<compile_context>
chip_gen: v7x
topology: tpu7x:2x2x1
jax: 0.10.0
libtpu: 0.0.40
codegen_flags: <defaults>
</compile_context>

<pallas_src>
import math
import numpy as np

import jax
import jax.numpy as jnp
from jax.experimental import pallas as pl
from jax.experimental.pallas import tpu as pltpu

EPS = 1e-5
LANES = 128

# Fixed problem geometry (fc1 = Linear(20*2*4, 128) pins the input to 8x20;
# batch fixed at 2 for this demo -- BN couples the batch anyway).
N = 2
H, W = 8, 20
C0, C1, C2, C3 = 3, 10, 10, 20        # conv1 in, conv2 in, conv3 in, conv3 out
HP, WP = H + 2, W + 2                  # zero-padded conv1/conv2 grid (10, 22)
ROWS = N * HP * WP                     # 440 flat rows (padded grid, all batches)
PAD = 24                               # extra zero rows for the +-23 row shifts
ROWSP = ROWS + 2 * PAD                 # 488 scratch frame height
H2, W2 = H // 2, W // 2                # after pool1: (4, 10)
H3, W3 = H2 - 2, W2 - 2                # after conv3 (valid): (2, 8)
W4 = W3 // 2                           # after pool2 (W only): 4
BSTRIDE = 64                           # rows per batch element on the conv3 grid
CG = N * BSTRIDE                       # conv3 grid rows (128)
BROWS = CG + PAD                       # conv3-grid buffer rows (152)
NVALID1 = float(N * H * W)             # BN element count for conv2 (320)
NVALID3 = float(N * H3 * W3)           # BN element count for conv3 (32)
C1BASE = PAD - WP - 1                  # first window row offset for pad=1 convs


# ----------------------------------------------------------------------------
# The fused kernel: all compute happens here, intermediates stay in VMEM.
# ----------------------------------------------------------------------------
def fused_kernel(x0_ref, convw_ref, fcw_ref, vecs_ref,
                 msk1col_ref, msk1row_ref, msk3row_ref,
                 out_ref, buf_ref, buf2_ref):
    f32, bf16 = jnp.float32, jnp.bfloat16

    def vrow(i):                                    # (1,128) per-channel vector
        return vecs_ref[pl.ds(i, 1), :]

    def conv3x3(window, cin, w_idx):
        # 3x3 conv as ONE matmul: pack (tap, cin) into the 128-lane K dim.
        # Lanes >= cin of every window row are zero, so the lane roll only
        # wraps zeros into the valid packed region.
        packed = None
        for kh in range(3):
            for kw in range(3):
                tap = kh * 3 + kw
                win = window(kh, kw)                         # (rows,128) f32
                if tap:
                    win = pltpu.roll(win, tap * cin, 1)      # lane roll (XLU)
                packed = win if packed is None else packed + win
        return jnp.dot(packed.astype(bf16), convw_ref[w_idx],
                       preferred_element_type=f32)

    def bn_relu(a, mskrow_ref, count, grow, brow):
        # masked column sums on the MXU: (8,rows)@(rows,128), row 0 is valid.
        s = jnp.dot(mskrow_ref[...], a, preferred_element_type=f32)[0:1]
        q = jnp.dot(mskrow_ref[...], a * a, preferred_element_type=f32)[0:1]
        mean = s * (1.0 / count)
        var = jnp.maximum(q * (1.0 / count) - mean * mean, 0.0)
        return jnp.maximum((a - mean) * jax.lax.rsqrt(var + EPS) * vrow(grow)
                           + vrow(brow), 0.0)

    # ---- conv1 (3x3, pad=1) + bias + ReLU --------------------------------
    a1 = conv3x3(lambda kh, kw: x0_ref[pl.ds(C1BASE + kh * WP + kw, ROWS), :],
                 C0, 0)
    # border rows must be exactly zero: they are conv2's zero padding.
    y1 = jnp.maximum(a1 + vrow(0), 0.0) * msk1col_ref[...]

    buf_ref[pl.ds(0, PAD), :] = jnp.zeros((PAD, LANES), f32)
    buf_ref[pl.ds(PAD + ROWS, PAD), :] = jnp.zeros((PAD, LANES), f32)
    buf_ref[pl.ds(PAD, ROWS), :] = y1

    # ---- conv2 (no bias: absorbed by BN) + BatchNorm2d + ReLU ------------
    a2 = conv3x3(lambda kh, kw: buf_ref[pl.ds(C1BASE + kh * WP + kw, ROWS), :],
                 C1, 1)
    y2 = bn_relu(a2, msk1row_ref, NVALID1, 1, 2)

    # ---- pool1 (2x2, stride 2): strided sublane reads + VPU maxima, laid
    #      out directly on the conv3 grid (BSTRIDE rows per batch element).
    buf_ref[pl.ds(PAD, ROWS), :] = y2
    buf2_ref[...] = jnp.zeros((BROWS, LANES), f32)
    for n in range(N):
        for hh in range(H2):
            src = PAD + n * HP * WP + (2 * hh + 1) * WP + 1
            r00 = buf_ref[pl.ds(src, W2, stride=2), :]
            r01 = buf_ref[pl.ds(src + 1, W2, stride=2), :]
            r10 = buf_ref[pl.ds(src + WP, W2, stride=2), :]
            r11 = buf_ref[pl.ds(src + WP + 1, W2, stride=2), :]
            buf2_ref[pl.ds(n * BSTRIDE + hh * W2, W2), :] = jnp.maximum(
                jnp.maximum(r00, r01), jnp.maximum(r10, r11))

    # ---- conv3 (3x3, valid, no bias) + BatchNorm2d + ReLU ----------------
    a3 = conv3x3(lambda kh, kw: buf2_ref[pl.ds(kh * W2 + kw, CG), :], C2, 2)
    y3 = bn_relu(a3, msk3row_ref, NVALID3, 3, 4)

    # ---- pool2 (W-only halving) + NCHW flatten + fc1 ----------------------
    # fc1's 160-feature contraction is split into 2 lane-packed groups of
    # 4 spatial slots (4*20=80 lanes each); the flatten permutation is folded
    # into fcw[0:2] host-side, so no activation transpose is materialised.
    buf2_ref[pl.ds(0, CG), :] = y3
    f1 = None
    for g in range(H3):                          # group index == h3
        packed = None
        for w4 in range(W4):
            start = g * W2 + 2 * w4
            ra = buf2_ref[pl.ds(start, N, stride=BSTRIDE), :]
            rb = buf2_ref[pl.ds(start + 1, N, stride=BSTRIDE), :]
            m = jnp.maximum(ra, rb)              # (N,128): pooled[n,:,g,w4]
            if w4:
                m = pltpu.roll(m, w4 * C3, 1)
            packed = m if packed is None else packed + m
        part = jnp.dot(packed.astype(bf16), fcw_ref[g],
                       preferred_element_type=f32)
        f1 = part if f1 is None else f1 + part

    def bn1d_relu(f, grow, brow):
        mean = jnp.mean(f, axis=0, keepdims=True)
        var = jnp.maximum(jnp.mean(f * f, axis=0, keepdims=True) - mean * mean,
                          0.0)
        return jnp.maximum((f - mean) * jax.lax.rsqrt(var + EPS) * vrow(grow)
                           + vrow(brow), 0.0)

    # ---- fc1 BN + ReLU, fc2 (+BN+ReLU), fc3 + bias + sigmoid --------------
    z1 = bn1d_relu(f1, 5, 6)
    f2 = jnp.dot(z1.astype(bf16), fcw_ref[H3], preferred_element_type=f32)
    z2 = bn1d_relu(f2, 7, 8)
    f3 = jnp.dot(z2.astype(bf16), fcw_ref[H3 + 1], preferred_element_type=f32)
    out_ref[...] = jax.nn.sigmoid(f3 + vrow(9))   # lane 0 is the real logit


# ----------------------------------------------------------------------------
# pallas_call wrapper (only NCHW->flat-grid input glue runs in XLA)
# ----------------------------------------------------------------------------
def _full_spec(shape):
    nd = len(shape)
    return pl.BlockSpec(shape, lambda i, _nd=nd: (0,) * _nd)


@jax.jit
def forward(x_nchw, kparams, consts):
    assert x_nchw.shape == (N, C0, H, W), "kernel is specialised to (2,3,8,20)"
    x = jnp.transpose(x_nchw, (0, 2, 3, 1)).astype(jnp.float32)
    x = jnp.pad(x, ((0, 0), (1, 1), (1, 1), (0, LANES - C0)))
    x0 = jnp.pad(x.reshape(ROWS, LANES), ((PAD, PAD), (0, 0)))

    args = (x0, kparams["conv_w"], kparams["fc_w"], kparams["vecs"],
            consts["msk1col"], consts["msk1row"], consts["msk3row"])
    out = pl.pallas_call(
        fused_kernel,
        grid=(1,),
        in_specs=[_full_spec(a.shape) for a in args],
        out_specs=_full_spec((N, LANES)),
        out_shape=jax.ShapeDtypeStruct((N, LANES), jnp.float32),
        scratch_shapes=[pltpu.VMEM((ROWSP, LANES), jnp.float32),
                        pltpu.VMEM((BROWS, LANES), jnp.float32)],
        compiler_params=pltpu.CompilerParams(dimension_semantics=("arbitrary",)),
    )(*args)
    return out[:, :1]                               # real sigmoid output, lane 0


# ----------------------------------------------------------------------------
# One-time weight relayout + constant geometry (hoisted out of forward()).
# ----------------------------------------------------------------------------
def _pad_lanes(v, width=LANES):
    v = jnp.asarray(v, jnp.float32)
    return jnp.pad(v, (0, width - v.shape[0]))


def _conv_packed_w(w):
    # (Cout, Cin, 3, 3) -> (128, 128), rows indexed tap*Cin + cin, cols = cout
    cout, cin = int(w.shape[0]), int(w.shape[1])
    t = jnp.transpose(w, (2, 3, 1, 0)).reshape(9 * cin, cout)
    return jnp.pad(t, ((0, LANES - 9 * cin), (0, LANES - cout)))


def prepare_kernel_params(params):
    conv_w = jnp.stack([_conv_packed_w(params["w1"]),
                        _conv_packed_w(params["w2"]),
                        _conv_packed_w(params["w3"])], 0).astype(jnp.bfloat16)

    # fc1: torch flatten feature index = c*8 + h3*4 + w4.  Split into H3=2
    # K-packed groups; group g rows indexed w4*C3 + c.
    wf1 = params["wf1"].reshape(LANES, C3, H3, W4)          # [j, c, h3, w4]
    fc1_blocks = []
    for g in range(H3):
        blk = jnp.transpose(wf1[:, :, g, :], (2, 1, 0)).reshape(W4 * C3, LANES)
        fc1_blocks.append(jnp.pad(blk, ((0, LANES - W4 * C3), (0, 0))))
    wf2t = params["wf2"].T
    wf3t = jnp.pad(params["wf3"].T, ((0, 0), (0, LANES - 1)))
    fc_w = jnp.stack(fc1_blocks + [wf2t, wf3t], 0).astype(jnp.bfloat16)

    # Per-channel vectors packed into one (16,128) f32 slab:
    # 0:b1  1:g2 2:bt2  3:g3 4:bt3  5:gf1 6:btf1  7:gf2 8:btf2  9:bf3
    # (b2, b3, bf1, bf2 are intentionally absent: BN cancels them exactly.)
    vecs = jnp.stack(
        [_pad_lanes(params["b1"]),
         _pad_lanes(params["g2"]), _pad_lanes(params["bt2"]),
         _pad_lanes(params["g3"]), _pad_lanes(params["bt3"]),
         params["gf1"], params["btf1"], params["gf2"], params["btf2"],
         _pad_lanes(params["bf3"])] +
        [jnp.zeros((LANES,), jnp.float32)] * 6, axis=0)
    return {"conv_w": conv_w, "fc_w": fc_w, "vecs": vecs}


def build_static_consts():
    # interior rows of the padded conv1/conv2 grid
    m1 = np.zeros((ROWS,), np.float32)
    for n in range(N):
        for hp in range(1, H + 1):
            base = n * HP * WP + hp * WP + 1
            m1[base:base + W] = 1.0
    msk1col = m1.reshape(ROWS, 1)                 # zeroes y1's padding ring
    msk1row = np.zeros((8, ROWS), np.float32)     # BN-stat mask, MXU sum LHS
    msk1row[0] = m1

    # valid rows of the conv3 output grid
    m3 = np.zeros((CG,), np.float32)
    for n in range(N):
        for h3 in range(H3):
            r0 = n * BSTRIDE + h3 * W2
            m3[r0:r0 + W3] = 1.0
    msk3row = np.zeros((8, CG), np.float32)
    msk3row[0] = m3

    arrs = {"msk1col": msk1col, "msk1row": msk1row, "msk3row": msk3row}
    return {k: jnp.asarray(v) for k, v in arrs.items()}


# ----------------------------------------------------------------------------
# Parameter init (deterministic, mirrors the PyTorch module's __init__)
# ----------------------------------------------------------------------------
def xavier_normal(key, shape, fan_in, fan_out):
    std = math.sqrt(2.0 / (fan_in + fan_out))
    return std * jax.random.normal(key, shape, dtype=jnp.float32)


def bias_init(key, shape, fan_in):
    bound = 1.0 / math.sqrt(fan_in)
    return jax.random.uniform(key, shape, jnp.float32, -bound, bound)


def init_params(key):
    ks = jax.random.split(key, 14)
    p = {}
    p["w1"] = xavier_normal(ks[0], (10, 3, 3, 3), 3 * 9, 10 * 9)
    p["b1"] = bias_init(ks[1], (10,), 3 * 9)
    p["w2"] = xavier_normal(ks[2], (10, 10, 3, 3), 10 * 9, 10 * 9)
    p["b2"] = bias_init(ks[3], (10,), 10 * 9)          # unused: cancelled by BN
    p["g2"], p["bt2"] = jnp.ones((10,), jnp.float32), jnp.zeros((10,), jnp.float32)
    p["w3"] = xavier_normal(ks[4], (20, 10, 3, 3), 10 * 9, 20 * 9)
    p["b3"] = bias_init(ks[5], (20,), 10 * 9)          # unused: cancelled by BN
    p["g3"], p["bt3"] = jnp.ones((20,), jnp.float32), jnp.zeros((20,), jnp.float32)
    p["wf1"] = xavier_normal(ks[6], (128, 160), 160, 128)
    p["bf1"] = bias_init(ks[7], (128,), 160)           # unused: cancelled by BN
    p["gf1"], p["btf1"] = jnp.ones((128,), jnp.float32), jnp.zeros((128,), jnp.float32)
    p["wf2"] = xavier_normal(ks[8], (128, 128), 128, 128)
    p["bf2"] = bias_init(ks[9], (128,), 128)           # unused: cancelled by BN
    p["gf2"], p["btf2"] = jnp.ones((128,), jnp.float32), jnp.zeros((128,), jnp.float32)
    p["wf3"] = xavier_normal(ks[10], (1, 128), 128, 1)
    p["bf3"] = bias_init(ks[11], (1,), 128)
    return p


if __name__ == "__main__":
    key = jax.random.PRNGKey(0)
    kx, kp = jax.random.split(key)
    # Spatial size is pinned by the module (fc1 expects 20*2*4 features):
    # (8, 20) -> pool1 (4, 10) -> conv3 (2, 8) -> pool2 (2, 4).
    x = jax.random.normal(kx, (N, C0, H, W), dtype=jnp.float32)   # NCHW like torch
    params = init_params(kp)
    kparams = prepare_kernel_params(params)   # one-time weight relayout (bf16)
    consts = build_static_consts()            # one-time geometry constants

    out = forward(x, kparams, consts)
    out = jax.block_until_ready(out)

    assert out.shape == (N, 1), out.shape
    assert bool(jnp.all(jnp.isfinite(out)))
    assert bool(jnp.all((out >= 0.0) & (out <= 1.0)))  # sigmoid range
    print("KERNEL_OK")
</pallas_src>

<mosaic_0001>
module attributes {stable_mosaic.version = 11 : i64} {
  func.func @fused_kernel(%arg0: i32, %arg1: memref<488x128xf32, #tpu.memory_space<vmem>>, %arg2: memref<3x128x128xbf16, #tpu.memory_space<vmem>>, %arg3: memref<4x128x128xbf16, #tpu.memory_space<vmem>>, %arg4: memref<16x128xf32, #tpu.memory_space<vmem>>, %arg5: memref<440x1xf32, #tpu.memory_space<vmem>>, %arg6: memref<8x440xf32, #tpu.memory_space<vmem>>, %arg7: memref<8x128xf32, #tpu.memory_space<vmem>>, %arg8: memref<2x128xf32, #tpu.memory_space<vmem>>, %arg9: memref<488x128xf32, #tpu.memory_space<vmem>>, %arg10: memref<152x128xf32, #tpu.memory_space<vmem>>) attributes {dimension_semantics = [#tpu.dimension_semantics<arbitrary>], iteration_bounds = array<i64: 1>, scalar_prefetch = 0 : i64, scratch_operands = 2 : i64, tpu.core_type = #tpu.core_type<tc>, window_params = [{pipeline_mode = #tpu.pipeline_mode<synchronous>, transform_indices = @transform_0, window_bounds = array<i64: 488, 128>}, {pipeline_mode = #tpu.pipeline_mode<synchronous>, transform_indices = @transform_1, window_bounds = array<i64: 3, 128, 128>}, {pipeline_mode = #tpu.pipeline_mode<synchronous>, transform_indices = @transform_2, window_bounds = array<i64: 4, 128, 128>}, {pipeline_mode = #tpu.pipeline_mode<synchronous>, transform_indices = @transform_3, window_bounds = array<i64: 16, 128>}, {pipeline_mode = #tpu.pipeline_mode<synchronous>, transform_indices = @transform_4, window_bounds = array<i64: 440, 1>}, {pipeline_mode = #tpu.pipeline_mode<synchronous>, transform_indices = @transform_5, window_bounds = array<i64: 8, 440>}, {pipeline_mode = #tpu.pipeline_mode<synchronous>, transform_indices = @transform_6, window_bounds = array<i64: 8, 128>}, {pipeline_mode = #tpu.pipeline_mode<synchronous>, transform_indices = @transform_7, window_bounds = array<i64: 2, 128>}]} {
    %c1 = arith.constant 1 : index
    %c0 = arith.constant 0 : index
    %0 = vector.load %arg1[%c1, %c0] : memref<488x128xf32, #tpu.memory_space<vmem>>, vector<440x128xf32>
    %c2 = arith.constant 2 : index
    %c0_0 = arith.constant 0 : index
    %1 = vector.load %arg1[%c2, %c0_0] : memref<488x128xf32, #tpu.memory_space<vmem>>, vector<440x128xf32>
    %c3_i32 = arith.constant 3 : i32
    %2 = tpu.dynamic_rotate %1 by %c3_i32 dim 1 : vector<440x128xf32>, i32 -> vector<440x128xf32>
    %3 = arith.addf %0, %2 : vector<440x128xf32>
    %c3 = arith.constant 3 : index
    %c0_1 = arith.constant 0 : index
    %4 = vector.load %arg1[%c3, %c0_1] : memref<488x128xf32, #tpu.memory_space<vmem>>, vector<440x128xf32>
    %c6_i32 = arith.constant 6 : i32
    %5 = tpu.dynamic_rotate %4 by %c6_i32 dim 1 : vector<440x128xf32>, i32 -> vector<440x128xf32>
    %6 = arith.addf %3, %5 : vector<440x128xf32>
    %c23 = arith.constant 23 : index
    %c0_2 = arith.constant 0 : index
    %7 = vector.load %arg1[%c23, %c0_2] : memref<488x128xf32, #tpu.memory_space<vmem>>, vector<440x128xf32>
    %c9_i32 = arith.constant 9 : i32
    %8 = tpu.dynamic_rotate %7 by %c9_i32 dim 1 : vector<440x128xf32>, i32 -> vector<440x128xf32>
    %9 = arith.addf %6, %8 : vector<440x128xf32>
    %c24 = arith.constant 24 : index
    %c0_3 = arith.constant 0 : index
    %10 = vector.load %arg1[%c24, %c0_3] : memref<488x128xf32, #tpu.memory_space<vmem>>, vector<440x128xf32>
    %c12_i32 = arith.constant 12 : i32
    %11 = tpu.dynamic_rotate %10 by %c12_i32 dim 1 : vector<440x128xf32>, i32 -> vector<440x128xf32>
    %12 = arith.addf %9, %11 : vector<440x128xf32>
    %c25 = arith.constant 25 : index
    %c0_4 = arith.constant 0 : index
    %13 = vector.load %arg1[%c25, %c0_4] : memref<488x128xf32, #tpu.memory_space<vmem>>, vector<440x128xf32>
    %c15_i32 = arith.constant 15 : i32
    %14 = tpu.dynamic_rotate %13 by %c15_i32 dim 1 : vector<440x128xf32>, i32 -> vector<440x128xf32>
    %15 = arith.addf %12, %14 : vector<440x128xf32>
    %c45 = arith.constant 45 : index
    %c0_5 = arith.constant 0 : index
    %16 = vector.load %arg1[%c45, %c0_5] : memref<488x128xf32, #tpu.memory_space<vmem>>, vector<440x128xf32>
    %c18_i32 = arith.constant 18 : i32
    %17 = tpu.dynamic_rotate %16 by %c18_i32 dim 1 : vector<440x128xf32>, i32 -> vector<440x128xf32>
    %18 = arith.addf %15, %17 : vector<440x128xf32>
    %c46 = arith.constant 46 : index
    %c0_6 = arith.constant 0 : index
    %19 = vector.load %arg1[%c46, %c0_6] : memref<488x128xf32, #tpu.memory_space<vmem>>, vector<440x128xf32>
    %c21_i32 = arith.constant 21 : i32
    %20 = tpu.dynamic_rotate %19 by %c21_i32 dim 1 : vector<440x128xf32>, i32 -> vector<440x128xf32>
    %21 = arith.addf %18, %20 : vector<440x128xf32>
    %c47 = arith.constant 47 : index
    %c0_7 = arith.constant 0 : index
    %22 = vector.load %arg1[%c47, %c0_7] : memref<488x128xf32, #tpu.memory_space<vmem>>, vector<440x128xf32>
    %c24_i32 = arith.constant 24 : i32
    %23 = tpu.dynamic_rotate %22 by %c24_i32 dim 1 : vector<440x128xf32>, i32 -> vector<440x128xf32>
    %24 = arith.addf %21, %23 : vector<440x128xf32>
    %25 = arith.truncf %24 : vector<440x128xf32> to vector<440x128xbf16>
    %c0_8 = arith.constant 0 : index
    %c0_9 = arith.constant 0 : index
    %c0_10 = arith.constant 0 : index
    %26 = vector.load %arg2[%c0_8, %c0_9, %c0_10] : memref<3x128x128xbf16, #tpu.memory_space<vmem>>, vector<1x128x128xbf16>
    %27 = vector.shape_cast %26 : vector<1x128x128xbf16> to vector<128x128xbf16>
    %cst = arith.constant dense<0.000000e+00> : vector<440x128xf32>
    %28 = tpu.matmul %25, %27, %cst {dimension_numbers = #tpu.dot_dimension_numbers<[1], [0], [0], [1], [0, 0, 1, 1], [], []>} : vector<440x128xbf16>, vector<128x128xbf16>, vector<440x128xf32> -> vector<440x128xf32>
    %c0_11 = arith.constant 0 : index
    %c0_12 = arith.constant 0 : index
    %29 = vector.load %arg4[%c0_11, %c0_12] : memref<16x128xf32, #tpu.memory_space<vmem>>, vector<1x128xf32>
    %30 = vector.broadcast %29 : vector<1x128xf32> to vector<440x128xf32>
    %31 = arith.addf %28, %30 : vector<440x128xf32>
    %cst_13 = arith.constant 0.000000e+00 : f32
    %32 = vector.broadcast %cst_13 : f32 to vector<440x128xf32>
    %33 = arith.maximumf %31, %32 : vector<440x128xf32>
    %c0_14 = arith.constant 0 : index
    %c0_15 = arith.constant 0 : index
    %34 = vector.load %arg5[%c0_14, %c0_15] : memref<440x1xf32, #tpu.memory_space<vmem>>, vector<440x1xf32>
    %35 = vector.broadcast %34 : vector<440x1xf32> to vector<440x128xf32>
    %36 = arith.mulf %33, %35 : vector<440x128xf32>
    %cst_16 = arith.constant 0.000000e+00 : f32
    %37 = vector.broadcast %cst_16 : f32 to vector<24x128xf32>
    %c0_17 = arith.constant 0 : index
    %c0_18 = arith.constant 0 : index
    %38 = vector.load %arg9[%c0_17, %c0_18] : memref<488x128xf32, #tpu.memory_space<vmem>>, vector<24x128xf32>
    tpu.vector_store %arg9[%c0_17, %c0_18], %37 {strides = array<i32>} : memref<488x128xf32, #tpu.memory_space<vmem>>, vector<24x128xf32>,
    %cst_19 = arith.constant 0.000000e+00 : f32
    %39 = vector.broadcast %cst_19 : f32 to vector<24x128xf32>
    %c464 = arith.constant 464 : index
    %c0_20 = arith.constant 0 : index
    %40 = vector.load %arg9[%c464, %c0_20] : memref<488x128xf32, #tpu.memory_space<vmem>>, vector<24x128xf32>
    tpu.vector_store %arg9[%c464, %c0_20], %39 {strides = array<i32>} : memref<488x128xf32, #tpu.memory_space<vmem>>, vector<24x128xf32>,
    %c24_21 = arith.constant 24 : index
    %c0_22 = arith.constant 0 : index
    %41 = vector.load %arg9[%c24_21, %c0_22] : memref<488x128xf32, #tpu.memory_space<vmem>>, vector<440x128xf32>
    tpu.vector_store %arg9[%c24_21, %c0_22], %36 {strides = array<i32>} : memref<488x128xf32, #tpu.memory_space<vmem>>, vector<440x128xf32>,
    %c1_23 = arith.constant 1 : index
    %c0_24 = arith.constant 0 : index
    %42 = vector.load %arg9[%c1_23, %c0_24] : memref<488x128xf32, #tpu.memory_space<vmem>>, vector<440x128xf32>
    %c2_25 = arith.constant 2 : index
    %c0_26 = arith.constant 0 : index
    %43 = vector.load %arg9[%c2_25, %c0_26] : memref<488x128xf32, #tpu.memory_space<vmem>>, vector<440x128xf32>
    %c10_i32 = arith.constant 10 : i32
    %44 = tpu.dynamic_rotate %43 by %c10_i32 dim 1 : vector<440x128xf32>, i32 -> vector<440x128xf32>
    %45 = arith.addf %42, %44 : vector<440x128xf32>
    %c3_27 = arith.constant 3 : index
    %c0_28 = arith.constant 0 : index
    %46 = vector.load %arg9[%c3_27, %c0_28] : memref<488x128xf32, #tpu.memory_space<vmem>>, vector<440x128xf32>
    %c20_i32 = arith.constant 20 : i32
    %47 = tpu.dynamic_rotate %46 by %c20_i32 dim 1 : vector<440x128xf32>, i32 -> vector<440x128xf32>
    %48 = arith.addf %45, %47 : vector<440x128xf32>
    %c23_29 = arith.constant 23 : index
    %c0_30 = arith.constant 0 : index
    %49 = vector.load %arg9[%c23_29, %c0_30] : memref<488x128xf32, #tpu.memory_space<vmem>>, vector<440x128xf32>
    %c30_i32 = arith.constant 30 : i32
    %50 = tpu.dynamic_rotate %49 by %c30_i32 dim 1 : vector<440x128xf32>, i32 -> vector<440x128xf32>
    %51 = arith.addf %48, %50 : vector<440x128xf32>
    %c24_31 = arith.constant 24 : index
    %c0_32 = arith.constant 0 : index
    %52 = vector.load %arg9[%c24_31, %c0_32] : memref<488x128xf32, #tpu.memory_space<vmem>>, vector<440x128xf32>
    %c40_i32 = arith.constant 40 : i32
    %53 = tpu.dynamic_rotate %52 by %c40_i32 dim 1 : vector<440x128xf32>, i32 -> vector<440x128xf32>
    %54 = arith.addf %51, %53 : vector<440x128xf32>
    %c25_33 = arith.constant 25 : index
    %c0_34 = arith.constant 0 : index
    %55 = vector.load %arg9[%c25_33, %c0_34] : memref<488x128xf32, #tpu.memory_space<vmem>>, vector<440x128xf32>
    %c50_i32 = arith.constant 50 : i32
    %56 = tpu.dynamic_rotate %55 by %c50_i32 dim 1 : vector<440x128xf32>, i32 -> vector<440x128xf32>
    %57 = arith.addf %54, %56 : vector<440x128xf32>
    %c45_35 = arith.constant 45 : index
    %c0_36 = arith.constant 0 : index
    %58 = vector.load %arg9[%c45_35, %c0_36] : memref<488x128xf32, #tpu.memory_space<vmem>>, vector<440x128xf32>
    %c60_i32 = arith.constant 60 : i32
    %59 = tpu.dynamic_rotate %58 by %c60_i32 dim 1 : vector<440x128xf32>, i32 -> vector<440x128xf32>
    %60 = arith.addf %57, %59 : vector<440x128xf32>
    %c46_37 = arith.constant 46 : index
    %c0_38 = arith.constant 0 : index
    %61 = vector.load %arg9[%c46_37, %c0_38] : memref<488x128xf32, #tpu.memory_space<vmem>>, vector<440x128xf32>
    %c70_i32 = arith.constant 70 : i32
    %62 = tpu.dynamic_rotate %61 by %c70_i32 dim 1 : vector<440x128xf32>, i32 -> vector<440x128xf32>
    %63 = arith.addf %60, %62 : vector<440x128xf32>
    %c47_39 = arith.constant 47 : index
    %c0_40 = arith.constant 0 : index
    %64 = vector.load %arg9[%c47_39, %c0_40] : memref<488x128xf32, #tpu.memory_space<vmem>>, vector<440x128xf32>
    %c80_i32 = arith.constant 80 : i32
    %65 = tpu.dynamic_rotate %64 by %c80_i32 dim 1 : vector<440x128xf32>, i32 -> vector<440x128xf32>
    %66 = arith.addf %63, %65 : vector<440x128xf32>
    %67 = arith.truncf %66 : vector<440x128xf32> to vector<440x128xbf16>
    %c1_41 = arith.constant 1 : index
    %c0_42 = arith.constant 0 : index
    %c0_43 = arith.constant 0 : index
    %68 = vector.load %arg2[%c1_41, %c0_42, %c0_43] : memref<3x128x128xbf16, #tpu.memory_space<vmem>>, vector<1x128x128xbf16>
    %69 = vector.shape_cast %68 : vector<1x128x128xbf16> to vector<128x128xbf16>
    %cst_44 = arith.constant dense<0.000000e+00> : vector<440x128xf32>
    %70 = tpu.matmul %67, %69, %cst_44 {dimension_numbers = #tpu.dot_dimension_numbers<[1], [0], [0], [1], [0, 0, 1, 1], [], []>} : vector<440x128xbf16>, vector<128x128xbf16>, vector<440x128xf32> -> vector<440x128xf32>
    %c0_45 = arith.constant 0 : index
    %c0_46 = arith.constant 0 : index
    %71 = vector.load %arg6[%c0_45, %c0_46] : memref<8x440xf32, #tpu.memory_space<vmem>>, vector<8x440xf32>
    %cst_47 = arith.constant dense<0.000000e+00> : vector<8x128xf32>
    %72 = tpu.matmul %71, %70, %cst_47 {dimension_numbers = #tpu.dot_dimension_numbers<[1], [0], [0], [1], [0, 0, 1, 1], [], []>} : vector<8x440xf32>, vector<440x128xf32>, vector<8x128xf32> -> vector<8x128xf32>
    %73 = vector.extract_strided_slice %72 {offsets = [0, 0], sizes = [1, 128], strides = [1, 1]} : vector<8x128xf32> to vector<1x128xf32>
    %c0_48 = arith.constant 0 : index
    %c0_49 = arith.constant 0 : index
    %74 = vector.load %arg6[%c0_48, %c0_49] : memref<8x440xf32, #tpu.memory_space<vmem>>, vector<8x440xf32>
    %75 = arith.mulf %70, %70 : vector<440x128xf32>
    %cst_50 = arith.constant dense<0.000000e+00> : vector<8x128xf32>
    %76 = tpu.matmul %74, %75, %cst_50 {dimension_numbers = #tpu.dot_dimension_numbers<[1], [0], [0], [1], [0, 0, 1, 1], [], []>} : vector<8x440xf32>, vector<440x128xf32>, vector<8x128xf32> -> vector<8x128xf32>
    %77 = vector.extract_strided_slice %76 {offsets = [0, 0], sizes = [1, 128], strides = [1, 1]} : vector<8x128xf32> to vector<1x128xf32>
    %cst_51 = arith.constant 3.125000e-03 : f32
    %78 = vector.broadcast %cst_51 : f32 to vector<1x128xf32>
    %79 = arith.mulf %73, %78 : vector<1x128xf32>
    %cst_52 = arith.constant 3.125000e-03 : f32
    %80 = vector.broadcast %cst_52 : f32 to vector<1x128xf32>
    %81 = arith.mulf %77, %80 : vector<1x128xf32>
    %82 = arith.mulf %79, %79 : vector<1x128xf32>
    %83 = arith.subf %81, %82 : vector<1x128xf32>
    %cst_53 = arith.constant 0.000000e+00 : f32
    %84 = vector.broadcast %cst_53 : f32 to vector<1x128xf32>
    %85 = arith.maximumf %83, %84 : vector<1x128xf32>
    %86 = vector.broadcast %79 : vector<1x128xf32> to vector<440x128xf32>
    %87 = arith.subf %70, %86 : vector<440x128xf32>
    %cst_54 = arith.constant 9.99999974E-6 : f32
    %88 = vector.broadcast %cst_54 : f32 to vector<1x128xf32>
    %89 = arith.addf %85, %88 : vector<1x128xf32>
    %90 = math.rsqrt %89 : vector<1x128xf32>
    %91 = vector.broadcast %90 : vector<1x128xf32> to vector<440x128xf32>
    %92 = arith.mulf %87, %91 : vector<440x128xf32>
    %c1_55 = arith.constant 1 : index
    %c0_56 = arith.constant 0 : index
    %93 = vector.load %arg4[%c1_55, %c0_56] : memref<16x128xf32, #tpu.memory_space<vmem>>, vector<1x128xf32>
    %94 = vector.broadcast %93 : vector<1x128xf32> to vector<440x128xf32>
    %95 = arith.mulf %92, %94 : vector<440x128xf32>
    %c2_57 = arith.constant 2 : index
    %c0_58 = arith.constant 0 : index
    %96 = vector.load %arg4[%c2_57, %c0_58] : memref<16x128xf32, #tpu.memory_space<vmem>>, vector<1x128xf32>
    %97 = vector.broadcast %96 : vector<1x128xf32> to vector<440x128xf32>
    %98 = arith.addf %95, %97 : vector<440x128xf32>
    %cst_59 = arith.constant 0.000000e+00 : f32
    %99 = vector.broadcast %cst_59 : f32 to vector<440x128xf32>
    %100 = arith.maximumf %98, %99 : vector<440x128xf32>
    %c24_60 = arith.constant 24 : index
    %c0_61 = arith.constant 0 : index
    %101 = vector.load %arg9[%c24_60, %c0_61] : memref<488x128xf32, #tpu.memory_space<vmem>>, vector<440x128xf32>
    tpu.vector_store %arg9[%c24_60, %c0_61], %100 {strides = array<i32>} : memref<488x128xf32, #tpu.memory_space<vmem>>, vector<440x128xf32>,
    %cst_62 = arith.constant 0.000000e+00 : f32
    %102 = vector.broadcast %cst_62 : f32 to vector<152x128xf32>
    %c0_63 = arith.constant 0 : index
    %c0_64 = arith.constant 0 : index
    %103 = vector.load %arg10[%c0_63, %c0_64] : memref<152x128xf32, #tpu.memory_space<vmem>>, vector<152x128xf32>
    tpu.vector_store %arg10[%c0_63, %c0_64], %102 {strides = array<i32>} : memref<152x128xf32, #tpu.memory_space<vmem>>, vector<152x128xf32>,
    %c47_65 = arith.constant 47 : index
    %c0_66 = arith.constant 0 : index
    %104 = tpu.strided_load %arg9[%c47_65, %c0_66] {strides = array<i32: 2, 1>} : memref<488x128xf32, #tpu.memory_space<vmem>>, vector<10x128xf32>
    %c48 = arith.constant 48 : index
    %c0_67 = arith.constant 0 : index
    %105 = tpu.strided_load %arg9[%c48, %c0_67] {strides = array<i32: 2, 1>} : memref<488x128xf32, #tpu.memory_space<vmem>>, vector<10x128xf32>
    %c69 = arith.constant 69 : index
    %c0_68 = arith.constant 0 : index
    %106 = tpu.strided_load %arg9[%c69, %c0_68] {strides = array<i32: 2, 1>} : memref<488x128xf32, #tpu.memory_space<vmem>>, vector<10x128xf32>
    %c70 = arith.constant 70 : index
    %c0_69 = arith.constant 0 : index
    %107 = tpu.strided_load %arg9[%c70, %c0_69] {strides = array<i32: 2, 1>} : memref<488x128xf32, #tpu.memory_space<vmem>>, vector<10x128xf32>
    %108 = arith.maximumf %104, %105 : vector<10x128xf32>
    %109 = arith.maximumf %106, %107 : vector<10x128xf32>
    %110 = arith.maximumf %108, %109 : vector<10x128xf32>
    %c0_70 = arith.constant 0 : index
    %c0_71 = arith.constant 0 : index
    %111 = vector.load %arg10[%c0_70, %c0_71] : memref<152x128xf32, #tpu.memory_space<vmem>>, vector<10x128xf32>
    tpu.vector_store %arg10[%c0_70, %c0_71], %110 {strides = array<i32>} : memref<152x128xf32, #tpu.memory_space<vmem>>, vector<10x128xf32>,
    %c91 = arith.constant 91 : index
    %c0_72 = arith.constant 0 : index
    %112 = tpu.strided_load %arg9[%c91, %c0_72] {strides = array<i32: 2, 1>} : memref<488x128xf32, #tpu.memory_space<vmem>>, vector<10x128xf32>
    %c92 = arith.constant 92 : index
    %c0_73 = arith.constant 0 : index
    %113 = tpu.strided_load %arg9[%c92, %c0_73] {strides = array<i32: 2, 1>} : memref<488x128xf32, #tpu.memory_space<vmem>>, vector<10x128xf32>
    %c113 = arith.constant 113 : index
    %c0_74 = arith.constant 0 : index
    %114 = tpu.strided_load %arg9[%c113, %c0_74] {strides = array<i32: 2, 1>} : memref<488x128xf32, #tpu.memory_space<vmem>>, vector<10x128xf32>
    %c114 = arith.constant 114 : index
    %c0_75 = arith.constant 0 : index
    %115 = tpu.strided_load %arg9[%c114, %c0_75] {strides = array<i32: 2, 1>} : memref<488x128xf32, #tpu.memory_space<vmem>>, vector<10x128xf32>
    %116 = arith.maximumf %112, %113 : vector<10x128xf32>
    %117 = arith.maximumf %114, %115 : vector<10x128xf32>
    %118 = arith.maximumf %116, %117 : vector<10x128xf32>
    %c10 = arith.constant 10 : index
    %c0_76 = arith.constant 0 : index
    %119 = vector.load %arg10[%c10, %c0_76] : memref<152x128xf32, #tpu.memory_space<vmem>>, vector<10x128xf32>
    tpu.vector_store %arg10[%c10, %c0_76], %118 {strides = array<i32>} : memref<152x128xf32, #tpu.memory_space<vmem>>, vector<10x128xf32>,
    %c135 = arith.constant 135 : index
    %c0_77 = arith.constant 0 : index
    %120 = tpu.strided_load %arg9[%c135, %c0_77] {strides = array<i32: 2, 1>} : memref<488x128xf32, #tpu.memory_space<vmem>>, vector<10x128xf32>
    %c136 = arith.constant 136 : index
    %c0_78 = arith.constant 0 : index
    %121 = tpu.strided_load %arg9[%c136, %c0_78] {strides = array<i32: 2, 1>} : memref<488x128xf32, #tpu.memory_space<vmem>>, vector<10x128xf32>
    %c157 = arith.constant 157 : index
    %c0_79 = arith.constant 0 : index
    %122 = tpu.strided_load %arg9[%c157, %c0_79] {strides = array<i32: 2, 1>} : memref<488x128xf32, #tpu.memory_space<vmem>>, vector<10x128xf32>
    %c158 = arith.constant 158 : index
    %c0_80 = arith.constant 0 : index
    %123 = tpu.strided_load %arg9[%c158, %c0_80] {strides = array<i32: 2, 1>} : memref<488x128xf32, #tpu.memory_space<vmem>>, vector<10x128xf32>
    %124 = arith.maximumf %120, %121 : vector<10x128xf32>
    %125 = arith.maximumf %122, %123 : vector<10x128xf32>
    %126 = arith.maximumf %124, %125 : vector<10x128xf32>
    %c20 = arith.constant 20 : index
    %c0_81 = arith.constant 0 : index
    %127 = vector.load %arg10[%c20, %c0_81] : memref<152x128xf32, #tpu.memory_space<vmem>>, vector<10x128xf32>
    tpu.vector_store %arg10[%c20, %c0_81], %126 {strides = array<i32>} : memref<152x128xf32, #tpu.memory_space<vmem>>, vector<10x128xf32>,
    %c179 = arith.constant 179 : index
    %c0_82 = arith.constant 0 : index
    %128 = tpu.strided_load %arg9[%c179, %c0_82] {strides = array<i32: 2, 1>} : memref<488x128xf32, #tpu.memory_space<vmem>>, vector<10x128xf32>
    %c180 = arith.constant 180 : index
    %c0_83 = arith.constant 0 : index
    %129 = tpu.strided_load %arg9[%c180, %c0_83] {strides = array<i32: 2, 1>} : memref<488x128xf32, #tpu.memory_space<vmem>>, vector<10x128xf32>
    %c201 = arith.constant 201 : index
    %c0_84 = arith.constant 0 : index
    %130 = tpu.strided_load %arg9[%c201, %c0_84] {strides = array<i32: 2, 1>} : memref<488x128xf32, #tpu.memory_space<vmem>>, vector<10x128xf32>
    %c202 = arith.constant 202 : index
    %c0_85 = arith.constant 0 : index
    %131 = tpu.strided_load %arg9[%c202, %c0_85] {strides = array<i32: 2, 1>} : memref<488x128xf32, #tpu.memory_space<vmem>>, vector<10x128xf32>
    %132 = arith.maximumf %128, %129 : vector<10x128xf32>
    %133 = arith.maximumf %130, %131 : vector<10x128xf32>
    %134 = arith.maximumf %132, %133 : vector<10x128xf32>
    %c30 = arith.constant 30 : index
    %c0_86 = arith.constant 0 : index
    %135 = vector.load %arg10[%c30, %c0_86] : memref<152x128xf32, #tpu.memory_space<vmem>>, vector<10x128xf32>
    tpu.vector_store %arg10[%c30, %c0_86], %134 {strides = array<i32>} : memref<152x128xf32, #tpu.memory_space<vmem>>, vector<10x128xf32>,
    %c267 = arith.constant 267 : index
    %c0_87 = arith.constant 0 : index
    %136 = tpu.strided_load %arg9[%c267, %c0_87] {strides = array<i32: 2, 1>} : memref<488x128xf32, #tpu.memory_space<vmem>>, vector<10x128xf32>
    %c268 = arith.constant 268 : index
    %c0_88 = arith.constant 0 : index
    %137 = tpu.strided_load %arg9[%c268, %c0_88] {strides = array<i32: 2, 1>} : memref<488x128xf32, #tpu.memory_space<vmem>>, vector<10x128xf32>
    %c289 = arith.constant 289 : index
    %c0_89 = arith.constant 0 : index
    %138 = tpu.strided_load %arg9[%c289, %c0_89] {strides = array<i32: 2, 1>} : memref<488x128xf32, #tpu.memory_space<vmem>>, vector<10x128xf32>
    %c290 = arith.constant 290 : index
    %c0_90 = arith.constant 0 : index
    %139 = tpu.strided_load %arg9[%c290, %c0_90] {strides = array<i32: 2, 1>} : memref<488x128xf32, #tpu.memory_space<vmem>>, vector<10x128xf32>
    %140 = arith.maximumf %136, %137 : vector<10x128xf32>
    %141 = arith.maximumf %138, %139 : vector<10x128xf32>
    %142 = arith.maximumf %140, %141 : vector<10x128xf32>
    %c64 = arith.constant 64 : index
    %c0_91 = arith.constant 0 : index
    %143 = vector.load %arg10[%c64, %c0_91] : memref<152x128xf32, #tpu.memory_space<vmem>>, vector<10x128xf32>
    tpu.vector_store %arg10[%c64, %c0_91], %142 {strides = array<i32>} : memref<152x128xf32, #tpu.memory_space<vmem>>, vector<10x128xf32>,
    %c311 = arith.constant 311 : index
    %c0_92 = arith.constant 0 : index
    %144 = tpu.strided_load %arg9[%c311, %c0_92] {strides = array<i32: 2, 1>} : memref<488x128xf32, #tpu.memory_space<vmem>>, vector<10x128xf32>
    %c312 = arith.constant 312 : index
    %c0_93 = arith.constant 0 : index
    %145 = tpu.strided_load %arg9[%c312, %c0_93] {strides = array<i32: 2, 1>} : memref<488x128xf32, #tpu.memory_space<vmem>>, vector<10x128xf32>
    %c333 = arith.constant 333 : index
    %c0_94 = arith.constant 0 : index
    %146 = tpu.strided_load %arg9[%c333, %c0_94] {strides = array<i32: 2, 1>} : memref<488x128xf32, #tpu.memory_space<vmem>>, vector<10x128xf32>
    %c334 = arith.constant 334 : index
    %c0_95 = arith.constant 0 : index
    %147 = tpu.strided_load %arg9[%c334, %c0_95] {strides = array<i32: 2, 1>} : memref<488x128xf32, #tpu.memory_space<vmem>>, vector<10x128xf32>
    %148 = arith.maximumf %144, %145 : vector<10x128xf32>
    %149 = arith.maximumf %146, %147 : vector<10x128xf32>
    %150 = arith.maximumf %148, %149 : vector<10x128xf32>
    %c74 = arith.constant 74 : index
    %c0_96 = arith.constant 0 : index
    %151 = vector.load %arg10[%c74, %c0_96] : memref<152x128xf32, #tpu.memory_space<vmem>>, vector<10x128xf32>
    tpu.vector_store %arg10[%c74, %c0_96], %150 {strides = array<i32>} : memref<152x128xf32, #tpu.memory_space<vmem>>, vector<10x128xf32>,
    %c355 = arith.constant 355 : index
    %c0_97 = arith.constant 0 : index
    %152 = tpu.strided_load %arg9[%c355, %c0_97] {strides = array<i32: 2, 1>} : memref<488x128xf32, #tpu.memory_space<vmem>>, vector<10x128xf32>
    %c356 = arith.constant 356 : index
    %c0_98 = arith.constant 0 : index
    %153 = tpu.strided_load %arg9[%c356, %c0_98] {strides = array<i32: 2, 1>} : memref<488x128xf32, #tpu.memory_space<vmem>>, vector<10x128xf32>
    %c377 = arith.constant 377 : index
    %c0_99 = arith.constant 0 : index
    %154 = tpu.strided_load %arg9[%c377, %c0_99] {strides = array<i32: 2, 1>} : memref<488x128xf32, #tpu.memory_space<vmem>>, vector<10x128xf32>
    %c378 = arith.constant 378 : index
    %c0_100 = arith.constant 0 : index
    %155 = tpu.strided_load %arg9[%c378, %c0_100] {strides = array<i32: 2, 1>} : memref<488x128xf32, #tpu.memory_space<vmem>>, vector<10x128xf32>
    %156 = arith.maximumf %152, %153 : vector<10x128xf32>
    %157 = arith.maximumf %154, %155 : vector<10x128xf32>
    %158 = arith.maximumf %156, %157 : vector<10x128xf32>
    %c84 = arith.constant 84 : index
    %c0_101 = arith.constant 0 : index
    %159 = vector.load %arg10[%c84, %c0_101] : memref<152x128xf32, #tpu.memory_space<vmem>>, vector<10x128xf32>
    tpu.vector_store %arg10[%c84, %c0_101], %158 {strides = array<i32>} : memref<152x128xf32, #tpu.memory_space<vmem>>, vector<10x128xf32>,
    %c399 = arith.constant 399 : index
    %c0_102 = arith.constant 0 : index
    %160 = tpu.strided_load %arg9[%c399, %c0_102] {strides = array<i32: 2, 1>} : memref<488x128xf32, #tpu.memory_space<vmem>>, vector<10x128xf32>
    %c400 = arith.constant 400 : index
    %c0_103 = arith.constant 0 : index
    %161 = tpu.strided_load %arg9[%c400, %c0_103] {strides = array<i32: 2, 1>} : memref<488x128xf32, #tpu.memory_space<vmem>>, vector<10x128xf32>
    %c421 = arith.constant 421 : index
    %c0_104 = arith.constant 0 : index
    %162 = tpu.strided_load %arg9[%c421, %c0_104] {strides = array<i32: 2, 1>} : memref<488x128xf32, #tpu.memory_space<vmem>>, vector<10x128xf32>
    %c422 = arith.constant 422 : index
    %c0_105 = arith.constant 0 : index
    %163 = tpu.strided_load %arg9[%c422, %c0_105] {strides = array<i32: 2, 1>} : memref<488x128xf32, #tpu.memory_space<vmem>>, vector<10x128xf32>
    %164 = arith.maximumf %160, %161 : vector<10x128xf32>
    %165 = arith.maximumf %162, %163 : vector<10x128xf32>
    %166 = arith.maximumf %164, %165 : vector<10x128xf32>
    %c94 = arith.constant 94 : index
    %c0_106 = arith.constant 0 : index
    %167 = vector.load %arg10[%c94, %c0_106] : memref<152x128xf32, #tpu.memory_space<vmem>>, vector<10x128xf32>
    tpu.vector_store %arg10[%c94, %c0_106], %166 {strides = array<i32>} : memref<152x128xf32, #tpu.memory_space<vmem>>, vector<10x128xf32>,
    %c0_107 = arith.constant 0 : index
    %c0_108 = arith.constant 0 : index
    %168 = vector.load %arg10[%c0_107, %c0_108] : memref<152x128xf32, #tpu.memory_space<vmem>>, vector<128x128xf32>
    %c1_109 = arith.constant 1 : index
    %c0_110 = arith.constant 0 : index
    %169 = vector.load %arg10[%c1_109, %c0_110] : memref<152x128xf32, #tpu.memory_space<vmem>>, vector<128x128xf32>
    %c10_i32_111 = arith.constant 10 : i32
    %170 = tpu.dynamic_rotate %169 by %c10_i32_111 dim 1 : vector<128x128xf32>, i32 -> vector<128x128xf32>
    %171 = arith.addf %168, %170 : vector<128x128xf32>
    %c2_112 = arith.constant 2 : index
    %c0_113 = arith.constant 0 : index
    %172 = vector.load %arg10[%c2_112, %c0_113] : memref<152x128xf32, #tpu.memory_space<vmem>>, vector<128x128xf32>
    %c20_i32_114 = arith.constant 20 : i32
    %173 = tpu.dynamic_rotate %172 by %c20_i32_114 dim 1 : vector<128x128xf32>, i32 -> vector<128x128xf32>
    %174 = arith.addf %171, %173 : vector<128x128xf32>
    %c10_115 = arith.constant 10 : index
    %c0_116 = arith.constant 0 : index
    %175 = vector.load %arg10[%c10_115, %c0_116] : memref<152x128xf32, #tpu.memory_space<vmem>>, vector<128x128xf32>
    %c30_i32_117 = arith.constant 30 : i32
    %176 = tpu.dynamic_rotate %175 by %c30_i32_117 dim 1 : vector<128x128xf32>, i32 -> vector<128x128xf32>
    %177 = arith.addf %174, %176 : vector<128x128xf32>
    %c11 = arith.constant 11 : index
    %c0_118 = arith.constant 0 : index
    %178 = vector.load %arg10[%c11, %c0_118] : memref<152x128xf32, #tpu.memory_space<vmem>>, vector<128x128xf32>
    %c40_i32_119 = arith.constant 40 : i32
    %179 = tpu.dynamic_rotate %178 by %c40_i32_119 dim 1 : vector<128x128xf32>, i32 -> vector<128x128xf32>
    %180 = arith.addf %177, %179 : vector<128x128xf32>
    %c12 = arith.constant 12 : index
    %c0_120 = arith.constant 0 : index
    %181 = vector.load %arg10[%c12, %c0_120] : memref<152x128xf32, #tpu.memory_space<vmem>>, vector<128x128xf32>
    %c50_i32_121 = arith.constant 50 : i32
    %182 = tpu.dynamic_rotate %181 by %c50_i32_121 dim 1 : vector<128x128xf32>, i32 -> vector<128x128xf32>
    %183 = arith.addf %180, %182 : vector<128x128xf32>
    %c20_122 = arith.constant 20 : index
    %c0_123 = arith.constant 0 : index
    %184 = vector.load %arg10[%c20_122, %c0_123] : memref<152x128xf32, #tpu.memory_space<vmem>>, vector<128x128xf32>
    %c60_i32_124 = arith.constant 60 : i32
    %185 = tpu.dynamic_rotate %184 by %c60_i32_124 dim 1 : vector<128x128xf32>, i32 -> vector<128x128xf32>
    %186 = arith.addf %183, %185 : vector<128x128xf32>
    %c21 = arith.constant 21 : index
    %c0_125 = arith.constant 0 : index
    %187 = vector.load %arg10[%c21, %c0_125] : memref<152x128xf32, #tpu.memory_space<vmem>>, vector<128x128xf32>
    %c70_i32_126 = arith.constant 70 : i32
    %188 = tpu.dynamic_rotate %187 by %c70_i32_126 dim 1 : vector<128x128xf32>, i32 -> vector<128x128xf32>
    %189 = arith.addf %186, %188 : vector<128x128xf32>
    %c22 = arith.constant 22 : index
    %c0_127 = arith.constant 0 : index
    %190 = vector.load %arg10[%c22, %c0_127] : memref<152x128xf32, #tpu.memory_space<vmem>>, vector<128x128xf32>
    %c80_i32_128 = arith.constant 80 : i32
    %191 = tpu.dynamic_rotate %190 by %c80_i32_128 dim 1 : vector<128x128xf32>, i32 -> vector<128x128xf32>
    %192 = arith.addf %189, %191 : vector<128x128xf32>
    %193 = arith.truncf %192 : vector<128x128xf32> to vector<128x128xbf16>
    %c2_129 = arith.constant 2 : index
    %c0_130 = arith.constant 0 : index
    %c0_131 = arith.constant 0 : index
    %194 = vector.load %arg2[%c2_129, %c0_130, %c0_131] : memref<3x128x128xbf16, #tpu.memory_space<vmem>>, vector<1x128x128xbf16>
    %195 = vector.shape_cast %194 : vector<1x128x128xbf16> to vector<128x128xbf16>
    %cst_132 = arith.constant dense<0.000000e+00> : vector<128x128xf32>
    %196 = tpu.matmul %193, %195, %cst_132 {dimension_numbers = #tpu.dot_dimension_numbers<[1], [0], [0], [1], [0, 0, 1, 1], [], []>} : vector<128x128xbf16>, vector<128x128xbf16>, vector<128x128xf32> -> vector<128x128xf32>
    %c0_133 = arith.constant 0 : index
    %c0_134 = arith.constant 0 : index
    %197 = vector.load %arg7[%c0_133, %c0_134] : memref<8x128xf32, #tpu.memory_space<vmem>>, vector<8x128xf32>
    %cst_135 = arith.constant dense<0.000000e+00> : vector<8x128xf32>
    %198 = tpu.matmul %197, %196, %cst_135 {dimension_numbers = #tpu.dot_dimension_numbers<[1], [0], [0], [1], [0, 0, 1, 1], [], []>} : vector<8x128xf32>, vector<128x128xf32>, vector<8x128xf32> -> vector<8x128xf32>
    %199 = vector.extract_strided_slice %198 {offsets = [0, 0], sizes = [1, 128], strides = [1, 1]} : vector<8x128xf32> to vector<1x128xf32>
    %c0_136 = arith.constant 0 : index
    %c0_137 = arith.constant 0 : index
    %200 = vector.load %arg7[%c0_136, %c0_137] : memref<8x128xf32, #tpu.memory_space<vmem>>, vector<8x128xf32>
    %201 = arith.mulf %196, %196 : vector<128x128xf32>
    %cst_138 = arith.constant dense<0.000000e+00> : vector<8x128xf32>
    %202 = tpu.matmul %200, %201, %cst_138 {dimension_numbers = #tpu.dot_dimension_numbers<[1], [0], [0], [1], [0, 0, 1, 1], [], []>} : vector<8x128xf32>, vector<128x128xf32>, vector<8x128xf32> -> vector<8x128xf32>
    %203 = vector.extract_strided_slice %202 {offsets = [0, 0], sizes = [1, 128], strides = [1, 1]} : vector<8x128xf32> to vector<1x128xf32>
    %cst_139 = arith.constant 3.125000e-02 : f32
    %204 = vector.broadcast %cst_139 : f32 to vector<1x128xf32>
    %205 = arith.mulf %199, %204 : vector<1x128xf32>
    %cst_140 = arith.constant 3.125000e-02 : f32
    %206 = vector.broadcast %cst_140 : f32 to vector<1x128xf32>
    %207 = arith.mulf %203, %206 : vector<1x128xf32>
    %208 = arith.mulf %205, %205 : vector<1x128xf32>
    %209 = arith.subf %207, %208 : vector<1x128xf32>
    %cst_141 = arith.constant 0.000000e+00 : f32
    %210 = vector.broadcast %cst_141 : f32 to vector<1x128xf32>
    %211 = arith.maximumf %209, %210 : vector<1x128xf32>
    %212 = vector.broadcast %205 : vector<1x128xf32> to vector<128x128xf32>
    %213 = arith.subf %196, %212 : vector<128x128xf32>
    %cst_142 = arith.constant 9.99999974E-6 : f32
    %214 = vector.broadcast %cst_142 : f32 to vector<1x128xf32>
    %215 = arith.addf %211, %214 : vector<1x128xf32>
    %216 = math.rsqrt %215 : vector<1x128xf32>
    %217 = vector.broadcast %216 : vector<1x128xf32> to vector<128x128xf32>
    %218 = arith.mulf %213, %217 : vector<128x128xf32>
    %c3_143 = arith.constant 3 : index
    %c0_144 = arith.constant 0 : index
    %219 = vector.load %arg4[%c3_143, %c0_144] : memref<16x128xf32, #tpu.memory_space<vmem>>, vector<1x128xf32>
    %220 = vector.broadcast %219 : vector<1x128xf32> to vector<128x128xf32>
    %221 = arith.mulf %218, %220 : vector<128x128xf32>
    %c4 = arith.constant 4 : index
    %c0_145 = arith.constant 0 : index
    %222 = vector.load %arg4[%c4, %c0_145] : memref<16x128xf32, #tpu.memory_space<vmem>>, vector<1x128xf32>
    %223 = vector.broadcast %222 : vector<1x128xf32> to vector<128x128xf32>
    %224 = arith.addf %221, %223 : vector<128x128xf32>
    %cst_146 = arith.constant 0.000000e+00 : f32
    %225 = vector.broadcast %cst_146 : f32 to vector<128x128xf32>
    %226 = arith.maximumf %224, %225 : vector<128x128xf32>
    %c0_147 = arith.constant 0 : index
    %c0_148 = arith.constant 0 : index
    %227 = vector.load %arg10[%c0_147, %c0_148] : memref<152x128xf32, #tpu.memory_space<vmem>>, vector<128x128xf32>
    tpu.vector_store %arg10[%c0_147, %c0_148], %226 {strides = array<i32>} : memref<152x128xf32, #tpu.memory_space<vmem>>, vector<128x128xf32>,
    %c0_149 = arith.constant 0 : index
    %c0_150 = arith.constant 0 : index
    %228 = tpu.strided_load %arg10[%c0_149, %c0_150] {strides = array<i32: 64, 1>} : memref<152x128xf32, #tpu.memory_space<vmem>>, vector<2x128xf32>
    %c1_151 = arith.constant 1 : index
    %c0_152 = arith.constant 0 : index
    %229 = tpu.strided_load %arg10[%c1_151, %c0_152] {strides = array<i32: 64, 1>} : memref<152x128xf32, #tpu.memory_space<vmem>>, vector<2x128xf32>
    %230 = arith.maximumf %228, %229 : vector<2x128xf32>
    %c2_153 = arith.constant 2 : index
    %c0_154 = arith.constant 0 : index
    %231 = tpu.strided_load %arg10[%c2_153, %c0_154] {strides = array<i32: 64, 1>} : memref<152x128xf32, #tpu.memory_space<vmem>>, vector<2x128xf32>
    %c3_155 = arith.constant 3 : index
    %c0_156 = arith.constant 0 : index
    %232 = tpu.strided_load %arg10[%c3_155, %c0_156] {strides = array<i32: 64, 1>} : memref<152x128xf32, #tpu.memory_space<vmem>>, vector<2x128xf32>
    %233 = arith.maximumf %231, %232 : vector<2x128xf32>
    %c20_i32_157 = arith.constant 20 : i32
    %234 = tpu.dynamic_rotate %233 by %c20_i32_157 dim 1 : vector<2x128xf32>, i32 -> vector<2x128xf32>
    %235 = arith.addf %230, %234 : vector<2x128xf32>
    %c4_158 = arith.constant 4 : index
    %c0_159 = arith.constant 0 : index
    %236 = tpu.strided_load %arg10[%c4_158, %c0_159] {strides = array<i32: 64, 1>} : memref<152x128xf32, #tpu.memory_space<vmem>>, vector<2x128xf32>
    %c5 = arith.constant 5 : index
    %c0_160 = arith.constant 0 : index
    %237 = tpu.strided_load %arg10[%c5, %c0_160] {strides = array<i32: 64, 1>} : memref<152x128xf32, #tpu.memory_space<vmem>>, vector<2x128xf32>
    %238 = arith.maximumf %236, %237 : vector<2x128xf32>
    %c40_i32_161 = arith.constant 40 : i32
    %239 = tpu.dynamic_rotate %238 by %c40_i32_161 dim 1 : vector<2x128xf32>, i32 -> vector<2x128xf32>
    %240 = arith.addf %235, %239 : vector<2x128xf32>
    %c6 = arith.constant 6 : index
    %c0_162 = arith.constant 0 : index
    %241 = tpu.strided_load %arg10[%c6, %c0_162] {strides = array<i32: 64, 1>} : memref<152x128xf32, #tpu.memory_space<vmem>>, vector<2x128xf32>
    %c7 = arith.constant 7 : index
    %c0_163 = arith.constant 0 : index
    %242 = tpu.strided_load %arg10[%c7, %c0_163] {strides = array<i32: 64, 1>} : memref<152x128xf32, #tpu.memory_space<vmem>>, vector<2x128xf32>
    %243 = arith.maximumf %241, %242 : vector<2x128xf32>
    %c60_i32_164 = arith.constant 60 : i32
    %244 = tpu.dynamic_rotate %243 by %c60_i32_164 dim 1 : vector<2x128xf32>, i32 -> vector<2x128xf32>
    %245 = arith.addf %240, %244 : vector<2x128xf32>
    %246 = arith.truncf %245 : vector<2x128xf32> to vector<2x128xbf16>
    %c0_165 = arith.constant 0 : index
    %c0_166 = arith.constant 0 : index
    %c0_167 = arith.constant 0 : index
    %247 = vector.load %arg3[%c0_165, %c0_166, %c0_167] : memref<4x128x128xbf16, #tpu.memory_space<vmem>>, vector<1x128x128xbf16>
    %248 = vector.shape_cast %247 : vector<1x128x128xbf16> to vector<128x128xbf16>
    %cst_168 = arith.constant dense<0.000000e+00> : vector<2x128xf32>
    %249 = tpu.matmul %246, %248, %cst_168 {dimension_numbers = #tpu.dot_dimension_numbers<[1], [0], [0], [1], [0, 0, 1, 1], [], []>} : vector<2x128xbf16>, vector<128x128xbf16>, vector<2x128xf32> -> vector<2x128xf32>
    %c10_169 = arith.constant 10 : index
    %c0_170 = arith.constant 0 : index
    %250 = tpu.strided_load %arg10[%c10_169, %c0_170] {strides = array<i32: 64, 1>} : memref<152x128xf32, #tpu.memory_space<vmem>>, vector<2x128xf32>
    %c11_171 = arith.constant 11 : index
    %c0_172 = arith.constant 0 : index
    %251 = tpu.strided_load %arg10[%c11_171, %c0_172] {strides = array<i32: 64, 1>} : memref<152x128xf32, #tpu.memory_space<vmem>>, vector<2x128xf32>
    %252 = arith.maximumf %250, %251 : vector<2x128xf32>
    %c12_173 = arith.constant 12 : index
    %c0_174 = arith.constant 0 : index
    %253 = tpu.strided_load %arg10[%c12_173, %c0_174] {strides = array<i32: 64, 1>} : memref<152x128xf32, #tpu.memory_space<vmem>>, vector<2x128xf32>
    %c13 = arith.constant 13 : index
    %c0_175 = arith.constant 0 : index
    %254 = tpu.strided_load %arg10[%c13, %c0_175] {strides = array<i32: 64, 1>} : memref<152x128xf32, #tpu.memory_space<vmem>>, vector<2x128xf32>
    %255 = arith.maximumf %253, %254 : vector<2x128xf32>
    %c20_i32_176 = arith.constant 20 : i32
    %256 = tpu.dynamic_rotate %255 by %c20_i32_176 dim 1 : vector<2x128xf32>, i32 -> vector<2x128xf32>
    %257 = arith.addf %252, %256 : vector<2x128xf32>
    %c14 = arith.constant 14 : index
    %c0_177 = arith.constant 0 : index
    %258 = tpu.strided_load %arg10[%c14, %c0_177] {strides = array<i32: 64, 1>} : memref<152x128xf32, #tpu.memory_space<vmem>>, vector<2x128xf32>
    %c15 = arith.constant 15 : index
    %c0_178 = arith.constant 0 : index
    %259 = tpu.strided_load %arg10[%c15, %c0_178] {strides = array<i32: 64, 1>} : memref<152x128xf32, #tpu.memory_space<vmem>>, vector<2x128xf32>
    %260 = arith.maximumf %258, %259 : vector<2x128xf32>
    %c40_i32_179 = arith.constant 40 : i32
    %261 = tpu.dynamic_rotate %260 by %c40_i32_179 dim 1 : vector<2x128xf32>, i32 -> vector<2x128xf32>
    %262 = arith.addf %257, %261 : vector<2x128xf32>
    %c16 = arith.constant 16 : index
    %c0_180 = arith.constant 0 : index
    %263 = tpu.strided_load %arg10[%c16, %c0_180] {strides = array<i32: 64, 1>} : memref<152x128xf32, #tpu.memory_space<vmem>>, vector<2x128xf32>
    %c17 = arith.constant 17 : index
    %c0_181 = arith.constant 0 : index
    %264 = tpu.strided_load %arg10[%c17, %c0_181] {strides = array<i32: 64, 1>} : memref<152x128xf32, #tpu.memory_space<vmem>>, vector<2x128xf32>
    %265 = arith.maximumf %263, %264 : vector<2x128xf32>
    %c60_i32_182 = arith.constant 60 : i32
    %266 = tpu.dynamic_rotate %265 by %c60_i32_182 dim 1 : vector<2x128xf32>, i32 -> vector<2x128xf32>
    %267 = arith.addf %262, %266 : vector<2x128xf32>
    %268 = arith.truncf %267 : vector<2x128xf32> to vector<2x128xbf16>
    %c1_183 = arith.constant 1 : index
    %c0_184 = arith.constant 0 : index
    %c0_185 = arith.constant 0 : index
    %269 = vector.load %arg3[%c1_183, %c0_184, %c0_185] : memref<4x128x128xbf16, #tpu.memory_space<vmem>>, vector<1x128x128xbf16>
    %270 = vector.shape_cast %269 : vector<1x128x128xbf16> to vector<128x128xbf16>
    %cst_186 = arith.constant dense<0.000000e+00> : vector<2x128xf32>
    %271 = tpu.matmul %268, %270, %cst_186 {dimension_numbers = #tpu.dot_dimension_numbers<[1], [0], [0], [1], [0, 0, 1, 1], [], []>} : vector<2x128xbf16>, vector<128x128xbf16>, vector<2x128xf32> -> vector<2x128xf32>
    %272 = arith.addf %249, %271 : vector<2x128xf32>
    %cst_187 = arith.constant dense<0.000000e+00> : vector<128xf32>
    %273 = vector.multi_reduction <add>, %272, %cst_187 [0] : vector<2x128xf32> to vector<128xf32>
    %274 = vector.shape_cast %273 : vector<128xf32> to vector<1x128xf32>
    %cst_188 = arith.constant 2.000000e+00 : f32
    %275 = vector.broadcast %cst_188 : f32 to vector<1x128xf32>
    %276 = arith.divf %274, %275 : vector<1x128xf32>
    %277 = arith.mulf %272, %272 : vector<2x128xf32>
    %cst_189 = arith.constant dense<0.000000e+00> : vector<128xf32>
    %278 = vector.multi_reduction <add>, %277, %cst_189 [0] : vector<2x128xf32> to vector<128xf32>
    %279 = vector.shape_cast %278 : vector<128xf32> to vector<1x128xf32>
    %cst_190 = arith.constant 2.000000e+00 : f32
    %280 = vector.broadcast %cst_190 : f32 to vector<1x128xf32>
    %281 = arith.divf %279, %280 : vector<1x128xf32>
    %282 = arith.mulf %276, %276 : vector<1x128xf32>
    %283 = arith.subf %281, %282 : vector<1x128xf32>
    %cst_191 = arith.constant 0.000000e+00 : f32
    %284 = vector.broadcast %cst_191 : f32 to vector<1x128xf32>
    %285 = arith.maximumf %283, %284 : vector<1x128xf32>
    %286 = vector.broadcast %276 : vector<1x128xf32> to vector<2x128xf32>
    %287 = arith.subf %272, %286 : vector<2x128xf32>
    %cst_192 = arith.constant 9.99999974E-6 : f32
    %288 = vector.broadcast %cst_192 : f32 to vector<1x128xf32>
    %289 = arith.addf %285, %288 : vector<1x128xf32>
    %290 = math.rsqrt %289 : vector<1x128xf32>
    %291 = vector.broadcast %290 : vector<1x128xf32> to vector<2x128xf32>
    %292 = arith.mulf %287, %291 : vector<2x128xf32>
    %c5_193 = arith.constant 5 : index
    %c0_194 = arith.constant 0 : index
    %293 = vector.load %arg4[%c5_193, %c0_194] : memref<16x128xf32, #tpu.memory_space<vmem>>, vector<1x128xf32>
    %294 = vector.broadcast %293 : vector<1x128xf32> to vector<2x128xf32>
    %295 = arith.mulf %292, %294 : vector<2x128xf32>
    %c6_195 = arith.constant 6 : index
    %c0_196 = arith.constant 0 : index
    %296 = vector.load %arg4[%c6_195, %c0_196] : memref<16x128xf32, #tpu.memory_space<vmem>>, vector<1x128xf32>
    %297 = vector.broadcast %296 : vector<1x128xf32> to vector<2x128xf32>
    %298 = arith.addf %295, %297 : vector<2x128xf32>
    %cst_197 = arith.constant 0.000000e+00 : f32
    %299 = vector.broadcast %cst_197 : f32 to vector<2x128xf32>
    %300 = arith.maximumf %298, %299 : vector<2x128xf32>
    %301 = arith.truncf %300 : vector<2x128xf32> to vector<2x128xbf16>
    %c2_198 = arith.constant 2 : index
    %c0_199 = arith.constant 0 : index
    %c0_200 = arith.constant 0 : index
    %302 = vector.load %arg3[%c2_198, %c0_199, %c0_200] : memref<4x128x128xbf16, #tpu.memory_space<vmem>>, vector<1x128x128xbf16>
    %303 = vector.shape_cast %302 : vector<1x128x128xbf16> to vector<128x128xbf16>
    %cst_201 = arith.constant dense<0.000000e+00> : vector<2x128xf32>
    %304 = tpu.matmul %301, %303, %cst_201 {dimension_numbers = #tpu.dot_dimension_numbers<[1], [0], [0], [1], [0, 0, 1, 1], [], []>} : vector<2x128xbf16>, vector<128x128xbf16>, vector<2x128xf32> -> vector<2x128xf32>
    %cst_202 = arith.constant dense<0.000000e+00> : vector<128xf32>
    %305 = vector.multi_reduction <add>, %304, %cst_202 [0] : vector<2x128xf32> to vector<128xf32>
    %306 = vector.shape_cast %305 : vector<128xf32> to vector<1x128xf32>
    %cst_203 = arith.constant 2.000000e+00 : f32
    %307 = vector.broadcast %cst_203 : f32 to vector<1x128xf32>
    %308 = arith.divf %306, %307 : vector<1x128xf32>
    %309 = arith.mulf %304, %304 : vector<2x128xf32>
    %cst_204 = arith.constant dense<0.000000e+00> : vector<128xf32>
    %310 = vector.multi_reduction <add>, %309, %cst_204 [0] : vector<2x128xf32> to vector<128xf32>
    %311 = vector.shape_cast %310 : vector<128xf32> to vector<1x128xf32>
    %cst_205 = arith.constant 2.000000e+00 : f32
    %312 = vector.broadcast %cst_205 : f32 to vector<1x128xf32>
    %313 = arith.divf %311, %312 : vector<1x128xf32>
    %314 = arith.mulf %308, %308 : vector<1x128xf32>
    %315 = arith.subf %313, %314 : vector<1x128xf32>
    %cst_206 = arith.constant 0.000000e+00 : f32
    %316 = vector.broadcast %cst_206 : f32 to vector<1x128xf32>
    %317 = arith.maximumf %315, %316 : vector<1x128xf32>
    %318 = vector.broadcast %308 : vector<1x128xf32> to vector<2x128xf32>
    %319 = arith.subf %304, %318 : vector<2x128xf32>
    %cst_207 = arith.constant 9.99999974E-6 : f32
    %320 = vector.broadcast %cst_207 : f32 to vector<1x128xf32>
    %321 = arith.addf %317, %320 : vector<1x128xf32>
    %322 = math.rsqrt %321 : vector<1x128xf32>
    %323 = vector.broadcast %322 : vector<1x128xf32> to vector<2x128xf32>
    %324 = arith.mulf %319, %323 : vector<2x128xf32>
    %c7_208 = arith.constant 7 : index
    %c0_209 = arith.constant 0 : index
    %325 = vector.load %arg4[%c7_208, %c0_209] : memref<16x128xf32, #tpu.memory_space<vmem>>, vector<1x128xf32>
    %326 = vector.broadcast %325 : vector<1x128xf32> to vector<2x128xf32>
    %327 = arith.mulf %324, %326 : vector<2x128xf32>
    %c8 = arith.constant 8 : index
    %c0_210 = arith.constant 0 : index
    %328 = vector.load %arg4[%c8, %c0_210] : memref<16x128xf32, #tpu.memory_space<vmem>>, vector<1x128xf32>
    %329 = vector.broadcast %328 : vector<1x128xf32> to vector<2x128xf32>
    %330 = arith.addf %327, %329 : vector<2x128xf32>
    %cst_211 = arith.constant 0.000000e+00 : f32
    %331 = vector.broadcast %cst_211 : f32 to vector<2x128xf32>
    %332 = arith.maximumf %330, %331 : vector<2x128xf32>
    %333 = arith.truncf %332 : vector<2x128xf32> to vector<2x128xbf16>
    %c3_212 = arith.constant 3 : index
    %c0_213 = arith.constant 0 : index
    %c0_214 = arith.constant 0 : index
    %334 = vector.load %arg3[%c3_212, %c0_213, %c0_214] : memref<4x128x128xbf16, #tpu.memory_space<vmem>>, vector<1x128x128xbf16>
    %335 = vector.shape_cast %334 : vector<1x128x128xbf16> to vector<128x128xbf16>
    %cst_215 = arith.constant dense<0.000000e+00> : vector<2x128xf32>
    %336 = tpu.matmul %333, %335, %cst_215 {dimension_numbers = #tpu.dot_dimension_numbers<[1], [0], [0], [1], [0, 0, 1, 1], [], []>} : vector<2x128xbf16>, vector<128x128xbf16>, vector<2x128xf32> -> vector<2x128xf32>
    %c9 = arith.constant 9 : index
    %c0_216 = arith.constant 0 : index
    %337 = vector.load %arg4[%c9, %c0_216] : memref<16x128xf32, #tpu.memory_space<vmem>>, vector<1x128xf32>
    %338 = vector.broadcast %337 : vector<1x128xf32> to vector<2x128xf32>
    %339 = arith.addf %336, %338 : vector<2x128xf32>
    %340 = arith.negf %339 : vector<2x128xf32>
    %341 = math.exp %340 : vector<2x128xf32>
    %cst_217 = arith.constant 1.000000e+00 : f32
    %342 = vector.broadcast %cst_217 : f32 to vector<2x128xf32>
    %343 = arith.addf %342, %341 : vector<2x128xf32>
    %344 = arith.divf %342, %343 : vector<2x128xf32>
    %c0_218 = arith.constant 0 : index
    %c0_219 = arith.constant 0 : index
    %345 = vector.load %arg8[%c0_218, %c0_219] : memref<2x128xf32, #tpu.memory_space<vmem>>, vector<2x128xf32>
    tpu.vector_store %arg8[%c0_218, %c0_219], %344 {strides = array<i32>} : memref<2x128xf32, #tpu.memory_space<vmem>>, vector<2x128xf32>,
    return
  }
  func.func @transform_0(%arg0: i32) -> (i32, i32) {
    %c0_i32 = arith.constant 0 : i32
    %c0_i32_0 = arith.constant 0 : i32
    %c0_i32_1 = arith.constant 0 : i32
    return %c0_i32, %c0_i32_0 : i32, i32
  }
  func.func @transform_1(%arg0: i32) -> (i32, i32, i32) {
    %c0_i32 = arith.constant 0 : i32
    %c0_i32_0 = arith.constant 0 : i32
    %c0_i32_1 = arith.constant 0 : i32
    %c0_i32_2 = arith.constant 0 : i32
    return %c0_i32, %c0_i32_0, %c0_i32_1 : i32, i32, i32
  }
  func.func @transform_2(%arg0: i32) -> (i32, i32, i32) {
    %c0_i32 = arith.constant 0 : i32
    %c0_i32_0 = arith.constant 0 : i32
    %c0_i32_1 = arith.constant 0 : i32
    %c0_i32_2 = arith.constant 0 : i32
    return %c0_i32, %c0_i32_0, %c0_i32_1 : i32, i32, i32
  }
  func.func @transform_3(%arg0: i32) -> (i32, i32) {
    %c0_i32 = arith.constant 0 : i32
    %c0_i32_0 = arith.constant 0 : i32
    %c0_i32_1 = arith.constant 0 : i32
    return %c0_i32, %c0_i32_0 : i32, i32
  }
  func.func @transform_4(%arg0: i32) -> (i32, i32) {
    %c0_i32 = arith.constant 0 : i32
    %c0_i32_0 = arith.constant 0 : i32
    %c0_i32_1 = arith.constant 0 : i32
    return %c0_i32, %c0_i32_0 : i32, i32
  }
  func.func @transform_5(%arg0: i32) -> (i32, i32) {
    %c0_i32 = arith.constant 0 : i32
    %c0_i32_0 = arith.constant 0 : i32
    %c0_i32_1 = arith.constant 0 : i32
    return %c0_i32, %c0_i32_0 : i32, i32
  }
  func.func @transform_6(%arg0: i32) -> (i32, i32) {
    %c0_i32 = arith.constant 0 : i32
    %c0_i32_0 = arith.constant 0 : i32
    %c0_i32_1 = arith.constant 0 : i32
    return %c0_i32, %c0_i32_0 : i32, i32
  }
  func.func @transform_7(%arg0: i32) -> (i32, i32) {
    %c0_i32 = arith.constant 0 : i32
    %c0_i32_0 = arith.constant 0 : i32
    %c0_i32_1 = arith.constant 0 : i32
    return %c0_i32, %c0_i32_0 : i32, i32
  }
}

</mosaic_0001>

<llo_original>
// kernel: forward.1
$region0: #{forward.1}
  #allocation0 [shape = 'u32[]', space=smem, size = 0x4, offset = 0x4, fixed_abs, tag = 'smem constant byte address 0x4 - core index']
  #allocation1 [shape = 'u32[144,128]{1,0:T(1,128)}', space=vmem, size = 0x12000, scoped, tag = 'internal scratch']
  #allocation2 [shape = 'f32[488,128]{1,0:T(8,128)}', space=vmem, size = 0x3d000, scoped, tag = 'scratch operand']
  #allocation3 [shape = 'f32[152,128]{1,0:T(8,128)}', space=vmem, size = 0x13000, scoped, tag = 'scratch operand']
  %s0 = inlined_call_operand.vmem [shape: f32[488,128], index: 0, kind: input, shape index: {}]
  %s1 = inlined_call_operand.vmem [shape: bf16[3,128,128], index: 1, kind: input, shape index: {}]
  %s2 = inlined_call_operand.vmem [shape: bf16[4,128,128], index: 2, kind: input, shape index: {}]
  %s3 = inlined_call_operand.vmem [shape: f32[16,128], index: 3, kind: input, shape index: {}]
  %s4 = inlined_call_operand.vmem [shape: f32[440,1], index: 4, kind: input, shape index: {}]
  %s5 = inlined_call_operand.vmem [shape: f32[8,440], index: 5, kind: input, shape index: {}]
  %s6 = inlined_call_operand.vmem [shape: f32[8,128], index: 6, kind: input, shape index: {}]
  %s7 = inlined_call_operand.vmem [shape: f32[2,128], index: 7, kind: output, shape index: {}]
  %s8 = sld [smem:[#allocation0]]
  $region38: #{forward.1} parent=0
    _
  %s10 = ssub.s32 1, %s8
  %s11 = scalar_select 0, %s10, %s8
  // Predicated region
  $region2: #{forward.1} parent=0 // pred_check
    _
  $region3: #{forward.1} parent=0 // pred_check_branch
    %13 = sbr.rel (0) target = $region5
  $region4: #{forward.1} parent=0 // pred_region
    _
  $region5: #{forward.1} parent=0 // pred_fallthru
    _
  // Predicated region
  $region6: #{forward.1} parent=0 // pred_check
    _
  $region7: #{forward.1} parent=0 // pred_check_branch
    %15 = sbr.rel (0) target = $region9
  $region8: #{forward.1} parent=0 // pred_region
    _
  $region9: #{forward.1} parent=0 // pred_fallthru
    _
  // Predicated region
  $region10: #{forward.1} parent=0 // pred_check
    _
  $region11: #{forward.1} parent=0 // pred_check_branch
    %17 = sbr.rel (0) target = $region13
  $region12: #{forward.1} parent=0 // pred_region
    _
  $region13: #{forward.1} parent=0 // pred_fallthru
    _
  // Predicated region
  $region14: #{forward.1} parent=0 // pred_check
    _
  $region15: #{forward.1} parent=0 // pred_check_branch
    %19 = sbr.rel (0) target = $region17
  $region16: #{forward.1} parent=0 // pred_region
    _
  $region17: #{forward.1} parent=0 // pred_fallthru
    _
  // Predicated region
  $region18: #{forward.1} parent=0 // pred_check
    _
  $region19: #{forward.1} parent=0 // pred_check_branch
    %21 = sbr.rel (0) target = $region21
  $region20: #{forward.1} parent=0 // pred_region
    _
  $region21: #{forward.1} parent=0 // pred_fallthru
    _
  // Predicated region
  $region22: #{forward.1} parent=0 // pred_check
    _
  $region23: #{forward.1} parent=0 // pred_check_branch
    %23 = sbr.rel (0) target = $region25
  $region24: #{forward.1} parent=0 // pred_region
    _
  $region25: #{forward.1} parent=0 // pred_fallthru
    _
  // Predicated region
  $region26: #{forward.1} parent=0 // pred_check
    _
  $region27: #{forward.1} parent=0 // pred_check_branch
    %25 = sbr.rel (0) target = $region29
  $region28: #{forward.1} parent=0 // pred_region
    _
  $region29: #{forward.1} parent=0 // pred_fallthru
    _
  %v27 = vld [vmem:[%s0 + $0x1] sm:$0xff]
  %v28 = vld [vmem:[%s0 + $0x9] sm:$0xff]
  %v29 = vld [vmem:[%s0 + $0x11] sm:$0xff]
  %v30 = vld [vmem:[%s0 + $0x19] sm:$0xff]
  %v31 = vld [vmem:[%s0 + $0x21] sm:$0xff]
  %v32 = vld [vmem:[%s0 + $0x29] sm:$0xff]
  %v33 = vld [vmem:[%s0 + $0x31] sm:$0xff]
  %v34 = vld [vmem:[%s0 + $0x39] sm:$0xff]
  %v35 = vld [vmem:[%s0 + $0x41] sm:$0xff]
  %v36 = vld [vmem:[%s0 + $0x49] sm:$0xff]
  %v37 = vld [vmem:[%s0 + $0x51] sm:$0xff]
  %v38 = vld [vmem:[%s0 + $0x59] sm:$0xff]
  %v39 = vld [vmem:[%s0 + $0x61] sm:$0xff]
  %v40 = vld [vmem:[%s0 + $0x69] sm:$0xff]
  %v41 = vld [vmem:[%s0 + $0x71] sm:$0xff]
  %v42 = vld [vmem:[%s0 + $0x79] sm:$0xff]
  %v43 = vld [vmem:[%s0 + $0x81] sm:$0xff]
  %v44 = vld [vmem:[%s0 + $0x89] sm:$0xff]
  %v45 = vld [vmem:[%s0 + $0x91] sm:$0xff]
  %v46 = vld [vmem:[%s0 + $0x99] sm:$0xff]
  %v47 = vld [vmem:[%s0 + $0xa1] sm:$0xff]
  %v48 = vld [vmem:[%s0 + $0xa9] sm:$0xff]
  %v49 = vld [vmem:[%s0 + $0xb1] sm:$0xff]
  %v50 = vld [vmem:[%s0 + $0xb9] sm:$0xff]
  %v51 = vld [vmem:[%s0 + $0xc1] sm:$0xff]
  %v52 = vld [vmem:[%s0 + $0xc9] sm:$0xff]
  %v53 = vld [vmem:[%s0 + $0xd1] sm:$0xff]
  %v54 = vld [vmem:[%s0 + $0xd9] sm:$0xff]
  %v55 = vld [vmem:[%s0 + $0xe1] sm:$0xff]
  %v56 = vld [vmem:[%s0 + $0xe9] sm:$0xff]
  %v57 = vld [vmem:[%s0 + $0xf1] sm:$0xff]
  %v58 = vld [vmem:[%s0 + $0xf9] sm:$0xff]
  %v59 = vld [vmem:[%s0 + $0x101] sm:$0xff]
  %v60 = vld [vmem:[%s0 + $0x109] sm:$0xff]
  %v61 = vld [vmem:[%s0 + $0x111] sm:$0xff]
  %v62 = vld [vmem:[%s0 + $0x119] sm:$0xff]
  %v63 = vld [vmem:[%s0 + $0x121] sm:$0xff]
  %v64 = vld [vmem:[%s0 + $0x129] sm:$0xff]
  %v65 = vld [vmem:[%s0 + $0x131] sm:$0xff]
  %v66 = vld [vmem:[%s0 + $0x139] sm:$0xff]
  %v67 = vld [vmem:[%s0 + $0x141] sm:$0xff]
  %v68 = vld [vmem:[%s0 + $0x149] sm:$0xff]
  %v69 = vld [vmem:[%s0 + $0x151] sm:$0xff]
  %v70 = vld [vmem:[%s0 + $0x159] sm:$0xff]
  %v71 = vld [vmem:[%s0 + $0x161] sm:$0xff]
  %v72 = vld [vmem:[%s0 + $0x169] sm:$0xff]
  %v73 = vld [vmem:[%s0 + $0x171] sm:$0xff]
  %v74 = vld [vmem:[%s0 + $0x179] sm:$0xff]
  %v75 = vld [vmem:[%s0 + $0x181] sm:$0xff]
  %v76 = vld [vmem:[%s0 + $0x189] sm:$0xff]
  %v77 = vld [vmem:[%s0 + $0x191] sm:$0xff]
  %v78 = vld [vmem:[%s0 + $0x199] sm:$0xff]
  %v79 = vld [vmem:[%s0 + $0x1a1] sm:$0xff]
  %v80 = vld [vmem:[%s0 + $0x1a9] sm:$0xff]
  %v81 = vld [vmem:[%s0 + $0x1b1] sm:$0xff]
  %v82 = vld [vmem:[%s0 + $0x2] sm:$0xff]
  %v83 = vld [vmem:[%s0 + $0xa] sm:$0xff]
  %v84 = vld [vmem:[%s0 + $0x12] sm:$0xff]
  %v85 = vld [vmem:[%s0 + $0x1a] sm:$0xff]
  %v86 = vld [vmem:[%s0 + $0x22] sm:$0xff]
  %v87 = vld [vmem:[%s0 + $0x2a] sm:$0xff]
  %v88 = vld [vmem:[%s0 + $0x32] sm:$0xff]
  %v89 = vld [vmem:[%s0 + $0x3a] sm:$0xff]
  %v90 = vld [vmem:[%s0 + $0x42] sm:$0xff]
  %v91 = vld [vmem:[%s0 + $0x4a] sm:$0xff]
  %v92 = vld [vmem:[%s0 + $0x52] sm:$0xff]
  %v93 = vld [vmem:[%s0 + $0x5a] sm:$0xff]
  %v94 = vld [vmem:[%s0 + $0x62] sm:$0xff]
  %v95 = vld [vmem:[%s0 + $0x6a] sm:$0xff]
  %v96 = vld [vmem:[%s0 + $0x72] sm:$0xff]
  %v97 = vld [vmem:[%s0 + $0x7a] sm:$0xff]
  %v98 = vld [vmem:[%s0 + $0x82] sm:$0xff]
  %v99 = vld [vmem:[%s0 + $0x8a] sm:$0xff]
  %v100 = vld [vmem:[%s0 + $0x92] sm:$0xff]
  %v101 = vld [vmem:[%s0 + $0x9a] sm:$0xff]
  %v102 = vld [vmem:[%s0 + $0xa2] sm:$0xff]
  %v103 = vld [vmem:[%s0 + $0xaa] sm:$0xff]
  %v104 = vld [vmem:[%s0 + $0xb2] sm:$0xff]
  %v105 = vld [vmem:[%s0 + $0xba] sm:$0xff]
  %v106 = vld [vmem:[%s0 + $0xc2] sm:$0xff]
  %v107 = vld [vmem:[%s0 + $0xca] sm:$0xff]
  %v108 = vld [vmem:[%s0 + $0xd2] sm:$0xff]
  %v109 = vld [vmem:[%s0 + $0xda] sm:$0xff]
  %v110 = vld [vmem:[%s0 + $0xe2] sm:$0xff]
  %v111 = vld [vmem:[%s0 + $0xea] sm:$0xff]
  %v112 = vld [vmem:[%s0 + $0xf2] sm:$0xff]
  %v113 = vld [vmem:[%s0 + $0xfa] sm:$0xff]
  %v114 = vld [vmem:[%s0 + $0x102] sm:$0xff]
  %v115 = vld [vmem:[%s0 + $0x10a] sm:$0xff]
  %v116 = vld [vmem:[%s0 + $0x112] sm:$0xff]
  %v117 = vld [vmem:[%s0 + $0x11a] sm:$0xff]
  %v118 = vld [vmem:[%s0 + $0x122] sm:$0xff]
  %v119 = vld [vmem:[%s0 + $0x12a] sm:$0xff]
  %v120 = vld [vmem:[%s0 + $0x132] sm:$0xff]
  %v121 = vld [vmem:[%s0 + $0x13a] sm:$0xff]
  %v122 = vld [vmem:[%s0 + $0x142] sm:$0xff]
  %v123 = vld [vmem:[%s0 + $0x14a] sm:$0xff]
  %v124 = vld [vmem:[%s0 + $0x152] sm:$0xff]
  %v125 = vld [vmem:[%s0 + $0x15a] sm:$0xff]
  %v126 = vld [vmem:[%s0 + $0x162] sm:$0xff]
  %v127 = vld [vmem:[%s0 + $0x16a] sm:$0xff]
  %v128 = vld [vmem:[%s0 + $0x172] sm:$0xff]
  %v129 = vld [vmem:[%s0 + $0x17a] sm:$0xff]
  %v130 = vld [vmem:[%s0 + $0x182] sm:$0xff]
  %v131 = vld [vmem:[%s0 + $0x18a] sm:$0xff]
  %v132 = vld [vmem:[%s0 + $0x192] sm:$0xff]
  %v133 = vld [vmem:[%s0 + $0x19a] sm:$0xff]
  %v134 = vld [vmem:[%s0 + $0x1a2] sm:$0xff]
  %v135 = vld [vmem:[%s0 + $0x1aa] sm:$0xff]
  %v136 = vld [vmem:[%s0 + $0x1b2] sm:$0xff]
  %137 = vrot.lane.b32.xlu0 %v82, 3
  %v138 = vpop.permute.xlu0 %137
  %139 = vrot.lane.b32.xlu0 %v83, 3
  %v140 = vpop.permute.xlu0 %139
  %141 = vrot.lane.b32.xlu0 %v84, 3
  %v142 = vpop.permute.xlu0 %141
  %143 = vrot.lane.b32.xlu0 %v85, 3
  %v144 = vpop.permute.xlu0 %143
  %145 = vrot.lane.b32.xlu0 %v86, 3
  %v146 = vpop.permute.xlu0 %145
  %147 = vrot.lane.b32.xlu0 %v87, 3
  %v148 = vpop.permute.xlu0 %147
  %149 = vrot.lane.b32.xlu0 %v88, 3
  %v150 = vpop.permute.xlu0 %149
  %151 = vrot.lane.b32.xlu0 %v89, 3
  %v152 = vpop.permute.xlu0 %151
  %153 = vrot.lane.b32.xlu0 %v90, 3
  %v154 = vpop.permute.xlu0 %153
  %155 = vrot.lane.b32.xlu0 %v91, 3
  %v156 = vpop.permute.xlu0 %155
  %157 = vrot.lane.b32.xlu0 %v92, 3
  %v158 = vpop.permute.xlu0 %157
  %159 = vrot.lane.b32.xlu0 %v93, 3
  %v160 = vpop.permute.xlu0 %159
  %161 = vrot.lane.b32.xlu0 %v94, 3
  %v162 = vpop.permute.xlu0 %161
  %163 = vrot.lane.b32.xlu0 %v95, 3
  %v164 = vpop.permute.xlu0 %163
  %165 = vrot.lane.b32.xlu0 %v96, 3
  %v166 = vpop.permute.xlu0 %165
  %167 = vrot.lane.b32.xlu0 %v97, 3
  %v168 = vpop.permute.xlu0 %167
  %169 = vrot.lane.b32.xlu0 %v98, 3
  %v170 = vpop.permute.xlu0 %169
  %171 = vrot.lane.b32.xlu0 %v99, 3
  %v172 = vpop.permute.xlu0 %171
  %173 = vrot.lane.b32.xlu0 %v100, 3
  %v174 = vpop.permute.xlu0 %173
  %175 = vrot.lane.b32.xlu0 %v101, 3
  %v176 = vpop.permute.xlu0 %175
  %177 = vrot.lane.b32.xlu0 %v102, 3
  %v178 = vpop.permute.xlu0 %177
  %179 = vrot.lane.b32.xlu0 %v103, 3
  %v180 = vpop.permute.xlu0 %179
  %181 = vrot.lane.b32.xlu0 %v104, 3
  %v182 = vpop.permute.xlu0 %181
  %183 = vrot.lane.b32.xlu0 %v105, 3
  %v184 = vpop.permute.xlu0 %183
  %185 = vrot.lane.b32.xlu0 %v106, 3
  %v186 = vpop.permute.xlu0 %185
  %187 = vrot.lane.b32.xlu0 %v107, 3
  %v188 = vpop.permute.xlu0 %187
  %189 = vrot.lane.b32.xlu0 %v108, 3
  %v190 = vpop.permute.xlu0 %189
  %191 = vrot.lane.b32.xlu0 %v109, 3
  %v192 = vpop.permute.xlu0 %191
  %193 = vrot.lane.b32.xlu0 %v110, 3
  %v194 = vpop.permute.xlu0 %193
  %195 = vrot.lane.b32.xlu0 %v111, 3
  %v196 = vpop.permute.xlu0 %195
  %197 = vrot.lane.b32.xlu0 %v112, 3
  %v198 = vpop.permute.xlu0 %197
  %199 = vrot.lane.b32.xlu0 %v113, 3
  %v200 = vpop.permute.xlu0 %199
  %201 = vrot.lane.b32.xlu0 %v114, 3
  %v202 = vpop.permute.xlu0 %201
  %203 = vrot.lane.b32.xlu0 %v115, 3
  %v204 = vpop.permute.xlu0 %203
  %205 = vrot.lane.b32.xlu0 %v116, 3
  %v206 = vpop.permute.xlu0 %205
  %207 = vrot.lane.b32.xlu0 %v117, 3
  %v208 = vpop.permute.xlu0 %207
  %209 = vrot.lane.b32.xlu0 %v118, 3
  %v210 = vpop.permute.xlu0 %209
  %211 = vrot.lane.b32.xlu0 %v119, 3
  %v212 = vpop.permute.xlu0 %211
  %213 = vrot.lane.b32.xlu0 %v120, 3
  %v214 = vpop.permute.xlu0 %213
  %215 = vrot.lane.b32.xlu0 %v121, 3
  %v216 = vpop.permute.xlu0 %215
  %217 = vrot.lane.b32.xlu0 %v122, 3
  %v218 = vpop.permute.xlu0 %217
  %219 = vrot.lane.b32.xlu0 %v123, 3
  %v220 = vpop.permute.xlu0 %219
  %221 = vrot.lane.b32.xlu0 %v124, 3
  %v222 = vpop.permute.xlu0 %221
  %223 = vrot.lane.b32.xlu0 %v125, 3
  %v224 = vpop.permute.xlu0 %223
  %225 = vrot.lane.b32.xlu0 %v126, 3
  %v226 = vpop.permute.xlu0 %225
  %227 = vrot.lane.b32.xlu0 %v127, 3
  %v228 = vpop.permute.xlu0 %227
  %229 = vrot.lane.b32.xlu0 %v128, 3
  %v230 = vpop.permute.xlu0 %229
  %231 = vrot.lane.b32.xlu0 %v129, 3
  %v232 = vpop.permute.xlu0 %231
  %233 = vrot.lane.b32.xlu0 %v130, 3
  %v234 = vpop.permute.xlu0 %233
  %235 = vrot.lane.b32.xlu0 %v131, 3
  %v236 = vpop.permute.xlu0 %235
  %237 = vrot.lane.b32.xlu0 %v132, 3
  %v238 = vpop.permute.xlu0 %237
  %239 = vrot.lane.b32.xlu0 %v133, 3
  %v240 = vpop.permute.xlu0 %239
  %241 = vrot.lane.b32.xlu0 %v134, 3
  %v242 = vpop.permute.xlu0 %241
  %243 = vrot.lane.b32.xlu0 %v135, 3
  %v244 = vpop.permute.xlu0 %243
  %245 = vrot.lane.b32.xlu0 %v136, 3
  %v246 = vpop.permute.xlu0 %245
  %v247 = vadd.f32 %v27, %v138
  %v248 = vadd.f32 %v28, %v140
  %v249 = vadd.f32 %v29, %v142
  %v250 = vadd.f32 %v30, %v144
  %v251 = vadd.f32 %v31, %v146
  %v252 = vadd.f32 %v32, %v148
  %v253 = vadd.f32 %v33, %v150
  %v254 = vadd.f32 %v34, %v152
  %v255 = vadd.f32 %v35, %v154
  %v256 = vadd.f32 %v36, %v156
  %v257 = vadd.f32 %v37, %v158
  %v258 = vadd.f32 %v38, %v160
  %v259 = vadd.f32 %v39, %v162
  %v260 = vadd.f32 %v40, %v164
  %v261 = vadd.f32 %v41, %v166
  %v262 = vadd.f32 %v42, %v168
  %v263 = vadd.f32 %v43, %v170
  %v264 = vadd.f32 %v44, %v172
  %v265 = vadd.f32 %v45, %v174
  %v266 = vadd.f32 %v46, %v176
  %v267 = vadd.f32 %v47, %v178
  %v268 = vadd.f32 %v48, %v180
  %v269 = vadd.f32 %v49, %v182
  %v270 = vadd.f32 %v50, %v184
  %v271 = vadd.f32 %v51, %v186
  %v272 = vadd.f32 %v52, %v188
  %v273 = vadd.f32 %v53, %v190
  %v274 = vadd.f32 %v54, %v192
  %v275 = vadd.f32 %v55, %v194
  %v276 = vadd.f32 %v56, %v196
  %v277 = vadd.f32 %v57, %v198
  %v278 = vadd.f32 %v58, %v200
  %v279 = vadd.f32 %v59, %v202
  %v280 = vadd.f32 %v60, %v204
  %v281 = vadd.f32 %v61, %v206
  %v282 = vadd.f32 %v62, %v208
  %v283 = vadd.f32 %v63, %v210
  %v284 = vadd.f32 %v64, %v212
  %v285 = vadd.f32 %v65, %v214
  %v286 = vadd.f32 %v66, %v216
  %v287 = vadd.f32 %v67, %v218
  %v288 = vadd.f32 %v68, %v220
  %v289 = vadd.f32 %v69, %v222
  %v290 = vadd.f32 %v70, %v224
  %v291 = vadd.f32 %v71, %v226
  %v292 = vadd.f32 %v72, %v228
  %v293 = vadd.f32 %v73, %v230
  %v294 = vadd.f32 %v74, %v232
  %v295 = vadd.f32 %v75, %v234
  %v296 = vadd.f32 %v76, %v236
  %v297 = vadd.f32 %v77, %v238
  %v298 = vadd.f32 %v78, %v240
  %v299 = vadd.f32 %v79, %v242
  %v300 = vadd.f32 %v80, %v244
  %v301 = vadd.f32 %v81, %v246
  %v302 = vld [vmem:[%s0 + $0x3] sm:$0xff]
  %v303 = vld [vmem:[%s0 + $0xb] sm:$0xff]
  %v304 = vld [vmem:[%s0 + $0x13] sm:$0xff]
  %v305 = vld [vmem:[%s0 + $0x1b] sm:$0xff]
  %v306 = vld [vmem:[%s0 + $0x23] sm:$0xff]
  %v307 = vld [vmem:[%s0 + $0x2b] sm:$0xff]
  %v308 = vld [vmem:[%s0 + $0x33] sm:$0xff]
  %v309 = vld [vmem:[%s0 + $0x3b] sm:$0xff]
  %v310 = vld [vmem:[%s0 + $0x43] sm:$0xff]
  %v311 = vld [vmem:[%s0 + $0x4b] sm:$0xff]
  %v312 = vld [vmem:[%s0 + $0x53] sm:$0xff]
  %v313 = vld [vmem:[%s0 + $0x5b] sm:$0xff]
  %v314 = vld [vmem:[%s0 + $0x63] sm:$0xff]
  %v315 = vld [vmem:[%s0 + $0x6b] sm:$0xff]
  %v316 = vld [vmem:[%s0 + $0x73] sm:$0xff]
  %v317 = vld [vmem:[%s0 + $0x7b] sm:$0xff]
  %v318 = vld [vmem:[%s0 + $0x83] sm:$0xff]
  %v319 = vld [vmem:[%s0 + $0x8b] sm:$0xff]
  %v320 = vld [vmem:[%s0 + $0x93] sm:$0xff]
  %v321 = vld [vmem:[%s0 + $0x9b] sm:$0xff]
  %v322 = vld [vmem:[%s0 + $0xa3] sm:$0xff]
  %v323 = vld [vmem:[%s0 + $0xab] sm:$0xff]
  %v324 = vld [vmem:[%s0 + $0xb3] sm:$0xff]
  %v325 = vld [vmem:[%s0 + $0xbb] sm:$0xff]
  %v326 = vld [vmem:[%s0 + $0xc3] sm:$0xff]
  %v327 = vld [vmem:[%s0 + $0xcb] sm:$0xff]
  %v328 = vld [vmem:[%s0 + $0xd3] sm:$0xff]
  %v329 = vld [vmem:[%s0 + $0xdb] sm:$0xff]
  %v330 = vld [vmem:[%s0 + $0xe3] sm:$0xff]
  %v331 = vld [vmem:[%s0 + $0xeb] sm:$0xff]
  %v332 = vld [vmem:[%s0 + $0xf3] sm:$0xff]
  %v333 = vld [vmem:[%s0 + $0xfb] sm:$0xff]
  %v334 = vld [vmem:[%s0 + $0x103] sm:$0xff]
  %v335 = vld [vmem:[%s0 + $0x10b] sm:$0xff]
  %v336 = vld [vmem:[%s0 + $0x113] sm:$0xff]
  %v337 = vld [vmem:[%s0 + $0x11b] sm:$0xff]
  %v338 = vld [vmem:[%s0 + $0x123] sm:$0xff]
  %v339 = vld [vmem:[%s0 + $0x12b] sm:$0xff]
  %v340 = vld [vmem:[%s0 + $0x133] sm:$0xff]
  %v341 = vld [vmem:[%s0 + $0x13b] sm:$0xff]
  %v342 = vld [vmem:[%s0 + $0x143] sm:$0xff]
  %v343 = vld [vmem:[%s0 + $0x14b] sm:$0xff]
  %v344 = vld [vmem:[%s0 + $0x153] sm:$0xff]
  %v345 = vld [vmem:[%s0 + $0x15b] sm:$0xff]
  %v346 = vld [vmem:[%s0 + $0x163] sm:$0xff]
  %v347 = vld [vmem:[%s0 + $0x16b] sm:$0xff]
  %v348 = vld [vmem:[%s0 + $0x173] sm:$0xff]
  %v349 = vld [vmem:[%s0 + $0x17b] sm:$0xff]
  %v350 = vld [vmem:[%s0 + $0x183] sm:$0xff]
  %v351 = vld [vmem:[%s0 + $0x18b] sm:$0xff]
  %v352 = vld [vmem:[%s0 + $0x193] sm:$0xff]
  %v353 = vld [vmem:[%s0 + $0x19b] sm:$0xff]
  %v354 = vld [vmem:[%s0 + $0x1a3] sm:$0xff]
  %v355 = vld [vmem:[%s0 + $0x1ab] sm:$0xff]
  %v356 = vld [vmem:[%s0 + $0x1b3] sm:$0xff]
  %357 = vrot.lane.b32.xlu0 %v302, 6
  %v358 = vpop.permute.xlu0 %357
  %359 = vrot.lane.b32.xlu0 %v303, 6
  %v360 = vpop.permute.xlu0 %359
  %361 = vrot.lane.b32.xlu0 %v304, 6
  %v362 = vpop.permute.xlu0 %361
  %363 = vrot.lane.b32.xlu0 %v305, 6
  %v364 = vpop.permute.xlu0 %363
  %365 = vrot.lane.b32.xlu0 %v306, 6
  %v366 = vpop.permute.xlu0 %365
  %367 = vrot.lane.b32.xlu0 %v307, 6
  %v368 = vpop.permute.xlu0 %367
  %369 = vrot.lane.b32.xlu0 %v308, 6
  %v370 = vpop.permute.xlu0 %369
  %371 = vrot.lane.b32.xlu0 %v309, 6
  %v372 = vpop.permute.xlu0 %371
  %373 = vrot.lane.b32.xlu0 %v310, 6
  %v374 = vpop.permute.xlu0 %373
  %375 = vrot.lane.b32.xlu0 %v311, 6
  %v376 = vpop.permute.xlu0 %375
  %377 = vrot.lane.b32.xlu0 %v312, 6
  %v378 = vpop.permute.xlu0 %377
  %379 = vrot.lane.b32.xlu0 %v313, 6
  %v380 = vpop.permute.xlu0 %379
  %381 = vrot.lane.b32.xlu0 %v314, 6
  %v382 = vpop.permute.xlu0 %381
  %383 = vrot.lane.b32.xlu0 %v315, 6
  %v384 = vpop.permute.xlu0 %383
  %385 = vrot.lane.b32.xlu0 %v316, 6
  %v386 = vpop.permute.xlu0 %385
  %387 = vrot.lane.b32.xlu0 %v317, 6
  %v388 = vpop.permute.xlu0 %387
  %389 = vrot.lane.b32.xlu0 %v318, 6
  %v390 = vpop.permute.xlu0 %389
  %391 = vrot.lane.b32.xlu0 %v319, 6
  %v392 = vpop.permute.xlu0 %391
  %393 = vrot.lane.b32.xlu0 %v320, 6
  %v394 = vpop.permute.xlu0 %393
  %395 = vrot.lane.b32.xlu0 %v321, 6
  %v396 = vpop.permute.xlu0 %395
  %397 = vrot.lane.b32.xlu0 %v322, 6
  %v398 = vpop.permute.xlu0 %397
  %399 = vrot.lane.b32.xlu0 %v323, 6
  %v400 = vpop.permute.xlu0 %399
  %401 = vrot.lane.b32.xlu0 %v324, 6
  %v402 = vpop.permute.xlu0 %401
  %403 = vrot.lane.b32.xlu0 %v325, 6
  %v404 = vpop.permute.xlu0 %403
  %405 = vrot.lane.b32.xlu0 %v326, 6
  %v406 = vpop.permute.xlu0 %405
  %407 = vrot.lane.b32.xlu0 %v327, 6
  %v408 = vpop.permute.xlu0 %407
  %409 = vrot.lane.b32.xlu0 %v328, 6
  %v410 = vpop.permute.xlu0 %409
  %411 = vrot.lane.b32.xlu0 %v329, 6
  %v412 = vpop.permute.xlu0 %411
  %413 = vrot.lane.b32.xlu0 %v330, 6
  %v414 = vpop.permute.xlu0 %413
  %415 = vrot.lane.b32.xlu0 %v331, 6
  %v416 = vpop.permute.xlu0 %415
  %417 = vrot.lane.b32.xlu0 %v332, 6
  %v418 = vpop.permute.xlu0 %417
  %419 = vrot.lane.b32.xlu0 %v333, 6
  %v420 = vpop.permute.xlu0 %419
  %421 = vrot.lane.b32.xlu0 %v334, 6
  %v422 = vpop.permute.xlu0 %421
  %423 = vrot.lane.b32.xlu0 %v335, 6
  %v424 = vpop.permute.xlu0 %423
  %425 = vrot.lane.b32.xlu0 %v336, 6
  %v426 = vpop.permute.xlu0 %425
  %427 = vrot.lane.b32.xlu0 %v337, 6
  %v428 = vpop.permute.xlu0 %427
  %429 = vrot.lane.b32.xlu0 %v338, 6
  %v430 = vpop.permute.xlu0 %429
  %431 = vrot.lane.b32.xlu0 %v339, 6
  %v432 = vpop.permute.xlu0 %431
  %433 = vrot.lane.b32.xlu0 %v340, 6
  %v434 = vpop.permute.xlu0 %433
  %435 = vrot.lane.b32.xlu0 %v341, 6
  %v436 = vpop.permute.xlu0 %435
  %437 = vrot.lane.b32.xlu0 %v342, 6
  %v438 = vpop.permute.xlu0 %437
  %439 = vrot.lane.b32.xlu0 %v343, 6
  %v440 = vpop.permute.xlu0 %439
  %441 = vrot.lane.b32.xlu0 %v344, 6
  %v442 = vpop.permute.xlu0 %441
  %443 = vrot.lane.b32.xlu0 %v345, 6
  %v444 = vpop.permute.xlu0 %443
  %445 = vrot.lane.b32.xlu0 %v346, 6
  %v446 = vpop.permute.xlu0 %445
  %447 = vrot.lane.b32.xlu0 %v347, 6
  %v448 = vpop.permute.xlu0 %447
  %449 = vrot.lane.b32.xlu0 %v348, 6
  %v450 = vpop.permute.xlu0 %449
  %451 = vrot.lane.b32.xlu0 %v349, 6
  %v452 = vpop.permute.xlu0 %451
  %453 = vrot.lane.b32.xlu0 %v350, 6
  %v454 = vpop.permute.xlu0 %453
  %455 = vrot.lane.b32.xlu0 %v351, 6
  %v456 = vpop.permute.xlu0 %455
  %457 = vrot.lane.b32.xlu0 %v352, 6
  %v458 = vpop.permute.xlu0 %457
  %459 = vrot.lane.b32.xlu0 %v353, 6
  %v460 = vpop.permute.xlu0 %459
  %461 = vrot.lane.b32.xlu0 %v354, 6
  %v462 = vpop.permute.xlu0 %461
  %463 = vrot.lane.b32.xlu0 %v355, 6
  %v464 = vpop.permute.xlu0 %463
  %465 = vrot.lane.b32.xlu0 %v356, 6
  %v466 = vpop.permute.xlu0 %465
  %v467 = vadd.f32 %v247, %v358
  %v468 = vadd.f32 %v248, %v360
  %v469 = vadd.f32 %v249, %v362
  %v470 = vadd.f32 %v250, %v364
  %v471 = vadd.f32 %v251, %v366
  %v472 = vadd.f32 %v252, %v368
  %v473 = vadd.f32 %v253, %v370
  %v474 = vadd.f32 %v254, %v372
  %v475 = vadd.f32 %v255, %v374
  %v476 = vadd.f32 %v256, %v376
  %v477 = vadd.f32 %v257, %v378
  %v478 = vadd.f32 %v258, %v380
  %v479 = vadd.f32 %v259, %v382
  %v480 = vadd.f32 %v260, %v384
  %v481 = vadd.f32 %v261, %v386
  %v482 = vadd.f32 %v262, %v388
  %v483 = vadd.f32 %v263, %v390
  %v484 = vadd.f32 %v264, %v392
  %v485 = vadd.f32 %v265, %v394
  %v486 = vadd.f32 %v266, %v396
  %v487 = vadd.f32 %v267, %v398
  %v488 = vadd.f32 %v268, %v400
  %v489 = vadd.f32 %v269, %v402
  %v490 = vadd.f32 %v270, %v404
  %v491 = vadd.f32 %v271, %v406
  %v492 = vadd.f32 %v272, %v408
  %v493 = vadd.f32 %v273, %v410
  %v494 = vadd.f32 %v274, %v412
  %v495 = vadd.f32 %v275, %v414
  %v496 = vadd.f32 %v276, %v416
  %v497 = vadd.f32 %v277, %v418
  %v498 = vadd.f32 %v278, %v420
  %v499 = vadd.f32 %v279, %v422
  %v500 = vadd.f32 %v280, %v424
  %v501 = vadd.f32 %v281, %v426
  %v502 = vadd.f32 %v282, %v428
  %v503 = vadd.f32 %v283, %v430
  %v504 = vadd.f32 %v284, %v432
  %v505 = vadd.f32 %v285, %v434
  %v506 = vadd.f32 %v286, %v436
  %v507 = vadd.f32 %v287, %v438
  %v508 = vadd.f32 %v288, %v440
  %v509 = vadd.f32 %v289, %v442
  %v510 = vadd.f32 %v290, %v444
  %v511 = vadd.f32 %v291, %v446
  %v512 = vadd.f32 %v292, %v448
  %v513 = vadd.f32 %v293, %v450
  %v514 = vadd.f32 %v294, %v452
  %v515 = vadd.f32 %v295, %v454
  %v516 = vadd.f32 %v296, %v456
  %v517 = vadd.f32 %v297, %v458
  %v518 = vadd.f32 %v298, %v460
  %v519 = vadd.f32 %v299, %v462
  %v520 = vadd.f32 %v300, %v464
  %v521 = vadd.f32 %v301, %v466
  %v522 = vld [vmem:[%s0 + $0x17] sm:$0xff]
  %v523 = vld [vmem:[%s0 + $0x1f] sm:$0xff]
  %v524 = vld [vmem:[%s0 + $0x27] sm:$0xff]
  %v525 = vld [vmem:[%s0 + $0x2f] sm:$0xff]
  %v526 = vld [vmem:[%s0 + $0x37] sm:$0xff]
  %v527 = vld [vmem:[%s0 + $0x3f] sm:$0xff]
  %v528 = vld [vmem:[%s0 + $0x47] sm:$0xff]
  %v529 = vld [vmem:[%s0 + $0x4f] sm:$0xff]
  %v530 = vld [vmem:[%s0 + $0x57] sm:$0xff]
  %v531 = vld [vmem:[%s0 + $0x5f] sm:$0xff]
  %v532 = vld [vmem:[%s0 + $0x67] sm:$0xff]
  %v533 = vld [vmem:[%s0 + $0x6f] sm:$0xff]
  %v534 = vld [vmem:[%s0 + $0x77] sm:$0xff]
  %v535 = vld [vmem:[%s0 + $0x7f] sm:$0xff]
  %v536 = vld [vmem:[%s0 + $0x87] sm:$0xff]
  %v537 = vld [vmem:[%s0 + $0x8f] sm:$0xff]
  %v538 = vld [vmem:[%s0 + $0x97] sm:$0xff]
  %v539 = vld [vmem:[%s0 + $0x9f] sm:$0xff]
  %v540 = vld [vmem:[%s0 + $0xa7] sm:$0xff]
  %v541 = vld [vmem:[%s0 + $0xaf] sm:$0xff]
  %v542 = vld [vmem:[%s0 + $0xb7] sm:$0xff]
  %v543 = vld [vmem:[%s0 + $0xbf] sm:$0xff]
  %v544 = vld [vmem:[%s0 + $0xc7] sm:$0xff]
  %v545 = vld [vmem:[%s0 + $0xcf] sm:$0xff]
  %v546 = vld [vmem:[%s0 + $0xd7] sm:$0xff]
  %v547 = vld [vmem:[%s0 + $0xdf] sm:$0xff]
  %v548 = vld [vmem:[%s0 + $0xe7] sm:$0xff]
  %v549 = vld [vmem:[%s0 + $0xef] sm:$0xff]
  %v550 = vld [vmem:[%s0 + $0xf7] sm:$0xff]
  %v551 = vld [vmem:[%s0 + $0xff] sm:$0xff]
  %v552 = vld [vmem:[%s0 + $0x107] sm:$0xff]
  %v553 = vld [vmem:[%s0 + $0x10f] sm:$0xff]
  %v554 = vld [vmem:[%s0 + $0x117] sm:$0xff]
  %v555 = vld [vmem:[%s0 + $0x11f] sm:$0xff]
  %v556 = vld [vmem:[%s0 + $0x127] sm:$0xff]
  %v557 = vld [vmem:[%s0 + $0x12f] sm:$0xff]
  %v558 = vld [vmem:[%s0 + $0x137] sm:$0xff]
  %v559 = vld [vmem:[%s0 + $0x13f] sm:$0xff]
  %v560 = vld [vmem:[%s0 + $0x147] sm:$0xff]
  %v561 = vld [vmem:[%s0 + $0x14f] sm:$0xff]
  %v562 = vld [vmem:[%s0 + $0x157] sm:$0xff]
  %v563 = vld [vmem:[%s0 + $0x15f] sm:$0xff]
  %v564 = vld [vmem:[%s0 + $0x167] sm:$0xff]
  %v565 = vld [vmem:[%s0 + $0x16f] sm:$0xff]
  %v566 = vld [vmem:[%s0 + $0x177] sm:$0xff]
  %v567 = vld [vmem:[%s0 + $0x17f] sm:$0xff]
  %v568 = vld [vmem:[%s0 + $0x187] sm:$0xff]
  %v569 = vld [vmem:[%s0 + $0x18f] sm:$0xff]
  %v570 = vld [vmem:[%s0 + $0x197] sm:$0xff]
  %v571 = vld [vmem:[%s0 + $0x19f] sm:$0xff]
  %v572 = vld [vmem:[%s0 + $0x1a7] sm:$0xff]
  %v573 = vld [vmem:[%s0 + $0x1af] sm:$0xff]
  %v574 = vld [vmem:[%s0 + $0x1b7] sm:$0xff]
  %v575 = vld [vmem:[%s0 + $0x1bf] sm:$0xff]
  %v576 = vld [vmem:[%s0 + $0x1c7] sm:$0xff]
  %577 = vrot.lane.b32.xlu0 %v522, 9
  %v578 = vpop.permute.xlu0 %577
  %579 = vrot.lane.b32.xlu0 %v523, 9
  %v580 = vpop.permute.xlu0 %579
  %581 = vrot.lane.b32.xlu0 %v524, 9
  %v582 = vpop.permute.xlu0 %581
  %583 = vrot.lane.b32.xlu0 %v525, 9
  %v584 = vpop.permute.xlu0 %583
  %585 = vrot.lane.b32.xlu0 %v526, 9
  %v586 = vpop.permute.xlu0 %585
  %587 = vrot.lane.b32.xlu0 %v527, 9
  %v588 = vpop.permute.xlu0 %587
  %589 = vrot.lane.b32.xlu0 %v528, 9
  %v590 = vpop.permute.xlu0 %589
  %591 = vrot.lane.b32.xlu0 %v529, 9
  %v592 = vpop.permute.xlu0 %591
  %593 = vrot.lane.b32.xlu0 %v530, 9
  %v594 = vpop.permute.xlu0 %593
  %595 = vrot.lane.b32.xlu0 %v531, 9
  %v596 = vpop.permute.xlu0 %595
  %597 = vrot.lane.b32.xlu0 %v532, 9
  %v598 = vpop.permute.xlu0 %597
  %599 = vrot.lane.b32.xlu0 %v533, 9
  %v600 = vpop.permute.xlu0 %599
  %601 = vrot.lane.b32.xlu0 %v534, 9
  %v602 = vpop.permute.xlu0 %601
  %603 = vrot.lane.b32.xlu0 %v535, 9
  %v604 = vpop.permute.xlu0 %603
  %605 = vrot.lane.b32.xlu0 %v536, 9
  %v606 = vpop.permute.xlu0 %605
  %607 = vrot.lane.b32.xlu0 %v537, 9
  %v608 = vpop.permute.xlu0 %607
  %609 = vrot.lane.b32.xlu0 %v538, 9
  %v610 = vpop.permute.xlu0 %609
  %611 = vrot.lane.b32.xlu0 %v539, 9
  %v612 = vpop.permute.xlu0 %611
  %613 = vrot.lane.b32.xlu0 %v540, 9
  %v614 = vpop.permute.xlu0 %613
  %615 = vrot.lane.b32.xlu0 %v541, 9
  %v616 = vpop.permute.xlu0 %615
  %617 = vrot.lane.b32.xlu0 %v542, 9
  %v618 = vpop.permute.xlu0 %617
  %619 = vrot.lane.b32.xlu0 %v543, 9
  %v620 = vpop.permute.xlu0 %619
  %621 = vrot.lane.b32.xlu0 %v544, 9
  %v622 = vpop.permute.xlu0 %621
  %623 = vrot.lane.b32.xlu0 %v545, 9
  %v624 = vpop.permute.xlu0 %623
  %625 = vrot.lane.b32.xlu0 %v546, 9
  %v626 = vpop.permute.xlu0 %625
  %627 = vrot.lane.b32.xlu0 %v547, 9
  %v628 = vpop.permute.xlu0 %627
  %629 = vrot.lane.b32.xlu0 %v548, 9
  %v630 = vpop.permute.xlu0 %629
  %631 = vrot.lane.b32.xlu0 %v549, 9
  %v632 = vpop.permute.xlu0 %631
  %633 = vrot.lane.b32.xlu0 %v550, 9
  %v634 = vpop.permute.xlu0 %633
  %635 = vrot.lane.b32.xlu0 %v551, 9
  %v636 = vpop.permute.xlu0 %635
  %637 = vrot.lane.b32.xlu0 %v552, 9
  %v638 = vpop.permute.xlu0 %637
  %639 = vrot.lane.b32.xlu0 %v553, 9
  %v640 = vpop.permute.xlu0 %639
  %641 = vrot.lane.b32.xlu0 %v554, 9
  %v642 = vpop.permute.xlu0 %641
  %643 = vrot.lane.b32.xlu0 %v555, 9
  %v644 = vpop.permute.xlu0 %643
  %645 = vrot.lane.b32.xlu0 %v556, 9
  %v646 = vpop.permute.xlu0 %645
  %647 = vrot.lane.b32.xlu0 %v557, 9
  %v648 = vpop.permute.xlu0 %647
  %649 = vrot.lane.b32.xlu0 %v558, 9
  %v650 = vpop.permute.xlu0 %649
  %651 = vrot.lane.b32.xlu0 %v559, 9
  %v652 = vpop.permute.xlu0 %651
  %653 = vrot.lane.b32.xlu0 %v560, 9
  %v654 = vpop.permute.xlu0 %653
  %655 = vrot.lane.b32.xlu0 %v561, 9
  %v656 = vpop.permute.xlu0 %655
  %657 = vrot.lane.b32.xlu0 %v562, 9
  %v658 = vpop.permute.xlu0 %657
  %659 = vrot.lane.b32.xlu0 %v563, 9
  %v660 = vpop.permute.xlu0 %659
  %661 = vrot.lane.b32.xlu0 %v564, 9
  %v662 = vpop.permute.xlu0 %661
  %663 = vrot.lane.b32.xlu0 %v565, 9
  %v664 = vpop.permute.xlu0 %663
  %665 = vrot.lane.b32.xlu0 %v566, 9
  %v666 = vpop.permute.xlu0 %665
  %667 = vrot.lane.b32.xlu0 %v567, 9
  %v668 = vpop.permute.xlu0 %667
  %669 = vrot.lane.b32.xlu0 %v568, 9
  %v670 = vpop.permute.xlu0 %669
  %671 = vrot.lane.b32.xlu0 %v569, 9
  %v672 = vpop.permute.xlu0 %671
  %673 = vrot.lane.b32.xlu0 %v570, 9
  %v674 = vpop.permute.xlu0 %673
  %675 = vrot.lane.b32.xlu0 %v571, 9
  %v676 = vpop.permute.xlu0 %675
  %677 = vrot.lane.b32.xlu0 %v572, 9
  %v678 = vpop.permute.xlu0 %677
  %679 = vrot.lane.b32.xlu0 %v573, 9
  %v680 = vpop.permute.xlu0 %679
  %681 = vrot.lane.b32.xlu0 %v574, 9
  %v682 = vpop.permute.xlu0 %681
  %683 = vrot.lane.b32.xlu0 %v575, 9
  %v684 = vpop.permute.xlu0 %683
  %685 = vrot.lane.b32.xlu0 %v576, 9
  %v686 = vpop.permute.xlu0 %685
  %v687 = vadd.f32 %v467, %v578
  %v688 = vadd.f32 %v468, %v580
  %v689 = vadd.f32 %v469, %v582
  %v690 = vadd.f32 %v470, %v584
  %v691 = vadd.f32 %v471, %v586
  %v692 = vadd.f32 %v472, %v588
  %v693 = vadd.f32 %v473, %v590
  %v694 = vadd.f32 %v474, %v592
  %v695 = vadd.f32 %v475, %v594
  %v696 = vadd.f32 %v476, %v596
  %v697 = vadd.f32 %v477, %v598
  %v698 = vadd.f32 %v478, %v600
  %v699 = vadd.f32 %v479, %v602
  %v700 = vadd.f32 %v480, %v604
  %v701 = vadd.f32 %v481, %v606
  %v702 = vadd.f32 %v482, %v608
  %v703 = vadd.f32 %v483, %v610
  %v704 = vadd.f32 %v484, %v612
  %v705 = vadd.f32 %v485, %v614
  %v706 = vadd.f32 %v486, %v616
  %v707 = vadd.f32 %v487, %v618
  %v708 = vadd.f32 %v488, %v620
  %v709 = vadd.f32 %v489, %v622
  %v710 = vadd.f32 %v490, %v624
  %v711 = vadd.f32 %v491, %v626
  %v712 = vadd.f32 %v492, %v628
  %v713 = vadd.f32 %v493, %v630
  %v714 = vadd.f32 %v494, %v632
  %v715 = vadd.f32 %v495, %v634
  %v716 = vadd.f32 %v496, %v636
  %v717 = vadd.f32 %v497, %v638
  %v718 = vadd.f32 %v498, %v640
  %v719 = vadd.f32 %v499, %v642
  %v720 = vadd.f32 %v500, %v644
  %v721 = vadd.f32 %v501, %v646
  %v722 = vadd.f32 %v502, %v648
  %v723 = vadd.f32 %v503, %v650
  %v724 = vadd.f32 %v504, %v652
  %v725 = vadd.f32 %v505, %v654
  %v726 = vadd.f32 %v506, %v656
  %v727 = vadd.f32 %v507, %v658
  %v728 = vadd.f32 %v508, %v660
  %v729 = vadd.f32 %v509, %v662
  %v730 = vadd.f32 %v510, %v664
  %v731 = vadd.f32 %v511, %v666
  %v732 = vadd.f32 %v512, %v668
  %v733 = vadd.f32 %v513, %v670
  %v734 = vadd.f32 %v514, %v672
  %v735 = vadd.f32 %v515, %v674
  %v736 = vadd.f32 %v516, %v676
  %v737 = vadd.f32 %v517, %v678
  %v738 = vadd.f32 %v518, %v680
  %v739 = vadd.f32 %v519, %v682
  %v740 = vadd.f32 %v520, %v684
  %v741 = vadd.f32 %v521, %v686
  %v742 = vld [vmem:[%s0 + $0x18] sm:$0xff]
  %v743 = vld [vmem:[%s0 + $0x20] sm:$0xff]
  %v744 = vld [vmem:[%s0 + $0x28] sm:$0xff]
  %v745 = vld [vmem:[%s0 + $0x30] sm:$0xff]
  %v746 = vld [vmem:[%s0 + $0x38] sm:$0xff]
  %v747 = vld [vmem:[%s0 + $0x40] sm:$0xff]
  %v748 = vld [vmem:[%s0 + $0x48] sm:$0xff]
  %v749 = vld [vmem:[%s0 + $0x50] sm:$0xff]
  %v750 = vld [vmem:[%s0 + $0x58] sm:$0xff]
  %v751 = vld [vmem:[%s0 + $0x60] sm:$0xff]
  %v752 = vld [vmem:[%s0 + $0x68] sm:$0xff]
  %v753 = vld [vmem:[%s0 + $0x70] sm:$0xff]
  %v754 = vld [vmem:[%s0 + $0x78] sm:$0xff]
  %v755 = vld [vmem:[%s0 + $0x80] sm:$0xff]
  %v756 = vld [vmem:[%s0 + $0x88] sm:$0xff]
  %v757 = vld [vmem:[%s0 + $0x90] sm:$0xff]
  %v758 = vld [vmem:[%s0 + $0x98] sm:$0xff]
  %v759 = vld [vmem:[%s0 + $0xa0] sm:$0xff]
  %v760 = vld [vmem:[%s0 + $0xa8] sm:$0xff]
  %v761 = vld [vmem:[%s0 + $0xb0] sm:$0xff]
  %v762 = vld [vmem:[%s0 + $0xb8] sm:$0xff]
  %v763 = vld [vmem:[%s0 + $0xc0] sm:$0xff]
  %v764 = vld [vmem:[%s0 + $0xc8] sm:$0xff]
  %v765 = vld [vmem:[%s0 + $0xd0] sm:$0xff]
  %v766 = vld [vmem:[%s0 + $0xd8] sm:$0xff]
  %v767 = vld [vmem:[%s0 + $0xe0] sm:$0xff]
  %v768 = vld [vmem:[%s0 + $0xe8] sm:$0xff]
  %v769 = vld [vmem:[%s0 + $0xf0] sm:$0xff]
  %v770 = vld [vmem:[%s0 + $0xf8] sm:$0xff]
  %v771 = vld [vmem:[%s0 + $0x100] sm:$0xff]
  %v772 = vld [vmem:[%s0 + $0x108] sm:$0xff]
  %v773 = vld [vmem:[%s0 + $0x110] sm:$0xff]
  %v774 = vld [vmem:[%s0 + $0x118] sm:$0xff]
  %v775 = vld [vmem:[%s0 + $0x120] sm:$0xff]
  %v776 = vld [vmem:[%s0 + $0x128] sm:$0xff]
  %v777 = vld [vmem:[%s0 + $0x130] sm:$0xff]
  %v778 = vld [vmem:[%s0 + $0x138] sm:$0xff]
  %v779 = vld [vmem:[%s0 + $0x140] sm:$0xff]
  %v780 = vld [vmem:[%s0 + $0x148] sm:$0xff]
  %v781 = vld [vmem:[%s0 + $0x150] sm:$0xff]
  %v782 = vld [vmem:[%s0 + $0x158] sm:$0xff]
  %v783 = vld [vmem:[%s0 + $0x160] sm:$0xff]
  %v784 = vld [vmem:[%s0 + $0x168] sm:$0xff]
  %v785 = vld [vmem:[%s0 + $0x170] sm:$0xff]
  %v786 = vld [vmem:[%s0 + $0x178] sm:$0xff]
  %v787 = vld [vmem:[%s0 + $0x180] sm:$0xff]
  %v788 = vld [vmem:[%s0 + $0x188] sm:$0xff]
  %v789 = vld [vmem:[%s0 + $0x190] sm:$0xff]
  %v790 = vld [vmem:[%s0 + $0x198] sm:$0xff]
  %v791 = vld [vmem:[%s0 + $0x1a0] sm:$0xff]
  %v792 = vld [vmem:[%s0 + $0x1a8] sm:$0xff]
  %v793 = vld [vmem:[%s0 + $0x1b0] sm:$0xff]
  %v794 = vld [vmem:[%s0 + $0x1b8] sm:$0xff]
  %v795 = vld [vmem:[%s0 + $0x1c0] sm:$0xff]
  %v796 = vld [vmem:[%s0 + $0x1c8] sm:$0xff]
  %797 = vrot.lane.b32.xlu0 %v742, 12
  %v798 = vpop.permute.xlu0 %797
  %799 = vrot.lane.b32.xlu0 %v743, 12
  %v800 = vpop.permute.xlu0 %799
  %801 = vrot.lane.b32.xlu0 %v744, 12
  %v802 = vpop.permute.xlu0 %801
  %803 = vrot.lane.b32.xlu0 %v745, 12
  %v804 = vpop.permute.xlu0 %803
  %805 = vrot.lane.b32.xlu0 %v746, 12
  %v806 = vpop.permute.xlu0 %805
  %807 = vrot.lane.b32.xlu0 %v747, 12
  %v808 = vpop.permute.xlu0 %807
  %809 = vrot.lane.b32.xlu0 %v748, 12
  %v810 = vpop.permute.xlu0 %809
  %811 = vrot.lane.b32.xlu0 %v749, 12
  %v812 = vpop.permute.xlu0 %811
  %813 = vrot.lane.b32.xlu0 %v750, 12
  %v814 = vpop.permute.xlu0 %813
  %815 = vrot.lane.b32.xlu0 %v751, 12
  %v816 = vpop.permute.xlu0 %815
  %817 = vrot.lane.b32.xlu0 %v752, 12
  %v818 = vpop.permute.xlu0 %817
  %819 = vrot.lane.b32.xlu0 %v753, 12
  %v820 = vpop.permute.xlu0 %819
  %821 = vrot.lane.b32.xlu0 %v754, 12
  %v822 = vpop.permute.xlu0 %821
  %823 = vrot.lane.b32.xlu0 %v755, 12
  %v824 = vpop.permute.xlu0 %823
  %825 = vrot.lane.b32.xlu0 %v756, 12
  %v826 = vpop.permute.xlu0 %825
  %827 = vrot.lane.b32.xlu0 %v757, 12
  %v828 = vpop.permute.xlu0 %827
  %829 = vrot.lane.b32.xlu0 %v758, 12
  %v830 = vpop.permute.xlu0 %829
  %831 = vrot.lane.b32.xlu0 %v759, 12
  %v832 = vpop.permute.xlu0 %831
  %833 = vrot.lane.b32.xlu0 %v760, 12
  %v834 = vpop.permute.xlu0 %833
  %835 = vrot.lane.b32.xlu0 %v761, 12
  %v836 = vpop.permute.xlu0 %835
  %837 = vrot.lane.b32.xlu0 %v762, 12
  %v838 = vpop.permute.xlu0 %837
  %839 = vrot.lane.b32.xlu0 %v763, 12
  %v840 = vpop.permute.xlu0 %839
  %841 = vrot.lane.b32.xlu0 %v764, 12
  %v842 = vpop.permute.xlu0 %841
  %843 = vrot.lane.b32.xlu0 %v765, 12
  %v844 = vpop.permute.xlu0 %843
  %845 = vrot.lane.b32.xlu0 %v766, 12
  %v846 = vpop.permute.xlu0 %845
  %847 = vrot.lane.b32.xlu0 %v767, 12
  %v848 = vpop.permute.xlu0 %847
  %849 = vrot.lane.b32.xlu0 %v768, 12
  %v850 = vpop.permute.xlu0 %849
  %851 = vrot.lane.b32.xlu0 %v769, 12
  %v852 = vpop.permute.xlu0 %851
  %853 = vrot.lane.b32.xlu0 %v770, 12
  %v854 = vpop.permute.xlu0 %853
  %855 = vrot.lane.b32.xlu0 %v771, 12
  %v856 = vpop.permute.xlu0 %855
  %857 = vrot.lane.b32.xlu0 %v772, 12
  %v858 = vpop.permute.xlu0 %857
  %859 = vrot.lane.b32.xlu0 %v773, 12
  %v860 = vpop.permute.xlu0 %859
  %861 = vrot.lane.b32.xlu0 %v774, 12
  %v862 = vpop.permute.xlu0 %861
  %863 = vrot.lane.b32.xlu0 %v775, 12
  %v864 = vpop.permute.xlu0 %863
  %865 = vrot.lane.b32.xlu0 %v776, 12
  %v866 = vpop.permute.xlu0 %865
  %867 = vrot.lane.b32.xlu0 %v777, 12
  %v868 = vpop.permute.xlu0 %867
  %869 = vrot.lane.b32.xlu0 %v778, 12
  %v870 = vpop.permute.xlu0 %869
  %871 = vrot.lane.b32.xlu0 %v779, 12
  %v872 = vpop.permute.xlu0 %871
  %873 = vrot.lane.b32.xlu0 %v780, 12
  %v874 = vpop.permute.xlu0 %873
  %875 = vrot.lane.b32.xlu0 %v781, 12
  %v876 = vpop.permute.xlu0 %875
  %877 = vrot.lane.b32.xlu0 %v782, 12
  %v878 = vpop.permute.xlu0 %877
  %879 = vrot.lane.b32.xlu0 %v783, 12
  %v880 = vpop.permute.xlu0 %879
  %881 = vrot.lane.b32.xlu0 %v784, 12
  %v882 = vpop.permute.xlu0 %881
  %883 = vrot.lane.b32.xlu0 %v785, 12
  %v884 = vpop.permute.xlu0 %883
  %885 = vrot.lane.b32.xlu0 %v786, 12
  %v886 = vpop.permute.xlu0 %885
  %887 = vrot.lane.b32.xlu0 %v787, 12
  %v888 = vpop.permute.xlu0 %887
  %889 = vrot.lane.b32.xlu0 %v788, 12
  %v890 = vpop.permute.xlu0 %889
  %891 = vrot.lane.b32.xlu0 %v789, 12
  %v892 = vpop.permute.xlu0 %891
  %893 = vrot.lane.b32.xlu0 %v790, 12
  %v894 = vpop.permute.xlu0 %893
  %895 = vrot.lane.b32.xlu0 %v791, 12
  %v896 = vpop.permute.xlu0 %895
  %897 = vrot.lane.b32.xlu0 %v792, 12
  %v898 = vpop.permute.xlu0 %897
  %899 = vrot.lane.b32.xlu0 %v793, 12
  %v900 = vpop.permute.xlu0 %899
  %901 = vrot.lane.b32.xlu0 %v794, 12
  %v902 = vpop.permute.xlu0 %901
  %903 = vrot.lane.b32.xlu0 %v795, 12
  %v904 = vpop.permute.xlu0 %903
  %905 = vrot.lane.b32.xlu0 %v796, 12
  %v906 = vpop.permute.xlu0 %905
  %v907 = vadd.f32 %v687, %v798
  %v908 = vadd.f32 %v688, %v800
  %v909 = vadd.f32 %v689, %v802
  %v910 = vadd.f32 %v690, %v804
  %v911 = vadd.f32 %v691, %v806
  %v912 = vadd.f32 %v692, %v808
  %v913 = vadd.f32 %v693, %v810
  %v914 = vadd.f32 %v694, %v812
  %v915 = vadd.f32 %v695, %v814
  %v916 = vadd.f32 %v696, %v816
  %v917 = vadd.f32 %v697, %v818
  %v918 = vadd.f32 %v698, %v820
  %v919 = vadd.f32 %v699, %v822
  %v920 = vadd.f32 %v700, %v824
  %v921 = vadd.f32 %v701, %v826
  %v922 = vadd.f32 %v702, %v828
  %v923 = vadd.f32 %v703, %v830
  %v924 = vadd.f32 %v704, %v832
  %v925 = vadd.f32 %v705, %v834
  %v926 = vadd.f32 %v706, %v836
  %v927 = vadd.f32 %v707, %v838
  %v928 = vadd.f32 %v708, %v840
  %v929 = vadd.f32 %v709, %v842
  %v930 = vadd.f32 %v710, %v844
  %v931 = vadd.f32 %v711, %v846
  %v932 = vadd.f32 %v712, %v848
  %v933 = vadd.f32 %v713, %v850
  %v934 = vadd.f32 %v714, %v852
  %v935 = vadd.f32 %v715, %v854
  %v936 = vadd.f32 %v716, %v856
  %v937 = vadd.f32 %v717, %v858
  %v938 = vadd.f32 %v718, %v860
  %v939 = vadd.f32 %v719, %v862
  %v940 = vadd.f32 %v720, %v864
  %v941 = vadd.f32 %v721, %v866
  %v942 = vadd.f32 %v722, %v868
  %v943 = vadd.f32 %v723, %v870
  %v944 = vadd.f32 %v724, %v872
  %v945 = vadd.f32 %v725, %v874
  %v946 = vadd.f32 %v726, %v876
  %v947 = vadd.f32 %v727, %v878
  %v948 = vadd.f32 %v728, %v880
  %v949 = vadd.f32 %v729, %v882
  %v950 = vadd.f32 %v730, %v884
  %v951 = vadd.f32 %v731, %v886
  %v952 = vadd.f32 %v732, %v888
  %v953 = vadd.f32 %v733, %v890
  %v954 = vadd.f32 %v734, %v892
  %v955 = vadd.f32 %v735, %v894
  %v956 = vadd.f32 %v736, %v896
  %v957 = vadd.f32 %v737, %v898
  %v958 = vadd.f32 %v738, %v900
  %v959 = vadd.f32 %v739, %v902
  %v960 = vadd.f32 %v740, %v904
  %v961 = vadd.f32 %v741, %v906
  %v962 = vld [vmem:[%s0 + $0x1b9] sm:$0xff]
  %v963 = vld [vmem:[%s0 + $0x1c1] sm:$0xff]
  %v964 = vld [vmem:[%s0 + $0x1c9] sm:$0xff]
  %965 = vrot.lane.b32.xlu0 %v30, 15
  %v966 = vpop.permute.xlu0 %965
  %967 = vrot.lane.b32.xlu0 %v31, 15
  %v968 = vpop.permute.xlu0 %967
  %969 = vrot.lane.b32.xlu0 %v32, 15
  %v970 = vpop.permute.xlu0 %969
  %971 = vrot.lane.b32.xlu0 %v33, 15
  %v972 = vpop.permute.xlu0 %971
  %973 = vrot.lane.b32.xlu0 %v34, 15
  %v974 = vpop.permute.xlu0 %973
  %975 = vrot.lane.b32.xlu0 %v35, 15
  %v976 = vpop.permute.xlu0 %975
  %977 = vrot.lane.b32.xlu0 %v36, 15
  %v978 = vpop.permute.xlu0 %977
  %979 = vrot.lane.b32.xlu0 %v37, 15
  %v980 = vpop.permute.xlu0 %979
  %981 = vrot.lane.b32.xlu0 %v38, 15
  %v982 = vpop.permute.xlu0 %981
  %983 = vrot.lane.b32.xlu0 %v39, 15
  %v984 = vpop.permute.xlu0 %983
  %985 = vrot.lane.b32.xlu0 %v40, 15
  %v986 = vpop.permute.xlu0 %985
  %987 = vrot.lane.b32.xlu0 %v41, 15
  %v988 = vpop.permute.xlu0 %987
  %989 = vrot.lane.b32.xlu0 %v42, 15
  %v990 = vpop.permute.xlu0 %989
  %991 = vrot.lane.b32.xlu0 %v43, 15
  %v992 = vpop.permute.xlu0 %991
  %993 = vrot.lane.b32.xlu0 %v44, 15
  %v994 = vpop.permute.xlu0 %993
  %995 = vrot.lane.b32.xlu0 %v45, 15
  %v996 = vpop.permute.xlu0 %995
  %997 = vrot.lane.b32.xlu0 %v46, 15
  %v998 = vpop.permute.xlu0 %997
  %999 = vrot.lane.b32.xlu0 %v47, 15
  %v1000 = vpop.permute.xlu0 %999
  %1001 = vrot.lane.b32.xlu0 %v48, 15
  %v1002 = vpop.permute.xlu0 %1001
  %1003 = vrot.lane.b32.xlu0 %v49, 15
  %v1004 = vpop.permute.xlu0 %1003
  %1005 = vrot.lane.b32.xlu0 %v50, 15
  %v1006 = vpop.permute.xlu0 %1005
  %1007 = vrot.lane.b32.xlu0 %v51, 15
  %v1008 = vpop.permute.xlu0 %1007
  %1009 = vrot.lane.b32.xlu0 %v52, 15
  %v1010 = vpop.permute.xlu0 %1009
  %1011 = vrot.lane.b32.xlu0 %v53, 15
  %v1012 = vpop.permute.xlu0 %1011
  %1013 = vrot.lane.b32.xlu0 %v54, 15
  %v1014 = vpop.permute.xlu0 %1013
  %1015 = vrot.lane.b32.xlu0 %v55, 15
  %v1016 = vpop.permute.xlu0 %1015
  %1017 = vrot.lane.b32.xlu0 %v56, 15
  %v1018 = vpop.permute.xlu0 %1017
  %1019 = vrot.lane.b32.xlu0 %v57, 15
  %v1020 = vpop.permute.xlu0 %1019
  %1021 = vrot.lane.b32.xlu0 %v58, 15
  %v1022 = vpop.permute.xlu0 %1021
  %1023 = vrot.lane.b32.xlu0 %v59, 15
  %v1024 = vpop.permute.xlu0 %1023
  %1025 = vrot.lane.b32.xlu0 %v60, 15
  %v1026 = vpop.permute.xlu0 %1025
  %1027 = vrot.lane.b32.xlu0 %v61, 15
  %v1028 = vpop.permute.xlu0 %1027
  %1029 = vrot.lane.b32.xlu0 %v62, 15
  %v1030 = vpop.permute.xlu0 %1029
  %1031 = vrot.lane.b32.xlu0 %v63, 15
  %v1032 = vpop.permute.xlu0 %1031
  %1033 = vrot.lane.b32.xlu0 %v64, 15
  %v1034 = vpop.permute.xlu0 %1033
  %1035 = vrot.lane.b32.xlu0 %v65, 15
  %v1036 = vpop.permute.xlu0 %1035
  %1037 = vrot.lane.b32.xlu0 %v66, 15
  %v1038 = vpop.permute.xlu0 %1037
  %1039 = vrot.lane.b32.xlu0 %v67, 15
  %v1040 = vpop.permute.xlu0 %1039
  %1041 = vrot.lane.b32.xlu0 %v68, 15
  %v1042 = vpop.permute.xlu0 %1041
  %1043 = vrot.lane.b32.xlu0 %v69, 15
  %v1044 = vpop.permute.xlu0 %1043
  %1045 = vrot.lane.b32.xlu0 %v70, 15
  %v1046 = vpop.permute.xlu0 %1045
  %1047 = vrot.lane.b32.xlu0 %v71, 15
  %v1048 = vpop.permute.xlu0 %1047
  %1049 = vrot.lane.b32.xlu0 %v72, 15
  %v1050 = vpop.permute.xlu0 %1049
  %1051 = vrot.lane.b32.xlu0 %v73, 15
  %v1052 = vpop.permute.xlu0 %1051
  %1053 = vrot.lane.b32.xlu0 %v74, 15
  %v1054 = vpop.permute.xlu0 %1053
  %1055 = vrot.lane.b32.xlu0 %v75, 15
  %v1056 = vpop.permute.xlu0 %1055
  %1057 = vrot.lane.b32.xlu0 %v76, 15
  %v1058 = vpop.permute.xlu0 %1057
  %1059 = vrot.lane.b32.xlu0 %v77, 15
  %v1060 = vpop.permute.xlu0 %1059
  %1061 = vrot.lane.b32.xlu0 %v78, 15
  %v1062 = vpop.permute.xlu0 %1061
  %1063 = vrot.lane.b32.xlu0 %v79, 15
  %v1064 = vpop.permute.xlu0 %1063
  %1065 = vrot.lane.b32.xlu0 %v80, 15
  %v1066 = vpop.permute.xlu0 %1065
  %1067 = vrot.lane.b32.xlu0 %v81, 15
  %v1068 = vpop.permute.xlu0 %1067
  %1069 = vrot.lane.b32.xlu0 %v962, 15
  %v1070 = vpop.permute.xlu0 %1069
  %1071 = vrot.lane.b32.xlu0 %v963, 15
  %v1072 = vpop.permute.xlu0 %1071
  %1073 = vrot.lane.b32.xlu0 %v964, 15
  %v1074 = vpop.permute.xlu0 %1073
  %v1075 = vadd.f32 %v907, %v966
  %v1076 = vadd.f32 %v908, %v968
  %v1077 = vadd.f32 %v909, %v970
  %v1078 = vadd.f32 %v910, %v972
  %v1079 = vadd.f32 %v911, %v974
  %v1080 = vadd.f32 %v912, %v976
  %v1081 = vadd.f32 %v913, %v978
  %v1082 = vadd.f32 %v914, %v980
  %v1083 = vadd.f32 %v915, %v982
  %v1084 = vadd.f32 %v916, %v984
  %v1085 = vadd.f32 %v917, %v986
  %v1086 = vadd.f32 %v918, %v988
  %v1087 = vadd.f32 %v919, %v990
  %v1088 = vadd.f32 %v920, %v992
  %v1089 = vadd.f32 %v921, %v994
  %v1090 = vadd.f32 %v922, %v996
  %v1091 = vadd.f32 %v923, %v998
  %v1092 = vadd.f32 %v924, %v1000
  %v1093 = vadd.f32 %v925, %v1002
  %v1094 = vadd.f32 %v926, %v1004
  %v1095 = vadd.f32 %v927, %v1006
  %v1096 = vadd.f32 %v928, %v1008
  %v1097 = vadd.f32 %v929, %v1010
  %v1098 = vadd.f32 %v930, %v1012
  %v1099 = vadd.f32 %v931, %v1014
  %v1100 = vadd.f32 %v932, %v1016
  %v1101 = vadd.f32 %v933, %v1018
  %v1102 = vadd.f32 %v934, %v1020
  %v1103 = vadd.f32 %v935, %v1022
  %v1104 = vadd.f32 %v936, %v1024
  %v1105 = vadd.f32 %v937, %v1026
  %v1106 = vadd.f32 %v938, %v1028
  %v1107 = vadd.f32 %v939, %v1030
  %v1108 = vadd.f32 %v940, %v1032
  %v1109 = vadd.f32 %v941, %v1034
  %v1110 = vadd.f32 %v942, %v1036
  %v1111 = vadd.f32 %v943, %v1038
  %v1112 = vadd.f32 %v944, %v1040
  %v1113 = vadd.f32 %v945, %v1042
  %v1114 = vadd.f32 %v946, %v1044
  %v1115 = vadd.f32 %v947, %v1046
  %v1116 = vadd.f32 %v948, %v1048
  %v1117 = vadd.f32 %v949, %v1050
  %v1118 = vadd.f32 %v950, %v1052
  %v1119 = vadd.f32 %v951, %v1054
  %v1120 = vadd.f32 %v952, %v1056
  %v1121 = vadd.f32 %v953, %v1058
  %v1122 = vadd.f32 %v954, %v1060
  %v1123 = vadd.f32 %v955, %v1062
  %v1124 = vadd.f32 %v956, %v1064
  %v1125 = vadd.f32 %v957, %v1066
  %v1126 = vadd.f32 %v958, %v1068
  %v1127 = vadd.f32 %v959, %v1070
  %v1128 = vadd.f32 %v960, %v1072
  %v1129 = vadd.f32 %v961, %v1074
  %v1130 = vld [vmem:[%s0 + $0x2d] sm:$0xff]
  %v1131 = vld [vmem:[%s0 + $0x35] sm:$0xff]
  %v1132 = vld [vmem:[%s0 + $0x3d] sm:$0xff]
  %v1133 = vld [vmem:[%s0 + $0x45] sm:$0xff]
  %v1134 = vld [vmem:[%s0 + $0x4d] sm:$0xff]
  %v1135 = vld [vmem:[%s0 + $0x55] sm:$0xff]
  %v1136 = vld [vmem:[%s0 + $0x5d] sm:$0xff]
  %v1137 = vld [vmem:[%s0 + $0x65] sm:$0xff]
  %v1138 = vld [vmem:[%s0 + $0x6d] sm:$0xff]
  %v1139 = vld [vmem:[%s0 + $0x75] sm:$0xff]
  %v1140 = vld [vmem:[%s0 + $0x7d] sm:$0xff]
  %v1141 = vld [vmem:[%s0 + $0x85] sm:$0xff]
  %v1142 = vld [vmem:[%s0 + $0x8d] sm:$0xff]
  %v1143 = vld [vmem:[%s0 + $0x95] sm:$0xff]
  %v1144 = vld [vmem:[%s0 + $0x9d] sm:$0xff]
  %v1145 = vld [vmem:[%s0 + $0xa5] sm:$0xff]
  %v1146 = vld [vmem:[%s0 + $0xad] sm:$0xff]
  %v1147 = vld [vmem:[%s0 + $0xb5] sm:$0xff]
  %v1148 = vld [vmem:[%s0 + $0xbd] sm:$0xff]
  %v1149 = vld [vmem:[%s0 + $0xc5] sm:$0xff]
  %v1150 = vld [vmem:[%s0 + $0xcd] sm:$0xff]
  %v1151 = vld [vmem:[%s0 + $0xd5] sm:$0xff]
  %v1152 = vld [vmem:[%s0 + $0xdd] sm:$0xff]
  %v1153 = vld [vmem:[%s0 + $0xe5] sm:$0xff]
  %v1154 = vld [vmem:[%s0 + $0xed] sm:$0xff]
  %v1155 = vld [vmem:[%s0 + $0xf5] sm:$0xff]
  %v1156 = vld [vmem:[%s0 + $0xfd] sm:$0xff]
  %v1157 = vld [vmem:[%s0 + $0x105] sm:$0xff]
  %v1158 = vld [vmem:[%s0 + $0x10d] sm:$0xff]
  %v1159 = vld [vmem:[%s0 + $0x115] sm:$0xff]
  %v1160 = vld [vmem:[%s0 + $0x11d] sm:$0xff]
  %v1161 = vld [vmem:[%s0 + $0x125] sm:$0xff]
  %v1162 = vld [vmem:[%s0 + $0x12d] sm:$0xff]
  %v1163 = vld [vmem:[%s0 + $0x135] sm:$0xff]
  %v1164 = vld [vmem:[%s0 + $0x13d] sm:$0xff]
  %v1165 = vld [vmem:[%s0 + $0x145] sm:$0xff]
  %v1166 = vld [vmem:[%s0 + $0x14d] sm:$0xff]
  %v1167 = vld [vmem:[%s0 + $0x155] sm:$0xff]
  %v1168 = vld [vmem:[%s0 + $0x15d] sm:$0xff]
  %v1169 = vld [vmem:[%s0 + $0x165] sm:$0xff]
  %v1170 = vld [vmem:[%s0 + $0x16d] sm:$0xff]
  %v1171 = vld [vmem:[%s0 + $0x175] sm:$0xff]
  %v1172 = vld [vmem:[%s0 + $0x17d] sm:$0xff]
  %v1173 = vld [vmem:[%s0 + $0x185] sm:$0xff]
  %v1174 = vld [vmem:[%s0 + $0x18d] sm:$0xff]
  %v1175 = vld [vmem:[%s0 + $0x195] sm:$0xff]
  %v1176 = vld [vmem:[%s0 + $0x19d] sm:$0xff]
  %v1177 = vld [vmem:[%s0 + $0x1a5] sm:$0xff]
  %v1178 = vld [vmem:[%s0 + $0x1ad] sm:$0xff]
  %v1179 = vld [vmem:[%s0 + $0x1b5] sm:$0xff]
  %v1180 = vld [vmem:[%s0 + $0x1bd] sm:$0xff]
  %v1181 = vld [vmem:[%s0 + $0x1c5] sm:$0xff]
  %v1182 = vld [vmem:[%s0 + $0x1cd] sm:$0xff]
  %v1183 = vld [vmem:[%s0 + $0x1d5] sm:$0xff]
  %v1184 = vld [vmem:[%s0 + $0x1dd] sm:$0xff]
  %1185 = vrot.lane.b32.xlu0 %v1130, 18
  %v1186 = vpop.permute.xlu0 %1185
  %1187 = vrot.lane.b32.xlu0 %v1131, 18
  %v1188 = vpop.permute.xlu0 %1187
  %1189 = vrot.lane.b32.xlu0 %v1132, 18
  %v1190 = vpop.permute.xlu0 %1189
  %1191 = vrot.lane.b32.xlu0 %v1133, 18
  %v1192 = vpop.permute.xlu0 %1191
  %1193 = vrot.lane.b32.xlu0 %v1134, 18
  %v1194 = vpop.permute.xlu0 %1193
  %1195 = vrot.lane.b32.xlu0 %v1135, 18
  %v1196 = vpop.permute.xlu0 %1195
  %1197 = vrot.lane.b32.xlu0 %v1136, 18
  %v1198 = vpop.permute.xlu0 %1197
  %1199 = vrot.lane.b32.xlu0 %v1137, 18
  %v1200 = vpop.permute.xlu0 %1199
  %1201 = vrot.lane.b32.xlu0 %v1138, 18
  %v1202 = vpop.permute.xlu0 %1201
  %1203 = vrot.lane.b32.xlu0 %v1139, 18
  %v1204 = vpop.permute.xlu0 %1203
  %1205 = vrot.lane.b32.xlu0 %v1140, 18
  %v1206 = vpop.permute.xlu0 %1205
  %1207 = vrot.lane.b32.xlu0 %v1141, 18
  %v1208 = vpop.permute.xlu0 %1207
  %1209 = vrot.lane.b32.xlu0 %v1142, 18
  %v1210 = vpop.permute.xlu0 %1209
  %1211 = vrot.lane.b32.xlu0 %v1143, 18
  %v1212 = vpop.permute.xlu0 %1211
  %1213 = vrot.lane.b32.xlu0 %v1144, 18
  %v1214 = vpop.permute.xlu0 %1213
  %1215 = vrot.lane.b32.xlu0 %v1145, 18
  %v1216 = vpop.permute.xlu0 %1215
  %1217 = vrot.lane.b32.xlu0 %v1146, 18
  %v1218 = vpop.permute.xlu0 %1217
  %1219 = vrot.lane.b32.xlu0 %v1147, 18
  %v1220 = vpop.permute.xlu0 %1219
  %1221 = vrot.lane.b32.xlu0 %v1148, 18
  %v1222 = vpop.permute.xlu0 %1221
  %1223 = vrot.lane.b32.xlu0 %v1149, 18
  %v1224 = vpop.permute.xlu0 %1223
  %1225 = vrot.lane.b32.xlu0 %v1150, 18
  %v1226 = vpop.permute.xlu0 %1225
  %1227 = vrot.lane.b32.xlu0 %v1151, 18
  %v1228 = vpop.permute.xlu0 %1227
  %1229 = vrot.lane.b32.xlu0 %v1152, 18
  %v1230 = vpop.permute.xlu0 %1229
  %1231 = vrot.lane.b32.xlu0 %v1153, 18
  %v1232 = vpop.permute.xlu0 %1231
  %1233 = vrot.lane.b32.xlu0 %v1154, 18
  %v1234 = vpop.permute.xlu0 %1233
  %1235 = vrot.lane.b32.xlu0 %v1155, 18
  %v1236 = vpop.permute.xlu0 %1235
  %1237 = vrot.lane.b32.xlu0 %v1156, 18
  %v1238 = vpop.permute.xlu0 %1237
  %1239 = vrot.lane.b32.xlu0 %v1157, 18
  %v1240 = vpop.permute.xlu0 %1239
  %1241 = vrot.lane.b32.xlu0 %v1158, 18
  %v1242 = vpop.permute.xlu0 %1241
  %1243 = vrot.lane.b32.xlu0 %v1159, 18
  %v1244 = vpop.permute.xlu0 %1243
  %1245 = vrot.lane.b32.xlu0 %v1160, 18
  %v1246 = vpop.permute.xlu0 %1245
  %1247 = vrot.lane.b32.xlu0 %v1161, 18
  %v1248 = vpop.permute.xlu0 %1247
  %1249 = vrot.lane.b32.xlu0 %v1162, 18
  %v1250 = vpop.permute.xlu0 %1249
  %1251 = vrot.lane.b32.xlu0 %v1163, 18
  %v1252 = vpop.permute.xlu0 %1251
  %1253 = vrot.lane.b32.xlu0 %v1164, 18
  %v1254 = vpop.permute.xlu0 %1253
  %1255 = vrot.lane.b32.xlu0 %v1165, 18
  %v1256 = vpop.permute.xlu0 %1255
  %1257 = vrot.lane.b32.xlu0 %v1166, 18
  %v1258 = vpop.permute.xlu0 %1257
  %1259 = vrot.lane.b32.xlu0 %v1167, 18
  %v1260 = vpop.permute.xlu0 %1259
  %1261 = vrot.lane.b32.xlu0 %v1168, 18
  %v1262 = vpop.permute.xlu0 %1261
  %1263 = vrot.lane.b32.xlu0 %v1169, 18
  %v1264 = vpop.permute.xlu0 %1263
  %1265 = vrot.lane.b32.xlu0 %v1170, 18
  %v1266 = vpop.permute.xlu0 %1265
  %1267 = vrot.lane.b32.xlu0 %v1171, 18
  %v1268 = vpop.permute.xlu0 %1267
  %1269 = vrot.lane.b32.xlu0 %v1172, 18
  %v1270 = vpop.permute.xlu0 %1269
  %1271 = vrot.lane.b32.xlu0 %v1173, 18
  %v1272 = vpop.permute.xlu0 %1271
  %1273 = vrot.lane.b32.xlu0 %v1174, 18
  %v1274 = vpop.permute.xlu0 %1273
  %1275 = vrot.lane.b32.xlu0 %v1175, 18
  %v1276 = vpop.permute.xlu0 %1275
  %1277 = vrot.lane.b32.xlu0 %v1176, 18
  %v1278 = vpop.permute.xlu0 %1277
  %1279 = vrot.lane.b32.xlu0 %v1177, 18
  %v1280 = vpop.permute.xlu0 %1279
  %1281 = vrot.lane.b32.xlu0 %v1178, 18
  %v1282 = vpop.permute.xlu0 %1281
  %1283 = vrot.lane.b32.xlu0 %v1179, 18
  %v1284 = vpop.permute.xlu0 %1283
  %1285 = vrot.lane.b32.xlu0 %v1180, 18
  %v1286 = vpop.permute.xlu0 %1285
  %1287 = vrot.lane.b32.xlu0 %v1181, 18
  %v1288 = vpop.permute.xlu0 %1287
  %1289 = vrot.lane.b32.xlu0 %v1182, 18
  %v1290 = vpop.permute.xlu0 %1289
  %1291 = vrot.lane.b32.xlu0 %v1183, 18
  %v1292 = vpop.permute.xlu0 %1291
  %1293 = vrot.lane.b32.xlu0 %v1184, 18
  %v1294 = vpop.permute.xlu0 %1293
  %v1295 = vadd.f32 %v1075, %v1186
  %v1296 = vadd.f32 %v1076, %v1188
  %v1297 = vadd.f32 %v1077, %v1190
  %v1298 = vadd.f32 %v1078, %v1192
  %v1299 = vadd.f32 %v1079, %v1194
  %v1300 = vadd.f32 %v1080, %v1196
  %v1301 = vadd.f32 %v1081, %v1198
  %v1302 = vadd.f32 %v1082, %v1200
  %v1303 = vadd.f32 %v1083, %v1202
  %v1304 = vadd.f32 %v1084, %v1204
  %v1305 = vadd.f32 %v1085, %v1206
  %v1306 = vadd.f32 %v1086, %v1208
  %v1307 = vadd.f32 %v1087, %v1210
  %v1308 = vadd.f32 %v1088, %v1212
  %v1309 = vadd.f32 %v1089, %v1214
  %v1310 = vadd.f32 %v1090, %v1216
  %v1311 = vadd.f32 %v1091, %v1218
  %v1312 = vadd.f32 %v1092, %v1220
  %v1313 = vadd.f32 %v1093, %v1222
  %v1314 = vadd.f32 %v1094, %v1224
  %v1315 = vadd.f32 %v1095, %v1226
  %v1316 = vadd.f32 %v1096, %v1228
  %v1317 = vadd.f32 %v1097, %v1230
  %v1318 = vadd.f32 %v1098, %v1232
  %v1319 = vadd.f32 %v1099, %v1234
  %v1320 = vadd.f32 %v1100, %v1236
  %v1321 = vadd.f32 %v1101, %v1238
  %v1322 = vadd.f32 %v1102, %v1240
  %v1323 = vadd.f32 %v1103, %v1242
  %v1324 = vadd.f32 %v1104, %v1244
  %v1325 = vadd.f32 %v1105, %v1246
  %v1326 = vadd.f32 %v1106, %v1248
  %v1327 = vadd.f32 %v1107, %v1250
  %v1328 = vadd.f32 %v1108, %v1252
  %v1329 = vadd.f32 %v1109, %v1254
  %v1330 = vadd.f32 %v1110, %v1256
  %v1331 = vadd.f32 %v1111, %v1258
  %v1332 = vadd.f32 %v1112, %v1260
  %v1333 = vadd.f32 %v1113, %v1262
  %v1334 = vadd.f32 %v1114, %v1264
  %v1335 = vadd.f32 %v1115, %v1266
  %v1336 = vadd.f32 %v1116, %v1268
  %v1337 = vadd.f32 %v1117, %v1270
  %v1338 = vadd.f32 %v1118, %v1272
  %v1339 = vadd.f32 %v1119, %v1274
  %v1340 = vadd.f32 %v1120, %v1276
  %v1341 = vadd.f32 %v1121, %v1278
  %v1342 = vadd.f32 %v1122, %v1280
  %v1343 = vadd.f32 %v1123, %v1282
  %v1344 = vadd.f32 %v1124, %v1284
  %v1345 = vadd.f32 %v1125, %v1286
  %v1346 = vadd.f32 %v1126, %v1288
  %v1347 = vadd.f32 %v1127, %v1290
  %v1348 = vadd.f32 %v1128, %v1292
  %v1349 = vadd.f32 %v1129, %v1294
  %v1350 = vld [vmem:[%s0 + $0x2e] sm:$0xff]
  %v1351 = vld [vmem:[%s0 + $0x36] sm:$0xff]
  %v1352 = vld [vmem:[%s0 + $0x3e] sm:$0xff]
  %v1353 = vld [vmem:[%s0 + $0x46] sm:$0xff]
  %v1354 = vld [vmem:[%s0 + $0x4e] sm:$0xff]
  %v1355 = vld [vmem:[%s0 + $0x56] sm:$0xff]
  %v1356 = vld [vmem:[%s0 + $0x5e] sm:$0xff]
  %v1357 = vld [vmem:[%s0 + $0x66] sm:$0xff]
  %v1358 = vld [vmem:[%s0 + $0x6e] sm:$0xff]
  %v1359 = vld [vmem:[%s0 + $0x76] sm:$0xff]
  %v1360 = vld [vmem:[%s0 + $0x7e] sm:$0xff]
  %v1361 = vld [vmem:[%s0 + $0x86] sm:$0xff]
  %v1362 = vld [vmem:[%s0 + $0x8e] sm:$0xff]
  %v1363 = vld [vmem:[%s0 + $0x96] sm:$0xff]
  %v1364 = vld [vmem:[%s0 + $0x9e] sm:$0xff]
  %v1365 = vld [vmem:[%s0 + $0xa6] sm:$0xff]
  %v1366 = vld [vmem:[%s0 + $0xae] sm:$0xff]
  %v1367 = vld [vmem:[%s0 + $0xb6] sm:$0xff]
  %v1368 = vld [vmem:[%s0 + $0xbe] sm:$0xff]
  %v1369 = vld [vmem:[%s0 + $0xc6] sm:$0xff]
  %v1370 = vld [vmem:[%s0 + $0xce] sm:$0xff]
  %v1371 = vld [vmem:[%s0 + $0xd6] sm:$0xff]
  %v1372 = vld [vmem:[%s0 + $0xde] sm:$0xff]
  %v1373 = vld [vmem:[%s0 + $0xe6] sm:$0xff]
  %v1374 = vld [vmem:[%s0 + $0xee] sm:$0xff]
  %v1375 = vld [vmem:[%s0 + $0xf6] sm:$0xff]
  %v1376 = vld [vmem:[%s0 + $0xfe] sm:$0xff]
  %v1377 = vld [vmem:[%s0 + $0x106] sm:$0xff]
  %v1378 = vld [vmem:[%s0 + $0x10e] sm:$0xff]
  %v1379 = vld [vmem:[%s0 + $0x116] sm:$0xff]
  %v1380 = vld [vmem:[%s0 + $0x11e] sm:$0xff]
  %v1381 = vld [vmem:[%s0 + $0x126] sm:$0xff]
  %v1382 = vld [vmem:[%s0 + $0x12e] sm:$0xff]
  %v1383 = vld [vmem:[%s0 + $0x136] sm:$0xff]
  %v1384 = vld [vmem:[%s0 + $0x13e] sm:$0xff]
  %v1385 = vld [vmem:[%s0 + $0x146] sm:$0xff]
  %v1386 = vld [vmem:[%s0 + $0x14e] sm:$0xff]
  %v1387 = vld [vmem:[%s0 + $0x156] sm:$0xff]
  %v1388 = vld [vmem:[%s0 + $0x15e] sm:$0xff]
  %v1389 = vld [vmem:[%s0 + $0x166] sm:$0xff]
  %v1390 = vld [vmem:[%s0 + $0x16e] sm:$0xff]
  %v1391 = vld [vmem:[%s0 + $0x176] sm:$0xff]
  %v1392 = vld [vmem:[%s0 + $0x17e] sm:$0xff]
  %v1393 = vld [vmem:[%s0 + $0x186] sm:$0xff]
  %v1394 = vld [vmem:[%s0 + $0x18e] sm:$0xff]
  %v1395 = vld [vmem:[%s0 + $0x196] sm:$0xff]
  %v1396 = vld [vmem:[%s0 + $0x19e] sm:$0xff]
  %v1397 = vld [vmem:[%s0 + $0x1a6] sm:$0xff]
  %v1398 = vld [vmem:[%s0 + $0x1ae] sm:$0xff]
  %v1399 = vld [vmem:[%s0 + $0x1b6] sm:$0xff]
  %v1400 = vld [vmem:[%s0 + $0x1be] sm:$0xff]
  %v1401 = vld [vmem:[%s0 + $0x1c6] sm:$0xff]
  %v1402 = vld [vmem:[%s0 + $0x1ce] sm:$0xff]
  %v1403 = vld [vmem:[%s0 + $0x1d6] sm:$0xff]
  %v1404 = vld [vmem:[%s0 + $0x1de] sm:$0xff]
  %1405 = vrot.lane.b32.xlu0 %v1350, 21
  %v1406 = vpop.permute.xlu0 %1405
  %1407 = vrot.lane.b32.xlu0 %v1351, 21
  %v1408 = vpop.permute.xlu0 %1407
  %1409 = vrot.lane.b32.xlu0 %v1352, 21
  %v1410 = vpop.permute.xlu0 %1409
  %1411 = vrot.lane.b32.xlu0 %v1353, 21
  %v1412 = vpop.permute.xlu0 %1411
  %1413 = vrot.lane.b32.xlu0 %v1354, 21
  %v1414 = vpop.permute.xlu0 %1413
  %1415 = vrot.lane.b32.xlu0 %v1355, 21
  %v1416 = vpop.permute.xlu0 %1415
  %1417 = vrot.lane.b32.xlu0 %v1356, 21
  %v1418 = vpop.permute.xlu0 %1417
  %1419 = vrot.lane.b32.xlu0 %v1357, 21
  %v1420 = vpop.permute.xlu0 %1419
  %1421 = vrot.lane.b32.xlu0 %v1358, 21
  %v1422 = vpop.permute.xlu0 %1421
  %1423 = vrot.lane.b32.xlu0 %v1359, 21
  %v1424 = vpop.permute.xlu0 %1423
  %1425 = vrot.lane.b32.xlu0 %v1360, 21
  %v1426 = vpop.permute.xlu0 %1425
  %1427 = vrot.lane.b32.xlu0 %v1361, 21
  %v1428 = vpop.permute.xlu0 %1427
  %1429 = vrot.lane.b32.xlu0 %v1362, 21
  %v1430 = vpop.permute.xlu0 %1429
  %1431 = vrot.lane.b32.xlu0 %v1363, 21
  %v1432 = vpop.permute.xlu0 %1431
  %1433 = vrot.lane.b32.xlu0 %v1364, 21
  %v1434 = vpop.permute.xlu0 %1433
  %1435 = vrot.lane.b32.xlu0 %v1365, 21
  %v1436 = vpop.permute.xlu0 %1435
  %1437 = vrot.lane.b32.xlu0 %v1366, 21
  %v1438 = vpop.permute.xlu0 %1437
  %1439 = vrot.lane.b32.xlu0 %v1367, 21
  %v1440 = vpop.permute.xlu0 %1439
  %1441 = vrot.lane.b32.xlu0 %v1368, 21
  %v1442 = vpop.permute.xlu0 %1441
  %1443 = vrot.lane.b32.xlu0 %v1369, 21
  %v1444 = vpop.permute.xlu0 %1443
  %1445 = vrot.lane.b32.xlu0 %v1370, 21
  %v1446 = vpop.permute.xlu0 %1445
  %1447 = vrot.lane.b32.xlu0 %v1371, 21
  %v1448 = vpop.permute.xlu0 %1447
  %1449 = vrot.lane.b32.xlu0 %v1372, 21
  %v1450 = vpop.permute.xlu0 %1449
  %1451 = vrot.lane.b32.xlu0 %v1373, 21
  %v1452 = vpop.permute.xlu0 %1451
  %1453 = vrot.lane.b32.xlu0 %v1374, 21
  %v1454 = vpop.permute.xlu0 %1453
  %1455 = vrot.lane.b32.xlu0 %v1375, 21
  %v1456 = vpop.permute.xlu0 %1455
  %1457 = vrot.lane.b32.xlu0 %v1376, 21
  %v1458 = vpop.permute.xlu0 %1457
  %1459 = vrot.lane.b32.xlu0 %v1377, 21
  %v1460 = vpop.permute.xlu0 %1459
  %1461 = vrot.lane.b32.xlu0 %v1378, 21
  %v1462 = vpop.permute.xlu0 %1461
  %1463 = vrot.lane.b32.xlu0 %v1379, 21
  %v1464 = vpop.permute.xlu0 %1463
  %1465 = vrot.lane.b32.xlu0 %v1380, 21
  %v1466 = vpop.permute.xlu0 %1465
  %1467 = vrot.lane.b32.xlu0 %v1381, 21
  %v1468 = vpop.permute.xlu0 %1467
  %1469 = vrot.lane.b32.xlu0 %v1382, 21
  %v1470 = vpop.permute.xlu0 %1469
  %1471 = vrot.lane.b32.xlu0 %v1383, 21
  %v1472 = vpop.permute.xlu0 %1471
  %1473 = vrot.lane.b32.xlu0 %v1384, 21
  %v1474 = vpop.permute.xlu0 %1473
  %1475 = vrot.lane.b32.xlu0 %v1385, 21
  %v1476 = vpop.permute.xlu0 %1475
  %1477 = vrot.lane.b32.xlu0 %v1386, 21
  %v1478 = vpop.permute.xlu0 %1477
  %1479 = vrot.lane.b32.xlu0 %v1387, 21
  %v1480 = vpop.permute.xlu0 %1479
  %1481 = vrot.lane.b32.xlu0 %v1388, 21
  %v1482 = vpop.permute.xlu0 %1481
  %1483 = vrot.lane.b32.xlu0 %v1389, 21
  %v1484 = vpop.permute.xlu0 %1483
  %1485 = vrot.lane.b32.xlu0 %v1390, 21
  %v1486 = vpop.permute.xlu0 %1485
  %1487 = vrot.lane.b32.xlu0 %v1391, 21
  %v1488 = vpop.permute.xlu0 %1487
  %1489 = vrot.lane.b32.xlu0 %v1392, 21
  %v1490 = vpop.permute.xlu0 %1489
  %1491 = vrot.lane.b32.xlu0 %v1393, 21
  %v1492 = vpop.permute.xlu0 %1491
  %1493 = vrot.lane.b32.xlu0 %v1394, 21
  %v1494 = vpop.permute.xlu0 %1493
  %1495 = vrot.lane.b32.xlu0 %v1395, 21
  %v1496 = vpop.permute.xlu0 %1495
  %1497 = vrot.lane.b32.xlu0 %v1396, 21
  %v1498 = vpop.permute.xlu0 %1497
  %1499 = vrot.lane.b32.xlu0 %v1397, 21
  %v1500 = vpop.permute.xlu0 %1499
  %1501 = vrot.lane.b32.xlu0 %v1398, 21
  %v1502 = vpop.permute.xlu0 %1501
  %1503 = vrot.lane.b32.xlu0 %v1399, 21
  %v1504 = vpop.permute.xlu0 %1503
  %1505 = vrot.lane.b32.xlu0 %v1400, 21
  %v1506 = vpop.permute.xlu0 %1505
  %1507 = vrot.lane.b32.xlu0 %v1401, 21
  %v1508 = vpop.permute.xlu0 %1507
  %1509 = vrot.lane.b32.xlu0 %v1402, 21
  %v1510 = vpop.permute.xlu0 %1509
  %1511 = vrot.lane.b32.xlu0 %v1403, 21
  %v1512 = vpop.permute.xlu0 %1511
  %1513 = vrot.lane.b32.xlu0 %v1404, 21
  %v1514 = vpop.permute.xlu0 %1513
  %v1515 = vadd.f32 %v1295, %v1406
  %v1516 = vadd.f32 %v1296, %v1408
  %v1517 = vadd.f32 %v1297, %v1410
  %v1518 = vadd.f32 %v1298, %v1412
  %v1519 = vadd.f32 %v1299, %v1414
  %v1520 = vadd.f32 %v1300, %v1416
  %v1521 = vadd.f32 %v1301, %v1418
  %v1522 = vadd.f32 %v1302, %v1420
  %v1523 = vadd.f32 %v1303, %v1422
  %v1524 = vadd.f32 %v1304, %v1424
  %v1525 = vadd.f32 %v1305, %v1426
  %v1526 = vadd.f32 %v1306, %v1428
  %v1527 = vadd.f32 %v1307, %v1430
  %v1528 = vadd.f32 %v1308, %v1432
  %v1529 = vadd.f32 %v1309, %v1434
  %v1530 = vadd.f32 %v1310, %v1436
  %v1531 = vadd.f32 %v1311, %v1438
  %v1532 = vadd.f32 %v1312, %v1440
  %v1533 = vadd.f32 %v1313, %v1442
  %v1534 = vadd.f32 %v1314, %v1444
  %v1535 = vadd.f32 %v1315, %v1446
  %v1536 = vadd.f32 %v1316, %v1448
  %v1537 = vadd.f32 %v1317, %v1450
  %v1538 = vadd.f32 %v1318, %v1452
  %v1539 = vadd.f32 %v1319, %v1454
  %v1540 = vadd.f32 %v1320, %v1456
  %v1541 = vadd.f32 %v1321, %v1458
  %v1542 = vadd.f32 %v1322, %v1460
  %v1543 = vadd.f32 %v1323, %v1462
  %v1544 = vadd.f32 %v1324, %v1464
  %v1545 = vadd.f32 %v1325, %v1466
  %v1546 = vadd.f32 %v1326, %v1468
  %v1547 = vadd.f32 %v1327, %v1470
  %v1548 = vadd.f32 %v1328, %v1472
  %v1549 = vadd.f32 %v1329, %v1474
  %v1550 = vadd.f32 %v1330, %v1476
  %v1551 = vadd.f32 %v1331, %v1478
  %v1552 = vadd.f32 %v1332, %v1480
  %v1553 = vadd.f32 %v1333, %v1482
  %v1554 = vadd.f32 %v1334, %v1484
  %v1555 = vadd.f32 %v1335, %v1486
  %v1556 = vadd.f32 %v1336, %v1488
  %v1557 = vadd.f32 %v1337, %v1490
  %v1558 = vadd.f32 %v1338, %v1492
  %v1559 = vadd.f32 %v1339, %v1494
  %v1560 = vadd.f32 %v1340, %v1496
  %v1561 = vadd.f32 %v1341, %v1498
  %v1562 = vadd.f32 %v1342, %v1500
  %v1563 = vadd.f32 %v1343, %v1502
  %v1564 = vadd.f32 %v1344, %v1504
  %v1565 = vadd.f32 %v1345, %v1506
  %v1566 = vadd.f32 %v1346, %v1508
  %v1567 = vadd.f32 %v1347, %v1510
  %v1568 = vadd.f32 %v1348, %v1512
  %v1569 = vadd.f32 %v1349, %v1514
  %v1570 = vld [vmem:[%s0 + $0x1cf] sm:$0xff]
  %v1571 = vld [vmem:[%s0 + $0x1d7] sm:$0xff]
  %v1572 = vld [vmem:[%s0 + $0x1df] sm:$0xff]
  %1573 = vrot.lane.b32.xlu0 %v525, 24
  %v1574 = vpop.permute.xlu0 %1573
  %1575 = vrot.lane.b32.xlu0 %v526, 24
  %v1576 = vpop.permute.xlu0 %1575
  %1577 = vrot.lane.b32.xlu0 %v527, 24
  %v1578 = vpop.permute.xlu0 %1577
  %1579 = vrot.lane.b32.xlu0 %v528, 24
  %v1580 = vpop.permute.xlu0 %1579
  %1581 = vrot.lane.b32.xlu0 %v529, 24
  %v1582 = vpop.permute.xlu0 %1581
  %1583 = vrot.lane.b32.xlu0 %v530, 24
  %v1584 = vpop.permute.xlu0 %1583
  %1585 = vrot.lane.b32.xlu0 %v531, 24
  %v1586 = vpop.permute.xlu0 %1585
  %1587 = vrot.lane.b32.xlu0 %v532, 24
  %v1588 = vpop.permute.xlu0 %1587
  %1589 = vrot.lane.b32.xlu0 %v533, 24
  %v1590 = vpop.permute.xlu0 %1589
  %1591 = vrot.lane.b32.xlu0 %v534, 24
  %v1592 = vpop.permute.xlu0 %1591
  %1593 = vrot.lane.b32.xlu0 %v535, 24
  %v1594 = vpop.permute.xlu0 %1593
  %1595 = vrot.lane.b32.xlu0 %v536, 24
  %v1596 = vpop.permute.xlu0 %1595
  %1597 = vrot.lane.b32.xlu0 %v537, 24
  %v1598 = vpop.permute.xlu0 %1597
  %1599 = vrot.lane.b32.xlu0 %v538, 24
  %v1600 = vpop.permute.xlu0 %1599
  %1601 = vrot.lane.b32.xlu0 %v539, 24
  %v1602 = vpop.permute.xlu0 %1601
  %1603 = vrot.lane.b32.xlu0 %v540, 24
  %v1604 = vpop.permute.xlu0 %1603
  %1605 = vrot.lane.b32.xlu0 %v541, 24
  %v1606 = vpop.permute.xlu0 %1605
  %1607 = vrot.lane.b32.xlu0 %v542, 24
  %v1608 = vpop.permute.xlu0 %1607
  %1609 = vrot.lane.b32.xlu0 %v543, 24
  %v1610 = vpop.permute.xlu0 %1609
  %1611 = vrot.lane.b32.xlu0 %v544, 24
  %v1612 = vpop.permute.xlu0 %1611
  %1613 = vrot.lane.b32.xlu0 %v545, 24
  %v1614 = vpop.permute.xlu0 %1613
  %1615 = vrot.lane.b32.xlu0 %v546, 24
  %v1616 = vpop.permute.xlu0 %1615
  %1617 = vrot.lane.b32.xlu0 %v547, 24
  %v1618 = vpop.permute.xlu0 %1617
  %1619 = vrot.lane.b32.xlu0 %v548, 24
  %v1620 = vpop.permute.xlu0 %1619
  %1621 = vrot.lane.b32.xlu0 %v549, 24
  %v1622 = vpop.permute.xlu0 %1621
  %1623 = vrot.lane.b32.xlu0 %v550, 24
  %v1624 = vpop.permute.xlu0 %1623
  %1625 = vrot.lane.b32.xlu0 %v551, 24
  %v1626 = vpop.permute.xlu0 %1625
  %1627 = vrot.lane.b32.xlu0 %v552, 24
  %v1628 = vpop.permute.xlu0 %1627
  %1629 = vrot.lane.b32.xlu0 %v553, 24
  %v1630 = vpop.permute.xlu0 %1629
  %1631 = vrot.lane.b32.xlu0 %v554, 24
  %v1632 = vpop.permute.xlu0 %1631
  %1633 = vrot.lane.b32.xlu0 %v555, 24
  %v1634 = vpop.permute.xlu0 %1633
  %1635 = vrot.lane.b32.xlu0 %v556, 24
  %v1636 = vpop.permute.xlu0 %1635
  %1637 = vrot.lane.b32.xlu0 %v557, 24
  %v1638 = vpop.permute.xlu0 %1637
  %1639 = vrot.lane.b32.xlu0 %v558, 24
  %v1640 = vpop.permute.xlu0 %1639
  %1641 = vrot.lane.b32.xlu0 %v559, 24
  %v1642 = vpop.permute.xlu0 %1641
  %1643 = vrot.lane.b32.xlu0 %v560, 24
  %v1644 = vpop.permute.xlu0 %1643
  %1645 = vrot.lane.b32.xlu0 %v561, 24
  %v1646 = vpop.permute.xlu0 %1645
  %1647 = vrot.lane.b32.xlu0 %v562, 24
  %v1648 = vpop.permute.xlu0 %1647
  %1649 = vrot.lane.b32.xlu0 %v563, 24
  %v1650 = vpop.permute.xlu0 %1649
  %1651 = vrot.lane.b32.xlu0 %v564, 24
  %v1652 = vpop.permute.xlu0 %1651
  %1653 = vrot.lane.b32.xlu0 %v565, 24
  %v1654 = vpop.permute.xlu0 %1653
  %1655 = vrot.lane.b32.xlu0 %v566, 24
  %v1656 = vpop.permute.xlu0 %1655
  %1657 = vrot.lane.b32.xlu0 %v567, 24
  %v1658 = vpop.permute.xlu0 %1657
  %1659 = vrot.lane.b32.xlu0 %v568, 24
  %v1660 = vpop.permute.xlu0 %1659
  %1661 = vrot.lane.b32.xlu0 %v569, 24
  %v1662 = vpop.permute.xlu0 %1661
  %1663 = vrot.lane.b32.xlu0 %v570, 24
  %v1664 = vpop.permute.xlu0 %1663
  %1665 = vrot.lane.b32.xlu0 %v571, 24
  %v1666 = vpop.permute.xlu0 %1665
  %1667 = vrot.lane.b32.xlu0 %v572, 24
  %v1668 = vpop.permute.xlu0 %1667
  %1669 = vrot.lane.b32.xlu0 %v573, 24
  %v1670 = vpop.permute.xlu0 %1669
  %1671 = vrot.lane.b32.xlu0 %v574, 24
  %v1672 = vpop.permute.xlu0 %1671
  %1673 = vrot.lane.b32.xlu0 %v575, 24
  %v1674 = vpop.permute.xlu0 %1673
  %1675 = vrot.lane.b32.xlu0 %v576, 24
  %v1676 = vpop.permute.xlu0 %1675
  %1677 = vrot.lane.b32.xlu0 %v1570, 24
  %v1678 = vpop.permute.xlu0 %1677
  %1679 = vrot.lane.b32.xlu0 %v1571, 24
  %v1680 = vpop.permute.xlu0 %1679
  %1681 = vrot.lane.b32.xlu0 %v1572, 24
  %v1682 = vpop.permute.xlu0 %1681
  %v1683 = vadd.f32 %v1515, %v1574
  %v1684 = vadd.f32 %v1516, %v1576
  %v1685 = vadd.f32 %v1517, %v1578
  %v1686 = vadd.f32 %v1518, %v1580
  %v1687 = vadd.f32 %v1519, %v1582
  %v1688 = vadd.f32 %v1520, %v1584
  %v1689 = vadd.f32 %v1521, %v1586
  %v1690 = vadd.f32 %v1522, %v1588
  %v1691 = vadd.f32 %v1523, %v1590
  %v1692 = vadd.f32 %v1524, %v1592
  %v1693 = vadd.f32 %v1525, %v1594
  %v1694 = vadd.f32 %v1526, %v1596
  %v1695 = vadd.f32 %v1527, %v1598
  %v1696 = vadd.f32 %v1528, %v1600
  %v1697 = vadd.f32 %v1529, %v1602
  %v1698 = vadd.f32 %v1530, %v1604
  %v1699 = vadd.f32 %v1531, %v1606
  %v1700 = vadd.f32 %v1532, %v1608
  %v1701 = vadd.f32 %v1533, %v1610
  %v1702 = vadd.f32 %v1534, %v1612
  %v1703 = vadd.f32 %v1535, %v1614
  %v1704 = vadd.f32 %v1536, %v1616
  %v1705 = vadd.f32 %v1537, %v1618
  %v1706 = vadd.f32 %v1538, %v1620
  %v1707 = vadd.f32 %v1539, %v1622
  %v1708 = vadd.f32 %v1540, %v1624
  %v1709 = vadd.f32 %v1541, %v1626
  %v1710 = vadd.f32 %v1542, %v1628
  %v1711 = vadd.f32 %v1543, %v1630
  %v1712 = vadd.f32 %v1544, %v1632
  %v1713 = vadd.f32 %v1545, %v1634
  %v1714 = vadd.f32 %v1546, %v1636
  %v1715 = vadd.f32 %v1547, %v1638
  %v1716 = vadd.f32 %v1548, %v1640
  %v1717 = vadd.f32 %v1549, %v1642
  %v1718 = vadd.f32 %v1550, %v1644
  %v1719 = vadd.f32 %v1551, %v1646
  %v1720 = vadd.f32 %v1552, %v1648
  %v1721 = vadd.f32 %v1553, %v1650
  %v1722 = vadd.f32 %v1554, %v1652
  %v1723 = vadd.f32 %v1555, %v1654
  %v1724 = vadd.f32 %v1556, %v1656
  %v1725 = vadd.f32 %v1557, %v1658
  %v1726 = vadd.f32 %v1558, %v1660
  %v1727 = vadd.f32 %v1559, %v1662
  %v1728 = vadd.f32 %v1560, %v1664
  %v1729 = vadd.f32 %v1561, %v1666
  %v1730 = vadd.f32 %v1562, %v1668
  %v1731 = vadd.f32 %v1563, %v1670
  %v1732 = vadd.f32 %v1564, %v1672
  %v1733 = vadd.f32 %v1565, %v1674
  %v1734 = vadd.f32 %v1566, %v1676
  %v1735 = vadd.f32 %v1567, %v1678
  %v1736 = vadd.f32 %v1568, %v1680
  %v1737 = vadd.f32 %v1569, %v1682
  %v1738 = vpack.c.bf16 %v1684, %v1683
  %v1739 = vpack.c.bf16 %v1686, %v1685
  %v1740 = vpack.c.bf16 %v1688, %v1687
  %v1741 = vpack.c.bf16 %v1690, %v1689
  %v1742 = vpack.c.bf16 %v1692, %v1691
  %v1743 = vpack.c.bf16 %v1694, %v1693
  %v1744 = vpack.c.bf16 %v1696, %v1695
  %v1745 = vpack.c.bf16 %v1698, %v1697
  %v1746 = vpack.c.bf16 %v1700, %v1699
  %v1747 = vpack.c.bf16 %v1702, %v1701
  %v1748 = vpack.c.bf16 %v1704, %v1703
  %v1749 = vpack.c.bf16 %v1706, %v1705
  %v1750 = vpack.c.bf16 %v1708, %v1707
  %v1751 = vpack.c.bf16 %v1710, %v1709
  %v1752 = vpack.c.bf16 %v1712, %v1711
  %v1753 = vpack.c.bf16 %v1714, %v1713
  %v1754 = vpack.c.bf16 %v1716, %v1715
  %v1755 = vpack.c.bf16 %v1718, %v1717
  %v1756 = vpack.c.bf16 %v1720, %v1719
  %v1757 = vpack.c.bf16 %v1722, %v1721
  %v1758 = vpack.c.bf16 %v1724, %v1723
  %v1759 = vpack.c.bf16 %v1726, %v1725
  %v1760 = vpack.c.bf16 %v1728, %v1727
  %v1761 = vpack.c.bf16 %v1730, %v1729
  %v1762 = vpack.c.bf16 %v1732, %v1731
  %v1763 = vpack.c.bf16 %v1734, %v1733
  %v1764 = vpack.c.bf16 %v1736, %v1735
  %v1765 = vpack.c.bf16 %v1737, %v1737
  %v1766 = vld [vmem:[%s1] sm:$0xf]
  %v1767 = vld [vmem:[%s1 + $0x4] sm:$0xf]
  %v1768 = vld [vmem:[%s1 + $0x8] sm:$0xf]
  %v1769 = vld [vmem:[%s1 + $0xc] sm:$0xf]
  %v1770 = vld [vmem:[%s1 + $0x10] sm:$0xf]
  %v1771 = vld [vmem:[%s1 + $0x14] sm:$0xf]
  %v1772 = vld [vmem:[%s1 + $0x18] sm:$0xf]
  %v1773 = vld [vmem:[%s1 + $0x1c] sm:$0xf]
  %v1774 = vld [vmem:[%s1 + $0x20] sm:$0xf]
  %v1775 = vld [vmem:[%s1 + $0x24] sm:$0xf]
  %v1776 = vld [vmem:[%s1 + $0x28] sm:$0xf]
  %v1777 = vld [vmem:[%s1 + $0x2c] sm:$0xf]
  %v1778 = vld [vmem:[%s1 + $0x30] sm:$0xf]
  %v1779 = vld [vmem:[%s1 + $0x34] sm:$0xf]
  %v1780 = vld [vmem:[%s1 + $0x38] sm:$0xf]
  %v1781 = vld [vmem:[%s1 + $0x3c] sm:$0xf]
  %v1782 = vld [vmem:[%s3] sm:$0x1]
  %v1783 = vlaneseq
  %v1784 = vshrl.u32 %v1783, 7
  %v1785 = vsub.s32 0, %v1784
  %v1786 = vrot.slane %v1782, %v1785
  %v1803 = vunpack.c.l.b16 %v1766
  %v1804 = vunpack.c.l.b16 %v1767
  %v1805 = vunpack.c.l.b16 %v1768
  %v1806 = vunpack.c.l.b16 %v1769
  %v1807 = vunpack.c.l.b16 %v1770
  %v1808 = vunpack.c.l.b16 %v1771
  %v1809 = vunpack.c.l.b16 %v1772
  %v1810 = vunpack.c.l.b16 %v1773
  %v1811 = vunpack.c.l.b16 %v1774
  %v1812 = vunpack.c.l.b16 %v1775
  %v1813 = vunpack.c.l.b16 %v1776
  %v1814 = vunpack.c.l.b16 %v1777
  %v1815 = vunpack.c.l.b16 %v1778
  %v1816 = vunpack.c.l.b16 %v1779
  %v1817 = vunpack.c.l.b16 %v1780
  %v1818 = vunpack.c.l.b16 %v1781
  %v1819 = vpack.c.b16 %v1804, %v1803
  %v1820 = vpack.c.b16 %v1806, %v1805
  %v1821 = vpack.c.b16 %v1808, %v1807
  %v1822 = vpack.c.b16 %v1810, %v1809
  %v1823 = vpack.c.b16 %v1812, %v1811
  %v1824 = vpack.c.b16 %v1814, %v1813
  %v1825 = vpack.c.b16 %v1816, %v1815
  %v1826 = vpack.c.b16 %v1818, %v1817
  %1835 = vmatprep.subr.bf16.mxu0 0
  %1836 = vmatpush1.bf16.msra.mxu0 %v1819
  %1837 = vmatprep.subr.bf16.mxu0 0
  %1838 = vmatpush1.bf16.msra.mxu0 %v1820
  %1839 = vmatprep.subr.bf16.mxu0 0
  %1840 = vmatpush1.bf16.msra.mxu0 %v1821
  %1841 = vmatprep.subr.bf16.mxu0 0
  %1842 = vmatpush1.bf16.msra.mxu0 %v1822
  %1843 = vmatprep.subr.bf16.mxu0 0
  %1844 = vmatpush1.bf16.msra.mxu0 %v1823
  %1845 = vmatprep.subr.bf16.mxu0 0
  %1846 = vmatpush1.bf16.msra.mxu0 %v1824
  %1847 = vmatprep.subr.bf16.mxu0 0
  %1848 = vmatpush1.bf16.msra.mxu0 %v1825
  %1849 = vmatprep.subr.bf16.mxu0 0
  %1850 = vmatpush1.bf16.msra.mxu0 %v1826
  %1851 = vmatprep.subr.bf16.mxu0 0
  %1852 = vmatpush1.bf16.msra.mxu0 0
  %1853 = vmatprep.subr.bf16.mxu0 0
  %1854 = vmatpush1.bf16.msra.mxu0 0
  %1855 = vmatprep.subr.bf16.mxu0 0
  %1856 = vmatpush1.bf16.msra.mxu0 0
  %1857 = vmatprep.subr.bf16.mxu0 0
  %1858 = vmatpush1.bf16.msra.mxu0 0
  %1859 = vmatprep.subr.bf16.mxu0 0
  %1860 = vmatpush1.bf16.msra.mxu0 0
  %1861 = vmatprep.subr.bf16.mxu0 0
  %1862 = vmatpush1.bf16.msra.mxu0 0
  %1863 = vmatprep.subr.bf16.mxu0 0
  %1864 = vmatpush1.bf16.msra.mxu0 0
  %1865 = vmatprep.subr.bf16.mxu0 0
  %1866 = vmatpush1.bf16.msra.mxu0 0
  %1867 = vmatprep.mubr.bf16.mxu0 0
  %1868 = vmatmul.mubr.bf16.gmra.mrb[0].mxu0 %v1738
  %v1869 = vpop.f32.mrb[0].mxu0
  %v1870 = vadd.f32 %v1786, %v1869
  %v1871 = vpop.f32.mrb[0].mxu0
  %v1872 = vpop.f32.mrb[0].mxu0
  %v1873 = vadd.f32 %v1786, %v1872
  %v1874 = vpop.f32.mrb[0].mxu0
  %1875 = vmatprep.mubr.bf16.mxu0 0
  %1876 = vmatmul.mubr.bf16.gmra.mrb[0].mxu0 %v1739
  %v1877 = vpop.f32.mrb[0].mxu0
  %v1878 = vadd.f32 %v1786, %v1877
  %v1879 = vpop.f32.mrb[0].mxu0
  %v1880 = vpop.f32.mrb[0].mxu0
  %v1881 = vadd.f32 %v1786, %v1880
  %v1882 = vpop.f32.mrb[0].mxu0
  %1883 = vmatprep.mubr.bf16.mxu0 0
  %1884 = vmatmul.mubr.bf16.gmra.mrb[0].mxu0 %v1740
  %v1885 = vpop.f32.mrb[0].mxu0
  %v1886 = vadd.f32 %v1786, %v1885
  %v1887 = vpop.f32.mrb[0].mxu0
  %v1888 = vpop.f32.mrb[0].mxu0
  %v1889 = vadd.f32 %v1786, %v1888
  %v1890 = vpop.f32.mrb[0].mxu0
  %1891 = vmatprep.mubr.bf16.mxu0 0
  %1892 = vmatmul.mubr.bf16.gmra.mrb[0].mxu0 %v1741
  %v1893 = vpop.f32.mrb[0].mxu0
  %v1894 = vadd.f32 %v1786, %v1893
  %v1895 = vpop.f32.mrb[0].mxu0
  %v1896 = vpop.f32.mrb[0].mxu0
  %v1897 = vadd.f32 %v1786, %v1896
  %v1898 = vpop.f32.mrb[0].mxu0
  %1899 = vmatprep.mubr.bf16.mxu0 0
  %1900 = vmatmul.mubr.bf16.gmra.mrb[0].mxu0 %v1742
  %v1901 = vpop.f32.mrb[0].mxu0
  %v1902 = vadd.f32 %v1786, %v1901
  %v1903 = vpop.f32.mrb[0].mxu0
  %v1904 = vpop.f32.mrb[0].mxu0
  %v1905 = vadd.f32 %v1786, %v1904
  %v1906 = vpop.f32.mrb[0].mxu0
  %1907 = vmatprep.mubr.bf16.mxu0 0
  %1908 = vmatmul.mubr.bf16.gmra.mrb[0].mxu0 %v1743
  %v1909 = vpop.f32.mrb[0].mxu0
  %v1910 = vadd.f32 %v1786, %v1909
  %v1911 = vpop.f32.mrb[0].mxu0
  %v1912 = vpop.f32.mrb[0].mxu0
  %v1913 = vadd.f32 %v1786, %v1912
  %v1914 = vpop.f32.mrb[0].mxu0
  %1915 = vmatprep.mubr.bf16.mxu0 0
  %1916 = vmatmul.mubr.bf16.gmra.mrb[0].mxu0 %v1744
  %v1917 = vpop.f32.mrb[0].mxu0
  %v1918 = vadd.f32 %v1786, %v1917
  %v1919 = vpop.f32.mrb[0].mxu0
  %v1920 = vpop.f32.mrb[0].mxu0
  %v1921 = vadd.f32 %v1786, %v1920
  %v1922 = vpop.f32.mrb[0].mxu0
  %1923 = vmatprep.mubr.bf16.mxu0 0
  %1924 = vmatmul.mubr.bf16.gmra.mrb[0].mxu0 %v1745
  %v1925 = vpop.f32.mrb[0].mxu0
  %v1926 = vadd.f32 %v1786, %v1925
  %v1927 = vpop.f32.mrb[0].mxu0
  %v1928 = vpop.f32.mrb[0].mxu0
  %v1929 = vadd.f32 %v1786, %v1928
  %v1930 = vpop.f32.mrb[0].mxu0
  %1931 = vmatprep.mubr.bf16.mxu0 0
  %1932 = vmatmul.mubr.bf16.gmra.mrb[0].mxu0 %v1746
  %v1933 = vpop.f32.mrb[0].mxu0
  %v1934 = vadd.f32 %v1786, %v1933
  %v1935 = vpop.f32.mrb[0].mxu0
  %v1936 = vpop.f32.mrb[0].mxu0
  %v1937 = vadd.f32 %v1786, %v1936
  %v1938 = vpop.f32.mrb[0].mxu0
  %1939 = vmatprep.mubr.bf16.mxu0 0
  %1940 = vmatmul.mubr.bf16.gmra.mrb[0].mxu0 %v1747
  %v1941 = vpop.f32.mrb[0].mxu0
  %v1942 = vadd.f32 %v1786, %v1941
  %v1943 = vpop.f32.mrb[0].mxu0
  %v1944 = vpop.f32.mrb[0].mxu0
  %v1945 = vadd.f32 %v1786, %v1944
  %v1946 = vpop.f32.mrb[0].mxu0
  %1947 = vmatprep.mubr.bf16.mxu0 0
  %1948 = vmatmul.mubr.bf16.gmra.mrb[0].mxu0 %v1748
  %v1949 = vpop.f32.mrb[0].mxu0
  %v1950 = vadd.f32 %v1786, %v1949
  %v1951 = vpop.f32.mrb[0].mxu0
  %v1952 = vpop.f32.mrb[0].mxu0
  %v1953 = vadd.f32 %v1786, %v1952
  %v1954 = vpop.f32.mrb[0].mxu0
  %1955 = vmatprep.mubr.bf16.mxu0 0
  %1956 = vmatmul.mubr.bf16.gmra.mrb[0].mxu0 %v1749
  %v1957 = vpop.f32.mrb[0].mxu0
  %v1958 = vadd.f32 %v1786, %v1957
  %v1959 = vpop.f32.mrb[0].mxu0
  %v1960 = vpop.f32.mrb[0].mxu0
  %v1961 = vadd.f32 %v1786, %v1960
  %v1962 = vpop.f32.mrb[0].mxu0
  %1963 = vmatprep.mubr.bf16.mxu0 0
  %1964 = vmatmul.mubr.bf16.gmra.mrb[0].mxu0 %v1750
  %v1965 = vpop.f32.mrb[0].mxu0
  %v1966 = vadd.f32 %v1786, %v1965
  %v1967 = vpop.f32.mrb[0].mxu0
  %v1968 = vpop.f32.mrb[0].mxu0
  %v1969 = vadd.f32 %v1786, %v1968
  %v1970 = vpop.f32.mrb[0].mxu0
  %1971 = vmatprep.mubr.bf16.mxu0 0
  %1972 = vmatmul.mubr.bf16.gmra.mrb[0].mxu0 %v1751
  %v1973 = vpop.f32.mrb[0].mxu0
  %v1974 = vadd.f32 %v1786, %v1973
  %v1975 = vpop.f32.mrb[0].mxu0
  %v1976 = vpop.f32.mrb[0].mxu0
  %v1977 = vadd.f32 %v1786, %v1976
  %v1978 = vpop.f32.mrb[0].mxu0
  %1979 = vmatprep.mubr.bf16.mxu0 0
  %1980 = vmatmul.mubr.bf16.gmra.mrb[0].mxu0 %v1752
  %v1981 = vpop.f32.mrb[0].mxu0
  %v1982 = vadd.f32 %v1786, %v1981
  %v1983 = vpop.f32.mrb[0].mxu0
  %v1984 = vpop.f32.mrb[0].mxu0
  %v1985 = vadd.f32 %v1786, %v1984
  %v1986 = vpop.f32.mrb[0].mxu0
  %1987 = vmatprep.mubr.bf16.mxu0 0
  %1988 = vmatmul.mubr.bf16.gmra.mrb[0].mxu0 %v1753
  %v1989 = vpop.f32.mrb[0].mxu0
  %v1990 = vadd.f32 %v1786, %v1989
  %v1991 = vpop.f32.mrb[0].mxu0
  %v1992 = vpop.f32.mrb[0].mxu0
  %v1993 = vadd.f32 %v1786, %v1992
  %v1994 = vpop.f32.mrb[0].mxu0
  %1995 = vmatprep.mubr.bf16.mxu0 0
  %1996 = vmatmul.mubr.bf16.gmra.mrb[0].mxu0 %v1754
  %v1997 = vpop.f32.mrb[0].mxu0
  %v1998 = vadd.f32 %v1786, %v1997
  %v1999 = vpop.f32.mrb[0].mxu0
  %v2000 = vpop.f32.mrb[0].mxu0
  %v2001 = vadd.f32 %v1786, %v2000
  %v2002 = vpop.f32.mrb[0].mxu0
  %2003 = vmatprep.mubr.bf16.mxu0 0
  %2004 = vmatmul.mubr.bf16.gmra.mrb[0].mxu0 %v1755
  %v2005 = vpop.f32.mrb[0].mxu0
  %v2006 = vadd.f32 %v1786, %v2005
  %v2007 = vpop.f32.mrb[0].mxu0
  %v2008 = vpop.f32.mrb[0].mxu0
  %v2009 = vadd.f32 %v1786, %v2008
  %v2010 = vpop.f32.mrb[0].mxu0
  %2011 = vmatprep.mubr.bf16.mxu0 0
  %2012 = vmatmul.mubr.bf16.gmra.mrb[0].mxu0 %v1756
  %v2013 = vpop.f32.mrb[0].mxu0
  %v2014 = vadd.f32 %v1786, %v2013
  %v2015 = vpop.f32.mrb[0].mxu0
  %v2016 = vpop.f32.mrb[0].mxu0
  %v2017 = vadd.f32 %v1786, %v2016
  %v2018 = vpop.f32.mrb[0].mxu0
  %2019 = vmatprep.mubr.bf16.mxu0 0
  %2020 = vmatmul.mubr.bf16.gmra.mrb[0].mxu0 %v1757
  %v2021 = vpop.f32.mrb[0].mxu0
  %v2022 = vadd.f32 %v1786, %v2021
  %v2023 = vpop.f32.mrb[0].mxu0
  %v2024 = vpop.f32.mrb[0].mxu0
  %v2025 = vadd.f32 %v1786, %v2024
  %v2026 = vpop.f32.mrb[0].mxu0
  %2027 = vmatprep.mubr.bf16.mxu0 0
  %2028 = vmatmul.mubr.bf16.gmra.mrb[0].mxu0 %v1758
  %v2029 = vpop.f32.mrb[0].mxu0
  %v2030 = vadd.f32 %v1786, %v2029
  %v2031 = vpop.f32.mrb[0].mxu0
  %v2032 = vpop.f32.mrb[0].mxu0
  %v2033 = vadd.f32 %v1786, %v2032
  %v2034 = vpop.f32.mrb[0].mxu0
  %2035 = vmatprep.mubr.bf16.mxu0 0
  %2036 = vmatmul.mubr.bf16.gmra.mrb[0].mxu0 %v1759
  %v2037 = vpop.f32.mrb[0].mxu0
  %v2038 = vadd.f32 %v1786, %v2037
  %v2039 = vpop.f32.mrb[0].mxu0
  %v2040 = vpop.f32.mrb[0].mxu0
  %v2041 = vadd.f32 %v1786, %v2040
  %v2042 = vpop.f32.mrb[0].mxu0
  %2043 = vmatprep.mubr.bf16.mxu0 0
  %2044 = vmatmul.mubr.bf16.gmra.mrb[0].mxu0 %v1760
  %v2045 = vpop.f32.mrb[0].mxu0
  %v2046 = vadd.f32 %v1786, %v2045
  %v2047 = vpop.f32.mrb[0].mxu0
  %v2048 = vpop.f32.mrb[0].mxu0
  %v2049 = vadd.f32 %v1786, %v2048
  %v2050 = vpop.f32.mrb[0].mxu0
  %2051 = vmatprep.mubr.bf16.mxu0 0
  %2052 = vmatmul.mubr.bf16.gmra.mrb[0].mxu0 %v1761
  %v2053 = vpop.f32.mrb[0].mxu0
  %v2054 = vadd.f32 %v1786, %v2053
  %v2055 = vpop.f32.mrb[0].mxu0
  %v2056 = vpop.f32.mrb[0].mxu0
  %v2057 = vadd.f32 %v1786, %v2056
  %v2058 = vpop.f32.mrb[0].mxu0
  %2059 = vmatprep.mubr.bf16.mxu0 0
  %2060 = vmatmul.mubr.bf16.gmra.mrb[0].mxu0 %v1762
  %v2061 = vpop.f32.mrb[0].mxu0
  %v2062 = vadd.f32 %v1786, %v2061
  %v2063 = vpop.f32.mrb[0].mxu0
  %v2064 = vpop.f32.mrb[0].mxu0
  %v2065 = vadd.f32 %v1786, %v2064
  %v2066 = vpop.f32.mrb[0].mxu0
  %2067 = vmatprep.mubr.bf16.mxu0 0
  %2068 = vmatmul.mubr.bf16.gmra.mrb[0].mxu0 %v1763
  %v2069 = vpop.f32.mrb[0].mxu0
  %v2070 = vadd.f32 %v1786, %v2069
  %v2071 = vpop.f32.mrb[0].mxu0
  %v2072 = vpop.f32.mrb[0].mxu0
  %v2073 = vadd.f32 %v1786, %v2072
  %v2074 = vpop.f32.mrb[0].mxu0
  %2075 = vmatprep.mubr.bf16.mxu0 0
  %2076 = vmatmul.mubr.bf16.gmra.mrb[0].mxu0 %v1764
  %v2077 = vpop.f32.mrb[0].mxu0
  %v2078 = vadd.f32 %v1786, %v2077
  %v2079 = vpop.f32.mrb[0].mxu0
  %v2080 = vpop.f32.mrb[0].mxu0
  %v2081 = vadd.f32 %v1786, %v2080
  %v2082 = vpop.f32.mrb[0].mxu0
  %2083 = vmatprep.mubr.bf16.mxu0 0
  %2084 = vmatmul.mubr.bf16.gmra.mrb[0].mxu0 %v1765
  %v2085 = vpop.f32.mrb[0].mxu0
  %v2086 = vadd.f32 %v1786, %v2085
  %v2087 = vpop.f32.mrb[0].mxu0
  %v2088 = vpop.f32.mrb[0].mxu0
  %v2089 = vpop.f32.mrb[0].mxu0
  %2090 = vdwg.mxu0
  %v2091 = vmax.f32 %v1870, 0.0
  %v2092 = vmax.f32 %v1873, 0.0
  %v2093 = vmax.f32 %v1878, 0.0
  %v2094 = vmax.f32 %v1881, 0.0
  %v2095 = vmax.f32 %v1886, 0.0
  %v2096 = vmax.f32 %v1889, 0.0
  %v2097 = vmax.f32 %v1894, 0.0
  %v2098 = vmax.f32 %v1897, 0.0
  %v2099 = vmax.f32 %v1902, 0.0
  %v2100 = vmax.f32 %v1905, 0.0
  %v2101 = vmax.f32 %v1910, 0.0
  %v2102 = vmax.f32 %v1913, 0.0
  %v2103 = vmax.f32 %v1918, 0.0
  %v2104 = vmax.f32 %v1921, 0.0
  %v2105 = vmax.f32 %v1926, 0.0
  %v2106 = vmax.f32 %v1929, 0.0
  %v2107 = vmax.f32 %v1934, 0.0
  %v2108 = vmax.f32 %v1937, 0.0
  %v2109 = vmax.f32 %v1942, 0.0
  %v2110 = vmax.f32 %v1945, 0.0
  %v2111 = vmax.f32 %v1950, 0.0
  %v2112 = vmax.f32 %v1953, 0.0
  %v2113 = vmax.f32 %v1958, 0.0
  %v2114 = vmax.f32 %v1961, 0.0
  %v2115 = vmax.f32 %v1966, 0.0
  %v2116 = vmax.f32 %v1969, 0.0
  %v2117 = vmax.f32 %v1974, 0.0
  %v2118 = vmax.f32 %v1977, 0.0
  %v2119 = vmax.f32 %v1982, 0.0
  %v2120 = vmax.f32 %v1985, 0.0
  %v2121 = vmax.f32 %v1990, 0.0
  %v2122 = vmax.f32 %v1993, 0.0
  %v2123 = vmax.f32 %v1998, 0.0
  %v2124 = vmax.f32 %v2001, 0.0
  %v2125 = vmax.f32 %v2006, 0.0
  %v2126 = vmax.f32 %v2009, 0.0
  %v2127 = vmax.f32 %v2014, 0.0
  %v2128 = vmax.f32 %v2017, 0.0
  %v2129 = vmax.f32 %v2022, 0.0
  %v2130 = vmax.f32 %v2025, 0.0
  %v2131 = vmax.f32 %v2030, 0.0
  %v2132 = vmax.f32 %v2033, 0.0
  %v2133 = vmax.f32 %v2038, 0.0
  %v2134 = vmax.f32 %v2041, 0.0
  %v2135 = vmax.f32 %v2046, 0.0
  %v2136 = vmax.f32 %v2049, 0.0
  %v2137 = vmax.f32 %v2054, 0.0
  %v2138 = vmax.f32 %v2057, 0.0
  %v2139 = vmax.f32 %v2062, 0.0
  %v2140 = vmax.f32 %v2065, 0.0
  %v2141 = vmax.f32 %v2070, 0.0
  %v2142 = vmax.f32 %v2073, 0.0
  %v2143 = vmax.f32 %v2078, 0.0
  %v2144 = vmax.f32 %v2081, 0.0
  %v2145 = vmax.f32 %v2086, 0.0
  %v2146 = vld [vmem:[%s4] sm:$0xff]
  %v2147 = vld [vmem:[%s4 + $0x8] sm:$0xff]
  %v2148 = vld [vmem:[%s4 + $0x10] sm:$0xff]
  %v2149 = vld [vmem:[%s4 + $0x18] sm:$0xff]
  %v2150 = vld [vmem:[%s4 + $0x20] sm:$0xff]
  %v2151 = vld [vmem:[%s4 + $0x28] sm:$0xff]
  %v2152 = vld [vmem:[%s4 + $0x30] sm:$0xff]
  %v2153 = vld [vmem:[%s4 + $0x38] sm:$0xff]
  %v2154 = vld [vmem:[%s4 + $0x40] sm:$0xff]
  %v2155 = vld [vmem:[%s4 + $0x48] sm:$0xff]
  %v2156 = vld [vmem:[%s4 + $0x50] sm:$0xff]
  %v2157 = vld [vmem:[%s4 + $0x58] sm:$0xff]
  %v2158 = vld [vmem:[%s4 + $0x60] sm:$0xff]
  %v2159 = vld [vmem:[%s4 + $0x68] sm:$0xff]
  %v2160 = vld [vmem:[%s4 + $0x70] sm:$0xff]
  %v2161 = vld [vmem:[%s4 + $0x78] sm:$0xff]
  %v2162 = vld [vmem:[%s4 + $0x80] sm:$0xff]
  %v2163 = vld [vmem:[%s4 + $0x88] sm:$0xff]
  %v2164 = vld [vmem:[%s4 + $0x90] sm:$0xff]
  %v2165 = vld [vmem:[%s4 + $0x98] sm:$0xff]
  %v2166 = vld [vmem:[%s4 + $0xa0] sm:$0xff]
  %v2167 = vld [vmem:[%s4 + $0xa8] sm:$0xff]
  %v2168 = vld [vmem:[%s4 + $0xb0] sm:$0xff]
  %v2169 = vld [vmem:[%s4 + $0xb8] sm:$0xff]
  %v2170 = vld [vmem:[%s4 + $0xc0] sm:$0xff]
  %v2171 = vld [vmem:[%s4 + $0xc8] sm:$0xff]
  %v2172 = vld [vmem:[%s4 + $0xd0] sm:$0xff]
  %v2173 = vld [vmem:[%s4 + $0xd8] sm:$0xff]
  %v2174 = vld [vmem:[%s4 + $0xe0] sm:$0xff]
  %v2175 = vld [vmem:[%s4 + $0xe8] sm:$0xff]
  %v2176 = vld [vmem:[%s4 + $0xf0] sm:$0xff]
  %v2177 = vld [vmem:[%s4 + $0xf8] sm:$0xff]
  %v2178 = vld [vmem:[%s4 + $0x100] sm:$0xff]
  %v2179 = vld [vmem:[%s4 + $0x108] sm:$0xff]
  %v2180 = vld [vmem:[%s4 + $0x110] sm:$0xff]
  %v2181 = vld [vmem:[%s4 + $0x118] sm:$0xff]
  %v2182 = vld [vmem:[%s4 + $0x120] sm:$0xff]
  %v2183 = vld [vmem:[%s4 + $0x128] sm:$0xff]
  %v2184 = vld [vmem:[%s4 + $0x130] sm:$0xff]
  %v2185 = vld [vmem:[%s4 + $0x138] sm:$0xff]
  %v2186 = vld [vmem:[%s4 + $0x140] sm:$0xff]
  %v2187 = vld [vmem:[%s4 + $0x148] sm:$0xff]
  %v2188 = vld [vmem:[%s4 + $0x150] sm:$0xff]
  %v2189 = vld [vmem:[%s4 + $0x158] sm:$0xff]
  %v2190 = vld [vmem:[%s4 + $0x160] sm:$0xff]
  %v2191 = vld [vmem:[%s4 + $0x168] sm:$0xff]
  %v2192 = vld [vmem:[%s4 + $0x170] sm:$0xff]
  %v2193 = vld [vmem:[%s4 + $0x178] sm:$0xff]
  %v2194 = vld [vmem:[%s4 + $0x180] sm:$0xff]
  %v2195 = vld [vmem:[%s4 + $0x188] sm:$0xff]
  %v2196 = vld [vmem:[%s4 + $0x190] sm:$0xff]
  %v2197 = vld [vmem:[%s4 + $0x198] sm:$0xff]
  %v2198 = vld [vmem:[%s4 + $0x1a0] sm:$0xff]
  %v2199 = vld [vmem:[%s4 + $0x1a8] sm:$0xff]
  %v2200 = vld [vmem:[%s4 + $0x1b0] sm:$0xff]
  %2202 = vset.pattern.permute.xlu0 0
  %2203 = vperm.xlu0 %2202, %v2146
  %v2204 = vpop.permute.xlu0 %2203
  %2207 = vset.pattern.permute.xlu0 0
  %2208 = vperm.xlu0 %2207, %v2147
  %v2209 = vpop.permute.xlu0 %2208
  %2212 = vset.pattern.permute.xlu0 0
  %2213 = vperm.xlu0 %2212, %v2148
  %v2214 = vpop.permute.xlu0 %2213
  %2217 = vset.pattern.permute.xlu0 0
  %2218 = vperm.xlu0 %2217, %v2149
  %v2219 = vpop.permute.xlu0 %2218
  %2222 = vset.pattern.permute.xlu0 0
  %2223 = vperm.xlu0 %2222, %v2150
  %v2224 = vpop.permute.xlu0 %2223
  %2227 = vset.pattern.permute.xlu0 0
  %2228 = vperm.xlu0 %2227, %v2151
  %v2229 = vpop.permute.xlu0 %2228
  %2232 = vset.pattern.permute.xlu0 0
  %2233 = vperm.xlu0 %2232, %v2152
  %v2234 = vpop.permute.xlu0 %2233
  %2237 = vset.pattern.permute.xlu0 0
  %2238 = vperm.xlu0 %2237, %v2153
  %v2239 = vpop.permute.xlu0 %2238
  %2242 = vset.pattern.permute.xlu0 0
  %2243 = vperm.xlu0 %2242, %v2154
  %v2244 = vpop.permute.xlu0 %2243
  %2247 = vset.pattern.permute.xlu0 0
  %2248 = vperm.xlu0 %2247, %v2155
  %v2249 = vpop.permute.xlu0 %2248
  %2252 = vset.pattern.permute.xlu0 0
  %2253 = vperm.xlu0 %2252, %v2156
  %v2254 = vpop.permute.xlu0 %2253
  %2257 = vset.pattern.permute.xlu0 0
  %2258 = vperm.xlu0 %2257, %v2157
  %v2259 = vpop.permute.xlu0 %2258
  %2262 = vset.pattern.permute.xlu0 0
  %2263 = vperm.xlu0 %2262, %v2158
  %v2264 = vpop.permute.xlu0 %2263
  %2267 = vset.pattern.permute.xlu0 0
  %2268 = vperm.xlu0 %2267, %v2159
  %v2269 = vpop.permute.xlu0 %2268
  %2272 = vset.pattern.permute.xlu0 0
  %2273 = vperm.xlu0 %2272, %v2160
  %v2274 = vpop.permute.xlu0 %2273
  %2277 = vset.pattern.permute.xlu0 0
  %2278 = vperm.xlu0 %2277, %v2161
  %v2279 = vpop.permute.xlu0 %2278
  %2282 = vset.pattern.permute.xlu0 0
  %2283 = vperm.xlu0 %2282, %v2162
  %v2284 = vpop.permute.xlu0 %2283
  %2287 = vset.pattern.permute.xlu0 0
  %2288 = vperm.xlu0 %2287, %v2163
  %v2289 = vpop.permute.xlu0 %2288
  %2292 = vset.pattern.permute.xlu0 0
  %2293 = vperm.xlu0 %2292, %v2164
  %v2294 = vpop.permute.xlu0 %2293
  %2297 = vset.pattern.permute.xlu0 0
  %2298 = vperm.xlu0 %2297, %v2165
  %v2299 = vpop.permute.xlu0 %2298
  %2302 = vset.pattern.permute.xlu0 0
  %2303 = vperm.xlu0 %2302, %v2166
  %v2304 = vpop.permute.xlu0 %2303
  %2307 = vset.pattern.permute.xlu0 0
  %2308 = vperm.xlu0 %2307, %v2167
  %v2309 = vpop.permute.xlu0 %2308
  %2312 = vset.pattern.permute.xlu0 0
  %2313 = vperm.xlu0 %2312, %v2168
  %v2314 = vpop.permute.xlu0 %2313
  %2317 = vset.pattern.permute.xlu0 0
  %2318 = vperm.xlu0 %2317, %v2169
  %v2319 = vpop.permute.xlu0 %2318
  %2322 = vset.pattern.permute.xlu0 0
  %2323 = vperm.xlu0 %2322, %v2170
  %v2324 = vpop.permute.xlu0 %2323
  %2327 = vset.pattern.permute.xlu0 0
  %2328 = vperm.xlu0 %2327, %v2171
  %v2329 = vpop.permute.xlu0 %2328
  %2332 = vset.pattern.permute.xlu0 0
  %2333 = vperm.xlu0 %2332, %v2172
  %v2334 = vpop.permute.xlu0 %2333
  %2337 = vset.pattern.permute.xlu0 0
  %2338 = vperm.xlu0 %2337, %v2173
  %v2339 = vpop.permute.xlu0 %2338
  %2342 = vset.pattern.permute.xlu0 0
  %2343 = vperm.xlu0 %2342, %v2174
  %v2344 = vpop.permute.xlu0 %2343
  %2347 = vset.pattern.permute.xlu0 0
  %2348 = vperm.xlu0 %2347, %v2175
  %v2349 = vpop.permute.xlu0 %2348
  %2352 = vset.pattern.permute.xlu0 0
  %2353 = vperm.xlu0 %2352, %v2176
  %v2354 = vpop.permute.xlu0 %2353
  %2357 = vset.pattern.permute.xlu0 0
  %2358 = vperm.xlu0 %2357, %v2177
  %v2359 = vpop.permute.xlu0 %2358
  %2362 = vset.pattern.permute.xlu0 0
  %2363 = vperm.xlu0 %2362, %v2178
  %v2364 = vpop.permute.xlu0 %2363
  %2367 = vset.pattern.permute.xlu0 0
  %2368 = vperm.xlu0 %2367, %v2179
  %v2369 = vpop.permute.xlu0 %2368
  %2372 = vset.pattern.permute.xlu0 0
  %2373 = vperm.xlu0 %2372, %v2180
  %v2374 = vpop.permute.xlu0 %2373
  %2377 = vset.pattern.permute.xlu0 0
  %2378 = vperm.xlu0 %2377, %v2181
  %v2379 = vpop.permute.xlu0 %2378
  %2382 = vset.pattern.permute.xlu0 0
  %2383 = vperm.xlu0 %2382, %v2182
  %v2384 = vpop.permute.xlu0 %2383
  %2387 = vset.pattern.permute.xlu0 0
  %2388 = vperm.xlu0 %2387, %v2183
  %v2389 = vpop.permute.xlu0 %2388
  %2392 = vset.pattern.permute.xlu0 0
  %2393 = vperm.xlu0 %2392, %v2184
  %v2394 = vpop.permute.xlu0 %2393
  %2397 = vset.pattern.permute.xlu0 0
  %2398 = vperm.xlu0 %2397, %v2185
  %v2399 = vpop.permute.xlu0 %2398
  %2402 = vset.pattern.permute.xlu0 0
  %2403 = vperm.xlu0 %2402, %v2186
  %v2404 = vpop.permute.xlu0 %2403
  %2407 = vset.pattern.permute.xlu0 0
  %2408 = vperm.xlu0 %2407, %v2187
  %v2409 = vpop.permute.xlu0 %2408
  %2412 = vset.pattern.permute.xlu0 0
  %2413 = vperm.xlu0 %2412, %v2188
  %v2414 = vpop.permute.xlu0 %2413
  %2417 = vset.pattern.permute.xlu0 0
  %2418 = vperm.xlu0 %2417, %v2189
  %v2419 = vpop.permute.xlu0 %2418
  %2422 = vset.pattern.permute.xlu0 0
  %2423 = vperm.xlu0 %2422, %v2190
  %v2424 = vpop.permute.xlu0 %2423
  %2427 = vset.pattern.permute.xlu0 0
  %2428 = vperm.xlu0 %2427, %v2191
  %v2429 = vpop.permute.xlu0 %2428
  %2432 = vset.pattern.permute.xlu0 0
  %2433 = vperm.xlu0 %2432, %v2192
  %v2434 = vpop.permute.xlu0 %2433
  %2437 = vset.pattern.permute.xlu0 0
  %2438 = vperm.xlu0 %2437, %v2193
  %v2439 = vpop.permute.xlu0 %2438
  %2442 = vset.pattern.permute.xlu0 0
  %2443 = vperm.xlu0 %2442, %v2194
  %v2444 = vpop.permute.xlu0 %2443
  %2447 = vset.pattern.permute.xlu0 0
  %2448 = vperm.xlu0 %2447, %v2195
  %v2449 = vpop.permute.xlu0 %2448
  %2452 = vset.pattern.permute.xlu0 0
  %2453 = vperm.xlu0 %2452, %v2196
  %v2454 = vpop.permute.xlu0 %2453
  %2457 = vset.pattern.permute.xlu0 0
  %2458 = vperm.xlu0 %2457, %v2197
  %v2459 = vpop.permute.xlu0 %2458
  %2462 = vset.pattern.permute.xlu0 0
  %2463 = vperm.xlu0 %2462, %v2198
  %v2464 = vpop.permute.xlu0 %2463
  %2467 = vset.pattern.permute.xlu0 0
  %2468 = vperm.xlu0 %2467, %v2199
  %v2469 = vpop.permute.xlu0 %2468
  %2472 = vset.pattern.permute.xlu0 0
  %2473 = vperm.xlu0 %2472, %v2200
  %v2474 = vpop.permute.xlu0 %2473
  %v2476 = vmul.f32 %v2091, %v2204
  %v2477 = vmul.f32 %v2092, %v2209
  %v2478 = vmul.f32 %v2093, %v2214
  %v2479 = vmul.f32 %v2094, %v2219
  %v2480 = vmul.f32 %v2095, %v2224
  %v2481 = vmul.f32 %v2096, %v2229
  %v2482 = vmul.f32 %v2097, %v2234
  %v2483 = vmul.f32 %v2098, %v2239
  %v2484 = vmul.f32 %v2099, %v2244
  %v2485 = vmul.f32 %v2100, %v2249
  %v2486 = vmul.f32 %v2101, %v2254
  %v2487 = vmul.f32 %v2102, %v2259
  %v2488 = vmul.f32 %v2103, %v2264
  %v2489 = vmul.f32 %v2104, %v2269
  %v2490 = vmul.f32 %v2105, %v2274
  %v2491 = vmul.f32 %v2106, %v2279
  %v2492 = vmul.f32 %v2107, %v2284
  %v2493 = vmul.f32 %v2108, %v2289
  %v2494 = vmul.f32 %v2109, %v2294
  %v2495 = vmul.f32 %v2110, %v2299
  %v2496 = vmul.f32 %v2111, %v2304
  %v2497 = vmul.f32 %v2112, %v2309
  %v2498 = vmul.f32 %v2113, %v2314
  %v2499 = vmul.f32 %v2114, %v2319
  %v2500 = vmul.f32 %v2115, %v2324
  %v2501 = vmul.f32 %v2116, %v2329
  %v2502 = vmul.f32 %v2117, %v2334
  %v2503 = vmul.f32 %v2118, %v2339
  %v2504 = vmul.f32 %v2119, %v2344
  %v2505 = vmul.f32 %v2120, %v2349
  %v2506 = vmul.f32 %v2121, %v2354
  %v2507 = vmul.f32 %v2122, %v2359
  %v2508 = vmul.f32 %v2123, %v2364
  %v2509 = vmul.f32 %v2124, %v2369
  %v2510 = vmul.f32 %v2125, %v2374
  %v2511 = vmul.f32 %v2126, %v2379
  %v2512 = vmul.f32 %v2127, %v2384
  %v2513 = vmul.f32 %v2128, %v2389
  %v2514 = vmul.f32 %v2129, %v2394
  %v2515 = vmul.f32 %v2130, %v2399
  %v2516 = vmul.f32 %v2131, %v2404
  %v2517 = vmul.f32 %v2132, %v2409
  %v2518 = vmul.f32 %v2133, %v2414
  %v2519 = vmul.f32 %v2134, %v2419
  %v2520 = vmul.f32 %v2135, %v2424
  %v2521 = vmul.f32 %v2136, %v2429
  %v2522 = vmul.f32 %v2137, %v2434
  %v2523 = vmul.f32 %v2138, %v2439
  %v2524 = vmul.f32 %v2139, %v2444
  %v2525 = vmul.f32 %v2140, %v2449
  %v2526 = vmul.f32 %v2141, %v2454
  %v2527 = vmul.f32 %v2142, %v2459
  %v2528 = vmul.f32 %v2143, %v2464
  %v2529 = vmul.f32 %v2144, %v2469
  %v2530 = vmul.f32 %v2145, %v2474
  %2531 = vst [vmem:[#allocation2] sm:$0xff] 0.0
  %2532 = vst [vmem:[#allocation2 + $0x8] sm:$0xff] 0.0
  %2533 = vst [vmem:[#allocation2 + $0x10] sm:$0xff] 0.0
  %2534 = vst [vmem:[#allocation2 + $0x1d0] sm:$0xff] 0.0
  %2535 = vst [vmem:[#allocation2 + $0x1d8] sm:$0xff] 0.0
  %2536 = vst [vmem:[#allocation2 + $0x1e0] sm:$0xff] 0.0
  %2537 = vst [vmem:[#allocation2 + $0x18] sm:$0xff] %v2476
  %2538 = vst [vmem:[#allocation2 + $0x20] sm:$0xff] %v2477
  %2539 = vst [vmem:[#allocation2 + $0x28] sm:$0xff] %v2478
  %2540 = vst [vmem:[#allocation2 + $0x30] sm:$0xff] %v2479
  %2541 = vst [vmem:[#allocation2 + $0x38] sm:$0xff] %v2480
  %2542 = vst [vmem:[#allocation2 + $0x40] sm:$0xff] %v2481
  %2543 = vst [vmem:[#allocation2 + $0x48] sm:$0xff] %v2482
  %2544 = vst [vmem:[#allocation2 + $0x50] sm:$0xff] %v2483
  %2545 = vst [vmem:[#allocation2 + $0x58] sm:$0xff] %v2484
  %2546 = vst [vmem:[#allocation2 + $0x60] sm:$0xff] %v2485
  %2547 = vst [vmem:[#allocation2 + $0x68] sm:$0xff] %v2486
  %2548 = vst [vmem:[#allocation2 + $0x70] sm:$0xff] %v2487
  %2549 = vst [vmem:[#allocation2 + $0x78] sm:$0xff] %v2488
  %2550 = vst [vmem:[#allocation2 + $0x80] sm:$0xff] %v2489
  %2551 = vst [vmem:[#allocation2 + $0x88] sm:$0xff] %v2490
  %2552 = vst [vmem:[#allocation2 + $0x90] sm:$0xff] %v2491
  %2553 = vst [vmem:[#allocation2 + $0x98] sm:$0xff] %v2492
  %2554 = vst [vmem:[#allocation2 + $0xa0] sm:$0xff] %v2493
  %2555 = vst [vmem:[#allocation2 + $0xa8] sm:$0xff] %v2494
  %2556 = vst [vmem:[#allocation2 + $0xb0] sm:$0xff] %v2495
  %2557 = vst [vmem:[#allocation2 + $0xb8] sm:$0xff] %v2496
  %2558 = vst [vmem:[#allocation2 + $0xc0] sm:$0xff] %v2497
  %2559 = vst [vmem:[#allocation2 + $0xc8] sm:$0xff] %v2498
  %2560 = vst [vmem:[#allocation2 + $0xd0] sm:$0xff] %v2499
  %2561 = vst [vmem:[#allocation2 + $0xd8] sm:$0xff] %v2500
  %2562 = vst [vmem:[#allocation2 + $0xe0] sm:$0xff] %v2501
  %2563 = vst [vmem:[#allocation2 + $0xe8] sm:$0xff] %v2502
  %2564 = vst [vmem:[#allocation2 + $0xf0] sm:$0xff] %v2503
  %2565 = vst [vmem:[#allocation2 + $0xf8] sm:$0xff] %v2504
  %2566 = vst [vmem:[#allocation2 + $0x100] sm:$0xff] %v2505
  %2567 = vst [vmem:[#allocation2 + $0x108] sm:$0xff] %v2506
  %2568 = vst [vmem:[#allocation2 + $0x110] sm:$0xff] %v2507
  %2569 = vst [vmem:[#allocation2 + $0x118] sm:$0xff] %v2508
  %2570 = vst [vmem:[#allocation2 + $0x120] sm:$0xff] %v2509
  %2571 = vst [vmem:[#allocation2 + $0x128] sm:$0xff] %v2510
  %2572 = vst [vmem:[#allocation2 + $0x130] sm:$0xff] %v2511
  %2573 = vst [vmem:[#allocation2 + $0x138] sm:$0xff] %v2512
  %2574 = vst [vmem:[#allocation2 + $0x140] sm:$0xff] %v2513
  %2575 = vst [vmem:[#allocation2 + $0x148] sm:$0xff] %v2514
  %2576 = vst [vmem:[#allocation2 + $0x150] sm:$0xff] %v2515
  %2577 = vst [vmem:[#allocation2 + $0x158] sm:$0xff] %v2516
  %2578 = vst [vmem:[#allocation2 + $0x160] sm:$0xff] %v2517
  %2579 = vst [vmem:[#allocation2 + $0x168] sm:$0xff] %v2518
  %2580 = vst [vmem:[#allocation2 + $0x170] sm:$0xff] %v2519
  %2581 = vst [vmem:[#allocation2 + $0x178] sm:$0xff] %v2520
  %2582 = vst [vmem:[#allocation2 + $0x180] sm:$0xff] %v2521
  %2583 = vst [vmem:[#allocation2 + $0x188] sm:$0xff] %v2522
  %2584 = vst [vmem:[#allocation2 + $0x190] sm:$0xff] %v2523
  %2585 = vst [vmem:[#allocation2 + $0x198] sm:$0xff] %v2524
  %2586 = vst [vmem:[#allocation2 + $0x1a0] sm:$0xff] %v2525
  %2587 = vst [vmem:[#allocation2 + $0x1a8] sm:$0xff] %v2526
  %2588 = vst [vmem:[#allocation2 + $0x1b0] sm:$0xff] %v2527
  %2589 = vst [vmem:[#allocation2 + $0x1b8] sm:$0xff] %v2528
  %2590 = vst [vmem:[#allocation2 + $0x1c0] sm:$0xff] %v2529
  %2591 = vst [vmem:[#allocation2 + $0x1c8] sm:$0xff] %v2530
  %v2592 = vld [vmem:[#allocation2 + $0x1] sm:$0xff]
  %v2593 = vld [vmem:[#allocation2 + $0x9] sm:$0xff]
  %v2594 = vld [vmem:[#allocation2 + $0x11] sm:$0xff]
  %v2595 = vld [vmem:[#allocation2 + $0x19] sm:$0xff]
  %v2596 = vld [vmem:[#allocation2 + $0x21] sm:$0xff]
  %v2597 = vld [vmem:[#allocation2 + $0x29] sm:$0xff]
  %v2598 = vld [vmem:[#allocation2 + $0x31] sm:$0xff]
  %v2599 = vld [vmem:[#allocation2 + $0x39] sm:$0xff]
  %v2600 = vld [vmem:[#allocation2 + $0x41] sm:$0xff]
  %v2601 = vld [vmem:[#allocation2 + $0x49] sm:$0xff]
  %v2602 = vld [vmem:[#allocation2 + $0x51] sm:$0xff]
  %v2603 = vld [vmem:[#allocation2 + $0x59] sm:$0xff]
  %v2604 = vld [vmem:[#allocation2 + $0x61] sm:$0xff]
  %v2605 = vld [vmem:[#allocation2 + $0x69] sm:$0xff]
  %v2606 = vld [vmem:[#allocation2 + $0x71] sm:$0xff]
  %v2607 = vld [vmem:[#allocation2 + $0x79] sm:$0xff]
  %v2608 = vld [vmem:[#allocation2 + $0x81] sm:$0xff]
  %v2609 = vld [vmem:[#allocation2 + $0x89] sm:$0xff]
  %v2610 = vld [vmem:[#allocation2 + $0x91] sm:$0xff]
  %v2611 = vld [vmem:[#allocation2 + $0x99] sm:$0xff]
  %v2612 = vld [vmem:[#allocation2 + $0xa1] sm:$0xff]
  %v2613 = vld [vmem:[#allocation2 + $0xa9] sm:$0xff]
  %v2614 = vld [vmem:[#allocation2 + $0xb1] sm:$0xff]
  %v2615 = vld [vmem:[#allocation2 + $0xb9] sm:$0xff]
  %v2616 = vld [vmem:[#allocation2 + $0xc1] sm:$0xff]
  %v2617 = vld [vmem:[#allocation2 + $0xc9] sm:$0xff]
  %v2618 = vld [vmem:[#allocation2 + $0xd1] sm:$0xff]
  %v2619 = vld [vmem:[#allocation2 + $0xd9] sm:$0xff]
  %v2620 = vld [vmem:[#allocation2 + $0xe1] sm:$0xff]
  %v2621 = vld [vmem:[#allocation2 + $0xe9] sm:$0xff]
  %v2622 = vld [vmem:[#allocation2 + $0xf1] sm:$0xff]
  %v2623 = vld [vmem:[#allocation2 + $0xf9] sm:$0xff]
  %v2624 = vld [vmem:[#allocation2 + $0x101] sm:$0xff]
  %v2625 = vld [vmem:[#allocation2 + $0x109] sm:$0xff]
  %v2626 = vld [vmem:[#allocation2 + $0x111] sm:$0xff]
  %v2627 = vld [vmem:[#allocation2 + $0x119] sm:$0xff]
  %v2628 = vld [vmem:[#allocation2 + $0x121] sm:$0xff]
  %v2629 = vld [vmem:[#allocation2 + $0x129] sm:$0xff]
  %v2630 = vld [vmem:[#allocation2 + $0x131] sm:$0xff]
  %v2631 = vld [vmem:[#allocation2 + $0x139] sm:$0xff]
  %v2632 = vld [vmem:[#allocation2 + $0x141] sm:$0xff]
  %v2633 = vld [vmem:[#allocation2 + $0x149] sm:$0xff]
  %v2634 = vld [vmem:[#allocation2 + $0x151] sm:$0xff]
  %v2635 = vld [vmem:[#allocation2 + $0x159] sm:$0xff]
  %v2636 = vld [vmem:[#allocation2 + $0x161] sm:$0xff]
  %v2637 = vld [vmem:[#allocation2 + $0x169] sm:$0xff]
  %v2638 = vld [vmem:[#allocation2 + $0x171] sm:$0xff]
  %v2639 = vld [vmem:[#allocation2 + $0x179] sm:$0xff]
  %v2640 = vld [vmem:[#allocation2 + $0x181] sm:$0xff]
  %v2641 = vld [vmem:[#allocation2 + $0x189] sm:$0xff]
  %v2642 = vld [vmem:[#allocation2 + $0x191] sm:$0xff]
  %v2643 = vld [vmem:[#allocation2 + $0x199] sm:$0xff]
  %v2644 = vld [vmem:[#allocation2 + $0x1a1] sm:$0xff]
  %v2645 = vld [vmem:[#allocation2 + $0x1a9] sm:$0xff]
  %v2646 = vld [vmem:[#allocation2 + $0x1b1] sm:$0xff]
  %v2647 = vld [vmem:[#allocation2 + $0x2] sm:$0xff]
  %v2648 = vld [vmem:[#allocation2 + $0xa] sm:$0xff]
  %v2649 = vld [vmem:[#allocation2 + $0x12] sm:$0xff]
  %v2650 = vld [vmem:[#allocation2 + $0x1a] sm:$0xff]
  %v2651 = vld [vmem:[#allocation2 + $0x22] sm:$0xff]
  %v2652 = vld [vmem:[#allocation2 + $0x2a] sm:$0xff]
  %v2653 = vld [vmem:[#allocation2 + $0x32] sm:$0xff]
  %v2654 = vld [vmem:[#allocation2 + $0x3a] sm:$0xff]
  %v2655 = vld [vmem:[#allocation2 + $0x42] sm:$0xff]
  %v2656 = vld [vmem:[#allocation2 + $0x4a] sm:$0xff]
  %v2657 = vld [vmem:[#allocation2 + $0x52] sm:$0xff]
  %v2658 = vld [vmem:[#allocation2 + $0x5a] sm:$0xff]
  %v2659 = vld [vmem:[#allocation2 + $0x62] sm:$0xff]
  %v2660 = vld [vmem:[#allocation2 + $0x6a] sm:$0xff]
  %v2661 = vld [vmem:[#allocation2 + $0x72] sm:$0xff]
  %v2662 = vld [vmem:[#allocation2 + $0x7a] sm:$0xff]
  %v2663 = vld [vmem:[#allocation2 + $0x82] sm:$0xff]
  %v2664 = vld [vmem:[#allocation2 + $0x8a] sm:$0xff]
  %v2665 = vld [vmem:[#allocation2 + $0x92] sm:$0xff]
  %v2666 = vld [vmem:[#allocation2 + $0x9a] sm:$0xff]
  %v2667 = vld [vmem:[#allocation2 + $0xa2] sm:$0xff]
  %v2668 = vld [vmem:[#allocation2 + $0xaa] sm:$0xff]
  %v2669 = vld [vmem:[#allocation2 + $0xb2] sm:$0xff]
  %v2670 = vld [vmem:[#allocation2 + $0xba] sm:$0xff]
  %v2671 = vld [vmem:[#allocation2 + $0xc2] sm:$0xff]
  %v2672 = vld [vmem:[#allocation2 + $0xca] sm:$0xff]
  %v2673 = vld [vmem:[#allocation2 + $0xd2] sm:$0xff]
  %v2674 = vld [vmem:[#allocation2 + $0xda] sm:$0xff]
  %v2675 = vld [vmem:[#allocation2 + $0xe2] sm:$0xff]
  %v2676 = vld [vmem:[#allocation2 + $0xea] sm:$0xff]
  %v2677 = vld [vmem:[#allocation2 + $0xf2] sm:$0xff]
  %v2678 = vld [vmem:[#allocation2 + $0xfa] sm:$0xff]
  %v2679 = vld [vmem:[#allocation2 + $0x102] sm:$0xff]
  %v2680 = vld [vmem:[#allocation2 + $0x10a] sm:$0xff]
  %v2681 = vld [vmem:[#allocation2 + $0x112] sm:$0xff]
  %v2682 = vld [vmem:[#allocation2 + $0x11a] sm:$0xff]
  %v2683 = vld [vmem:[#allocation2 + $0x122] sm:$0xff]
  %v2684 = vld [vmem:[#allocation2 + $0x12a] sm:$0xff]
  %v2685 = vld [vmem:[#allocation2 + $0x132] sm:$0xff]
  %v2686 = vld [vmem:[#allocation2 + $0x13a] sm:$0xff]
  %v2687 = vld [vmem:[#allocation2 + $0x142] sm:$0xff]
  %v2688 = vld [vmem:[#allocation2 + $0x14a] sm:$0xff]
  %v2689 = vld [vmem:[#allocation2 + $0x152] sm:$0xff]
  %v2690 = vld [vmem:[#allocation2 + $0x15a] sm:$0xff]
  %v2691 = vld [vmem:[#allocation2 + $0x162] sm:$0xff]
  %v2692 = vld [vmem:[#allocation2 + $0x16a] sm:$0xff]
  %v2693 = vld [vmem:[#allocation2 + $0x172] sm:$0xff]
  %v2694 = vld [vmem:[#allocation2 + $0x17a] sm:$0xff]
  %v2695 = vld [vmem:[#allocation2 + $0x182] sm:$0xff]
  %v2696 = vld [vmem:[#allocation2 + $0x18a] sm:$0xff]
  %v2697 = vld [vmem:[#allocation2 + $0x192] sm:$0xff]
  %v2698 = vld [vmem:[#allocation2 + $0x19a] sm:$0xff]
  %v2699 = vld [vmem:[#allocation2 + $0x1a2] sm:$0xff]
  %v2700 = vld [vmem:[#allocation2 + $0x1aa] sm:$0xff]
  %v2701 = vld [vmem:[#allocation2 + $0x1b2] sm:$0xff]
  %2702 = vrot.lane.b32.xlu0 %v2647, 10
  %v2703 = vpop.permute.xlu0 %2702
  %2704 = vrot.lane.b32.xlu0 %v2648, 10
  %v2705 = vpop.permute.xlu0 %2704
  %2706 = vrot.lane.b32.xlu0 %v2649, 10
  %v2707 = vpop.permute.xlu0 %2706
  %2708 = vrot.lane.b32.xlu0 %v2650, 10
  %v2709 = vpop.permute.xlu0 %2708
  %2710 = vrot.lane.b32.xlu0 %v2651, 10
  %v2711 = vpop.permute.xlu0 %2710
  %2712 = vrot.lane.b32.xlu0 %v2652, 10
  %v2713 = vpop.permute.xlu0 %2712
  %2714 = vrot.lane.b32.xlu0 %v2653, 10
  %v2715 = vpop.permute.xlu0 %2714
  %2716 = vrot.lane.b32.xlu0 %v2654, 10
  %v2717 = vpop.permute.xlu0 %2716
  %2718 = vrot.lane.b32.xlu0 %v2655, 10
  %v2719 = vpop.permute.xlu0 %2718
  %2720 = vrot.lane.b32.xlu0 %v2656, 10
  %v2721 = vpop.permute.xlu0 %2720
  %2722 = vrot.lane.b32.xlu0 %v2657, 10
  %v2723 = vpop.permute.xlu0 %2722
  %2724 = vrot.lane.b32.xlu0 %v2658, 10
  %v2725 = vpop.permute.xlu0 %2724
  %2726 = vrot.lane.b32.xlu0 %v2659, 10
  %v2727 = vpop.permute.xlu0 %2726
  %2728 = vrot.lane.b32.xlu0 %v2660, 10
  %v2729 = vpop.permute.xlu0 %2728
  %2730 = vrot.lane.b32.xlu0 %v2661, 10
  %v2731 = vpop.permute.xlu0 %2730
  %2732 = vrot.lane.b32.xlu0 %v2662, 10
  %v2733 = vpop.permute.xlu0 %2732
  %2734 = vrot.lane.b32.xlu0 %v2663, 10
  %v2735 = vpop.permute.xlu0 %2734
  %2736 = vrot.lane.b32.xlu0 %v2664, 10
  %v2737 = vpop.permute.xlu0 %2736
  %2738 = vrot.lane.b32.xlu0 %v2665, 10
  %v2739 = vpop.permute.xlu0 %2738
  %2740 = vrot.lane.b32.xlu0 %v2666, 10
  %v2741 = vpop.permute.xlu0 %2740
  %2742 = vrot.lane.b32.xlu0 %v2667, 10
  %v2743 = vpop.permute.xlu0 %2742
  %2744 = vrot.lane.b32.xlu0 %v2668, 10
  %v2745 = vpop.permute.xlu0 %2744
  %2746 = vrot.lane.b32.xlu0 %v2669, 10
  %v2747 = vpop.permute.xlu0 %2746
  %2748 = vrot.lane.b32.xlu0 %v2670, 10
  %v2749 = vpop.permute.xlu0 %2748
  %2750 = vrot.lane.b32.xlu0 %v2671, 10
  %v2751 = vpop.permute.xlu0 %2750
  %2752 = vrot.lane.b32.xlu0 %v2672, 10
  %v2753 = vpop.permute.xlu0 %2752
  %2754 = vrot.lane.b32.xlu0 %v2673, 10
  %v2755 = vpop.permute.xlu0 %2754
  %2756 = vrot.lane.b32.xlu0 %v2674, 10
  %v2757 = vpop.permute.xlu0 %2756
  %2758 = vrot.lane.b32.xlu0 %v2675, 10
  %v2759 = vpop.permute.xlu0 %2758
  %2760 = vrot.lane.b32.xlu0 %v2676, 10
  %v2761 = vpop.permute.xlu0 %2760
  %2762 = vrot.lane.b32.xlu0 %v2677, 10
  %v2763 = vpop.permute.xlu0 %2762
  %2764 = vrot.lane.b32.xlu0 %v2678, 10
  %v2765 = vpop.permute.xlu0 %2764
  %2766 = vrot.lane.b32.xlu0 %v2679, 10
  %v2767 = vpop.permute.xlu0 %2766
  %2768 = vrot.lane.b32.xlu0 %v2680, 10
  %v2769 = vpop.permute.xlu0 %2768
  %2770 = vrot.lane.b32.xlu0 %v2681, 10
  %v2771 = vpop.permute.xlu0 %2770
  %2772 = vrot.lane.b32.xlu0 %v2682, 10
  %v2773 = vpop.permute.xlu0 %2772
  %2774 = vrot.lane.b32.xlu0 %v2683, 10
  %v2775 = vpop.permute.xlu0 %2774
  %2776 = vrot.lane.b32.xlu0 %v2684, 10
  %v2777 = vpop.permute.xlu0 %2776
  %2778 = vrot.lane.b32.xlu0 %v2685, 10
  %v2779 = vpop.permute.xlu0 %2778
  %2780 = vrot.lane.b32.xlu0 %v2686, 10
  %v2781 = vpop.permute.xlu0 %2780
  %2782 = vrot.lane.b32.xlu0 %v2687, 10
  %v2783 = vpop.permute.xlu0 %2782
  %2784 = vrot.lane.b32.xlu0 %v2688, 10
  %v2785 = vpop.permute.xlu0 %2784
  %2786 = vrot.lane.b32.xlu0 %v2689, 10
  %v2787 = vpop.permute.xlu0 %2786
  %2788 = vrot.lane.b32.xlu0 %v2690, 10
  %v2789 = vpop.permute.xlu0 %2788
  %2790 = vrot.lane.b32.xlu0 %v2691, 10
  %v2791 = vpop.permute.xlu0 %2790
  %2792 = vrot.lane.b32.xlu0 %v2692, 10
  %v2793 = vpop.permute.xlu0 %2792
  %2794 = vrot.lane.b32.xlu0 %v2693, 10
  %v2795 = vpop.permute.xlu0 %2794
  %2796 = vrot.lane.b32.xlu0 %v2694, 10
  %v2797 = vpop.permute.xlu0 %2796
  %2798 = vrot.lane.b32.xlu0 %v2695, 10
  %v2799 = vpop.permute.xlu0 %2798
  %2800 = vrot.lane.b32.xlu0 %v2696, 10
  %v2801 = vpop.permute.xlu0 %2800
  %2802 = vrot.lane.b32.xlu0 %v2697, 10
  %v2803 = vpop.permute.xlu0 %2802
  %2804 = vrot.lane.b32.xlu0 %v2698, 10
  %v2805 = vpop.permute.xlu0 %2804
  %2806 = vrot.lane.b32.xlu0 %v2699, 10
  %v2807 = vpop.permute.xlu0 %2806
  %2808 = vrot.lane.b32.xlu0 %v2700, 10
  %v2809 = vpop.permute.xlu0 %2808
  %2810 = vrot.lane.b32.xlu0 %v2701, 10
  %v2811 = vpop.permute.xlu0 %2810
  %v2812 = vadd.f32 %v2592, %v2703
  %v2813 = vadd.f32 %v2593, %v2705
  %v2814 = vadd.f32 %v2594, %v2707
  %v2815 = vadd.f32 %v2595, %v2709
  %v2816 = vadd.f32 %v2596, %v2711
  %v2817 = vadd.f32 %v2597, %v2713
  %v2818 = vadd.f32 %v2598, %v2715
  %v2819 = vadd.f32 %v2599, %v2717
  %v2820 = vadd.f32 %v2600, %v2719
  %v2821 = vadd.f32 %v2601, %v2721
  %v2822 = vadd.f32 %v2602, %v2723
  %v2823 = vadd.f32 %v2603, %v2725
  %v2824 = vadd.f32 %v2604, %v2727
  %v2825 = vadd.f32 %v2605, %v2729
  %v2826 = vadd.f32 %v2606, %v2731
  %v2827 = vadd.f32 %v2607, %v2733
  %v2828 = vadd.f32 %v2608, %v2735
  %v2829 = vadd.f32 %v2609, %v2737
  %v2830 = vadd.f32 %v2610, %v2739
  %v2831 = vadd.f32 %v2611, %v2741
  %v2832 = vadd.f32 %v2612, %v2743
  %v2833 = vadd.f32 %v2613, %v2745
  %v2834 = vadd.f32 %v2614, %v2747
  %v2835 = vadd.f32 %v2615, %v2749
  %v2836 = vadd.f32 %v2616, %v2751
  %v2837 = vadd.f32 %v2617, %v2753
  %v2838 = vadd.f32 %v2618, %v2755
  %v2839 = vadd.f32 %v2619, %v2757
  %v2840 = vadd.f32 %v2620, %v2759
  %v2841 = vadd.f32 %v2621, %v2761
  %v2842 = vadd.f32 %v2622, %v2763
  %v2843 = vadd.f32 %v2623, %v2765
  %v2844 = vadd.f32 %v2624, %v2767
  %v2845 = vadd.f32 %v2625, %v2769
  %v2846 = vadd.f32 %v2626, %v2771
  %v2847 = vadd.f32 %v2627, %v2773
  %v2848 = vadd.f32 %v2628, %v2775
  %v2849 = vadd.f32 %v2629, %v2777
  %v2850 = vadd.f32 %v2630, %v2779
  %v2851 = vadd.f32 %v2631, %v2781
  %v2852 = vadd.f32 %v2632, %v2783
  %v2853 = vadd.f32 %v2633, %v2785
  %v2854 = vadd.f32 %v2634, %v2787
  %v2855 = vadd.f32 %v2635, %v2789
  %v2856 = vadd.f32 %v2636, %v2791
  %v2857 = vadd.f32 %v2637, %v2793
  %v2858 = vadd.f32 %v2638, %v2795
  %v2859 = vadd.f32 %v2639, %v2797
  %v2860 = vadd.f32 %v2640, %v2799
  %v2861 = vadd.f32 %v2641, %v2801
  %v2862 = vadd.f32 %v2642, %v2803
  %v2863 = vadd.f32 %v2643, %v2805
  %v2864 = vadd.f32 %v2644, %v2807
  %v2865 = vadd.f32 %v2645, %v2809
  %v2866 = vadd.f32 %v2646, %v2811
  %v2867 = vld [vmem:[#allocation2 + $0x3] sm:$0xff]
  %v2868 = vld [vmem:[#allocation2 + $0xb] sm:$0xff]
  %v2869 = vld [vmem:[#allocation2 + $0x13] sm:$0xff]
  %v2870 = vld [vmem:[#allocation2 + $0x1b] sm:$0xff]
  %v2871 = vld [vmem:[#allocation2 + $0x23] sm:$0xff]
  %v2872 = vld [vmem:[#allocation2 + $0x2b] sm:$0xff]
  %v2873 = vld [vmem:[#allocation2 + $0x33] sm:$0xff]
  %v2874 = vld [vmem:[#allocation2 + $0x3b] sm:$0xff]
  %v2875 = vld [vmem:[#allocation2 + $0x43] sm:$0xff]
  %v2876 = vld [vmem:[#allocation2 + $0x4b] sm:$0xff]
  %v2877 = vld [vmem:[#allocation2 + $0x53] sm:$0xff]
  %v2878 = vld [vmem:[#allocation2 + $0x5b] sm:$0xff]
  %v2879 = vld [vmem:[#allocation2 + $0x63] sm:$0xff]
  %v2880 = vld [vmem:[#allocation2 + $0x6b] sm:$0xff]
  %v2881 = vld [vmem:[#allocation2 + $0x73] sm:$0xff]
  %v2882 = vld [vmem:[#allocation2 + $0x7b] sm:$0xff]
  %v2883 = vld [vmem:[#allocation2 + $0x83] sm:$0xff]
  %v2884 = vld [vmem:[#allocation2 + $0x8b] sm:$0xff]
  %v2885 = vld [vmem:[#allocation2 + $0x93] sm:$0xff]
  %v2886 = vld [vmem:[#allocation2 + $0x9b] sm:$0xff]
  %v2887 = vld [vmem:[#allocation2 + $0xa3] sm:$0xff]
  %v2888 = vld [vmem:[#allocation2 + $0xab] sm:$0xff]
  %v2889 = vld [vmem:[#allocation2 + $0xb3] sm:$0xff]
  %v2890 = vld [vmem:[#allocation2 + $0xbb] sm:$0xff]
  %v2891 = vld [vmem:[#allocation2 + $0xc3] sm:$0xff]
  %v2892 = vld [vmem:[#allocation2 + $0xcb] sm:$0xff]
  %v2893 = vld [vmem:[#allocation2 + $0xd3] sm:$0xff]
  %v2894 = vld [vmem:[#allocation2 + $0xdb] sm:$0xff]
  %v2895 = vld [vmem:[#allocation2 + $0xe3] sm:$0xff]
  %v2896 = vld [vmem:[#allocation2 + $0xeb] sm:$0xff]
  %v2897 = vld [vmem:[#allocation2 + $0xf3] sm:$0xff]
  %v2898 = vld [vmem:[#allocation2 + $0xfb] sm:$0xff]
  %v2899 = vld [vmem:[#allocation2 + $0x103] sm:$0xff]
  %v2900 = vld [vmem:[#allocation2 + $0x10b] sm:$0xff]
  %v2901 = vld [vmem:[#allocation2 + $0x113] sm:$0xff]
  %v2902 = vld [vmem:[#allocation2 + $0x11b] sm:$0xff]
  %v2903 = vld [vmem:[#allocation2 + $0x123] sm:$0xff]
  %v2904 = vld [vmem:[#allocation2 + $0x12b] sm:$0xff]
  %v2905 = vld [vmem:[#allocation2 + $0x133] sm:$0xff]
  %v2906 = vld [vmem:[#allocation2 + $0x13b] sm:$0xff]
  %v2907 = vld [vmem:[#allocation2 + $0x143] sm:$0xff]
  %v2908 = vld [vmem:[#allocation2 + $0x14b] sm:$0xff]
  %v2909 = vld [vmem:[#allocation2 + $0x153] sm:$0xff]
  %v2910 = vld [vmem:[#allocation2 + $0x15b] sm:$0xff]
  %v2911 = vld [vmem:[#allocation2 + $0x163] sm:$0xff]
  %v2912 = vld [vmem:[#allocation2 + $0x16b] sm:$0xff]
  %v2913 = vld [vmem:[#allocation2 + $0x173] sm:$0xff]
  %v2914 = vld [vmem:[#allocation2 + $0x17b] sm:$0xff]
  %v2915 = vld [vmem:[#allocation2 + $0x183] sm:$0xff]
  %v2916 = vld [vmem:[#allocation2 + $0x18b] sm:$0xff]
  %v2917 = vld [vmem:[#allocation2 + $0x193] sm:$0xff]
  %v2918 = vld [vmem:[#allocation2 + $0x19b] sm:$0xff]
  %v2919 = vld [vmem:[#allocation2 + $0x1a3] sm:$0xff]
  %v2920 = vld [vmem:[#allocation2 + $0x1ab] sm:$0xff]
  %v2921 = vld [vmem:[#allocation2 + $0x1b3] sm:$0xff]
  %2922 = vrot.lane.b32.xlu0 %v2867, 20
  %v2923 = vpop.permute.xlu0 %2922
  %2924 = vrot.lane.b32.xlu0 %v2868, 20
  %v2925 = vpop.permute.xlu0 %2924
  %2926 = vrot.lane.b32.xlu0 %v2869, 20
  %v2927 = vpop.permute.xlu0 %2926
  %2928 = vrot.lane.b32.xlu0 %v2870, 20
  %v2929 = vpop.permute.xlu0 %2928
  %2930 = vrot.lane.b32.xlu0 %v2871, 20
  %v2931 = vpop.permute.xlu0 %2930
  %2932 = vrot.lane.b32.xlu0 %v2872, 20
  %v2933 = vpop.permute.xlu0 %2932
  %2934 = vrot.lane.b32.xlu0 %v2873, 20
  %v2935 = vpop.permute.xlu0 %2934
  %2936 = vrot.lane.b32.xlu0 %v2874, 20
  %v2937 = vpop.permute.xlu0 %2936
  %2938 = vrot.lane.b32.xlu0 %v2875, 20
  %v2939 = vpop.permute.xlu0 %2938
  %2940 = vrot.lane.b32.xlu0 %v2876, 20
  %v2941 = vpop.permute.xlu0 %2940
  %2942 = vrot.lane.b32.xlu0 %v2877, 20
  %v2943 = vpop.permute.xlu0 %2942
  %2944 = vrot.lane.b32.xlu0 %v2878, 20
  %v2945 = vpop.permute.xlu0 %2944
  %2946 = vrot.lane.b32.xlu0 %v2879, 20
  %v2947 = vpop.permute.xlu0 %2946
  %2948 = vrot.lane.b32.xlu0 %v2880, 20
  %v2949 = vpop.permute.xlu0 %2948
  %2950 = vrot.lane.b32.xlu0 %v2881, 20
  %v2951 = vpop.permute.xlu0 %2950
  %2952 = vrot.lane.b32.xlu0 %v2882, 20
  %v2953 = vpop.permute.xlu0 %2952
  %2954 = vrot.lane.b32.xlu0 %v2883, 20
  %v2955 = vpop.permute.xlu0 %2954
  %2956 = vrot.lane.b32.xlu0 %v2884, 20
  %v2957 = vpop.permute.xlu0 %2956
  %2958 = vrot.lane.b32.xlu0 %v2885, 20
  %v2959 = vpop.permute.xlu0 %2958
  %2960 = vrot.lane.b32.xlu0 %v2886, 20
  %v2961 = vpop.permute.xlu0 %2960
  %2962 = vrot.lane.b32.xlu0 %v2887, 20
  %v2963 = vpop.permute.xlu0 %2962
  %2964 = vrot.lane.b32.xlu0 %v2888, 20
  %v2965 = vpop.permute.xlu0 %2964
  %2966 = vrot.lane.b32.xlu0 %v2889, 20
  %v2967 = vpop.permute.xlu0 %2966
  %2968 = vrot.lane.b32.xlu0 %v2890, 20
  %v2969 = vpop.permute.xlu0 %2968
  %2970 = vrot.lane.b32.xlu0 %v2891, 20
  %v2971 = vpop.permute.xlu0 %2970
  %2972 = vrot.lane.b32.xlu0 %v2892, 20
  %v2973 = vpop.permute.xlu0 %2972
  %2974 = vrot.lane.b32.xlu0 %v2893, 20
  %v2975 = vpop.permute.xlu0 %2974
  %2976 = vrot.lane.b32.xlu0 %v2894, 20
  %v2977 = vpop.permute.xlu0 %2976
  %2978 = vrot.lane.b32.xlu0 %v2895, 20
  %v2979 = vpop.permute.xlu0 %2978
  %2980 = vrot.lane.b32.xlu0 %v2896, 20
  %v2981 = vpop.permute.xlu0 %2980
  %2982 = vrot.lane.b32.xlu0 %v2897, 20
  %v2983 = vpop.permute.xlu0 %2982
  %2984 = vrot.lane.b32.xlu0 %v2898, 20
  %v2985 = vpop.permute.xlu0 %2984
  %2986 = vrot.lane.b32.xlu0 %v2899, 20
  %v2987 = vpop.permute.xlu0 %2986
  %2988 = vrot.lane.b32.xlu0 %v2900, 20
  %v2989 = vpop.permute.xlu0 %2988
  %2990 = vrot.lane.b32.xlu0 %v2901, 20
  %v2991 = vpop.permute.xlu0 %2990
  %2992 = vrot.lane.b32.xlu0 %v2902, 20
  %v2993 = vpop.permute.xlu0 %2992
  %2994 = vrot.lane.b32.xlu0 %v2903, 20
  %v2995 = vpop.permute.xlu0 %2994
  %2996 = vrot.lane.b32.xlu0 %v2904, 20
  %v2997 = vpop.permute.xlu0 %2996
  %2998 = vrot.lane.b32.xlu0 %v2905, 20
  %v2999 = vpop.permute.xlu0 %2998
  %3000 = vrot.lane.b32.xlu0 %v2906, 20
  %v3001 = vpop.permute.xlu0 %3000
  %3002 = vrot.lane.b32.xlu0 %v2907, 20
  %v3003 = vpop.permute.xlu0 %3002
  %3004 = vrot.lane.b32.xlu0 %v2908, 20
  %v3005 = vpop.permute.xlu0 %3004
  %3006 = vrot.lane.b32.xlu0 %v2909, 20
  %v3007 = vpop.permute.xlu0 %3006
  %3008 = vrot.lane.b32.xlu0 %v2910, 20
  %v3009 = vpop.permute.xlu0 %3008
  %3010 = vrot.lane.b32.xlu0 %v2911, 20
  %v3011 = vpop.permute.xlu0 %3010
  %3012 = vrot.lane.b32.xlu0 %v2912, 20
  %v3013 = vpop.permute.xlu0 %3012
  %3014 = vrot.lane.b32.xlu0 %v2913, 20
  %v3015 = vpop.permute.xlu0 %3014
  %3016 = vrot.lane.b32.xlu0 %v2914, 20
  %v3017 = vpop.permute.xlu0 %3016
  %3018 = vrot.lane.b32.xlu0 %v2915, 20
  %v3019 = vpop.permute.xlu0 %3018
  %3020 = vrot.lane.b32.xlu0 %v2916, 20
  %v3021 = vpop.permute.xlu0 %3020
  %3022 = vrot.lane.b32.xlu0 %v2917, 20
  %v3023 = vpop.permute.xlu0 %3022
  %3024 = vrot.lane.b32.xlu0 %v2918, 20
  %v3025 = vpop.permute.xlu0 %3024
  %3026 = vrot.lane.b32.xlu0 %v2919, 20
  %v3027 = vpop.permute.xlu0 %3026
  %3028 = vrot.lane.b32.xlu0 %v2920, 20
  %v3029 = vpop.permute.xlu0 %3028
  %3030 = vrot.lane.b32.xlu0 %v2921, 20
  %v3031 = vpop.permute.xlu0 %3030
  %v3032 = vadd.f32 %v2812, %v2923
  %v3033 = vadd.f32 %v2813, %v2925
  %v3034 = vadd.f32 %v2814, %v2927
  %v3035 = vadd.f32 %v2815, %v2929
  %v3036 = vadd.f32 %v2816, %v2931
  %v3037 = vadd.f32 %v2817, %v2933
  %v3038 = vadd.f32 %v2818, %v2935
  %v3039 = vadd.f32 %v2819, %v2937
  %v3040 = vadd.f32 %v2820, %v2939
  %v3041 = vadd.f32 %v2821, %v2941
  %v3042 = vadd.f32 %v2822, %v2943
  %v3043 = vadd.f32 %v2823, %v2945
  %v3044 = vadd.f32 %v2824, %v2947
  %v3045 = vadd.f32 %v2825, %v2949
  %v3046 = vadd.f32 %v2826, %v2951
  %v3047 = vadd.f32 %v2827, %v2953
  %v3048 = vadd.f32 %v2828, %v2955
  %v3049 = vadd.f32 %v2829, %v2957
  %v3050 = vadd.f32 %v2830, %v2959
  %v3051 = vadd.f32 %v2831, %v2961
  %v3052 = vadd.f32 %v2832, %v2963
  %v3053 = vadd.f32 %v2833, %v2965
  %v3054 = vadd.f32 %v2834, %v2967
  %v3055 = vadd.f32 %v2835, %v2969
  %v3056 = vadd.f32 %v2836, %v2971
  %v3057 = vadd.f32 %v2837, %v2973
  %v3058 = vadd.f32 %v2838, %v2975
  %v3059 = vadd.f32 %v2839, %v2977
  %v3060 = vadd.f32 %v2840, %v2979
  %v3061 = vadd.f32 %v2841, %v2981
  %v3062 = vadd.f32 %v2842, %v2983
  %v3063 = vadd.f32 %v2843, %v2985
  %v3064 = vadd.f32 %v2844, %v2987
  %v3065 = vadd.f32 %v2845, %v2989
  %v3066 = vadd.f32 %v2846, %v2991
  %v3067 = vadd.f32 %v2847, %v2993
  %v3068 = vadd.f32 %v2848, %v2995
  %v3069 = vadd.f32 %v2849, %v2997
  %v3070 = vadd.f32 %v2850, %v2999
  %v3071 = vadd.f32 %v2851, %v3001
  %v3072 = vadd.f32 %v2852, %v3003
  %v3073 = vadd.f32 %v2853, %v3005
  %v3074 = vadd.f32 %v2854, %v3007
  %v3075 = vadd.f32 %v2855, %v3009
  %v3076 = vadd.f32 %v2856, %v3011
  %v3077 = vadd.f32 %v2857, %v3013
  %v3078 = vadd.f32 %v2858, %v3015
  %v3079 = vadd.f32 %v2859, %v3017
  %v3080 = vadd.f32 %v2860, %v3019
  %v3081 = vadd.f32 %v2861, %v3021
  %v3082 = vadd.f32 %v2862, %v3023
  %v3083 = vadd.f32 %v2863, %v3025
  %v3084 = vadd.f32 %v2864, %v3027
  %v3085 = vadd.f32 %v2865, %v3029
  %v3086 = vadd.f32 %v2866, %v3031
  %v3087 = vld [vmem:[#allocation2 + $0x17] sm:$0xff]
  %v3088 = vld [vmem:[#allocation2 + $0x1f] sm:$0xff]
  %v3089 = vld [vmem:[#allocation2 + $0x27] sm:$0xff]
  %v3090 = vld [vmem:[#allocation2 + $0x2f] sm:$0xff]
  %v3091 = vld [vmem:[#allocation2 + $0x37] sm:$0xff]
  %v3092 = vld [vmem:[#allocation2 + $0x3f] sm:$0xff]
  %v3093 = vld [vmem:[#allocation2 + $0x47] sm:$0xff]
  %v3094 = vld [vmem:[#allocation2 + $0x4f] sm:$0xff]
  %v3095 = vld [vmem:[#allocation2 + $0x57] sm:$0xff]
  %v3096 = vld [vmem:[#allocation2 + $0x5f] sm:$0xff]
  %v3097 = vld [vmem:[#allocation2 + $0x67] sm:$0xff]
  %v3098 = vld [vmem:[#allocation2 + $0x6f] sm:$0xff]
  %v3099 = vld [vmem:[#allocation2 + $0x77] sm:$0xff]
  %v3100 = vld [vmem:[#allocation2 + $0x7f] sm:$0xff]
  %v3101 = vld [vmem:[#allocation2 + $0x87] sm:$0xff]
  %v3102 = vld [vmem:[#allocation2 + $0x8f] sm:$0xff]
  %v3103 = vld [vmem:[#allocation2 + $0x97] sm:$0xff]
  %v3104 = vld [vmem:[#allocation2 + $0x9f] sm:$0xff]
  %v3105 = vld [vmem:[#allocation2 + $0xa7] sm:$0xff]
  %v3106 = vld [vmem:[#allocation2 + $0xaf] sm:$0xff]
  %v3107 = vld [vmem:[#allocation2 + $0xb7] sm:$0xff]
  %v3108 = vld [vmem:[#allocation2 + $0xbf] sm:$0xff]
  %v3109 = vld [vmem:[#allocation2 + $0xc7] sm:$0xff]
  %v3110 = vld [vmem:[#allocation2 + $0xcf] sm:$0xff]
  %v3111 = vld [vmem:[#allocation2 + $0xd7] sm:$0xff]
  %v3112 = vld [vmem:[#allocation2 + $0xdf] sm:$0xff]
  %v3113 = vld [vmem:[#allocation2 + $0xe7] sm:$0xff]
  %v3114 = vld [vmem:[#allocation2 + $0xef] sm:$0xff]
  %v3115 = vld [vmem:[#allocation2 + $0xf7] sm:$0xff]
  %v3116 = vld [vmem:[#allocation2 + $0xff] sm:$0xff]
  %v3117 = vld [vmem:[#allocation2 + $0x107] sm:$0xff]
  %v3118 = vld [vmem:[#allocation2 + $0x10f] sm:$0xff]
  %v3119 = vld [vmem:[#allocation2 + $0x117] sm:$0xff]
  %v3120 = vld [vmem:[#allocation2 + $0x11f] sm:$0xff]
  %v3121 = vld [vmem:[#allocation2 + $0x127] sm:$0xff]
  %v3122 = vld [vmem:[#allocation2 + $0x12f] sm:$0xff]
  %v3123 = vld [vmem:[#allocation2 + $0x137] sm:$0xff]
  %v3124 = vld [vmem:[#allocation2 + $0x13f] sm:$0xff]
  %v3125 = vld [vmem:[#allocation2 + $0x147] sm:$0xff]
  %v3126 = vld [vmem:[#allocation2 + $0x14f] sm:$0xff]
  %v3127 = vld [vmem:[#allocation2 + $0x157] sm:$0xff]
  %v3128 = vld [vmem:[#allocation2 + $0x15f] sm:$0xff]
  %v3129 = vld [vmem:[#allocation2 + $0x167] sm:$0xff]
  %v3130 = vld [vmem:[#allocation2 + $0x16f] sm:$0xff]
  %v3131 = vld [vmem:[#allocation2 + $0x177] sm:$0xff]
  %v3132 = vld [vmem:[#allocation2 + $0x17f] sm:$0xff]
  %v3133 = vld [vmem:[#allocation2 + $0x187] sm:$0xff]
  %v3134 = vld [vmem:[#allocation2 + $0x18f] sm:$0xff]
  %v3135 = vld [vmem:[#allocation2 + $0x197] sm:$0xff]
  %v3136 = vld [vmem:[#allocation2 + $0x19f] sm:$0xff]
  %v3137 = vld [vmem:[#allocation2 + $0x1a7] sm:$0xff]
  %v3138 = vld [vmem:[#allocation2 + $0x1af] sm:$0xff]
  %v3139 = vld [vmem:[#allocation2 + $0x1b7] sm:$0xff]
  %v3140 = vld [vmem:[#allocation2 + $0x1bf] sm:$0xff]
  %v3141 = vld [vmem:[#allocation2 + $0x1c7] sm:$0xff]
  %3142 = vrot.lane.b32.xlu0 %v3087, 30
  %v3143 = vpop.permute.xlu0 %3142
  %3144 = vrot.lane.b32.xlu0 %v3088, 30
  %v3145 = vpop.permute.xlu0 %3144
  %3146 = vrot.lane.b32.xlu0 %v3089, 30
  %v3147 = vpop.permute.xlu0 %3146
  %3148 = vrot.lane.b32.xlu0 %v3090, 30
  %v3149 = vpop.permute.xlu0 %3148
  %3150 = vrot.lane.b32.xlu0 %v3091, 30
  %v3151 = vpop.permute.xlu0 %3150
  %3152 = vrot.lane.b32.xlu0 %v3092, 30
  %v3153 = vpop.permute.xlu0 %3152
  %3154 = vrot.lane.b32.xlu0 %v3093, 30
  %v3155 = vpop.permute.xlu0 %3154
  %3156 = vrot.lane.b32.xlu0 %v3094, 30
  %v3157 = vpop.permute.xlu0 %3156
  %3158 = vrot.lane.b32.xlu0 %v3095, 30
  %v3159 = vpop.permute.xlu0 %3158
  %3160 = vrot.lane.b32.xlu0 %v3096, 30
  %v3161 = vpop.permute.xlu0 %3160
  %3162 = vrot.lane.b32.xlu0 %v3097, 30
  %v3163 = vpop.permute.xlu0 %3162
  %3164 = vrot.lane.b32.xlu0 %v3098, 30
  %v3165 = vpop.permute.xlu0 %3164
  %3166 = vrot.lane.b32.xlu0 %v3099, 30
  %v3167 = vpop.permute.xlu0 %3166
  %3168 = vrot.lane.b32.xlu0 %v3100, 30
  %v3169 = vpop.permute.xlu0 %3168
  %3170 = vrot.lane.b32.xlu0 %v3101, 30
  %v3171 = vpop.permute.xlu0 %3170
  %3172 = vrot.lane.b32.xlu0 %v3102, 30
  %v3173 = vpop.permute.xlu0 %3172
  %3174 = vrot.lane.b32.xlu0 %v3103, 30
  %v3175 = vpop.permute.xlu0 %3174
  %3176 = vrot.lane.b32.xlu0 %v3104, 30
  %v3177 = vpop.permute.xlu0 %3176
  %3178 = vrot.lane.b32.xlu0 %v3105, 30
  %v3179 = vpop.permute.xlu0 %3178
  %3180 = vrot.lane.b32.xlu0 %v3106, 30
  %v3181 = vpop.permute.xlu0 %3180
  %3182 = vrot.lane.b32.xlu0 %v3107, 30
  %v3183 = vpop.permute.xlu0 %3182
  %3184 = vrot.lane.b32.xlu0 %v3108, 30
  %v3185 = vpop.permute.xlu0 %3184
  %3186 = vrot.lane.b32.xlu0 %v3109, 30
  %v3187 = vpop.permute.xlu0 %3186
  %3188 = vrot.lane.b32.xlu0 %v3110, 30
  %v3189 = vpop.permute.xlu0 %3188
  %3190 = vrot.lane.b32.xlu0 %v3111, 30
  %v3191 = vpop.permute.xlu0 %3190
  %3192 = vrot.lane.b32.xlu0 %v3112, 30
  %v3193 = vpop.permute.xlu0 %3192
  %3194 = vrot.lane.b32.xlu0 %v3113, 30
  %v3195 = vpop.permute.xlu0 %3194
  %3196 = vrot.lane.b32.xlu0 %v3114, 30
  %v3197 = vpop.permute.xlu0 %3196
  %3198 = vrot.lane.b32.xlu0 %v3115, 30
  %v3199 = vpop.permute.xlu0 %3198
  %3200 = vrot.lane.b32.xlu0 %v3116, 30
  %v3201 = vpop.permute.xlu0 %3200
  %3202 = vrot.lane.b32.xlu0 %v3117, 30
  %v3203 = vpop.permute.xlu0 %3202
  %3204 = vrot.lane.b32.xlu0 %v3118, 30
  %v3205 = vpop.permute.xlu0 %3204
  %3206 = vrot.lane.b32.xlu0 %v3119, 30
  %v3207 = vpop.permute.xlu0 %3206
  %3208 = vrot.lane.b32.xlu0 %v3120, 30
  %v3209 = vpop.permute.xlu0 %3208
  %3210 = vrot.lane.b32.xlu0 %v3121, 30
  %v3211 = vpop.permute.xlu0 %3210
  %3212 = vrot.lane.b32.xlu0 %v3122, 30
  %v3213 = vpop.permute.xlu0 %3212
  %3214 = vrot.lane.b32.xlu0 %v3123, 30
  %v3215 = vpop.permute.xlu0 %3214
  %3216 = vrot.lane.b32.xlu0 %v3124, 30
  %v3217 = vpop.permute.xlu0 %3216
  %3218 = vrot.lane.b32.xlu0 %v3125, 30
  %v3219 = vpop.permute.xlu0 %3218
  %3220 = vrot.lane.b32.xlu0 %v3126, 30
  %v3221 = vpop.permute.xlu0 %3220
  %3222 = vrot.lane.b32.xlu0 %v3127, 30
  %v3223 = vpop.permute.xlu0 %3222
  %3224 = vrot.lane.b32.xlu0 %v3128, 30
  %v3225 = vpop.permute.xlu0 %3224
  %3226 = vrot.lane.b32.xlu0 %v3129, 30
  %v3227 = vpop.permute.xlu0 %3226
  %3228 = vrot.lane.b32.xlu0 %v3130, 30
  %v3229 = vpop.permute.xlu0 %3228
  %3230 = vrot.lane.b32.xlu0 %v3131, 30
  %v3231 = vpop.permute.xlu0 %3230
  %3232 = vrot.lane.b32.xlu0 %v3132, 30
  %v3233 = vpop.permute.xlu0 %3232
  %3234 = vrot.lane.b32.xlu0 %v3133, 30
  %v3235 = vpop.permute.xlu0 %3234
  %3236 = vrot.lane.b32.xlu0 %v3134, 30
  %v3237 = vpop.permute.xlu0 %3236
  %3238 = vrot.lane.b32.xlu0 %v3135, 30
  %v3239 = vpop.permute.xlu0 %3238
  %3240 = vrot.lane.b32.xlu0 %v3136, 30
  %v3241 = vpop.permute.xlu0 %3240
  %3242 = vrot.lane.b32.xlu0 %v3137, 30
  %v3243 = vpop.permute.xlu0 %3242
  %3244 = vrot.lane.b32.xlu0 %v3138, 30
  %v3245 = vpop.permute.xlu0 %3244
  %3246 = vrot.lane.b32.xlu0 %v3139, 30
  %v3247 = vpop.permute.xlu0 %3246
  %3248 = vrot.lane.b32.xlu0 %v3140, 30
  %v3249 = vpop.permute.xlu0 %3248
  %3250 = vrot.lane.b32.xlu0 %v3141, 30
  %v3251 = vpop.permute.xlu0 %3250
  %v3252 = vadd.f32 %v3032, %v3143
  %v3253 = vadd.f32 %v3033, %v3145
  %v3254 = vadd.f32 %v3034, %v3147
  %v3255 = vadd.f32 %v3035, %v3149
  %v3256 = vadd.f32 %v3036, %v3151
  %v3257 = vadd.f32 %v3037, %v3153
  %v3258 = vadd.f32 %v3038, %v3155
  %v3259 = vadd.f32 %v3039, %v3157
  %v3260 = vadd.f32 %v3040, %v3159
  %v3261 = vadd.f32 %v3041, %v3161
  %v3262 = vadd.f32 %v3042, %v3163
  %v3263 = vadd.f32 %v3043, %v3165
  %v3264 = vadd.f32 %v3044, %v3167
  %v3265 = vadd.f32 %v3045, %v3169
  %v3266 = vadd.f32 %v3046, %v3171
  %v3267 = vadd.f32 %v3047, %v3173
  %v3268 = vadd.f32 %v3048, %v3175
  %v3269 = vadd.f32 %v3049, %v3177
  %v3270 = vadd.f32 %v3050, %v3179
  %v3271 = vadd.f32 %v3051, %v3181
  %v3272 = vadd.f32 %v3052, %v3183
  %v3273 = vadd.f32 %v3053, %v3185
  %v3274 = vadd.f32 %v3054, %v3187
  %v3275 = vadd.f32 %v3055, %v3189
  %v3276 = vadd.f32 %v3056, %v3191
  %v3277 = vadd.f32 %v3057, %v3193
  %v3278 = vadd.f32 %v3058, %v3195
  %v3279 = vadd.f32 %v3059, %v3197
  %v3280 = vadd.f32 %v3060, %v3199
  %v3281 = vadd.f32 %v3061, %v3201
  %v3282 = vadd.f32 %v3062, %v3203
  %v3283 = vadd.f32 %v3063, %v3205
  %v3284 = vadd.f32 %v3064, %v3207
  %v3285 = vadd.f32 %v3065, %v3209
  %v3286 = vadd.f32 %v3066, %v3211
  %v3287 = vadd.f32 %v3067, %v3213
  %v3288 = vadd.f32 %v3068, %v3215
  %v3289 = vadd.f32 %v3069, %v3217
  %v3290 = vadd.f32 %v3070, %v3219
  %v3291 = vadd.f32 %v3071, %v3221
  %v3292 = vadd.f32 %v3072, %v3223
  %v3293 = vadd.f32 %v3073, %v3225
  %v3294 = vadd.f32 %v3074, %v3227
  %v3295 = vadd.f32 %v3075, %v3229
  %v3296 = vadd.f32 %v3076, %v3231
  %v3297 = vadd.f32 %v3077, %v3233
  %v3298 = vadd.f32 %v3078, %v3235
  %v3299 = vadd.f32 %v3079, %v3237
  %v3300 = vadd.f32 %v3080, %v3239
  %v3301 = vadd.f32 %v3081, %v3241
  %v3302 = vadd.f32 %v3082, %v3243
  %v3303 = vadd.f32 %v3083, %v3245
  %v3304 = vadd.f32 %v3084, %v3247
  %v3305 = vadd.f32 %v3085, %v3249
  %v3306 = vadd.f32 %v3086, %v3251
  %v3307 = vld [vmem:[#allocation2 + $0x18] sm:$0xff]
  %v3308 = vld [vmem:[#allocation2 + $0x20] sm:$0xff]
  %v3309 = vld [vmem:[#allocation2 + $0x28] sm:$0xff]
  %v3310 = vld [vmem:[#allocation2 + $0x30] sm:$0xff]
  %v3311 = vld [vmem:[#allocation2 + $0x38] sm:$0xff]
  %v3312 = vld [vmem:[#allocation2 + $0x40] sm:$0xff]
  %v3313 = vld [vmem:[#allocation2 + $0x48] sm:$0xff]
  %v3314 = vld [vmem:[#allocation2 + $0x50] sm:$0xff]
  %v3315 = vld [vmem:[#allocation2 + $0x58] sm:$0xff]
  %v3316 = vld [vmem:[#allocation2 + $0x60] sm:$0xff]
  %v3317 = vld [vmem:[#allocation2 + $0x68] sm:$0xff]
  %v3318 = vld [vmem:[#allocation2 + $0x70] sm:$0xff]
  %v3319 = vld [vmem:[#allocation2 + $0x78] sm:$0xff]
  %v3320 = vld [vmem:[#allocation2 + $0x80] sm:$0xff]
  %v3321 = vld [vmem:[#allocation2 + $0x88] sm:$0xff]
  %v3322 = vld [vmem:[#allocation2 + $0x90] sm:$0xff]
  %v3323 = vld [vmem:[#allocation2 + $0x98] sm:$0xff]
  %v3324 = vld [vmem:[#allocation2 + $0xa0] sm:$0xff]
  %v3325 = vld [vmem:[#allocation2 + $0xa8] sm:$0xff]
  %v3326 = vld [vmem:[#allocation2 + $0xb0] sm:$0xff]
  %v3327 = vld [vmem:[#allocation2 + $0xb8] sm:$0xff]
  %v3328 = vld [vmem:[#allocation2 + $0xc0] sm:$0xff]
  %v3329 = vld [vmem:[#allocation2 + $0xc8] sm:$0xff]
  %v3330 = vld [vmem:[#allocation2 + $0xd0] sm:$0xff]
  %v3331 = vld [vmem:[#allocation2 + $0xd8] sm:$0xff]
  %v3332 = vld [vmem:[#allocation2 + $0xe0] sm:$0xff]
  %v3333 = vld [vmem:[#allocation2 + $0xe8] sm:$0xff]
  %v3334 = vld [vmem:[#allocation2 + $0xf0] sm:$0xff]
  %v3335 = vld [vmem:[#allocation2 + $0xf8] sm:$0xff]
  %v3336 = vld [vmem:[#allocation2 + $0x100] sm:$0xff]
  %v3337 = vld [vmem:[#allocation2 + $0x108] sm:$0xff]
  %v3338 = vld [vmem:[#allocation2 + $0x110] sm:$0xff]
  %v3339 = vld [vmem:[#allocation2 + $0x118] sm:$0xff]
  %v3340 = vld [vmem:[#allocation2 + $0x120] sm:$0xff]
  %v3341 = vld [vmem:[#allocation2 + $0x128] sm:$0xff]
  %v3342 = vld [vmem:[#allocation2 + $0x130] sm:$0xff]
  %v3343 = vld [vmem:[#allocation2 + $0x138] sm:$0xff]
  %v3344 = vld [vmem:[#allocation2 + $0x140] sm:$0xff]
  %v3345 = vld [vmem:[#allocation2 + $0x148] sm:$0xff]
  %v3346 = vld [vmem:[#allocation2 + $0x150] sm:$0xff]
  %v3347 = vld [vmem:[#allocation2 + $0x158] sm:$0xff]
  %v3348 = vld [vmem:[#allocation2 + $0x160] sm:$0xff]
  %v3349 = vld [vmem:[#allocation2 + $0x168] sm:$0xff]
  %v3350 = vld [vmem:[#allocation2 + $0x170] sm:$0xff]
  %v3351 = vld [vmem:[#allocation2 + $0x178] sm:$0xff]
  %v3352 = vld [vmem:[#allocation2 + $0x180] sm:$0xff]
  %v3353 = vld [vmem:[#allocation2 + $0x188] sm:$0xff]
  %v3354 = vld [vmem:[#allocation2 + $0x190] sm:$0xff]
  %v3355 = vld [vmem:[#allocation2 + $0x198] sm:$0xff]
  %v3356 = vld [vmem:[#allocation2 + $0x1a0] sm:$0xff]
  %v3357 = vld [vmem:[#allocation2 + $0x1a8] sm:$0xff]
  %v3358 = vld [vmem:[#allocation2 + $0x1b0] sm:$0xff]
  %v3359 = vld [vmem:[#allocation2 + $0x1b8] sm:$0xff]
  %v3360 = vld [vmem:[#allocation2 + $0x1c0] sm:$0xff]
  %v3361 = vld [vmem:[#allocation2 + $0x1c8] sm:$0xff]
  %3362 = vrot.lane.b32.xlu0 %v3307, 40
  %v3363 = vpop.permute.xlu0 %3362
  %3364 = vrot.lane.b32.xlu0 %v3308, 40
  %v3365 = vpop.permute.xlu0 %3364
  %3366 = vrot.lane.b32.xlu0 %v3309, 40
  %v3367 = vpop.permute.xlu0 %3366
  %3368 = vrot.lane.b32.xlu0 %v3310, 40
  %v3369 = vpop.permute.xlu0 %3368
  %3370 = vrot.lane.b32.xlu0 %v3311, 40
  %v3371 = vpop.permute.xlu0 %3370
  %3372 = vrot.lane.b32.xlu0 %v3312, 40
  %v3373 = vpop.permute.xlu0 %3372
  %3374 = vrot.lane.b32.xlu0 %v3313, 40
  %v3375 = vpop.permute.xlu0 %3374
  %3376 = vrot.lane.b32.xlu0 %v3314, 40
  %v3377 = vpop.permute.xlu0 %3376
  %3378 = vrot.lane.b32.xlu0 %v3315, 40
  %v3379 = vpop.permute.xlu0 %3378
  %3380 = vrot.lane.b32.xlu0 %v3316, 40
  %v3381 = vpop.permute.xlu0 %3380
  %3382 = vrot.lane.b32.xlu0 %v3317, 40
  %v3383 = vpop.permute.xlu0 %3382
  %3384 = vrot.lane.b32.xlu0 %v3318, 40
  %v3385 = vpop.permute.xlu0 %3384
  %3386 = vrot.lane.b32.xlu0 %v3319, 40
  %v3387 = vpop.permute.xlu0 %3386
  %3388 = vrot.lane.b32.xlu0 %v3320, 40
  %v3389 = vpop.permute.xlu0 %3388
  %3390 = vrot.lane.b32.xlu0 %v3321, 40
  %v3391 = vpop.permute.xlu0 %3390
  %3392 = vrot.lane.b32.xlu0 %v3322, 40
  %v3393 = vpop.permute.xlu0 %3392
  %3394 = vrot.lane.b32.xlu0 %v3323, 40
  %v3395 = vpop.permute.xlu0 %3394
  %3396 = vrot.lane.b32.xlu0 %v3324, 40
  %v3397 = vpop.permute.xlu0 %3396
  %3398 = vrot.lane.b32.xlu0 %v3325, 40
  %v3399 = vpop.permute.xlu0 %3398
  %3400 = vrot.lane.b32.xlu0 %v3326, 40
  %v3401 = vpop.permute.xlu0 %3400
  %3402 = vrot.lane.b32.xlu0 %v3327, 40
  %v3403 = vpop.permute.xlu0 %3402
  %3404 = vrot.lane.b32.xlu0 %v3328, 40
  %v3405 = vpop.permute.xlu0 %3404
  %3406 = vrot.lane.b32.xlu0 %v3329, 40
  %v3407 = vpop.permute.xlu0 %3406
  %3408 = vrot.lane.b32.xlu0 %v3330, 40
  %v3409 = vpop.permute.xlu0 %3408
  %3410 = vrot.lane.b32.xlu0 %v3331, 40
  %v3411 = vpop.permute.xlu0 %3410
  %3412 = vrot.lane.b32.xlu0 %v3332, 40
  %v3413 = vpop.permute.xlu0 %3412
  %3414 = vrot.lane.b32.xlu0 %v3333, 40
  %v3415 = vpop.permute.xlu0 %3414
  %3416 = vrot.lane.b32.xlu0 %v3334, 40
  %v3417 = vpop.permute.xlu0 %3416
  %3418 = vrot.lane.b32.xlu0 %v3335, 40
  %v3419 = vpop.permute.xlu0 %3418
  %3420 = vrot.lane.b32.xlu0 %v3336, 40
  %v3421 = vpop.permute.xlu0 %3420
  %3422 = vrot.lane.b32.xlu0 %v3337, 40
  %v3423 = vpop.permute.xlu0 %3422
  %3424 = vrot.lane.b32.xlu0 %v3338, 40
  %v3425 = vpop.permute.xlu0 %3424
  %3426 = vrot.lane.b32.xlu0 %v3339, 40
  %v3427 = vpop.permute.xlu0 %3426
  %3428 = vrot.lane.b32.xlu0 %v3340, 40
  %v3429 = vpop.permute.xlu0 %3428
  %3430 = vrot.lane.b32.xlu0 %v3341, 40
  %v3431 = vpop.permute.xlu0 %3430
  %3432 = vrot.lane.b32.xlu0 %v3342, 40
  %v3433 = vpop.permute.xlu0 %3432
  %3434 = vrot.lane.b32.xlu0 %v3343, 40
  %v3435 = vpop.permute.xlu0 %3434
  %3436 = vrot.lane.b32.xlu0 %v3344, 40
  %v3437 = vpop.permute.xlu0 %3436
  %3438 = vrot.lane.b32.xlu0 %v3345, 40
  %v3439 = vpop.permute.xlu0 %3438
  %3440 = vrot.lane.b32.xlu0 %v3346, 40
  %v3441 = vpop.permute.xlu0 %3440
  %3442 = vrot.lane.b32.xlu0 %v3347, 40
  %v3443 = vpop.permute.xlu0 %3442
  %3444 = vrot.lane.b32.xlu0 %v3348, 40
  %v3445 = vpop.permute.xlu0 %3444
  %3446 = vrot.lane.b32.xlu0 %v3349, 40
  %v3447 = vpop.permute.xlu0 %3446
  %3448 = vrot.lane.b32.xlu0 %v3350, 40
  %v3449 = vpop.permute.xlu0 %3448
  %3450 = vrot.lane.b32.xlu0 %v3351, 40
  %v3451 = vpop.permute.xlu0 %3450
  %3452 = vrot.lane.b32.xlu0 %v3352, 40
  %v3453 = vpop.permute.xlu0 %3452
  %3454 = vrot.lane.b32.xlu0 %v3353, 40
  %v3455 = vpop.permute.xlu0 %3454
  %3456 = vrot.lane.b32.xlu0 %v3354, 40
  %v3457 = vpop.permute.xlu0 %3456
  %3458 = vrot.lane.b32.xlu0 %v3355, 40
  %v3459 = vpop.permute.xlu0 %3458
  %3460 = vrot.lane.b32.xlu0 %v3356, 40
  %v3461 = vpop.permute.xlu0 %3460
  %3462 = vrot.lane.b32.xlu0 %v3357, 40
  %v3463 = vpop.permute.xlu0 %3462
  %3464 = vrot.lane.b32.xlu0 %v3358, 40
  %v3465 = vpop.permute.xlu0 %3464
  %3466 = vrot.lane.b32.xlu0 %v3359, 40
  %v3467 = vpop.permute.xlu0 %3466
  %3468 = vrot.lane.b32.xlu0 %v3360, 40
  %v3469 = vpop.permute.xlu0 %3468
  %3470 = vrot.lane.b32.xlu0 %v3361, 40
  %v3471 = vpop.permute.xlu0 %3470
  %v3472 = vadd.f32 %v3252, %v3363
  %v3473 = vadd.f32 %v3253, %v3365
  %v3474 = vadd.f32 %v3254, %v3367
  %v3475 = vadd.f32 %v3255, %v3369
  %v3476 = vadd.f32 %v3256, %v3371
  %v3477 = vadd.f32 %v3257, %v3373
  %v3478 = vadd.f32 %v3258, %v3375
  %v3479 = vadd.f32 %v3259, %v3377
  %v3480 = vadd.f32 %v3260, %v3379
  %v3481 = vadd.f32 %v3261, %v3381
  %v3482 = vadd.f32 %v3262, %v3383
  %v3483 = vadd.f32 %v3263, %v3385
  %v3484 = vadd.f32 %v3264, %v3387
  %v3485 = vadd.f32 %v3265, %v3389
  %v3486 = vadd.f32 %v3266, %v3391
  %v3487 = vadd.f32 %v3267, %v3393
  %v3488 = vadd.f32 %v3268, %v3395
  %v3489 = vadd.f32 %v3269, %v3397
  %v3490 = vadd.f32 %v3270, %v3399
  %v3491 = vadd.f32 %v3271, %v3401
  %v3492 = vadd.f32 %v3272, %v3403
  %v3493 = vadd.f32 %v3273, %v3405
  %v3494 = vadd.f32 %v3274, %v3407
  %v3495 = vadd.f32 %v3275, %v3409
  %v3496 = vadd.f32 %v3276, %v3411
  %v3497 = vadd.f32 %v3277, %v3413
  %v3498 = vadd.f32 %v3278, %v3415
  %v3499 = vadd.f32 %v3279, %v3417
  %v3500 = vadd.f32 %v3280, %v3419
  %v3501 = vadd.f32 %v3281, %v3421
  %v3502 = vadd.f32 %v3282, %v3423
  %v3503 = vadd.f32 %v3283, %v3425
  %v3504 = vadd.f32 %v3284, %v3427
  %v3505 = vadd.f32 %v3285, %v3429
  %v3506 = vadd.f32 %v3286, %v3431
  %v3507 = vadd.f32 %v3287, %v3433
  %v3508 = vadd.f32 %v3288, %v3435
  %v3509 = vadd.f32 %v3289, %v3437
  %v3510 = vadd.f32 %v3290, %v3439
  %v3511 = vadd.f32 %v3291, %v3441
  %v3512 = vadd.f32 %v3292, %v3443
  %v3513 = vadd.f32 %v3293, %v3445
  %v3514 = vadd.f32 %v3294, %v3447
  %v3515 = vadd.f32 %v3295, %v3449
  %v3516 = vadd.f32 %v3296, %v3451
  %v3517 = vadd.f32 %v3297, %v3453
  %v3518 = vadd.f32 %v3298, %v3455
  %v3519 = vadd.f32 %v3299, %v3457
  %v3520 = vadd.f32 %v3300, %v3459
  %v3521 = vadd.f32 %v3301, %v3461
  %v3522 = vadd.f32 %v3302, %v3463
  %v3523 = vadd.f32 %v3303, %v3465
  %v3524 = vadd.f32 %v3304, %v3467
  %v3525 = vadd.f32 %v3305, %v3469
  %v3526 = vadd.f32 %v3306, %v3471
  %v3527 = vld [vmem:[#allocation2 + $0x1b9] sm:$0xff]
  %v3528 = vld [vmem:[#allocation2 + $0x1c1] sm:$0xff]
  %v3529 = vld [vmem:[#allocation2 + $0x1c9] sm:$0xff]
  %3530 = vrot.lane.b32.xlu0 %v2595, 50
  %v3531 = vpop.permute.xlu0 %3530
  %3532 = vrot.lane.b32.xlu0 %v2596, 50
  %v3533 = vpop.permute.xlu0 %3532
  %3534 = vrot.lane.b32.xlu0 %v2597, 50
  %v3535 = vpop.permute.xlu0 %3534
  %3536 = vrot.lane.b32.xlu0 %v2598, 50
  %v3537 = vpop.permute.xlu0 %3536
  %3538 = vrot.lane.b32.xlu0 %v2599, 50
  %v3539 = vpop.permute.xlu0 %3538
  %3540 = vrot.lane.b32.xlu0 %v2600, 50
  %v3541 = vpop.permute.xlu0 %3540
  %3542 = vrot.lane.b32.xlu0 %v2601, 50
  %v3543 = vpop.permute.xlu0 %3542
  %3544 = vrot.lane.b32.xlu0 %v2602, 50
  %v3545 = vpop.permute.xlu0 %3544
  %3546 = vrot.lane.b32.xlu0 %v2603, 50
  %v3547 = vpop.permute.xlu0 %3546
  %3548 = vrot.lane.b32.xlu0 %v2604, 50
  %v3549 = vpop.permute.xlu0 %3548
  %3550 = vrot.lane.b32.xlu0 %v2605, 50
  %v3551 = vpop.permute.xlu0 %3550
  %3552 = vrot.lane.b32.xlu0 %v2606, 50
  %v3553 = vpop.permute.xlu0 %3552
  %3554 = vrot.lane.b32.xlu0 %v2607, 50
  %v3555 = vpop.permute.xlu0 %3554
  %3556 = vrot.lane.b32.xlu0 %v2608, 50
  %v3557 = vpop.permute.xlu0 %3556
  %3558 = vrot.lane.b32.xlu0 %v2609, 50
  %v3559 = vpop.permute.xlu0 %3558
  %3560 = vrot.lane.b32.xlu0 %v2610, 50
  %v3561 = vpop.permute.xlu0 %3560
  %3562 = vrot.lane.b32.xlu0 %v2611, 50
  %v3563 = vpop.permute.xlu0 %3562
  %3564 = vrot.lane.b32.xlu0 %v2612, 50
  %v3565 = vpop.permute.xlu0 %3564
  %3566 = vrot.lane.b32.xlu0 %v2613, 50
  %v3567 = vpop.permute.xlu0 %3566
  %3568 = vrot.lane.b32.xlu0 %v2614, 50
  %v3569 = vpop.permute.xlu0 %3568
  %3570 = vrot.lane.b32.xlu0 %v2615, 50
  %v3571 = vpop.permute.xlu0 %3570
  %3572 = vrot.lane.b32.xlu0 %v2616, 50
  %v3573 = vpop.permute.xlu0 %3572
  %3574 = vrot.lane.b32.xlu0 %v2617, 50
  %v3575 = vpop.permute.xlu0 %3574
  %3576 = vrot.lane.b32.xlu0 %v2618, 50
  %v3577 = vpop.permute.xlu0 %3576
  %3578 = vrot.lane.b32.xlu0 %v2619, 50
  %v3579 = vpop.permute.xlu0 %3578
  %3580 = vrot.lane.b32.xlu0 %v2620, 50
  %v3581 = vpop.permute.xlu0 %3580
  %3582 = vrot.lane.b32.xlu0 %v2621, 50
  %v3583 = vpop.permute.xlu0 %3582
  %3584 = vrot.lane.b32.xlu0 %v2622, 50
  %v3585 = vpop.permute.xlu0 %3584
  %3586 = vrot.lane.b32.xlu0 %v2623, 50
  %v3587 = vpop.permute.xlu0 %3586
  %3588 = vrot.lane.b32.xlu0 %v2624, 50
  %v3589 = vpop.permute.xlu0 %3588
  %3590 = vrot.lane.b32.xlu0 %v2625, 50
  %v3591 = vpop.permute.xlu0 %3590
  %3592 = vrot.lane.b32.xlu0 %v2626, 50
  %v3593 = vpop.permute.xlu0 %3592
  %3594 = vrot.lane.b32.xlu0 %v2627, 50
  %v3595 = vpop.permute.xlu0 %3594
  %3596 = vrot.lane.b32.xlu0 %v2628, 50
  %v3597 = vpop.permute.xlu0 %3596
  %3598 = vrot.lane.b32.xlu0 %v2629, 50
  %v3599 = vpop.permute.xlu0 %3598
  %3600 = vrot.lane.b32.xlu0 %v2630, 50
  %v3601 = vpop.permute.xlu0 %3600
  %3602 = vrot.lane.b32.xlu0 %v2631, 50
  %v3603 = vpop.permute.xlu0 %3602
  %3604 = vrot.lane.b32.xlu0 %v2632, 50
  %v3605 = vpop.permute.xlu0 %3604
  %3606 = vrot.lane.b32.xlu0 %v2633, 50
  %v3607 = vpop.permute.xlu0 %3606
  %3608 = vrot.lane.b32.xlu0 %v2634, 50
  %v3609 = vpop.permute.xlu0 %3608
  %3610 = vrot.lane.b32.xlu0 %v2635, 50
  %v3611 = vpop.permute.xlu0 %3610
  %3612 = vrot.lane.b32.xlu0 %v2636, 50
  %v3613 = vpop.permute.xlu0 %3612
  %3614 = vrot.lane.b32.xlu0 %v2637, 50
  %v3615 = vpop.permute.xlu0 %3614
  %3616 = vrot.lane.b32.xlu0 %v2638, 50
  %v3617 = vpop.permute.xlu0 %3616
  %3618 = vrot.lane.b32.xlu0 %v2639, 50
  %v3619 = vpop.permute.xlu0 %3618
  %3620 = vrot.lane.b32.xlu0 %v2640, 50
  %v3621 = vpop.permute.xlu0 %3620
  %3622 = vrot.lane.b32.xlu0 %v2641, 50
  %v3623 = vpop.permute.xlu0 %3622
  %3624 = vrot.lane.b32.xlu0 %v2642, 50
  %v3625 = vpop.permute.xlu0 %3624
  %3626 = vrot.lane.b32.xlu0 %v2643, 50
  %v3627 = vpop.permute.xlu0 %3626
  %3628 = vrot.lane.b32.xlu0 %v2644, 50
  %v3629 = vpop.permute.xlu0 %3628
  %3630 = vrot.lane.b32.xlu0 %v2645, 50
  %v3631 = vpop.permute.xlu0 %3630
  %3632 = vrot.lane.b32.xlu0 %v2646, 50
  %v3633 = vpop.permute.xlu0 %3632
  %3634 = vrot.lane.b32.xlu0 %v3527, 50
  %v3635 = vpop.permute.xlu0 %3634
  %3636 = vrot.lane.b32.xlu0 %v3528, 50
  %v3637 = vpop.permute.xlu0 %3636
  %3638 = vrot.lane.b32.xlu0 %v3529, 50
  %v3639 = vpop.permute.xlu0 %3638
  %v3640 = vadd.f32 %v3472, %v3531
  %v3641 = vadd.f32 %v3473, %v3533
  %v3642 = vadd.f32 %v3474, %v3535
  %v3643 = vadd.f32 %v3475, %v3537
  %v3644 = vadd.f32 %v3476, %v3539
  %v3645 = vadd.f32 %v3477, %v3541
  %v3646 = vadd.f32 %v3478, %v3543
  %v3647 = vadd.f32 %v3479, %v3545
  %v3648 = vadd.f32 %v3480, %v3547
  %v3649 = vadd.f32 %v3481, %v3549
  %v3650 = vadd.f32 %v3482, %v3551
  %v3651 = vadd.f32 %v3483, %v3553
  %v3652 = vadd.f32 %v3484, %v3555
  %v3653 = vadd.f32 %v3485, %v3557
  %v3654 = vadd.f32 %v3486, %v3559
  %v3655 = vadd.f32 %v3487, %v3561
  %v3656 = vadd.f32 %v3488, %v3563
  %v3657 = vadd.f32 %v3489, %v3565
  %v3658 = vadd.f32 %v3490, %v3567
  %v3659 = vadd.f32 %v3491, %v3569
  %v3660 = vadd.f32 %v3492, %v3571
  %v3661 = vadd.f32 %v3493, %v3573
  %v3662 = vadd.f32 %v3494, %v3575
  %v3663 = vadd.f32 %v3495, %v3577
  %v3664 = vadd.f32 %v3496, %v3579
  %v3665 = vadd.f32 %v3497, %v3581
  %v3666 = vadd.f32 %v3498, %v3583
  %v3667 = vadd.f32 %v3499, %v3585
  %v3668 = vadd.f32 %v3500, %v3587
  %v3669 = vadd.f32 %v3501, %v3589
  %v3670 = vadd.f32 %v3502, %v3591
  %v3671 = vadd.f32 %v3503, %v3593
  %v3672 = vadd.f32 %v3504, %v3595
  %v3673 = vadd.f32 %v3505, %v3597
  %v3674 = vadd.f32 %v3506, %v3599
  %v3675 = vadd.f32 %v3507, %v3601
  %v3676 = vadd.f32 %v3508, %v3603
  %v3677 = vadd.f32 %v3509, %v3605
  %v3678 = vadd.f32 %v3510, %v3607
  %v3679 = vadd.f32 %v3511, %v3609
  %v3680 = vadd.f32 %v3512, %v3611
  %v3681 = vadd.f32 %v3513, %v3613
  %v3682 = vadd.f32 %v3514, %v3615
  %v3683 = vadd.f32 %v3515, %v3617
  %v3684 = vadd.f32 %v3516, %v3619
  %v3685 = vadd.f32 %v3517, %v3621
  %v3686 = vadd.f32 %v3518, %v3623
  %v3687 = vadd.f32 %v3519, %v3625
  %v3688 = vadd.f32 %v3520, %v3627
  %v3689 = vadd.f32 %v3521, %v3629
  %v3690 = vadd.f32 %v3522, %v3631
  %v3691 = vadd.f32 %v3523, %v3633
  %v3692 = vadd.f32 %v3524, %v3635
  %v3693 = vadd.f32 %v3525, %v3637
  %v3694 = vadd.f32 %v3526, %v3639
  %v3695 = vld [vmem:[#allocation2 + $0x2d] sm:$0xff]
  %v3696 = vld [vmem:[#allocation2 + $0x35] sm:$0xff]
  %v3697 = vld [vmem:[#allocation2 + $0x3d] sm:$0xff]
  %v3698 = vld [vmem:[#allocation2 + $0x45] sm:$0xff]
  %v3699 = vld [vmem:[#allocation2 + $0x4d] sm:$0xff]
  %v3700 = vld [vmem:[#allocation2 + $0x55] sm:$0xff]
  %v3701 = vld [vmem:[#allocation2 + $0x5d] sm:$0xff]
  %v3702 = vld [vmem:[#allocation2 + $0x65] sm:$0xff]
  %v3703 = vld [vmem:[#allocation2 + $0x6d] sm:$0xff]
  %v3704 = vld [vmem:[#allocation2 + $0x75] sm:$0xff]
  %v3705 = vld [vmem:[#allocation2 + $0x7d] sm:$0xff]
  %v3706 = vld [vmem:[#allocation2 + $0x85] sm:$0xff]
  %v3707 = vld [vmem:[#allocation2 + $0x8d] sm:$0xff]
  %v3708 = vld [vmem:[#allocation2 + $0x95] sm:$0xff]
  %v3709 = vld [vmem:[#allocation2 + $0x9d] sm:$0xff]
  %v3710 = vld [vmem:[#allocation2 + $0xa5] sm:$0xff]
  %v3711 = vld [vmem:[#allocation2 + $0xad] sm:$0xff]
  %v3712 = vld [vmem:[#allocation2 + $0xb5] sm:$0xff]
  %v3713 = vld [vmem:[#allocation2 + $0xbd] sm:$0xff]
  %v3714 = vld [vmem:[#allocation2 + $0xc5] sm:$0xff]
  %v3715 = vld [vmem:[#allocation2 + $0xcd] sm:$0xff]
  %v3716 = vld [vmem:[#allocation2 + $0xd5] sm:$0xff]
  %v3717 = vld [vmem:[#allocation2 + $0xdd] sm:$0xff]
  %v3718 = vld [vmem:[#allocation2 + $0xe5] sm:$0xff]
  %v3719 = vld [vmem:[#allocation2 + $0xed] sm:$0xff]
  %v3720 = vld [vmem:[#allocation2 + $0xf5] sm:$0xff]
  %v3721 = vld [vmem:[#allocation2 + $0xfd] sm:$0xff]
  %v3722 = vld [vmem:[#allocation2 + $0x105] sm:$0xff]
  %v3723 = vld [vmem:[#allocation2 + $0x10d] sm:$0xff]
  %v3724 = vld [vmem:[#allocation2 + $0x115] sm:$0xff]
  %v3725 = vld [vmem:[#allocation2 + $0x11d] sm:$0xff]
  %v3726 = vld [vmem:[#allocation2 + $0x125] sm:$0xff]
  %v3727 = vld [vmem:[#allocation2 + $0x12d] sm:$0xff]
  %v3728 = vld [vmem:[#allocation2 + $0x135] sm:$0xff]
  %v3729 = vld [vmem:[#allocation2 + $0x13d] sm:$0xff]
  %v3730 = vld [vmem:[#allocation2 + $0x145] sm:$0xff]
  %v3731 = vld [vmem:[#allocation2 + $0x14d] sm:$0xff]
  %v3732 = vld [vmem:[#allocation2 + $0x155] sm:$0xff]
  %v3733 = vld [vmem:[#allocation2 + $0x15d] sm:$0xff]
  %v3734 = vld [vmem:[#allocation2 + $0x165] sm:$0xff]
  %v3735 = vld [vmem:[#allocation2 + $0x16d] sm:$0xff]
  %v3736 = vld [vmem:[#allocation2 + $0x175] sm:$0xff]
  %v3737 = vld [vmem:[#allocation2 + $0x17d] sm:$0xff]
  %v3738 = vld [vmem:[#allocation2 + $0x185] sm:$0xff]
  %v3739 = vld [vmem:[#allocation2 + $0x18d] sm:$0xff]
  %v3740 = vld [vmem:[#allocation2 + $0x195] sm:$0xff]
  %v3741 = vld [vmem:[#allocation2 + $0x19d] sm:$0xff]
  %v3742 = vld [vmem:[#allocation2 + $0x1a5] sm:$0xff]
  %v3743 = vld [vmem:[#allocation2 + $0x1ad] sm:$0xff]
  %v3744 = vld [vmem:[#allocation2 + $0x1b5] sm:$0xff]
  %v3745 = vld [vmem:[#allocation2 + $0x1bd] sm:$0xff]
  %v3746 = vld [vmem:[#allocation2 + $0x1c5] sm:$0xff]
  %v3747 = vld [vmem:[#allocation2 + $0x1cd] sm:$0xff]
  %v3748 = vld [vmem:[#allocation2 + $0x1d5] sm:$0xff]
  %v3749 = vld [vmem:[#allocation2 + $0x1dd] sm:$0xff]
  %3750 = vrot.lane.b32.xlu0 %v3695, 60
  %v3751 = vpop.permute.xlu0 %3750
  %3752 = vrot.lane.b32.xlu0 %v3696, 60
  %v3753 = vpop.permute.xlu0 %3752
  %3754 = vrot.lane.b32.xlu0 %v3697, 60
  %v3755 = vpop.permute.xlu0 %3754
  %3756 = vrot.lane.b32.xlu0 %v3698, 60
  %v3757 = vpop.permute.xlu0 %3756
  %3758 = vrot.lane.b32.xlu0 %v3699, 60
  %v3759 = vpop.permute.xlu0 %3758
  %3760 = vrot.lane.b32.xlu0 %v3700, 60
  %v3761 = vpop.permute.xlu0 %3760
  %3762 = vrot.lane.b32.xlu0 %v3701, 60
  %v3763 = vpop.permute.xlu0 %3762
  %3764 = vrot.lane.b32.xlu0 %v3702, 60
  %v3765 = vpop.permute.xlu0 %3764
  %3766 = vrot.lane.b32.xlu0 %v3703, 60
  %v3767 = vpop.permute.xlu0 %3766
  %3768 = vrot.lane.b32.xlu0 %v3704, 60
  %v3769 = vpop.permute.xlu0 %3768
  %3770 = vrot.lane.b32.xlu0 %v3705, 60
  %v3771 = vpop.permute.xlu0 %3770
  %3772 = vrot.lane.b32.xlu0 %v3706, 60
  %v3773 = vpop.permute.xlu0 %3772
  %3774 = vrot.lane.b32.xlu0 %v3707, 60
  %v3775 = vpop.permute.xlu0 %3774
  %3776 = vrot.lane.b32.xlu0 %v3708, 60
  %v3777 = vpop.permute.xlu0 %3776
  %3778 = vrot.lane.b32.xlu0 %v3709, 60
  %v3779 = vpop.permute.xlu0 %3778
  %3780 = vrot.lane.b32.xlu0 %v3710, 60
  %v3781 = vpop.permute.xlu0 %3780
  %3782 = vrot.lane.b32.xlu0 %v3711, 60
  %v3783 = vpop.permute.xlu0 %3782
  %3784 = vrot.lane.b32.xlu0 %v3712, 60
  %v3785 = vpop.permute.xlu0 %3784
  %3786 = vrot.lane.b32.xlu0 %v3713, 60
  %v3787 = vpop.permute.xlu0 %3786
  %3788 = vrot.lane.b32.xlu0 %v3714, 60
  %v3789 = vpop.permute.xlu0 %3788
  %3790 = vrot.lane.b32.xlu0 %v3715, 60
  %v3791 = vpop.permute.xlu0 %3790
  %3792 = vrot.lane.b32.xlu0 %v3716, 60
  %v3793 = vpop.permute.xlu0 %3792
  %3794 = vrot.lane.b32.xlu0 %v3717, 60
  %v3795 = vpop.permute.xlu0 %3794
  %3796 = vrot.lane.b32.xlu0 %v3718, 60
  %v3797 = vpop.permute.xlu0 %3796
  %3798 = vrot.lane.b32.xlu0 %v3719, 60
  %v3799 = vpop.permute.xlu0 %3798
  %3800 = vrot.lane.b32.xlu0 %v3720, 60
  %v3801 = vpop.permute.xlu0 %3800
  %3802 = vrot.lane.b32.xlu0 %v3721, 60
  %v3803 = vpop.permute.xlu0 %3802
  %3804 = vrot.lane.b32.xlu0 %v3722, 60
  %v3805 = vpop.permute.xlu0 %3804
  %3806 = vrot.lane.b32.xlu0 %v3723, 60
  %v3807 = vpop.permute.xlu0 %3806
  %3808 = vrot.lane.b32.xlu0 %v3724, 60
  %v3809 = vpop.permute.xlu0 %3808
  %3810 = vrot.lane.b32.xlu0 %v3725, 60
  %v3811 = vpop.permute.xlu0 %3810
  %3812 = vrot.lane.b32.xlu0 %v3726, 60
  %v3813 = vpop.permute.xlu0 %3812
  %3814 = vrot.lane.b32.xlu0 %v3727, 60
  %v3815 = vpop.permute.xlu0 %3814
  %3816 = vrot.lane.b32.xlu0 %v3728, 60
  %v3817 = vpop.permute.xlu0 %3816
  %3818 = vrot.lane.b32.xlu0 %v3729, 60
  %v3819 = vpop.permute.xlu0 %3818
  %3820 = vrot.lane.b32.xlu0 %v3730, 60
  %v3821 = vpop.permute.xlu0 %3820
  %3822 = vrot.lane.b32.xlu0 %v3731, 60
  %v3823 = vpop.permute.xlu0 %3822
  %3824 = vrot.lane.b32.xlu0 %v3732, 60
  %v3825 = vpop.permute.xlu0 %3824
  %3826 = vrot.lane.b32.xlu0 %v3733, 60
  %v3827 = vpop.permute.xlu0 %3826
  %3828 = vrot.lane.b32.xlu0 %v3734, 60
  %v3829 = vpop.permute.xlu0 %3828
  %3830 = vrot.lane.b32.xlu0 %v3735, 60
  %v3831 = vpop.permute.xlu0 %3830
  %3832 = vrot.lane.b32.xlu0 %v3736, 60
  %v3833 = vpop.permute.xlu0 %3832
  %3834 = vrot.lane.b32.xlu0 %v3737, 60
  %v3835 = vpop.permute.xlu0 %3834
  %3836 = vrot.lane.b32.xlu0 %v3738, 60
  %v3837 = vpop.permute.xlu0 %3836
  %3838 = vrot.lane.b32.xlu0 %v3739, 60
  %v3839 = vpop.permute.xlu0 %3838
  %3840 = vrot.lane.b32.xlu0 %v3740, 60
  %v3841 = vpop.permute.xlu0 %3840
  %3842 = vrot.lane.b32.xlu0 %v3741, 60
  %v3843 = vpop.permute.xlu0 %3842
  %3844 = vrot.lane.b32.xlu0 %v3742, 60
  %v3845 = vpop.permute.xlu0 %3844
  %3846 = vrot.lane.b32.xlu0 %v3743, 60
  %v3847 = vpop.permute.xlu0 %3846
  %3848 = vrot.lane.b32.xlu0 %v3744, 60
  %v3849 = vpop.permute.xlu0 %3848
  %3850 = vrot.lane.b32.xlu0 %v3745, 60
  %v3851 = vpop.permute.xlu0 %3850
  %3852 = vrot.lane.b32.xlu0 %v3746, 60
  %v3853 = vpop.permute.xlu0 %3852
  %3854 = vrot.lane.b32.xlu0 %v3747, 60
  %v3855 = vpop.permute.xlu0 %3854
  %3856 = vrot.lane.b32.xlu0 %v3748, 60
  %v3857 = vpop.permute.xlu0 %3856
  %3858 = vrot.lane.b32.xlu0 %v3749, 60
  %v3859 = vpop.permute.xlu0 %3858
  %v3860 = vadd.f32 %v3640, %v3751
  %v3861 = vadd.f32 %v3641, %v3753
  %v3862 = vadd.f32 %v3642, %v3755
  %v3863 = vadd.f32 %v3643, %v3757
  %v3864 = vadd.f32 %v3644, %v3759
  %v3865 = vadd.f32 %v3645, %v3761
  %v3866 = vadd.f32 %v3646, %v3763
  %v3867 = vadd.f32 %v3647, %v3765
  %v3868 = vadd.f32 %v3648, %v3767
  %v3869 = vadd.f32 %v3649, %v3769
  %v3870 = vadd.f32 %v3650, %v3771
  %v3871 = vadd.f32 %v3651, %v3773
  %v3872 = vadd.f32 %v3652, %v3775
  %v3873 = vadd.f32 %v3653, %v3777
  %v3874 = vadd.f32 %v3654, %v3779
  %v3875 = vadd.f32 %v3655, %v3781
  %v3876 = vadd.f32 %v3656, %v3783
  %v3877 = vadd.f32 %v3657, %v3785
  %v3878 = vadd.f32 %v3658, %v3787
  %v3879 = vadd.f32 %v3659, %v3789
  %v3880 = vadd.f32 %v3660, %v3791
  %v3881 = vadd.f32 %v3661, %v3793
  %v3882 = vadd.f32 %v3662, %v3795
  %v3883 = vadd.f32 %v3663, %v3797
  %v3884 = vadd.f32 %v3664, %v3799
  %v3885 = vadd.f32 %v3665, %v3801
  %v3886 = vadd.f32 %v3666, %v3803
  %v3887 = vadd.f32 %v3667, %v3805
  %v3888 = vadd.f32 %v3668, %v3807
  %v3889 = vadd.f32 %v3669, %v3809
  %v3890 = vadd.f32 %v3670, %v3811
  %v3891 = vadd.f32 %v3671, %v3813
  %v3892 = vadd.f32 %v3672, %v3815
  %v3893 = vadd.f32 %v3673, %v3817
  %v3894 = vadd.f32 %v3674, %v3819
  %v3895 = vadd.f32 %v3675, %v3821
  %v3896 = vadd.f32 %v3676, %v3823
  %v3897 = vadd.f32 %v3677, %v3825
  %v3898 = vadd.f32 %v3678, %v3827
  %v3899 = vadd.f32 %v3679, %v3829
  %v3900 = vadd.f32 %v3680, %v3831
  %v3901 = vadd.f32 %v3681, %v3833
  %v3902 = vadd.f32 %v3682, %v3835
  %v3903 = vadd.f32 %v3683, %v3837
  %v3904 = vadd.f32 %v3684, %v3839
  %v3905 = vadd.f32 %v3685, %v3841
  %v3906 = vadd.f32 %v3686, %v3843
  %v3907 = vadd.f32 %v3687, %v3845
  %v3908 = vadd.f32 %v3688, %v3847
  %v3909 = vadd.f32 %v3689, %v3849
  %v3910 = vadd.f32 %v3690, %v3851
  %v3911 = vadd.f32 %v3691, %v3853
  %v3912 = vadd.f32 %v3692, %v3855
  %v3913 = vadd.f32 %v3693, %v3857
  %v3914 = vadd.f32 %v3694, %v3859
  %v3915 = vld [vmem:[#allocation2 + $0x2e] sm:$0xff]
  %v3916 = vld [vmem:[#allocation2 + $0x36] sm:$0xff]
  %v3917 = vld [vmem:[#allocation2 + $0x3e] sm:$0xff]
  %v3918 = vld [vmem:[#allocation2 + $0x46] sm:$0xff]
  %v3919 = vld [vmem:[#allocation2 + $0x4e] sm:$0xff]
  %v3920 = vld [vmem:[#allocation2 + $0x56] sm:$0xff]
  %v3921 = vld [vmem:[#allocation2 + $0x5e] sm:$0xff]
  %v3922 = vld [vmem:[#allocation2 + $0x66] sm:$0xff]
  %v3923 = vld [vmem:[#allocation2 + $0x6e] sm:$0xff]
  %v3924 = vld [vmem:[#allocation2 + $0x76] sm:$0xff]
  %v3925 = vld [vmem:[#allocation2 + $0x7e] sm:$0xff]
  %v3926 = vld [vmem:[#allocation2 + $0x86] sm:$0xff]
  %v3927 = vld [vmem:[#allocation2 + $0x8e] sm:$0xff]
  %v3928 = vld [vmem:[#allocation2 + $0x96] sm:$0xff]
  %v3929 = vld [vmem:[#allocation2 + $0x9e] sm:$0xff]
  %v3930 = vld [vmem:[#allocation2 + $0xa6] sm:$0xff]
  %v3931 = vld [vmem:[#allocation2 + $0xae] sm:$0xff]
  %v3932 = vld [vmem:[#allocation2 + $0xb6] sm:$0xff]
  %v3933 = vld [vmem:[#allocation2 + $0xbe] sm:$0xff]
  %v3934 = vld [vmem:[#allocation2 + $0xc6] sm:$0xff]
  %v3935 = vld [vmem:[#allocation2 + $0xce] sm:$0xff]
  %v3936 = vld [vmem:[#allocation2 + $0xd6] sm:$0xff]
  %v3937 = vld [vmem:[#allocation2 + $0xde] sm:$0xff]
  %v3938 = vld [vmem:[#allocation2 + $0xe6] sm:$0xff]
  %v3939 = vld [vmem:[#allocation2 + $0xee] sm:$0xff]
  %v3940 = vld [vmem:[#allocation2 + $0xf6] sm:$0xff]
  %v3941 = vld [vmem:[#allocation2 + $0xfe] sm:$0xff]
  %v3942 = vld [vmem:[#allocation2 + $0x106] sm:$0xff]
  %v3943 = vld [vmem:[#allocation2 + $0x10e] sm:$0xff]
  %v3944 = vld [vmem:[#allocation2 + $0x116] sm:$0xff]
  %v3945 = vld [vmem:[#allocation2 + $0x11e] sm:$0xff]
  %v3946 = vld [vmem:[#allocation2 + $0x126] sm:$0xff]
  %v3947 = vld [vmem:[#allocation2 + $0x12e] sm:$0xff]
  %v3948 = vld [vmem:[#allocation2 + $0x136] sm:$0xff]
  %v3949 = vld [vmem:[#allocation2 + $0x13e] sm:$0xff]
  %v3950 = vld [vmem:[#allocation2 + $0x146] sm:$0xff]
  %v3951 = vld [vmem:[#allocation2 + $0x14e] sm:$0xff]
  %v3952 = vld [vmem:[#allocation2 + $0x156] sm:$0xff]
  %v3953 = vld [vmem:[#allocation2 + $0x15e] sm:$0xff]
  %v3954 = vld [vmem:[#allocation2 + $0x166] sm:$0xff]
  %v3955 = vld [vmem:[#allocation2 + $0x16e] sm:$0xff]
  %v3956 = vld [vmem:[#allocation2 + $0x176] sm:$0xff]
  %v3957 = vld [vmem:[#allocation2 + $0x17e] sm:$0xff]
  %v3958 = vld [vmem:[#allocation2 + $0x186] sm:$0xff]
  %v3959 = vld [vmem:[#allocation2 + $0x18e] sm:$0xff]
  %v3960 = vld [vmem:[#allocation2 + $0x196] sm:$0xff]
  %v3961 = vld [vmem:[#allocation2 + $0x19e] sm:$0xff]
  %v3962 = vld [vmem:[#allocation2 + $0x1a6] sm:$0xff]
  %v3963 = vld [vmem:[#allocation2 + $0x1ae] sm:$0xff]
  %v3964 = vld [vmem:[#allocation2 + $0x1b6] sm:$0xff]
  %v3965 = vld [vmem:[#allocation2 + $0x1be] sm:$0xff]
  %v3966 = vld [vmem:[#allocation2 + $0x1c6] sm:$0xff]
  %v3967 = vld [vmem:[#allocation2 + $0x1ce] sm:$0xff]
  %v3968 = vld [vmem:[#allocation2 + $0x1d6] sm:$0xff]
  %v3969 = vld [vmem:[#allocation2 + $0x1de] sm:$0xff]
  %3970 = vrot.lane.b32.xlu0 %v3915, 70
  %v3971 = vpop.permute.xlu0 %3970
  %3972 = vrot.lane.b32.xlu0 %v3916, 70
  %v3973 = vpop.permute.xlu0 %3972
  %3974 = vrot.lane.b32.xlu0 %v3917, 70
  %v3975 = vpop.permute.xlu0 %3974
  %3976 = vrot.lane.b32.xlu0 %v3918, 70
  %v3977 = vpop.permute.xlu0 %3976
  %3978 = vrot.lane.b32.xlu0 %v3919, 70
  %v3979 = vpop.permute.xlu0 %3978
  %3980 = vrot.lane.b32.xlu0 %v3920, 70
  %v3981 = vpop.permute.xlu0 %3980
  %3982 = vrot.lane.b32.xlu0 %v3921, 70
  %v3983 = vpop.permute.xlu0 %3982
  %3984 = vrot.lane.b32.xlu0 %v3922, 70
  %v3985 = vpop.permute.xlu0 %3984
  %3986 = vrot.lane.b32.xlu0 %v3923, 70
  %v3987 = vpop.permute.xlu0 %3986
  %3988 = vrot.lane.b32.xlu0 %v3924, 70
  %v3989 = vpop.permute.xlu0 %3988
  %3990 = vrot.lane.b32.xlu0 %v3925, 70
  %v3991 = vpop.permute.xlu0 %3990
  %3992 = vrot.lane.b32.xlu0 %v3926, 70
  %v3993 = vpop.permute.xlu0 %3992
  %3994 = vrot.lane.b32.xlu0 %v3927, 70
  %v3995 = vpop.permute.xlu0 %3994
  %3996 = vrot.lane.b32.xlu0 %v3928, 70
  %v3997 = vpop.permute.xlu0 %3996
  %3998 = vrot.lane.b32.xlu0 %v3929, 70
  %v3999 = vpop.permute.xlu0 %3998
  %4000 = vrot.lane.b32.xlu0 %v3930, 70
  %v4001 = vpop.permute.xlu0 %4000
  %4002 = vrot.lane.b32.xlu0 %v3931, 70
  %v4003 = vpop.permute.xlu0 %4002
  %4004 = vrot.lane.b32.xlu0 %v3932, 70
  %v4005 = vpop.permute.xlu0 %4004
  %4006 = vrot.lane.b32.xlu0 %v3933, 70
  %v4007 = vpop.permute.xlu0 %4006
  %4008 = vrot.lane.b32.xlu0 %v3934, 70
  %v4009 = vpop.permute.xlu0 %4008
  %4010 = vrot.lane.b32.xlu0 %v3935, 70
  %v4011 = vpop.permute.xlu0 %4010
  %4012 = vrot.lane.b32.xlu0 %v3936, 70
  %v4013 = vpop.permute.xlu0 %4012
  %4014 = vrot.lane.b32.xlu0 %v3937, 70
  %v4015 = vpop.permute.xlu0 %4014
  %4016 = vrot.lane.b32.xlu0 %v3938, 70
  %v4017 = vpop.permute.xlu0 %4016
  %4018 = vrot.lane.b32.xlu0 %v3939, 70
  %v4019 = vpop.permute.xlu0 %4018
  %4020 = vrot.lane.b32.xlu0 %v3940, 70
  %v4021 = vpop.permute.xlu0 %4020
  %4022 = vrot.lane.b32.xlu0 %v3941, 70
  %v4023 = vpop.permute.xlu0 %4022
  %4024 = vrot.lane.b32.xlu0 %v3942, 70
  %v4025 = vpop.permute.xlu0 %4024
  %4026 = vrot.lane.b32.xlu0 %v3943, 70
  %v4027 = vpop.permute.xlu0 %4026
  %4028 = vrot.lane.b32.xlu0 %v3944, 70
  %v4029 = vpop.permute.xlu0 %4028
  %4030 = vrot.lane.b32.xlu0 %v3945, 70
  %v4031 = vpop.permute.xlu0 %4030
  %4032 = vrot.lane.b32.xlu0 %v3946, 70
  %v4033 = vpop.permute.xlu0 %4032
  %4034 = vrot.lane.b32.xlu0 %v3947, 70
  %v4035 = vpop.permute.xlu0 %4034
  %4036 = vrot.lane.b32.xlu0 %v3948, 70
  %v4037 = vpop.permute.xlu0 %4036
  %4038 = vrot.lane.b32.xlu0 %v3949, 70
  %v4039 = vpop.permute.xlu0 %4038
  %4040 = vrot.lane.b32.xlu0 %v3950, 70
  %v4041 = vpop.permute.xlu0 %4040
  %4042 = vrot.lane.b32.xlu0 %v3951, 70
  %v4043 = vpop.permute.xlu0 %4042
  %4044 = vrot.lane.b32.xlu0 %v3952, 70
  %v4045 = vpop.permute.xlu0 %4044
  %4046 = vrot.lane.b32.xlu0 %v3953, 70
  %v4047 = vpop.permute.xlu0 %4046
  %4048 = vrot.lane.b32.xlu0 %v3954, 70
  %v4049 = vpop.permute.xlu0 %4048
  %4050 = vrot.lane.b32.xlu0 %v3955, 70
  %v4051 = vpop.permute.xlu0 %4050
  %4052 = vrot.lane.b32.xlu0 %v3956, 70
  %v4053 = vpop.permute.xlu0 %4052
  %4054 = vrot.lane.b32.xlu0 %v3957, 70
  %v4055 = vpop.permute.xlu0 %4054
  %4056 = vrot.lane.b32.xlu0 %v3958, 70
  %v4057 = vpop.permute.xlu0 %4056
  %4058 = vrot.lane.b32.xlu0 %v3959, 70
  %v4059 = vpop.permute.xlu0 %4058
  %4060 = vrot.lane.b32.xlu0 %v3960, 70
  %v4061 = vpop.permute.xlu0 %4060
  %4062 = vrot.lane.b32.xlu0 %v3961, 70
  %v4063 = vpop.permute.xlu0 %4062
  %4064 = vrot.lane.b32.xlu0 %v3962, 70
  %v4065 = vpop.permute.xlu0 %4064
  %4066 = vrot.lane.b32.xlu0 %v3963, 70
  %v4067 = vpop.permute.xlu0 %4066
  %4068 = vrot.lane.b32.xlu0 %v3964, 70
  %v4069 = vpop.permute.xlu0 %4068
  %4070 = vrot.lane.b32.xlu0 %v3965, 70
  %v4071 = vpop.permute.xlu0 %4070
  %4072 = vrot.lane.b32.xlu0 %v3966, 70
  %v4073 = vpop.permute.xlu0 %4072
  %4074 = vrot.lane.b32.xlu0 %v3967, 70
  %v4075 = vpop.permute.xlu0 %4074
  %4076 = vrot.lane.b32.xlu0 %v3968, 70
  %v4077 = vpop.permute.xlu0 %4076
  %4078 = vrot.lane.b32.xlu0 %v3969, 70
  %v4079 = vpop.permute.xlu0 %4078
  %v4080 = vadd.f32 %v3860, %v3971
  %v4081 = vadd.f32 %v3861, %v3973
  %v4082 = vadd.f32 %v3862, %v3975
  %v4083 = vadd.f32 %v3863, %v3977
  %v4084 = vadd.f32 %v3864, %v3979
  %v4085 = vadd.f32 %v3865, %v3981
  %v4086 = vadd.f32 %v3866, %v3983
  %v4087 = vadd.f32 %v3867, %v3985
  %v4088 = vadd.f32 %v3868, %v3987
  %v4089 = vadd.f32 %v3869, %v3989
  %v4090 = vadd.f32 %v3870, %v3991
  %v4091 = vadd.f32 %v3871, %v3993
  %v4092 = vadd.f32 %v3872, %v3995
  %v4093 = vadd.f32 %v3873, %v3997
  %v4094 = vadd.f32 %v3874, %v3999
  %v4095 = vadd.f32 %v3875, %v4001
  %v4096 = vadd.f32 %v3876, %v4003
  %v4097 = vadd.f32 %v3877, %v4005
  %v4098 = vadd.f32 %v3878, %v4007
  %v4099 = vadd.f32 %v3879, %v4009
  %v4100 = vadd.f32 %v3880, %v4011
  %v4101 = vadd.f32 %v3881, %v4013
  %v4102 = vadd.f32 %v3882, %v4015
  %v4103 = vadd.f32 %v3883, %v4017
  %v4104 = vadd.f32 %v3884, %v4019
  %v4105 = vadd.f32 %v3885, %v4021
  %v4106 = vadd.f32 %v3886, %v4023
  %v4107 = vadd.f32 %v3887, %v4025
  %v4108 = vadd.f32 %v3888, %v4027
  %v4109 = vadd.f32 %v3889, %v4029
  %v4110 = vadd.f32 %v3890, %v4031
  %v4111 = vadd.f32 %v3891, %v4033
  %v4112 = vadd.f32 %v3892, %v4035
  %v4113 = vadd.f32 %v3893, %v4037
  %v4114 = vadd.f32 %v3894, %v4039
  %v4115 = vadd.f32 %v3895, %v4041
  %v4116 = vadd.f32 %v3896, %v4043
  %v4117 = vadd.f32 %v3897, %v4045
  %v4118 = vadd.f32 %v3898, %v4047
  %v4119 = vadd.f32 %v3899, %v4049
  %v4120 = vadd.f32 %v3900, %v4051
  %v4121 = vadd.f32 %v3901, %v4053
  %v4122 = vadd.f32 %v3902, %v4055
  %v4123 = vadd.f32 %v3903, %v4057
  %v4124 = vadd.f32 %v3904, %v4059
  %v4125 = vadd.f32 %v3905, %v4061
  %v4126 = vadd.f32 %v3906, %v4063
  %v4127 = vadd.f32 %v3907, %v4065
  %v4128 = vadd.f32 %v3908, %v4067
  %v4129 = vadd.f32 %v3909, %v4069
  %v4130 = vadd.f32 %v3910, %v4071
  %v4131 = vadd.f32 %v3911, %v4073
  %v4132 = vadd.f32 %v3912, %v4075
  %v4133 = vadd.f32 %v3913, %v4077
  %v4134 = vadd.f32 %v3914, %v4079
  %v4135 = vld [vmem:[#allocation2 + $0x1cf] sm:$0xff]
  %v4136 = vld [vmem:[#allocation2 + $0x1d7] sm:$0xff]
  %v4137 = vld [vmem:[#allocation2 + $0x1df] sm:$0xff]
  %4138 = vrot.lane.b32.xlu0 %v3090, 80
  %v4139 = vpop.permute.xlu0 %4138
  %4140 = vrot.lane.b32.xlu0 %v3091, 80
  %v4141 = vpop.permute.xlu0 %4140
  %4142 = vrot.lane.b32.xlu0 %v3092, 80
  %v4143 = vpop.permute.xlu0 %4142
  %4144 = vrot.lane.b32.xlu0 %v3093, 80
  %v4145 = vpop.permute.xlu0 %4144
  %4146 = vrot.lane.b32.xlu0 %v3094, 80
  %v4147 = vpop.permute.xlu0 %4146
  %4148 = vrot.lane.b32.xlu0 %v3095, 80
  %v4149 = vpop.permute.xlu0 %4148
  %4150 = vrot.lane.b32.xlu0 %v3096, 80
  %v4151 = vpop.permute.xlu0 %4150
  %4152 = vrot.lane.b32.xlu0 %v3097, 80
  %v4153 = vpop.permute.xlu0 %4152
  %4154 = vrot.lane.b32.xlu0 %v3098, 80
  %v4155 = vpop.permute.xlu0 %4154
  %4156 = vrot.lane.b32.xlu0 %v3099, 80
  %v4157 = vpop.permute.xlu0 %4156
  %4158 = vrot.lane.b32.xlu0 %v3100, 80
  %v4159 = vpop.permute.xlu0 %4158
  %4160 = vrot.lane.b32.xlu0 %v3101, 80
  %v4161 = vpop.permute.xlu0 %4160
  %4162 = vrot.lane.b32.xlu0 %v3102, 80
  %v4163 = vpop.permute.xlu0 %4162
  %4164 = vrot.lane.b32.xlu0 %v3103, 80
  %v4165 = vpop.permute.xlu0 %4164
  %4166 = vrot.lane.b32.xlu0 %v3104, 80
  %v4167 = vpop.permute.xlu0 %4166
  %4168 = vrot.lane.b32.xlu0 %v3105, 80
  %v4169 = vpop.permute.xlu0 %4168
  %4170 = vrot.lane.b32.xlu0 %v3106, 80
  %v4171 = vpop.permute.xlu0 %4170
  %4172 = vrot.lane.b32.xlu0 %v3107, 80
  %v4173 = vpop.permute.xlu0 %4172
  %4174 = vrot.lane.b32.xlu0 %v3108, 80
  %v4175 = vpop.permute.xlu0 %4174
  %4176 = vrot.lane.b32.xlu0 %v3109, 80
  %v4177 = vpop.permute.xlu0 %4176
  %4178 = vrot.lane.b32.xlu0 %v3110, 80
  %v4179 = vpop.permute.xlu0 %4178
  %4180 = vrot.lane.b32.xlu0 %v3111, 80
  %v4181 = vpop.permute.xlu0 %4180
  %4182 = vrot.lane.b32.xlu0 %v3112, 80
  %v4183 = vpop.permute.xlu0 %4182
  %4184 = vrot.lane.b32.xlu0 %v3113, 80
  %v4185 = vpop.permute.xlu0 %4184
  %4186 = vrot.lane.b32.xlu0 %v3114, 80
  %v4187 = vpop.permute.xlu0 %4186
  %4188 = vrot.lane.b32.xlu0 %v3115, 80
  %v4189 = vpop.permute.xlu0 %4188
  %4190 = vrot.lane.b32.xlu0 %v3116, 80
  %v4191 = vpop.permute.xlu0 %4190
  %4192 = vrot.lane.b32.xlu0 %v3117, 80
  %v4193 = vpop.permute.xlu0 %4192
  %4194 = vrot.lane.b32.xlu0 %v3118, 80
  %v4195 = vpop.permute.xlu0 %4194
  %4196 = vrot.lane.b32.xlu0 %v3119, 80
  %v4197 = vpop.permute.xlu0 %4196
  %4198 = vrot.lane.b32.xlu0 %v3120, 80
  %v4199 = vpop.permute.xlu0 %4198
  %4200 = vrot.lane.b32.xlu0 %v3121, 80
  %v4201 = vpop.permute.xlu0 %4200
  %4202 = vrot.lane.b32.xlu0 %v3122, 80
  %v4203 = vpop.permute.xlu0 %4202
  %4204 = vrot.lane.b32.xlu0 %v3123, 80
  %v4205 = vpop.permute.xlu0 %4204
  %4206 = vrot.lane.b32.xlu0 %v3124, 80
  %v4207 = vpop.permute.xlu0 %4206
  %4208 = vrot.lane.b32.xlu0 %v3125, 80
  %v4209 = vpop.permute.xlu0 %4208
  %4210 = vrot.lane.b32.xlu0 %v3126, 80
  %v4211 = vpop.permute.xlu0 %4210
  %4212 = vrot.lane.b32.xlu0 %v3127, 80
  %v4213 = vpop.permute.xlu0 %4212
  %4214 = vrot.lane.b32.xlu0 %v3128, 80
  %v4215 = vpop.permute.xlu0 %4214
  %4216 = vrot.lane.b32.xlu0 %v3129, 80
  %v4217 = vpop.permute.xlu0 %4216
  %4218 = vrot.lane.b32.xlu0 %v3130, 80
  %v4219 = vpop.permute.xlu0 %4218
  %4220 = vrot.lane.b32.xlu0 %v3131, 80
  %v4221 = vpop.permute.xlu0 %4220
  %4222 = vrot.lane.b32.xlu0 %v3132, 80
  %v4223 = vpop.permute.xlu0 %4222
  %4224 = vrot.lane.b32.xlu0 %v3133, 80
  %v4225 = vpop.permute.xlu0 %4224
  %4226 = vrot.lane.b32.xlu0 %v3134, 80
  %v4227 = vpop.permute.xlu0 %4226
  %4228 = vrot.lane.b32.xlu0 %v3135, 80
  %v4229 = vpop.permute.xlu0 %4228
  %4230 = vrot.lane.b32.xlu0 %v3136, 80
  %v4231 = vpop.permute.xlu0 %4230
  %4232 = vrot.lane.b32.xlu0 %v3137, 80
  %v4233 = vpop.permute.xlu0 %4232
  %4234 = vrot.lane.b32.xlu0 %v3138, 80
  %v4235 = vpop.permute.xlu0 %4234
  %4236 = vrot.lane.b32.xlu0 %v3139, 80
  %v4237 = vpop.permute.xlu0 %4236
  %4238 = vrot.lane.b32.xlu0 %v3140, 80
  %v4239 = vpop.permute.xlu0 %4238
  %4240 = vrot.lane.b32.xlu0 %v3141, 80
  %v4241 = vpop.permute.xlu0 %4240
  %4242 = vrot.lane.b32.xlu0 %v4135, 80
  %v4243 = vpop.permute.xlu0 %4242
  %4244 = vrot.lane.b32.xlu0 %v4136, 80
  %v4245 = vpop.permute.xlu0 %4244
  %4246 = vrot.lane.b32.xlu0 %v4137, 80
  %v4247 = vpop.permute.xlu0 %4246
  %v4248 = vadd.f32 %v4080, %v4139
  %v4249 = vadd.f32 %v4081, %v4141
  %v4250 = vadd.f32 %v4082, %v4143
  %v4251 = vadd.f32 %v4083, %v4145
  %v4252 = vadd.f32 %v4084, %v4147
  %v4253 = vadd.f32 %v4085, %v4149
  %v4254 = vadd.f32 %v4086, %v4151
  %v4255 = vadd.f32 %v4087, %v4153
  %v4256 = vadd.f32 %v4088, %v4155
  %v4257 = vadd.f32 %v4089, %v4157
  %v4258 = vadd.f32 %v4090, %v4159
  %v4259 = vadd.f32 %v4091, %v4161
  %v4260 = vadd.f32 %v4092, %v4163
  %v4261 = vadd.f32 %v4093, %v4165
  %v4262 = vadd.f32 %v4094, %v4167
  %v4263 = vadd.f32 %v4095, %v4169
  %v4264 = vadd.f32 %v4096, %v4171
  %v4265 = vadd.f32 %v4097, %v4173
  %v4266 = vadd.f32 %v4098, %v4175
  %v4267 = vadd.f32 %v4099, %v4177
  %v4268 = vadd.f32 %v4100, %v4179
  %v4269 = vadd.f32 %v4101, %v4181
  %v4270 = vadd.f32 %v4102, %v4183
  %v4271 = vadd.f32 %v4103, %v4185
  %v4272 = vadd.f32 %v4104, %v4187
  %v4273 = vadd.f32 %v4105, %v4189
  %v4274 = vadd.f32 %v4106, %v4191
  %v4275 = vadd.f32 %v4107, %v4193
  %v4276 = vadd.f32 %v4108, %v4195
  %v4277 = vadd.f32 %v4109, %v4197
  %v4278 = vadd.f32 %v4110, %v4199
  %v4279 = vadd.f32 %v4111, %v4201
  %v4280 = vadd.f32 %v4112, %v4203
  %v4281 = vadd.f32 %v4113, %v4205
  %v4282 = vadd.f32 %v4114, %v4207
  %v4283 = vadd.f32 %v4115, %v4209
  %v4284 = vadd.f32 %v4116, %v4211
  %v4285 = vadd.f32 %v4117, %v4213
  %v4286 = vadd.f32 %v4118, %v4215
  %v4287 = vadd.f32 %v4119, %v4217
  %v4288 = vadd.f32 %v4120, %v4219
  %v4289 = vadd.f32 %v4121, %v4221
  %v4290 = vadd.f32 %v4122, %v4223
  %v4291 = vadd.f32 %v4123, %v4225
  %v4292 = vadd.f32 %v4124, %v4227
  %v4293 = vadd.f32 %v4125, %v4229
  %v4294 = vadd.f32 %v4126, %v4231
  %v4295 = vadd.f32 %v4127, %v4233
  %v4296 = vadd.f32 %v4128, %v4235
  %v4297 = vadd.f32 %v4129, %v4237
  %v4298 = vadd.f32 %v4130, %v4239
  %v4299 = vadd.f32 %v4131, %v4241
  %v4300 = vadd.f32 %v4132, %v4243
  %v4301 = vadd.f32 %v4133, %v4245
  %v4302 = vadd.f32 %v4134, %v4247
  %v4303 = vpack.c.bf16 %v4249, %v4248
  %v4304 = vpack.c.bf16 %v4251, %v4250
  %v4305 = vpack.c.bf16 %v4253, %v4252
  %v4306 = vpack.c.bf16 %v4255, %v4254
  %v4307 = vpack.c.bf16 %v4257, %v4256
  %v4308 = vpack.c.bf16 %v4259, %v4258
  %v4309 = vpack.c.bf16 %v4261, %v4260
  %v4310 = vpack.c.bf16 %v4263, %v4262
  %v4311 = vpack.c.bf16 %v4265, %v4264
  %v4312 = vpack.c.bf16 %v4267, %v4266
  %v4313 = vpack.c.bf16 %v4269, %v4268
  %v4314 = vpack.c.bf16 %v4271, %v4270
  %v4315 = vpack.c.bf16 %v4273, %v4272
  %v4316 = vpack.c.bf16 %v4275, %v4274
  %v4317 = vpack.c.bf16 %v4277, %v4276
  %v4318 = vpack.c.bf16 %v4279, %v4278
  %v4319 = vpack.c.bf16 %v4281, %v4280
  %v4320 = vpack.c.bf16 %v4283, %v4282
  %v4321 = vpack.c.bf16 %v4285, %v4284
  %v4322 = vpack.c.bf16 %v4287, %v4286
  %v4323 = vpack.c.bf16 %v4289, %v4288
  %v4324 = vpack.c.bf16 %v4291, %v4290
  %v4325 = vpack.c.bf16 %v4293, %v4292
  %v4326 = vpack.c.bf16 %v4295, %v4294
  %v4327 = vpack.c.bf16 %v4297, %v4296
  %v4328 = vpack.c.bf16 %v4299, %v4298
  %v4329 = vpack.c.bf16 %v4301, %v4300
  %v4330 = vpack.c.bf16 %v4302, %v4302
  %s4331 = scalar_lea.vmem %s1, 64
  %v4332 = vld [vmem:[%s4331] sm:$0xf]
  %v4333 = vld [vmem:[%s4331 + $0x4] sm:$0xf]
  %v4334 = vld [vmem:[%s4331 + $0x8] sm:$0xf]
  %v4335 = vld [vmem:[%s4331 + $0xc] sm:$0xf]
  %v4336 = vld [vmem:[%s4331 + $0x10] sm:$0xf]
  %v4337 = vld [vmem:[%s4331 + $0x14] sm:$0xf]
  %v4338 = vld [vmem:[%s4331 + $0x18] sm:$0xf]
  %v4339 = vld [vmem:[%s4331 + $0x1c] sm:$0xf]
  %v4340 = vld [vmem:[%s4331 + $0x20] sm:$0xf]
  %v4341 = vld [vmem:[%s4331 + $0x24] sm:$0xf]
  %v4342 = vld [vmem:[%s4331 + $0x28] sm:$0xf]
  %v4343 = vld [vmem:[%s4331 + $0x2c] sm:$0xf]
  %v4344 = vld [vmem:[%s4331 + $0x30] sm:$0xf]
  %v4345 = vld [vmem:[%s4331 + $0x34] sm:$0xf]
  %v4346 = vld [vmem:[%s4331 + $0x38] sm:$0xf]
  %v4347 = vld [vmem:[%s4331 + $0x3c] sm:$0xf]
  %v4364 = vunpack.c.l.b16 %v4332
  %v4365 = vunpack.c.l.b16 %v4333
  %v4366 = vunpack.c.l.b16 %v4334
  %v4367 = vunpack.c.l.b16 %v4335
  %v4368 = vunpack.c.l.b16 %v4336
  %v4369 = vunpack.c.l.b16 %v4337
  %v4370 = vunpack.c.l.b16 %v4338
  %v4371 = vunpack.c.l.b16 %v4339
  %v4372 = vunpack.c.l.b16 %v4340
  %v4373 = vunpack.c.l.b16 %v4341
  %v4374 = vunpack.c.l.b16 %v4342
  %v4375 = vunpack.c.l.b16 %v4343
  %v4376 = vunpack.c.l.b16 %v4344
  %v4377 = vunpack.c.l.b16 %v4345
  %v4378 = vunpack.c.l.b16 %v4346
  %v4379 = vunpack.c.l.b16 %v4347
  %v4380 = vpack.c.b16 %v4365, %v4364
  %v4381 = vpack.c.b16 %v4367, %v4366
  %v4382 = vpack.c.b16 %v4369, %v4368
  %v4383 = vpack.c.b16 %v4371, %v4370
  %v4384 = vpack.c.b16 %v4373, %v4372
  %v4385 = vpack.c.b16 %v4375, %v4374
  %v4386 = vpack.c.b16 %v4377, %v4376
  %v4387 = vpack.c.b16 %v4379, %v4378
  %4396 = vmatprep.subr.bf16.mxu0 0
  %4397 = vmatpush1.bf16.msra.mxu0 %v4380
  %4398 = vmatprep.subr.bf16.mxu0 0
  %4399 = vmatpush1.bf16.msra.mxu0 %v4381
  %4400 = vmatprep.subr.bf16.mxu0 0
  %4401 = vmatpush1.bf16.msra.mxu0 %v4382
  %4402 = vmatprep.subr.bf16.mxu0 0
  %4403 = vmatpush1.bf16.msra.mxu0 %v4383
  %4404 = vmatprep.subr.bf16.mxu0 0
  %4405 = vmatpush1.bf16.msra.mxu0 %v4384
  %4406 = vmatprep.subr.bf16.mxu0 0
  %4407 = vmatpush1.bf16.msra.mxu0 %v4385
  %4408 = vmatprep.subr.bf16.mxu0 0
  %4409 = vmatpush1.bf16.msra.mxu0 %v4386
  %4410 = vmatprep.subr.bf16.mxu0 0
  %4411 = vmatpush1.bf16.msra.mxu0 %v4387
  %4412 = vmatprep.subr.bf16.mxu0 0
  %4413 = vmatpush1.bf16.msra.mxu0 0
  %4414 = vmatprep.subr.bf16.mxu0 0
  %4415 = vmatpush1.bf16.msra.mxu0 0
  %4416 = vmatprep.subr.bf16.mxu0 0
  %4417 = vmatpush1.bf16.msra.mxu0 0
  %4418 = vmatprep.subr.bf16.mxu0 0
  %4419 = vmatpush1.bf16.msra.mxu0 0
  %4420 = vmatprep.subr.bf16.mxu0 0
  %4421 = vmatpush1.bf16.msra.mxu0 0
  %4422 = vmatprep.subr.bf16.mxu0 0
  %4423 = vmatpush1.bf16.msra.mxu0 0
  %4424 = vmatprep.subr.bf16.mxu0 0
  %4425 = vmatpush1.bf16.msra.mxu0 0
  %4426 = vmatprep.subr.bf16.mxu0 0
  %4427 = vmatpush1.bf16.msra.mxu0 0
  %4428 = vmatprep.mubr.bf16.mxu0 0
  %4429 = vmatmul.mubr.bf16.gmra.mrb[0].mxu0 %v4303
  %v4430 = vpop.f32.mrb[0].mxu0
  %v4431 = vadd.f32 0.0, %v4430
  %v4432 = vpop.f32.mrb[0].mxu0
  %v4433 = vpop.f32.mrb[0].mxu0
  %v4434 = vadd.f32 0.0, %v4433
  %v4435 = vpop.f32.mrb[0].mxu0
  %4436 = vmatprep.mubr.bf16.mxu0 0
  %4437 = vmatmul.mubr.bf16.gmra.mrb[0].mxu0 %v4304
  %v4438 = vpop.f32.mrb[0].mxu0
  %v4439 = vadd.f32 0.0, %v4438
  %v4440 = vpop.f32.mrb[0].mxu0
  %v4441 = vpop.f32.mrb[0].mxu0
  %v4442 = vadd.f32 0.0, %v4441
  %v4443 = vpop.f32.mrb[0].mxu0
  %4444 = vmatprep.mubr.bf16.mxu0 0
  %4445 = vmatmul.mubr.bf16.gmra.mrb[0].mxu0 %v4305
  %v4446 = vpop.f32.mrb[0].mxu0
  %v4447 = vadd.f32 0.0, %v4446
  %v4448 = vpop.f32.mrb[0].mxu0
  %v4449 = vpop.f32.mrb[0].mxu0
  %v4450 = vadd.f32 0.0, %v4449
  %v4451 = vpop.f32.mrb[0].mxu0
  %4452 = vmatprep.mubr.bf16.mxu0 0
  %4453 = vmatmul.mubr.bf16.gmra.mrb[0].mxu0 %v4306
  %v4454 = vpop.f32.mrb[0].mxu0
  %v4455 = vadd.f32 0.0, %v4454
  %v4456 = vpop.f32.mrb[0].mxu0
  %v4457 = vpop.f32.mrb[0].mxu0
  %v4458 = vadd.f32 0.0, %v4457
  %v4459 = vpop.f32.mrb[0].mxu0
  %4460 = vmatprep.mubr.bf16.mxu0 0
  %4461 = vmatmul.mubr.bf16.gmra.mrb[0].mxu0 %v4307
  %v4462 = vpop.f32.mrb[0].mxu0
  %v4463 = vadd.f32 0.0, %v4462
  %v4464 = vpop.f32.mrb[0].mxu0
  %v4465 = vpop.f32.mrb[0].mxu0
  %v4466 = vadd.f32 0.0, %v4465
  %v4467 = vpop.f32.mrb[0].mxu0
  %4468 = vmatprep.mubr.bf16.mxu0 0
  %4469 = vmatmul.mubr.bf16.gmra.mrb[0].mxu0 %v4308
  %v4470 = vpop.f32.mrb[0].mxu0
  %v4471 = vadd.f32 0.0, %v4470
  %v4472 = vpop.f32.mrb[0].mxu0
  %v4473 = vpop.f32.mrb[0].mxu0
  %v4474 = vadd.f32 0.0, %v4473
  %v4475 = vpop.f32.mrb[0].mxu0
  %4476 = vmatprep.mubr.bf16.mxu0 0
  %4477 = vmatmul.mubr.bf16.gmra.mrb[0].mxu0 %v4309
  %v4478 = vpop.f32.mrb[0].mxu0
  %v4479 = vadd.f32 0.0, %v4478
  %v4480 = vpop.f32.mrb[0].mxu0
  %v4481 = vpop.f32.mrb[0].mxu0
  %v4482 = vadd.f32 0.0, %v4481
  %v4483 = vpop.f32.mrb[0].mxu0
  %4484 = vmatprep.mubr.bf16.mxu0 0
  %4485 = vmatmul.mubr.bf16.gmra.mrb[0].mxu0 %v4310
  %v4486 = vpop.f32.mrb[0].mxu0
  %v4487 = vadd.f32 0.0, %v4486
  %v4488 = vpop.f32.mrb[0].mxu0
  %v4489 = vpop.f32.mrb[0].mxu0
  %v4490 = vadd.f32 0.0, %v4489
  %v4491 = vpop.f32.mrb[0].mxu0
  %4492 = vmatprep.mubr.bf16.mxu0 0
  %4493 = vmatmul.mubr.bf16.gmra.mrb[0].mxu0 %v4311
  %v4494 = vpop.f32.mrb[0].mxu0
  %v4495 = vadd.f32 0.0, %v4494
  %v4496 = vpop.f32.mrb[0].mxu0
  %v4497 = vpop.f32.mrb[0].mxu0
  %v4498 = vadd.f32 0.0, %v4497
  %v4499 = vpop.f32.mrb[0].mxu0
  %4500 = vmatprep.mubr.bf16.mxu0 0
  %4501 = vmatmul.mubr.bf16.gmra.mrb[0].mxu0 %v4312
  %v4502 = vpop.f32.mrb[0].mxu0
  %v4503 = vadd.f32 0.0, %v4502
  %v4504 = vpop.f32.mrb[0].mxu0
  %v4505 = vpop.f32.mrb[0].mxu0
  %v4506 = vadd.f32 0.0, %v4505
  %v4507 = vpop.f32.mrb[0].mxu0
  %4508 = vmatprep.mubr.bf16.mxu0 0
  %4509 = vmatmul.mubr.bf16.gmra.mrb[0].mxu0 %v4313
  %v4510 = vpop.f32.mrb[0].mxu0
  %v4511 = vadd.f32 0.0, %v4510
  %v4512 = vpop.f32.mrb[0].mxu0
  %v4513 = vpop.f32.mrb[0].mxu0
  %v4514 = vadd.f32 0.0, %v4513
  %v4515 = vpop.f32.mrb[0].mxu0
  %4516 = vmatprep.mubr.bf16.mxu0 0
  %4517 = vmatmul.mubr.bf16.gmra.mrb[0].mxu0 %v4314
  %v4518 = vpop.f32.mrb[0].mxu0
  %v4519 = vadd.f32 0.0, %v4518
  %v4520 = vpop.f32.mrb[0].mxu0
  %v4521 = vpop.f32.mrb[0].mxu0
  %v4522 = vadd.f32 0.0, %v4521
  %v4523 = vpop.f32.mrb[0].mxu0
  %4524 = vmatprep.mubr.bf16.mxu0 0
  %4525 = vmatmul.mubr.bf16.gmra.mrb[0].mxu0 %v4315
  %v4526 = vpop.f32.mrb[0].mxu0
  %v4527 = vadd.f32 0.0, %v4526
  %v4528 = vpop.f32.mrb[0].mxu0
  %v4529 = vpop.f32.mrb[0].mxu0
  %v4530 = vadd.f32 0.0, %v4529
  %v4531 = vpop.f32.mrb[0].mxu0
  %4532 = vmatprep.mubr.bf16.mxu0 0
  %4533 = vmatmul.mubr.bf16.gmra.mrb[0].mxu0 %v4316
  %v4534 = vpop.f32.mrb[0].mxu0
  %v4535 = vadd.f32 0.0, %v4534
  %v4536 = vpop.f32.mrb[0].mxu0
  %v4537 = vpop.f32.mrb[0].mxu0
  %v4538 = vadd.f32 0.0, %v4537
  %v4539 = vpop.f32.mrb[0].mxu0
  %4540 = vmatprep.mubr.bf16.mxu0 0
  %4541 = vmatmul.mubr.bf16.gmra.mrb[0].mxu0 %v4317
  %v4542 = vpop.f32.mrb[0].mxu0
  %v4543 = vadd.f32 0.0, %v4542
  %v4544 = vpop.f32.mrb[0].mxu0
  %v4545 = vpop.f32.mrb[0].mxu0
  %v4546 = vadd.f32 0.0, %v4545
  %v4547 = vpop.f32.mrb[0].mxu0
  %4548 = vmatprep.mubr.bf16.mxu0 0
  %4549 = vmatmul.mubr.bf16.gmra.mrb[0].mxu0 %v4318
  %v4550 = vpop.f32.mrb[0].mxu0
  %v4551 = vadd.f32 0.0, %v4550
  %v4552 = vpop.f32.mrb[0].mxu0
  %v4553 = vpop.f32.mrb[0].mxu0
  %v4554 = vadd.f32 0.0, %v4553
  %v4555 = vpop.f32.mrb[0].mxu0
  %4556 = vmatprep.mubr.bf16.mxu0 0
  %4557 = vmatmul.mubr.bf16.gmra.mrb[0].mxu0 %v4319
  %v4558 = vpop.f32.mrb[0].mxu0
  %v4559 = vadd.f32 0.0, %v4558
  %v4560 = vpop.f32.mrb[0].mxu0
  %v4561 = vpop.f32.mrb[0].mxu0
  %v4562 = vadd.f32 0.0, %v4561
  %v4563 = vpop.f32.mrb[0].mxu0
  %4564 = vmatprep.mubr.bf16.mxu0 0
  %4565 = vmatmul.mubr.bf16.gmra.mrb[0].mxu0 %v4320
  %v4566 = vpop.f32.mrb[0].mxu0
  %v4567 = vadd.f32 0.0, %v4566
  %v4568 = vpop.f32.mrb[0].mxu0
  %v4569 = vpop.f32.mrb[0].mxu0
  %v4570 = vadd.f32 0.0, %v4569
  %v4571 = vpop.f32.mrb[0].mxu0
  %4572 = vmatprep.mubr.bf16.mxu0 0
  %4573 = vmatmul.mubr.bf16.gmra.mrb[0].mxu0 %v4321
  %v4574 = vpop.f32.mrb[0].mxu0
  %v4575 = vadd.f32 0.0, %v4574
  %v4576 = vpop.f32.mrb[0].mxu0
  %v4577 = vpop.f32.mrb[0].mxu0
  %v4578 = vadd.f32 0.0, %v4577
  %v4579 = vpop.f32.mrb[0].mxu0
  %4580 = vmatprep.mubr.bf16.mxu0 0
  %4581 = vmatmul.mubr.bf16.gmra.mrb[0].mxu0 %v4322
  %v4582 = vpop.f32.mrb[0].mxu0
  %v4583 = vadd.f32 0.0, %v4582
  %v4584 = vpop.f32.mrb[0].mxu0
  %v4585 = vpop.f32.mrb[0].mxu0
  %v4586 = vadd.f32 0.0, %v4585
  %v4587 = vpop.f32.mrb[0].mxu0
  %4588 = vmatprep.mubr.bf16.mxu0 0
  %4589 = vmatmul.mubr.bf16.gmra.mrb[0].mxu0 %v4323
  %v4590 = vpop.f32.mrb[0].mxu0
  %v4591 = vadd.f32 0.0, %v4590
  %v4592 = vpop.f32.mrb[0].mxu0
  %v4593 = vpop.f32.mrb[0].mxu0
  %v4594 = vadd.f32 0.0, %v4593
  %v4595 = vpop.f32.mrb[0].mxu0
  %4596 = vmatprep.mubr.bf16.mxu0 0
  %4597 = vmatmul.mubr.bf16.gmra.mrb[0].mxu0 %v4324
  %v4598 = vpop.f32.mrb[0].mxu0
  %v4599 = vadd.f32 0.0, %v4598
  %v4600 = vpop.f32.mrb[0].mxu0
  %v4601 = vpop.f32.mrb[0].mxu0
  %v4602 = vadd.f32 0.0, %v4601
  %v4603 = vpop.f32.mrb[0].mxu0
  %4604 = vmatprep.mubr.bf16.mxu0 0
  %4605 = vmatmul.mubr.bf16.gmra.mrb[0].mxu0 %v4325
  %v4606 = vpop.f32.mrb[0].mxu0
  %v4607 = vadd.f32 0.0, %v4606
  %v4608 = vpop.f32.mrb[0].mxu0
  %v4609 = vpop.f32.mrb[0].mxu0
  %v4610 = vadd.f32 0.0, %v4609
  %v4611 = vpop.f32.mrb[0].mxu0
  %4612 = vmatprep.mubr.bf16.mxu0 0
  %4613 = vmatmul.mubr.bf16.gmra.mrb[0].mxu0 %v4326
  %v4614 = vpop.f32.mrb[0].mxu0
  %v4615 = vadd.f32 0.0, %v4614
  %v4616 = vpop.f32.mrb[0].mxu0
  %v4617 = vpop.f32.mrb[0].mxu0
  %v4618 = vadd.f32 0.0, %v4617
  %v4619 = vpop.f32.mrb[0].mxu0
  %4620 = vmatprep.mubr.bf16.mxu0 0
  %4621 = vmatmul.mubr.bf16.gmra.mrb[0].mxu0 %v4327
  %v4622 = vpop.f32.mrb[0].mxu0
  %v4623 = vadd.f32 0.0, %v4622
  %v4624 = vpop.f32.mrb[0].mxu0
  %v4625 = vpop.f32.mrb[0].mxu0
  %v4626 = vadd.f32 0.0, %v4625
  %v4627 = vpop.f32.mrb[0].mxu0
  %4628 = vmatprep.mubr.bf16.mxu0 0
  %4629 = vmatmul.mubr.bf16.gmra.mrb[0].mxu0 %v4328
  %v4630 = vpop.f32.mrb[0].mxu0
  %v4631 = vadd.f32 0.0, %v4630
  %v4632 = vpop.f32.mrb[0].mxu0
  %v4633 = vpop.f32.mrb[0].mxu0
  %v4634 = vadd.f32 0.0, %v4633
  %v4635 = vpop.f32.mrb[0].mxu0
  %4636 = vmatprep.mubr.bf16.mxu0 0
  %4637 = vmatmul.mubr.bf16.gmra.mrb[0].mxu0 %v4329
  %v4638 = vpop.f32.mrb[0].mxu0
  %v4639 = vadd.f32 0.0, %v4638
  %v4640 = vpop.f32.mrb[0].mxu0
  %v4641 = vpop.f32.mrb[0].mxu0
  %v4642 = vadd.f32 0.0, %v4641
  %v4643 = vpop.f32.mrb[0].mxu0
  %4644 = vmatprep.mubr.bf16.mxu0 0
  %4645 = vmatmul.mubr.bf16.gmra.mrb[0].mxu0 %v4330
  %v4646 = vpop.f32.mrb[0].mxu0
  %v4647 = vadd.f32 0.0, %v4646
  %v4648 = vpop.f32.mrb[0].mxu0
  %v4649 = vpop.f32.mrb[0].mxu0
  %v4650 = vpop.f32.mrb[0].mxu0
  %4651 = vdwg.mxu0
  %v4652 = vld [vmem:[%s5] sm:$0xff]
  %v4653 = vld [vmem:[%s5 + $0x8] sm:$0xff]
  %v4654 = vld [vmem:[%s5 + $0x10] sm:$0xff]
  %v4655 = vld [vmem:[%s5 + $0x18] sm:$0xff]
  %vm4656 = vcmask 457728
  %v4658 = vsel %vm4656, %v4655, 0
  %4660 = vmatprep.subr.mxu0 0.0
  %4661 = vmatpush1.msra.mxu0 %v4431
  %4662 = vmatprep.subr.mxu0 0.0
  %4663 = vmatpush1.msra.mxu0 %v4434
  %4664 = vmatprep.subr.mxu0 0.0
  %4665 = vmatpush1.msra.mxu0 %v4439
  %4666 = vmatprep.subr.mxu0 0.0
  %4667 = vmatpush1.msra.mxu0 %v4442
  %4668 = vmatprep.subr.mxu0 0.0
  %4669 = vmatpush1.msra.mxu0 %v4447
  %4670 = vmatprep.subr.mxu0 0.0
  %4671 = vmatpush1.msra.mxu0 %v4450
  %4672 = vmatprep.subr.mxu0 0.0
  %4673 = vmatpush1.msra.mxu0 %v4455
  %4674 = vmatprep.subr.mxu0 0.0
  %4675 = vmatpush1.msra.mxu0 %v4458
  %4676 = vmatprep.subr.mxu0 0.0
  %4677 = vmatpush1.msra.mxu0 %v4463
  %4678 = vmatprep.subr.mxu0 0.0
  %4679 = vmatpush1.msra.mxu0 %v4466
  %4680 = vmatprep.subr.mxu0 0.0
  %4681 = vmatpush1.msra.mxu0 %v4471
  %4682 = vmatprep.subr.mxu0 0.0
  %4683 = vmatpush1.msra.mxu0 %v4474
  %4684 = vmatprep.subr.mxu0 0.0
  %4685 = vmatpush1.msra.mxu0 %v4479
  %4686 = vmatprep.subr.mxu0 0.0
  %4687 = vmatpush1.msra.mxu0 %v4482
  %4688 = vmatprep.subr.mxu0 0.0
  %4689 = vmatpush1.msra.mxu0 %v4487
  %4690 = vmatprep.subr.mxu0 0.0
  %4691 = vmatpush1.msra.mxu0 %v4490
  %4692 = vmatprep.subr.mxu0 0.0
  %4693 = vmatpush1.msra.mxu0 %v4495
  %4694 = vmatprep.subr.mxu0 0.0
  %4695 = vmatpush1.msra.mxu0 %v4498
  %4696 = vmatprep.subr.mxu0 0.0
  %4697 = vmatpush1.msra.mxu0 %v4503
  %4698 = vmatprep.subr.mxu0 0.0
  %4699 = vmatpush1.msra.mxu0 %v4506
  %4700 = vmatprep.subr.mxu0 0.0
  %4701 = vmatpush1.msra.mxu0 %v4511
  %4702 = vmatprep.subr.mxu0 0.0
  %4703 = vmatpush1.msra.mxu0 %v4514
  %4704 = vmatprep.subr.mxu0 0.0
  %4705 = vmatpush1.msra.mxu0 %v4519
  %4706 = vmatprep.subr.mxu0 0.0
  %4707 = vmatpush1.msra.mxu0 %v4522
  %4708 = vmatprep.subr.mxu0 0.0
  %4709 = vmatpush1.msra.mxu0 %v4527
  %4710 = vmatprep.subr.mxu0 0.0
  %4711 = vmatpush1.msra.mxu0 %v4530
  %4712 = vmatprep.subr.mxu0 0.0
  %4713 = vmatpush1.msra.mxu0 %v4535
  %4714 = vmatprep.subr.mxu0 0.0
  %4715 = vmatpush1.msra.mxu0 %v4538
  %4716 = vmatprep.subr.mxu0 0.0
  %4717 = vmatpush1.msra.mxu0 %v4543
  %4718 = vmatprep.subr.mxu0 0.0
  %4719 = vmatpush1.msra.mxu0 %v4546
  %4720 = vmatprep.subr.mxu0 0.0
  %4721 = vmatpush1.msra.mxu0 %v4551
  %4722 = vmatprep.subr.mxu0 0.0
  %4723 = vmatpush1.msra.mxu0 %v4554
  %4724 = vmatprep.mubr.f32.mxu0 %v4653
  %4725 = vmatmul.mubr.f32.gmra.mrb[0].mxu0 %v4652
  %v4726 = vpop.f32.mrb[0].mxu0
  %v4727 = vadd.f32 0.0, %v4726
  %v4728 = vpop.f32.mrb[0].mxu0
  %4729 = vdwg.mxu0
  %4730 = vmatprep.subr.mxu0 0.0
  %4731 = vmatpush1.msra.mxu0 %v4559
  %4732 = vmatprep.subr.mxu0 0.0
  %4733 = vmatpush1.msra.mxu0 %v4562
  %4734 = vmatprep.subr.mxu0 0.0
  %4735 = vmatpush1.msra.mxu0 %v4567
  %4736 = vmatprep.subr.mxu0 0.0
  %4737 = vmatpush1.msra.mxu0 %v4570
  %4738 = vmatprep.subr.mxu0 0.0
  %4739 = vmatpush1.msra.mxu0 %v4575
  %4740 = vmatprep.subr.mxu0 0.0
  %4741 = vmatpush1.msra.mxu0 %v4578
  %4742 = vmatprep.subr.mxu0 0.0
  %4743 = vmatpush1.msra.mxu0 %v4583
  %4744 = vmatprep.subr.mxu0 0.0
  %4745 = vmatpush1.msra.mxu0 %v4586
  %4746 = vmatprep.subr.mxu0 0.0
  %4747 = vmatpush1.msra.mxu0 %v4591
  %4748 = vmatprep.subr.mxu0 0.0
  %4749 = vmatpush1.msra.mxu0 %v4594
  %4750 = vmatprep.subr.mxu0 0.0
  %4751 = vmatpush1.msra.mxu0 %v4599
  %4752 = vmatprep.subr.mxu0 0.0
  %4753 = vmatpush1.msra.mxu0 %v4602
  %4754 = vmatprep.subr.mxu0 0.0
  %4755 = vmatpush1.msra.mxu0 %v4607
  %4756 = vmatprep.subr.mxu0 0.0
  %4757 = vmatpush1.msra.mxu0 %v4610
  %4758 = vmatprep.subr.mxu0 0.0
  %4759 = vmatpush1.msra.mxu0 %v4615
  %4760 = vmatprep.subr.mxu0 0.0
  %4761 = vmatpush1.msra.mxu0 %v4618
  %4762 = vmatprep.subr.mxu0 0.0
  %4763 = vmatpush1.msra.mxu0 %v4623
  %4764 = vmatprep.subr.mxu0 0.0
  %4765 = vmatpush1.msra.mxu0 %v4626
  %4766 = vmatprep.subr.mxu0 0.0
  %4767 = vmatpush1.msra.mxu0 %v4631
  %4768 = vmatprep.subr.mxu0 0.0
  %4769 = vmatpush1.msra.mxu0 %v4634
  %4770 = vmatprep.subr.mxu0 0.0
  %4771 = vmatpush1.msra.mxu0 %v4639
  %4772 = vmatprep.subr.mxu0 0.0
  %4773 = vmatpush1.msra.mxu0 %v4642
  %4774 = vmatprep.subr.mxu0 0.0
  %4775 = vmatpush1.msra.mxu0 %v4647
  %4776 = vmatprep.subr.mxu0 0.0
  %4777 = vmatpush1.msra.mxu0 0.0
  %4778 = vmatprep.subr.mxu0 0.0
  %4779 = vmatpush1.msra.mxu0 0.0
  %4780 = vmatprep.subr.mxu0 0.0
  %4781 = vmatpush1.msra.mxu0 0.0
  %4782 = vmatprep.subr.mxu0 0.0
  %4783 = vmatpush1.msra.mxu0 0.0
  %4784 = vmatprep.subr.mxu0 0.0
  %4785 = vmatpush1.msra.mxu0 0.0
  %4786 = vmatprep.subr.mxu0 0.0
  %4787 = vmatpush1.msra.mxu0 0.0
  %4788 = vmatprep.subr.mxu0 0.0
  %4789 = vmatpush1.msra.mxu0 0.0
  %4790 = vmatprep.subr.mxu0 0.0
  %4791 = vmatpush1.msra.mxu0 0.0
  %4792 = vmatprep.subr.mxu0 0.0
  %4793 = vmatpush1.msra.mxu0 0.0
  %4794 = vmatprep.mubr.f32.mxu0 %v4658
  %4795 = vmatmul.mubr.f32.gmra.mrb[0].mxu0 %v4654
  %v4796 = vpop.f32.mrb[0].mxu0
  %v4797 = vadd.f32 %v4727, %v4796
  %v4798 = vpop.f32.mrb[0].mxu0
  %4799 = vdwg.mxu0
  %v4800 = vmul.f32 %v4431, %v4431
  %v4801 = vmul.f32 %v4434, %v4434
  %v4802 = vmul.f32 %v4439, %v4439
  %v4803 = vmul.f32 %v4442, %v4442
  %v4804 = vmul.f32 %v4447, %v4447
  %v4805 = vmul.f32 %v4450, %v4450
  %v4806 = vmul.f32 %v4455, %v4455
  %v4807 = vmul.f32 %v4458, %v4458
  %v4808 = vmul.f32 %v4463, %v4463
  %v4809 = vmul.f32 %v4466, %v4466
  %v4810 = vmul.f32 %v4471, %v4471
  %v4811 = vmul.f32 %v4474, %v4474
  %v4812 = vmul.f32 %v4479, %v4479
  %v4813 = vmul.f32 %v4482, %v4482
  %v4814 = vmul.f32 %v4487, %v4487
  %v4815 = vmul.f32 %v4490, %v4490
  %v4816 = vmul.f32 %v4495, %v4495
  %v4817 = vmul.f32 %v4498, %v4498
  %v4818 = vmul.f32 %v4503, %v4503
  %v4819 = vmul.f32 %v4506, %v4506
  %v4820 = vmul.f32 %v4511, %v4511
  %v4821 = vmul.f32 %v4514, %v4514
  %v4822 = vmul.f32 %v4519, %v4519
  %v4823 = vmul.f32 %v4522, %v4522
  %v4824 = vmul.f32 %v4527, %v4527
  %v4825 = vmul.f32 %v4530, %v4530
  %v4826 = vmul.f32 %v4535, %v4535
  %v4827 = vmul.f32 %v4538, %v4538
  %v4828 = vmul.f32 %v4543, %v4543
  %v4829 = vmul.f32 %v4546, %v4546
  %v4830 = vmul.f32 %v4551, %v4551
  %v4831 = vmul.f32 %v4554, %v4554
  %v4832 = vmul.f32 %v4559, %v4559
  %v4833 = vmul.f32 %v4562, %v4562
  %v4834 = vmul.f32 %v4567, %v4567
  %v4835 = vmul.f32 %v4570, %v4570
  %v4836 = vmul.f32 %v4575, %v4575
  %v4837 = vmul.f32 %v4578, %v4578
  %v4838 = vmul.f32 %v4583, %v4583
  %v4839 = vmul.f32 %v4586, %v4586
  %v4840 = vmul.f32 %v4591, %v4591
  %v4841 = vmul.f32 %v4594, %v4594
  %v4842 = vmul.f32 %v4599, %v4599
  %v4843 = vmul.f32 %v4602, %v4602
  %v4844 = vmul.f32 %v4607, %v4607
  %v4845 = vmul.f32 %v4610, %v4610
  %v4846 = vmul.f32 %v4615, %v4615
  %v4847 = vmul.f32 %v4618, %v4618
  %v4848 = vmul.f32 %v4623, %v4623
  %v4849 = vmul.f32 %v4626, %v4626
  %v4850 = vmul.f32 %v4631, %v4631
  %v4851 = vmul.f32 %v4634, %v4634
  %v4852 = vmul.f32 %v4639, %v4639
  %v4853 = vmul.f32 %v4642, %v4642
  %v4854 = vmul.f32 %v4647, %v4647
  %4855 = vmatprep.subr.mxu0 0.0
  %4856 = vmatpush1.msra.mxu0 %v4800
  %4857 = vmatprep.subr.mxu0 0.0
  %4858 = vmatpush1.msra.mxu0 %v4801
  %4859 = vmatprep.subr.mxu0 0.0
  %4860 = vmatpush1.msra.mxu0 %v4802
  %4861 = vmatprep.subr.mxu0 0.0
  %4862 = vmatpush1.msra.mxu0 %v4803
  %4863 = vmatprep.subr.mxu0 0.0
  %4864 = vmatpush1.msra.mxu0 %v4804
  %4865 = vmatprep.subr.mxu0 0.0
  %4866 = vmatpush1.msra.mxu0 %v4805
  %4867 = vmatprep.subr.mxu0 0.0
  %4868 = vmatpush1.msra.mxu0 %v4806
  %4869 = vmatprep.subr.mxu0 0.0
  %4870 = vmatpush1.msra.mxu0 %v4807
  %4871 = vmatprep.subr.mxu0 0.0
  %4872 = vmatpush1.msra.mxu0 %v4808
  %4873 = vmatprep.subr.mxu0 0.0
  %4874 = vmatpush1.msra.mxu0 %v4809
  %4875 = vmatprep.subr.mxu0 0.0
  %4876 = vmatpush1.msra.mxu0 %v4810
  %4877 = vmatprep.subr.mxu0 0.0
  %4878 = vmatpush1.msra.mxu0 %v4811
  %4879 = vmatprep.subr.mxu0 0.0
  %4880 = vmatpush1.msra.mxu0 %v4812
  %4881 = vmatprep.subr.mxu0 0.0
  %4882 = vmatpush1.msra.mxu0 %v4813
  %4883 = vmatprep.subr.mxu0 0.0
  %4884 = vmatpush1.msra.mxu0 %v4814
  %4885 = vmatprep.subr.mxu0 0.0
  %4886 = vmatpush1.msra.mxu0 %v4815
  %4887 = vmatprep.subr.mxu0 0.0
  %4888 = vmatpush1.msra.mxu0 %v4816
  %4889 = vmatprep.subr.mxu0 0.0
  %4890 = vmatpush1.msra.mxu0 %v4817
  %4891 = vmatprep.subr.mxu0 0.0
  %4892 = vmatpush1.msra.mxu0 %v4818
  %4893 = vmatprep.subr.mxu0 0.0
  %4894 = vmatpush1.msra.mxu0 %v4819
  %4895 = vmatprep.subr.mxu0 0.0
  %4896 = vmatpush1.msra.mxu0 %v4820
  %4897 = vmatprep.subr.mxu0 0.0
  %4898 = vmatpush1.msra.mxu0 %v4821
  %4899 = vmatprep.subr.mxu0 0.0
  %4900 = vmatpush1.msra.mxu0 %v4822
  %4901 = vmatprep.subr.mxu0 0.0
  %4902 = vmatpush1.msra.mxu0 %v4823
  %4903 = vmatprep.subr.mxu0 0.0
  %4904 = vmatpush1.msra.mxu0 %v4824
  %4905 = vmatprep.subr.mxu0 0.0
  %4906 = vmatpush1.msra.mxu0 %v4825
  %4907 = vmatprep.subr.mxu0 0.0
  %4908 = vmatpush1.msra.mxu0 %v4826
  %4909 = vmatprep.subr.mxu0 0.0
  %4910 = vmatpush1.msra.mxu0 %v4827
  %4911 = vmatprep.subr.mxu0 0.0
  %4912 = vmatpush1.msra.mxu0 %v4828
  %4913 = vmatprep.subr.mxu0 0.0
  %4914 = vmatpush1.msra.mxu0 %v4829
  %4915 = vmatprep.subr.mxu0 0.0
  %4916 = vmatpush1.msra.mxu0 %v4830
  %4917 = vmatprep.subr.mxu0 0.0
  %4918 = vmatpush1.msra.mxu0 %v4831
  %4919 = vmatprep.mubr.f32.mxu0 %v4653
  %4920 = vmatmul.mubr.f32.gmra.mrb[0].mxu0 %v4652
  %v4921 = vpop.f32.mrb[0].mxu0
  %v4922 = vadd.f32 0.0, %v4921
  %v4923 = vpop.f32.mrb[0].mxu0
  %4924 = vdwg.mxu0
  %4925 = vmatprep.subr.mxu0 0.0
  %4926 = vmatpush1.msra.mxu0 %v4832
  %4927 = vmatprep.subr.mxu0 0.0
  %4928 = vmatpush1.msra.mxu0 %v4833
  %4929 = vmatprep.subr.mxu0 0.0
  %4930 = vmatpush1.msra.mxu0 %v4834
  %4931 = vmatprep.subr.mxu0 0.0
  %4932 = vmatpush1.msra.mxu0 %v4835
  %4933 = vmatprep.subr.mxu0 0.0
  %4934 = vmatpush1.msra.mxu0 %v4836
  %4935 = vmatprep.subr.mxu0 0.0
  %4936 = vmatpush1.msra.mxu0 %v4837
  %4937 = vmatprep.subr.mxu0 0.0
  %4938 = vmatpush1.msra.mxu0 %v4838
  %4939 = vmatprep.subr.mxu0 0.0
  %4940 = vmatpush1.msra.mxu0 %v4839
  %4941 = vmatprep.subr.mxu0 0.0
  %4942 = vmatpush1.msra.mxu0 %v4840
  %4943 = vmatprep.subr.mxu0 0.0
  %4944 = vmatpush1.msra.mxu0 %v4841
  %4945 = vmatprep.subr.mxu0 0.0
  %4946 = vmatpush1.msra.mxu0 %v4842
  %4947 = vmatprep.subr.mxu0 0.0
  %4948 = vmatpush1.msra.mxu0 %v4843
  %4949 = vmatprep.subr.mxu0 0.0
  %4950 = vmatpush1.msra.mxu0 %v4844
  %4951 = vmatprep.subr.mxu0 0.0
  %4952 = vmatpush1.msra.mxu0 %v4845
  %4953 = vmatprep.subr.mxu0 0.0
  %4954 = vmatpush1.msra.mxu0 %v4846
  %4955 = vmatprep.subr.mxu0 0.0
  %4956 = vmatpush1.msra.mxu0 %v4847
  %4957 = vmatprep.subr.mxu0 0.0
  %4958 = vmatpush1.msra.mxu0 %v4848
  %4959 = vmatprep.subr.mxu0 0.0
  %4960 = vmatpush1.msra.mxu0 %v4849
  %4961 = vmatprep.subr.mxu0 0.0
  %4962 = vmatpush1.msra.mxu0 %v4850
  %4963 = vmatprep.subr.mxu0 0.0
  %4964 = vmatpush1.msra.mxu0 %v4851
  %4965 = vmatprep.subr.mxu0 0.0
  %4966 = vmatpush1.msra.mxu0 %v4852
  %4967 = vmatprep.subr.mxu0 0.0
  %4968 = vmatpush1.msra.mxu0 %v4853
  %4969 = vmatprep.subr.mxu0 0.0
  %4970 = vmatpush1.msra.mxu0 %v4854
  %4971 = vmatprep.subr.mxu0 0.0
  %4972 = vmatpush1.msra.mxu0 0.0
  %4973 = vmatprep.subr.mxu0 0.0
  %4974 = vmatpush1.msra.mxu0 0.0
  %4975 = vmatprep.subr.mxu0 0.0
  %4976 = vmatpush1.msra.mxu0 0.0
  %4977 = vmatprep.subr.mxu0 0.0
  %4978 = vmatpush1.msra.mxu0 0.0
  %4979 = vmatprep.subr.mxu0 0.0
  %4980 = vmatpush1.msra.mxu0 0.0
  %4981 = vmatprep.subr.mxu0 0.0
  %4982 = vmatpush1.msra.mxu0 0.0
  %4983 = vmatprep.subr.mxu0 0.0
  %4984 = vmatpush1.msra.mxu0 0.0
  %4985 = vmatprep.subr.mxu0 0.0
  %4986 = vmatpush1.msra.mxu0 0.0
  %4987 = vmatprep.subr.mxu0 0.0
  %4988 = vmatpush1.msra.mxu0 0.0
  %4989 = vmatprep.mubr.f32.mxu0 %v4658
  %4990 = vmatmul.mubr.f32.gmra.mrb[0].mxu0 %v4654
  %v4991 = vpop.f32.mrb[0].mxu0
  %v4992 = vadd.f32 %v4922, %v4991
  %v4993 = vpop.f32.mrb[0].mxu0
  %4994 = vdwg.mxu0
  %v4995 = vmul.f32 %v4797, 0.003125
  %v4996 = vmul.f32 %v4992, 0.003125
  %v4997 = vmul.f32 %v4995, %v4995
  %v4998 = vsub.f32 %v4996, %v4997
  %v4999 = vmax.f32 %v4998, 0.0
  %v5000 = vlaneseq
  %v5001 = vshrl.u32 %v5000, 7
  %v5002 = vsub.s32 0, %v5001
  %v5003 = vrot.slane %v4995, %v5002
  %v5004 = vsub.f32 %v4431, %v5003
  %v5005 = vsub.f32 %v4434, %v5003
  %v5006 = vsub.f32 %v4439, %v5003
  %v5007 = vsub.f32 %v4442, %v5003
  %v5008 = vsub.f32 %v4447, %v5003
  %v5009 = vsub.f32 %v4450, %v5003
  %v5010 = vsub.f32 %v4455, %v5003
  %v5011 = vsub.f32 %v4458, %v5003
  %v5012 = vsub.f32 %v4463, %v5003
  %v5013 = vsub.f32 %v4466, %v5003
  %v5014 = vsub.f32 %v4471, %v5003
  %v5015 = vsub.f32 %v4474, %v5003
  %v5016 = vsub.f32 %v4479, %v5003
  %v5017 = vsub.f32 %v4482, %v5003
  %v5018 = vsub.f32 %v4487, %v5003
  %v5019 = vsub.f32 %v4490, %v5003
  %v5020 = vsub.f32 %v4495, %v5003
  %v5021 = vsub.f32 %v4498, %v5003
  %v5022 = vsub.f32 %v4503, %v5003
  %v5023 = vsub.f32 %v4506, %v5003
  %v5024 = vsub.f32 %v4511, %v5003
  %v5025 = vsub.f32 %v4514, %v5003
  %v5026 = vsub.f32 %v4519, %v5003
  %v5027 = vsub.f32 %v4522, %v5003
  %v5028 = vsub.f32 %v4527, %v5003
  %v5029 = vsub.f32 %v4530, %v5003
  %v5030 = vsub.f32 %v4535, %v5003
  %v5031 = vsub.f32 %v4538, %v5003
  %v5032 = vsub.f32 %v4543, %v5003
  %v5033 = vsub.f32 %v4546, %v5003
  %v5034 = vsub.f32 %v4551, %v5003
  %v5035 = vsub.f32 %v4554, %v5003
  %v5036 = vsub.f32 %v4559, %v5003
  %v5037 = vsub.f32 %v4562, %v5003
  %v5038 = vsub.f32 %v4567, %v5003
  %v5039 = vsub.f32 %v4570, %v5003
  %v5040 = vsub.f32 %v4575, %v5003
  %v5041 = vsub.f32 %v4578, %v5003
  %v5042 = vsub.f32 %v4583, %v5003
  %v5043 = vsub.f32 %v4586, %v5003
  %v5044 = vsub.f32 %v4591, %v5003
  %v5045 = vsub.f32 %v4594, %v5003
  %v5046 = vsub.f32 %v4599, %v5003
  %v5047 = vsub.f32 %v4602, %v5003
  %v5048 = vsub.f32 %v4607, %v5003
  %v5049 = vsub.f32 %v4610, %v5003
  %v5050 = vsub.f32 %v4615, %v5003
  %v5051 = vsub.f32 %v4618, %v5003
  %v5052 = vsub.f32 %v4623, %v5003
  %v5053 = vsub.f32 %v4626, %v5003
  %v5054 = vsub.f32 %v4631, %v5003
  %v5055 = vsub.f32 %v4634, %v5003
  %v5056 = vsub.f32 %v4639, %v5003
  %v5057 = vsub.f32 %v4642, %v5003
  %v5058 = vsub.f32 %v4647, %v5003
  %v5059 = vadd.f32 %v4999, 1e-05
  %v5060 = vrsqrt.pop %v5059
  %v5061 = vlaneseq
  %v5062 = vshrl.u32 %v5061, 7
  %v5063 = vsub.s32 0, %v5062
  %v5064 = vrot.slane %v5060, %v5063
  %v5065 = vmul.f32 %v5004, %v5064
  %v5066 = vmul.f32 %v5005, %v5064
  %v5067 = vmul.f32 %v5006, %v5064
  %v5068 = vmul.f32 %v5007, %v5064
  %v5069 = vmul.f32 %v5008, %v5064
  %v5070 = vmul.f32 %v5009, %v5064
  %v5071 = vmul.f32 %v5010, %v5064
  %v5072 = vmul.f32 %v5011, %v5064
  %v5073 = vmul.f32 %v5012, %v5064
  %v5074 = vmul.f32 %v5013, %v5064
  %v5075 = vmul.f32 %v5014, %v5064
  %v5076 = vmul.f32 %v5015, %v5064
  %v5077 = vmul.f32 %v5016, %v5064
  %v5078 = vmul.f32 %v5017, %v5064
  %v5079 = vmul.f32 %v5018, %v5064
  %v5080 = vmul.f32 %v5019, %v5064
  %v5081 = vmul.f32 %v5020, %v5064
  %v5082 = vmul.f32 %v5021, %v5064
  %v5083 = vmul.f32 %v5022, %v5064
  %v5084 = vmul.f32 %v5023, %v5064
  %v5085 = vmul.f32 %v5024, %v5064
  %v5086 = vmul.f32 %v5025, %v5064
  %v5087 = vmul.f32 %v5026, %v5064
  %v5088 = vmul.f32 %v5027, %v5064
  %v5089 = vmul.f32 %v5028, %v5064
  %v5090 = vmul.f32 %v5029, %v5064
  %v5091 = vmul.f32 %v5030, %v5064
  %v5092 = vmul.f32 %v5031, %v5064
  %v5093 = vmul.f32 %v5032, %v5064
  %v5094 = vmul.f32 %v5033, %v5064
  %v5095 = vmul.f32 %v5034, %v5064
  %v5096 = vmul.f32 %v5035, %v5064
  %v5097 = vmul.f32 %v5036, %v5064
  %v5098 = vmul.f32 %v5037, %v5064
  %v5099 = vmul.f32 %v5038, %v5064
  %v5100 = vmul.f32 %v5039, %v5064
  %v5101 = vmul.f32 %v5040, %v5064
  %v5102 = vmul.f32 %v5041, %v5064
  %v5103 = vmul.f32 %v5042, %v5064
  %v5104 = vmul.f32 %v5043, %v5064
  %v5105 = vmul.f32 %v5044, %v5064
  %v5106 = vmul.f32 %v5045, %v5064
  %v5107 = vmul.f32 %v5046, %v5064
  %v5108 = vmul.f32 %v5047, %v5064
  %v5109 = vmul.f32 %v5048, %v5064
  %v5110 = vmul.f32 %v5049, %v5064
  %v5111 = vmul.f32 %v5050, %v5064
  %v5112 = vmul.f32 %v5051, %v5064
  %v5113 = vmul.f32 %v5052, %v5064
  %v5114 = vmul.f32 %v5053, %v5064
  %v5115 = vmul.f32 %v5054, %v5064
  %v5116 = vmul.f32 %v5055, %v5064
  %v5117 = vmul.f32 %v5056, %v5064
  %v5118 = vmul.f32 %v5057, %v5064
  %v5119 = vmul.f32 %v5058, %v5064
  %v5120 = vld [vmem:[%s3 + $0x1] sm:$0x1]
  %v5121 = vlaneseq
  %v5122 = vshrl.u32 %v5121, 7
  %v5123 = vsub.s32 0, %v5122
  %v5124 = vrot.slane %v5120, %v5123
  %v5125 = vmul.f32 %v5065, %v5124
  %v5126 = vmul.f32 %v5066, %v5124
  %v5127 = vmul.f32 %v5067, %v5124
  %v5128 = vmul.f32 %v5068, %v5124
  %v5129 = vmul.f32 %v5069, %v5124
  %v5130 = vmul.f32 %v5070, %v5124
  %v5131 = vmul.f32 %v5071, %v5124
  %v5132 = vmul.f32 %v5072, %v5124
  %v5133 = vmul.f32 %v5073, %v5124
  %v5134 = vmul.f32 %v5074, %v5124
  %v5135 = vmul.f32 %v5075, %v5124
  %v5136 = vmul.f32 %v5076, %v5124
  %v5137 = vmul.f32 %v5077, %v5124
  %v5138 = vmul.f32 %v5078, %v5124
  %v5139 = vmul.f32 %v5079, %v5124
  %v5140 = vmul.f32 %v5080, %v5124
  %v5141 = vmul.f32 %v5081, %v5124
  %v5142 = vmul.f32 %v5082, %v5124
  %v5143 = vmul.f32 %v5083, %v5124
  %v5144 = vmul.f32 %v5084, %v5124
  %v5145 = vmul.f32 %v5085, %v5124
  %v5146 = vmul.f32 %v5086, %v5124
  %v5147 = vmul.f32 %v5087, %v5124
  %v5148 = vmul.f32 %v5088, %v5124
  %v5149 = vmul.f32 %v5089, %v5124
  %v5150 = vmul.f32 %v5090, %v5124
  %v5151 = vmul.f32 %v5091, %v5124
  %v5152 = vmul.f32 %v5092, %v5124
  %v5153 = vmul.f32 %v5093, %v5124
  %v5154 = vmul.f32 %v5094, %v5124
  %v5155 = vmul.f32 %v5095, %v5124
  %v5156 = vmul.f32 %v5096, %v5124
  %v5157 = vmul.f32 %v5097, %v5124
  %v5158 = vmul.f32 %v5098, %v5124
  %v5159 = vmul.f32 %v5099, %v5124
  %v5160 = vmul.f32 %v5100, %v5124
  %v5161 = vmul.f32 %v5101, %v5124
  %v5162 = vmul.f32 %v5102, %v5124
  %v5163 = vmul.f32 %v5103, %v5124
  %v5164 = vmul.f32 %v5104, %v5124
  %v5165 = vmul.f32 %v5105, %v5124
  %v5166 = vmul.f32 %v5106, %v5124
  %v5167 = vmul.f32 %v5107, %v5124
  %v5168 = vmul.f32 %v5108, %v5124
  %v5169 = vmul.f32 %v5109, %v5124
  %v5170 = vmul.f32 %v5110, %v5124
  %v5171 = vmul.f32 %v5111, %v5124
  %v5172 = vmul.f32 %v5112, %v5124
  %v5173 = vmul.f32 %v5113, %v5124
  %v5174 = vmul.f32 %v5114, %v5124
  %v5175 = vmul.f32 %v5115, %v5124
  %v5176 = vmul.f32 %v5116, %v5124
  %v5177 = vmul.f32 %v5117, %v5124
  %v5178 = vmul.f32 %v5118, %v5124
  %v5179 = vmul.f32 %v5119, %v5124
  %v5180 = vld [vmem:[%s3 + $0x2] sm:$0x1]
  %v5181 = vlaneseq
  %v5182 = vshrl.u32 %v5181, 7
  %v5183 = vsub.s32 0, %v5182
  %v5184 = vrot.slane %v5180, %v5183
  %v5185 = vadd.f32 %v5125, %v5184
  %v5186 = vadd.f32 %v5126, %v5184
  %v5187 = vadd.f32 %v5127, %v5184
  %v5188 = vadd.f32 %v5128, %v5184
  %v5189 = vadd.f32 %v5129, %v5184
  %v5190 = vadd.f32 %v5130, %v5184
  %v5191 = vadd.f32 %v5131, %v5184
  %v5192 = vadd.f32 %v5132, %v5184
  %v5193 = vadd.f32 %v5133, %v5184
  %v5194 = vadd.f32 %v5134, %v5184
  %v5195 = vadd.f32 %v5135, %v5184
  %v5196 = vadd.f32 %v5136, %v5184
  %v5197 = vadd.f32 %v5137, %v5184
  %v5198 = vadd.f32 %v5138, %v5184
  %v5199 = vadd.f32 %v5139, %v5184
  %v5200 = vadd.f32 %v5140, %v5184
  %v5201 = vadd.f32 %v5141, %v5184
  %v5202 = vadd.f32 %v5142, %v5184
  %v5203 = vadd.f32 %v5143, %v5184
  %v5204 = vadd.f32 %v5144, %v5184
  %v5205 = vadd.f32 %v5145, %v5184
  %v5206 = vadd.f32 %v5146, %v5184
  %v5207 = vadd.f32 %v5147, %v5184
  %v5208 = vadd.f32 %v5148, %v5184
  %v5209 = vadd.f32 %v5149, %v5184
  %v5210 = vadd.f32 %v5150, %v5184
  %v5211 = vadd.f32 %v5151, %v5184
  %v5212 = vadd.f32 %v5152, %v5184
  %v5213 = vadd.f32 %v5153, %v5184
  %v5214 = vadd.f32 %v5154, %v5184
  %v5215 = vadd.f32 %v5155, %v5184
  %v5216 = vadd.f32 %v5156, %v5184
  %v5217 = vadd.f32 %v5157, %v5184
  %v5218 = vadd.f32 %v5158, %v5184
  %v5219 = vadd.f32 %v5159, %v5184
  %v5220 = vadd.f32 %v5160, %v5184
  %v5221 = vadd.f32 %v5161, %v5184
  %v5222 = vadd.f32 %v5162, %v5184
  %v5223 = vadd.f32 %v5163, %v5184
  %v5224 = vadd.f32 %v5164, %v5184
  %v5225 = vadd.f32 %v5165, %v5184
  %v5226 = vadd.f32 %v5166, %v5184
  %v5227 = vadd.f32 %v5167, %v5184
  %v5228 = vadd.f32 %v5168, %v5184
  %v5229 = vadd.f32 %v5169, %v5184
  %v5230 = vadd.f32 %v5170, %v5184
  %v5231 = vadd.f32 %v5171, %v5184
  %v5232 = vadd.f32 %v5172, %v5184
  %v5233 = vadd.f32 %v5173, %v5184
  %v5234 = vadd.f32 %v5174, %v5184
  %v5235 = vadd.f32 %v5175, %v5184
  %v5236 = vadd.f32 %v5176, %v5184
  %v5237 = vadd.f32 %v5177, %v5184
  %v5238 = vadd.f32 %v5178, %v5184
  %v5239 = vadd.f32 %v5179, %v5184
  %v5240 = vmax.f32 %v5185, 0.0
  %v5241 = vmax.f32 %v5186, 0.0
  %v5242 = vmax.f32 %v5187, 0.0
  %v5243 = vmax.f32 %v5188, 0.0
  %v5244 = vmax.f32 %v5189, 0.0
  %v5245 = vmax.f32 %v5190, 0.0
  %v5246 = vmax.f32 %v5191, 0.0
  %v5247 = vmax.f32 %v5192, 0.0
  %v5248 = vmax.f32 %v5193, 0.0
  %v5249 = vmax.f32 %v5194, 0.0
  %v5250 = vmax.f32 %v5195, 0.0
  %v5251 = vmax.f32 %v5196, 0.0
  %v5252 = vmax.f32 %v5197, 0.0
  %v5253 = vmax.f32 %v5198, 0.0
  %v5254 = vmax.f32 %v5199, 0.0
  %v5255 = vmax.f32 %v5200, 0.0
  %v5256 = vmax.f32 %v5201, 0.0
  %v5257 = vmax.f32 %v5202, 0.0
  %v5258 = vmax.f32 %v5203, 0.0
  %v5259 = vmax.f32 %v5204, 0.0
  %v5260 = vmax.f32 %v5205, 0.0
  %v5261 = vmax.f32 %v5206, 0.0
  %v5262 = vmax.f32 %v5207, 0.0
  %v5263 = vmax.f32 %v5208, 0.0
  %v5264 = vmax.f32 %v5209, 0.0
  %v5265 = vmax.f32 %v5210, 0.0
  %v5266 = vmax.f32 %v5211, 0.0
  %v5267 = vmax.f32 %v5212, 0.0
  %v5268 = vmax.f32 %v5213, 0.0
  %v5269 = vmax.f32 %v5214, 0.0
  %v5270 = vmax.f32 %v5215, 0.0
  %v5271 = vmax.f32 %v5216, 0.0
  %v5272 = vmax.f32 %v5217, 0.0
  %v5273 = vmax.f32 %v5218, 0.0
  %v5274 = vmax.f32 %v5219, 0.0
  %v5275 = vmax.f32 %v5220, 0.0
  %v5276 = vmax.f32 %v5221, 0.0
  %v5277 = vmax.f32 %v5222, 0.0
  %v5278 = vmax.f32 %v5223, 0.0
  %v5279 = vmax.f32 %v5224, 0.0
  %v5280 = vmax.f32 %v5225, 0.0
  %v5281 = vmax.f32 %v5226, 0.0
  %v5282 = vmax.f32 %v5227, 0.0
  %v5283 = vmax.f32 %v5228, 0.0
  %v5284 = vmax.f32 %v5229, 0.0
  %v5285 = vmax.f32 %v5230, 0.0
  %v5286 = vmax.f32 %v5231, 0.0
  %v5287 = vmax.f32 %v5232, 0.0
  %v5288 = vmax.f32 %v5233, 0.0
  %v5289 = vmax.f32 %v5234, 0.0
  %v5290 = vmax.f32 %v5235, 0.0
  %v5291 = vmax.f32 %v5236, 0.0
  %v5292 = vmax.f32 %v5237, 0.0
  %v5293 = vmax.f32 %v5238, 0.0
  %v5294 = vmax.f32 %v5239, 0.0
  %5295 = vst [vmem:[#allocation2 + $0x18] sm:$0xff] %v5240
  %5296 = vst [vmem:[#allocation2 + $0x20] sm:$0xff] %v5241
  %5297 = vst [vmem:[#allocation2 + $0x28] sm:$0xff] %v5242
  %5298 = vst [vmem:[#allocation2 + $0x30] sm:$0xff] %v5243
  %5299 = vst [vmem:[#allocation2 + $0x38] sm:$0xff] %v5244
  %5300 = vst [vmem:[#allocation2 + $0x40] sm:$0xff] %v5245
  %5301 = vst [vmem:[#allocation2 + $0x48] sm:$0xff] %v5246
  %5302 = vst [vmem:[#allocation2 + $0x50] sm:$0xff] %v5247
  %5303 = vst [vmem:[#allocation2 + $0x58] sm:$0xff] %v5248
  %5304 = vst [vmem:[#allocation2 + $0x60] sm:$0xff] %v5249
  %5305 = vst [vmem:[#allocation2 + $0x68] sm:$0xff] %v5250
  %5306 = vst [vmem:[#allocation2 + $0x70] sm:$0xff] %v5251
  %5307 = vst [vmem:[#allocation2 + $0x78] sm:$0xff] %v5252
  %5308 = vst [vmem:[#allocation2 + $0x80] sm:$0xff] %v5253
  %5309 = vst [vmem:[#allocation2 + $0x88] sm:$0xff] %v5254
  %5310 = vst [vmem:[#allocation2 + $0x90] sm:$0xff] %v5255
  %5311 = vst [vmem:[#allocation2 + $0x98] sm:$0xff] %v5256
  %5312 = vst [vmem:[#allocation2 + $0xa0] sm:$0xff] %v5257
  %5313 = vst [vmem:[#allocation2 + $0xa8] sm:$0xff] %v5258
  %5314 = vst [vmem:[#allocation2 + $0xb0] sm:$0xff] %v5259
  %5315 = vst [vmem:[#allocation2 + $0xb8] sm:$0xff] %v5260
  %5316 = vst [vmem:[#allocation2 + $0xc0] sm:$0xff] %v5261
  %5317 = vst [vmem:[#allocation2 + $0xc8] sm:$0xff] %v5262
  %5318 = vst [vmem:[#allocation2 + $0xd0] sm:$0xff] %v5263
  %5319 = vst [vmem:[#allocation2 + $0xd8] sm:$0xff] %v5264
  %5320 = vst [vmem:[#allocation2 + $0xe0] sm:$0xff] %v5265
  %5321 = vst [vmem:[#allocation2 + $0xe8] sm:$0xff] %v5266
  %5322 = vst [vmem:[#allocation2 + $0xf0] sm:$0xff] %v5267
  %5323 = vst [vmem:[#allocation2 + $0xf8] sm:$0xff] %v5268
  %5324 = vst [vmem:[#allocation2 + $0x100] sm:$0xff] %v5269
  %5325 = vst [vmem:[#allocation2 + $0x108] sm:$0xff] %v5270
  %5326 = vst [vmem:[#allocation2 + $0x110] sm:$0xff] %v5271
  %5327 = vst [vmem:[#allocation2 + $0x118] sm:$0xff] %v5272
  %5328 = vst [vmem:[#allocation2 + $0x120] sm:$0xff] %v5273
  %5329 = vst [vmem:[#allocation2 + $0x128] sm:$0xff] %v5274
  %5330 = vst [vmem:[#allocation2 + $0x130] sm:$0xff] %v5275
  %5331 = vst [vmem:[#allocation2 + $0x138] sm:$0xff] %v5276
  %5332 = vst [vmem:[#allocation2 + $0x140] sm:$0xff] %v5277
  %5333 = vst [vmem:[#allocation2 + $0x148] sm:$0xff] %v5278
  %5334 = vst [vmem:[#allocation2 + $0x150] sm:$0xff] %v5279
  %5335 = vst [vmem:[#allocation2 + $0x158] sm:$0xff] %v5280
  %5336 = vst [vmem:[#allocation2 + $0x160] sm:$0xff] %v5281
  %5337 = vst [vmem:[#allocation2 + $0x168] sm:$0xff] %v5282
  %5338 = vst [vmem:[#allocation2 + $0x170] sm:$0xff] %v5283
  %5339 = vst [vmem:[#allocation2 + $0x178] sm:$0xff] %v5284
  %5340 = vst [vmem:[#allocation2 + $0x180] sm:$0xff] %v5285
  %5341 = vst [vmem:[#allocation2 + $0x188] sm:$0xff] %v5286
  %5342 = vst [vmem:[#allocation2 + $0x190] sm:$0xff] %v5287
  %5343 = vst [vmem:[#allocation2 + $0x198] sm:$0xff] %v5288
  %5344 = vst [vmem:[#allocation2 + $0x1a0] sm:$0xff] %v5289
  %5345 = vst [vmem:[#allocation2 + $0x1a8] sm:$0xff] %v5290
  %5346 = vst [vmem:[#allocation2 + $0x1b0] sm:$0xff] %v5291
  %5347 = vst [vmem:[#allocation2 + $0x1b8] sm:$0xff] %v5292
  %5348 = vst [vmem:[#allocation2 + $0x1c0] sm:$0xff] %v5293
  %5349 = vst [vmem:[#allocation2 + $0x1c8] sm:$0xff] %v5294
  %5350 = vst [vmem:[#allocation3] sm:$0xff] 0.0
  %5351 = vst [vmem:[#allocation3 + $0x8] sm:$0xff] 0.0
  %5352 = vst [vmem:[#allocation3 + $0x10] sm:$0xff] 0.0
  %5353 = vst [vmem:[#allocation3 + $0x18] sm:$0xff] 0.0
  %5354 = vst [vmem:[#allocation3 + $0x20] sm:$0xff] 0.0
  %5355 = vst [vmem:[#allocation3 + $0x28] sm:$0xff] 0.0
  %5356 = vst [vmem:[#allocation3 + $0x30] sm:$0xff] 0.0
  %5357 = vst [vmem:[#allocation3 + $0x38] sm:$0xff] 0.0
  %5358 = vst [vmem:[#allocation3 + $0x40] sm:$0xff] 0.0
  %5359 = vst [vmem:[#allocation3 + $0x48] sm:$0xff] 0.0
  %5360 = vst [vmem:[#allocation3 + $0x50] sm:$0xff] 0.0
  %5361 = vst [vmem:[#allocation3 + $0x58] sm:$0xff] 0.0
  %5362 = vst [vmem:[#allocation3 + $0x60] sm:$0xff] 0.0
  %5363 = vst [vmem:[#allocation3 + $0x68] sm:$0xff] 0.0
  %5364 = vst [vmem:[#allocation3 + $0x70] sm:$0xff] 0.0
  %5365 = vst [vmem:[#allocation3 + $0x78] sm:$0xff] 0.0
  %5366 = vst [vmem:[#allocation3 + $0x80] sm:$0xff] 0.0
  %5367 = vst [vmem:[#allocation3 + $0x88] sm:$0xff] 0.0
  %5368 = vst [vmem:[#allocation3 + $0x90] sm:$0xff] 0.0
  %s5369 = scalar_lea.vmem [#allocation2], 47
  %v5370 = vld [vmem:[%s5369] ss:$2 sm:$0xff]
  %s5371 = scalar_lea.vmem [#allocation2], 63
  %v5372 = vld [vmem:[%s5371] ss:$2 sm:$0x3]
  %s5373 = scalar_lea.vmem [#allocation2], 48
  %v5374 = vld [vmem:[%s5373] ss:$2 sm:$0xff]
  %s5375 = scalar_lea.vmem [#allocation2], 64
  %v5376 = vld [vmem:[%s5375] ss:$2 sm:$0x3]
  %s5377 = scalar_lea.vmem [#allocation2], 69
  %v5378 = vld [vmem:[%s5377] ss:$2 sm:$0xff]
  %s5379 = scalar_lea.vmem [#allocation2], 85
  %v5380 = vld [vmem:[%s5379] ss:$2 sm:$0x3]
  %s5381 = scalar_lea.vmem [#allocation2], 70
  %v5382 = vld [vmem:[%s5381] ss:$2 sm:$0xff]
  %s5383 = scalar_lea.vmem [#allocation2], 86
  %v5384 = vld [vmem:[%s5383] ss:$2 sm:$0x3]
  %v5385 = vmax.f32 %v5370, %v5374
  %v5386 = vmax.f32 %v5372, %v5376
  %v5387 = vmax.f32 %v5378, %v5382
  %v5388 = vmax.f32 %v5380, %v5384
  %v5389 = vmax.f32 %v5385, %v5387
  %v5390 = vmax.f32 %v5386, %v5388
  %5391 = vst [vmem:[#allocation3] sm:$0xff] %v5389
  %5392 = vst [vmem:[#allocation3 + $0x8] sm:$0x3] %v5390
  %s5393 = scalar_lea.vmem [#allocation2], 91
  %v5394 = vld [vmem:[%s5393] ss:$2 sm:$0xff]
  %s5395 = scalar_lea.vmem [#allocation2], 107
  %v5396 = vld [vmem:[%s5395] ss:$2 sm:$0x3]
  %s5397 = scalar_lea.vmem [#allocation2], 92
  %v5398 = vld [vmem:[%s5397] ss:$2 sm:$0xff]
  %s5399 = scalar_lea.vmem [#allocation2], 108
  %v5400 = vld [vmem:[%s5399] ss:$2 sm:$0x3]
  %s5401 = scalar_lea.vmem [#allocation2], 113
  %v5402 = vld [vmem:[%s5401] ss:$2 sm:$0xff]
  %s5403 = scalar_lea.vmem [#allocation2], 129
  %v5404 = vld [vmem:[%s5403] ss:$2 sm:$0x3]
  %s5405 = scalar_lea.vmem [#allocation2], 114
  %v5406 = vld [vmem:[%s5405] ss:$2 sm:$0xff]
  %s5407 = scalar_lea.vmem [#allocation2], 130
  %v5408 = vld [vmem:[%s5407] ss:$2 sm:$0x3]
  %v5409 = vmax.f32 %v5394, %v5398
  %v5410 = vmax.f32 %v5396, %v5400
  %v5411 = vmax.f32 %v5402, %v5406
  %v5412 = vmax.f32 %v5404, %v5408
  %v5413 = vmax.f32 %v5409, %v5411
  %v5414 = vmax.f32 %v5410, %v5412
  %5415 = vst [vmem:[#allocation3 + $0xa] sm:$0xff] %v5413
  %5416 = vst [vmem:[#allocation3 + $0x12] sm:$0x3] %v5414
  %s5417 = scalar_lea.vmem [#allocation2], 135
  %v5418 = vld [vmem:[%s5417] ss:$2 sm:$0xff]
  %s5419 = scalar_lea.vmem [#allocation2], 151
  %v5420 = vld [vmem:[%s5419] ss:$2 sm:$0x3]
  %s5421 = scalar_lea.vmem [#allocation2], 136
  %v5422 = vld [vmem:[%s5421] ss:$2 sm:$0xff]
  %s5423 = scalar_lea.vmem [#allocation2], 152
  %v5424 = vld [vmem:[%s5423] ss:$2 sm:$0x3]
  %s5425 = scalar_lea.vmem [#allocation2], 157
  %v5426 = vld [vmem:[%s5425] ss:$2 sm:$0xff]
  %s5427 = scalar_lea.vmem [#allocation2], 173
  %v5428 = vld [vmem:[%s5427] ss:$2 sm:$0x3]
  %s5429 = scalar_lea.vmem [#allocation2], 158
  %v5430 = vld [vmem:[%s5429] ss:$2 sm:$0xff]
  %s5431 = scalar_lea.vmem [#allocation2], 174
  %v5432 = vld [vmem:[%s5431] ss:$2 sm:$0x3]
  %v5433 = vmax.f32 %v5418, %v5422
  %v5434 = vmax.f32 %v5420, %v5424
  %v5435 = vmax.f32 %v5426, %v5430
  %v5436 = vmax.f32 %v5428, %v5432
  %v5437 = vmax.f32 %v5433, %v5435
  %v5438 = vmax.f32 %v5434, %v5436
  %5439 = vst [vmem:[#allocation3 + $0x14] sm:$0xff] %v5437
  %5440 = vst [vmem:[#allocation3 + $0x1c] sm:$0x3] %v5438
  %s5441 = scalar_lea.vmem [#allocation2], 179
  %v5442 = vld [vmem:[%s5441] ss:$2 sm:$0xff]
  %s5443 = scalar_lea.vmem [#allocation2], 195
  %v5444 = vld [vmem:[%s5443] ss:$2 sm:$0x3]
  %s5445 = scalar_lea.vmem [#allocation2], 180
  %v5446 = vld [vmem:[%s5445] ss:$2 sm:$0xff]
  %s5447 = scalar_lea.vmem [#allocation2], 196
  %v5448 = vld [vmem:[%s5447] ss:$2 sm:$0x3]
  %s5449 = scalar_lea.vmem [#allocation2], 201
  %v5450 = vld [vmem:[%s5449] ss:$2 sm:$0xff]
  %s5451 = scalar_lea.vmem [#allocation2], 217
  %v5452 = vld [vmem:[%s5451] ss:$2 sm:$0x3]
  %s5453 = scalar_lea.vmem [#allocation2], 202
  %v5454 = vld [vmem:[%s5453] ss:$2 sm:$0xff]
  %s5455 = scalar_lea.vmem [#allocation2], 218
  %v5456 = vld [vmem:[%s5455] ss:$2 sm:$0x3]
  %v5457 = vmax.f32 %v5442, %v5446
  %v5458 = vmax.f32 %v5444, %v5448
  %v5459 = vmax.f32 %v5450, %v5454
  %v5460 = vmax.f32 %v5452, %v5456
  %v5461 = vmax.f32 %v5457, %v5459
  %v5462 = vmax.f32 %v5458, %v5460
  %5463 = vst [vmem:[#allocation3 + $0x1e] sm:$0xff] %v5461
  %5464 = vst [vmem:[#allocation3 + $0x26] sm:$0x3] %v5462
  %s5465 = scalar_lea.vmem [#allocation2], 267
  %v5466 = vld [vmem:[%s5465] ss:$2 sm:$0xff]
  %s5467 = scalar_lea.vmem [#allocation2], 283
  %v5468 = vld [vmem:[%s5467] ss:$2 sm:$0x3]
  %s5469 = scalar_lea.vmem [#allocation2], 268
  %v5470 = vld [vmem:[%s5469] ss:$2 sm:$0xff]
  %s5471 = scalar_lea.vmem [#allocation2], 284
  %v5472 = vld [vmem:[%s5471] ss:$2 sm:$0x3]
  %s5473 = scalar_lea.vmem [#allocation2], 289
  %v5474 = vld [vmem:[%s5473] ss:$2 sm:$0xff]
  %s5475 = scalar_lea.vmem [#allocation2], 305
  %v5476 = vld [vmem:[%s5475] ss:$2 sm:$0x3]
  %s5477 = scalar_lea.vmem [#allocation2], 290
  %v5478 = vld [vmem:[%s5477] ss:$2 sm:$0xff]
  %s5479 = scalar_lea.vmem [#allocation2], 306
  %v5480 = vld [vmem:[%s5479] ss:$2 sm:$0x3]
  %v5481 = vmax.f32 %v5466, %v5470
  %v5482 = vmax.f32 %v5468, %v5472
  %v5483 = vmax.f32 %v5474, %v5478
  %v5484 = vmax.f32 %v5476, %v5480
  %v5485 = vmax.f32 %v5481, %v5483
  %v5486 = vmax.f32 %v5482, %v5484
  %5487 = vst [vmem:[#allocation3 + $0x40] sm:$0xff] %v5485
  %5488 = vst [vmem:[#allocation3 + $0x48] sm:$0x3] %v5486
  %s5489 = scalar_lea.vmem [#allocation2], 311
  %v5490 = vld [vmem:[%s5489] ss:$2 sm:$0xff]
  %s5491 = scalar_lea.vmem [#allocation2], 327
  %v5492 = vld [vmem:[%s5491] ss:$2 sm:$0x3]
  %s5493 = scalar_lea.vmem [#allocation2], 312
  %v5494 = vld [vmem:[%s5493] ss:$2 sm:$0xff]
  %s5495 = scalar_lea.vmem [#allocation2], 328
  %v5496 = vld [vmem:[%s5495] ss:$2 sm:$0x3]
  %s5497 = scalar_lea.vmem [#allocation2], 333
  %v5498 = vld [vmem:[%s5497] ss:$2 sm:$0xff]
  %s5499 = scalar_lea.vmem [#allocation2], 349
  %v5500 = vld [vmem:[%s5499] ss:$2 sm:$0x3]
  %s5501 = scalar_lea.vmem [#allocation2], 334
  %v5502 = vld [vmem:[%s5501] ss:$2 sm:$0xff]
  %s5503 = scalar_lea.vmem [#allocation2], 350
  %v5504 = vld [vmem:[%s5503] ss:$2 sm:$0x3]
  %v5505 = vmax.f32 %v5490, %v5494
  %v5506 = vmax.f32 %v5492, %v5496
  %v5507 = vmax.f32 %v5498, %v5502
  %v5508 = vmax.f32 %v5500, %v5504
  %v5509 = vmax.f32 %v5505, %v5507
  %v5510 = vmax.f32 %v5506, %v5508
  %5511 = vst [vmem:[#allocation3 + $0x4a] sm:$0xff] %v5509
  %5512 = vst [vmem:[#allocation3 + $0x52] sm:$0x3] %v5510
  %s5513 = scalar_lea.vmem [#allocation2], 355
  %v5514 = vld [vmem:[%s5513] ss:$2 sm:$0xff]
  %s5515 = scalar_lea.vmem [#allocation2], 371
  %v5516 = vld [vmem:[%s5515] ss:$2 sm:$0x3]
  %s5517 = scalar_lea.vmem [#allocation2], 356
  %v5518 = vld [vmem:[%s5517] ss:$2 sm:$0xff]
  %s5519 = scalar_lea.vmem [#allocation2], 372
  %v5520 = vld [vmem:[%s5519] ss:$2 sm:$0x3]
  %s5521 = scalar_lea.vmem [#allocation2], 377
  %v5522 = vld [vmem:[%s5521] ss:$2 sm:$0xff]
  %s5523 = scalar_lea.vmem [#allocation2], 393
  %v5524 = vld [vmem:[%s5523] ss:$2 sm:$0x3]
  %s5525 = scalar_lea.vmem [#allocation2], 378
  %v5526 = vld [vmem:[%s5525] ss:$2 sm:$0xff]
  %s5527 = scalar_lea.vmem [#allocation2], 394
  %v5528 = vld [vmem:[%s5527] ss:$2 sm:$0x3]
  %v5529 = vmax.f32 %v5514, %v5518
  %v5530 = vmax.f32 %v5516, %v5520
  %v5531 = vmax.f32 %v5522, %v5526
  %v5532 = vmax.f32 %v5524, %v5528
  %v5533 = vmax.f32 %v5529, %v5531
  %v5534 = vmax.f32 %v5530, %v5532
  %5535 = vst [vmem:[#allocation3 + $0x54] sm:$0xff] %v5533
  %5536 = vst [vmem:[#allocation3 + $0x5c] sm:$0x3] %v5534
  %s5537 = scalar_lea.vmem [#allocation2], 399
  %v5538 = vld [vmem:[%s5537] ss:$2 sm:$0xff]
  %s5539 = scalar_lea.vmem [#allocation2], 415
  %v5540 = vld [vmem:[%s5539] ss:$2 sm:$0x3]
  %s5541 = scalar_lea.vmem [#allocation2], 400
  %v5542 = vld [vmem:[%s5541] ss:$2 sm:$0xff]
  %s5543 = scalar_lea.vmem [#allocation2], 416
  %v5544 = vld [vmem:[%s5543] ss:$2 sm:$0x3]
  %s5545 = scalar_lea.vmem [#allocation2], 421
  %v5546 = vld [vmem:[%s5545] ss:$2 sm:$0xff]
  %s5547 = scalar_lea.vmem [#allocation2], 437
  %v5548 = vld [vmem:[%s5547] ss:$2 sm:$0x3]
  %s5549 = scalar_lea.vmem [#allocation2], 422
  %v5550 = vld [vmem:[%s5549] ss:$2 sm:$0xff]
  %s5551 = scalar_lea.vmem [#allocation2], 438
  %v5552 = vld [vmem:[%s5551] ss:$2 sm:$0x3]
  %v5553 = vmax.f32 %v5538, %v5542
  %v5554 = vmax.f32 %v5540, %v5544
  %v5555 = vmax.f32 %v5546, %v5550
  %v5556 = vmax.f32 %v5548, %v5552
  %v5557 = vmax.f32 %v5553, %v5555
  %v5558 = vmax.f32 %v5554, %v5556
  %5559 = vst [vmem:[#allocation3 + $0x5e] sm:$0xff] %v5557
  %5560 = vst [vmem:[#allocation3 + $0x66] sm:$0x3] %v5558
  %v5561 = vld [vmem:[#allocation3] sm:$0xff]
  %v5562 = vld [vmem:[#allocation3 + $0x8] sm:$0xff]
  %v5563 = vld [vmem:[#allocation3 + $0x10] sm:$0xff]
  %v5564 = vld [vmem:[#allocation3 + $0x18] sm:$0xff]
  %v5565 = vld [vmem:[#allocation3 + $0x20] sm:$0xff]
  %v5566 = vld [vmem:[#allocation3 + $0x28] sm:$0xff]
  %v5567 = vld [vmem:[#allocation3 + $0x30] sm:$0xff]
  %v5568 = vld [vmem:[#allocation3 + $0x38] sm:$0xff]
  %v5569 = vld [vmem:[#allocation3 + $0x40] sm:$0xff]
  %v5570 = vld [vmem:[#allocation3 + $0x48] sm:$0xff]
  %v5571 = vld [vmem:[#allocation3 + $0x50] sm:$0xff]
  %v5572 = vld [vmem:[#allocation3 + $0x58] sm:$0xff]
  %v5573 = vld [vmem:[#allocation3 + $0x60] sm:$0xff]
  %v5574 = vld [vmem:[#allocation3 + $0x68] sm:$0xff]
  %v5575 = vld [vmem:[#allocation3 + $0x70] sm:$0xff]
  %v5576 = vld [vmem:[#allocation3 + $0x78] sm:$0xff]
  %v5577 = vld [vmem:[#allocation3 + $0x1] sm:$0xff]
  %v5578 = vld [vmem:[#allocation3 + $0x9] sm:$0xff]
  %v5579 = vld [vmem:[#allocation3 + $0x11] sm:$0xff]
  %v5580 = vld [vmem:[#allocation3 + $0x19] sm:$0xff]
  %v5581 = vld [vmem:[#allocation3 + $0x21] sm:$0xff]
  %v5582 = vld [vmem:[#allocation3 + $0x29] sm:$0xff]
  %v5583 = vld [vmem:[#allocation3 + $0x31] sm:$0xff]
  %v5584 = vld [vmem:[#allocation3 + $0x39] sm:$0xff]
  %v5585 = vld [vmem:[#allocation3 + $0x41] sm:$0xff]
  %v5586 = vld [vmem:[#allocation3 + $0x49] sm:$0xff]
  %v5587 = vld [vmem:[#allocation3 + $0x51] sm:$0xff]
  %v5588 = vld [vmem:[#allocation3 + $0x59] sm:$0xff]
  %v5589 = vld [vmem:[#allocation3 + $0x61] sm:$0xff]
  %v5590 = vld [vmem:[#allocation3 + $0x69] sm:$0xff]
  %v5591 = vld [vmem:[#allocation3 + $0x71] sm:$0xff]
  %v5592 = vld [vmem:[#allocation3 + $0x79] sm:$0xff]
  %5593 = vrot.lane.b32.xlu0 %v5577, 10
  %v5594 = vpop.permute.xlu0 %5593
  %5595 = vrot.lane.b32.xlu0 %v5578, 10
  %v5596 = vpop.permute.xlu0 %5595
  %5597 = vrot.lane.b32.xlu0 %v5579, 10
  %v5598 = vpop.permute.xlu0 %5597
  %5599 = vrot.lane.b32.xlu0 %v5580, 10
  %v5600 = vpop.permute.xlu0 %5599
  %5601 = vrot.lane.b32.xlu0 %v5581, 10
  %v5602 = vpop.permute.xlu0 %5601
  %5603 = vrot.lane.b32.xlu0 %v5582, 10
  %v5604 = vpop.permute.xlu0 %5603
  %5605 = vrot.lane.b32.xlu0 %v5583, 10
  %v5606 = vpop.permute.xlu0 %5605
  %5607 = vrot.lane.b32.xlu0 %v5584, 10
  %v5608 = vpop.permute.xlu0 %5607
  %5609 = vrot.lane.b32.xlu0 %v5585, 10
  %v5610 = vpop.permute.xlu0 %5609
  %5611 = vrot.lane.b32.xlu0 %v5586, 10
  %v5612 = vpop.permute.xlu0 %5611
  %5613 = vrot.lane.b32.xlu0 %v5587, 10
  %v5614 = vpop.permute.xlu0 %5613
  %5615 = vrot.lane.b32.xlu0 %v5588, 10
  %v5616 = vpop.permute.xlu0 %5615
  %5617 = vrot.lane.b32.xlu0 %v5589, 10
  %v5618 = vpop.permute.xlu0 %5617
  %5619 = vrot.lane.b32.xlu0 %v5590, 10
  %v5620 = vpop.permute.xlu0 %5619
  %5621 = vrot.lane.b32.xlu0 %v5591, 10
  %v5622 = vpop.permute.xlu0 %5621
  %5623 = vrot.lane.b32.xlu0 %v5592, 10
  %v5624 = vpop.permute.xlu0 %5623
  %v5625 = vadd.f32 %v5561, %v5594
  %v5626 = vadd.f32 %v5562, %v5596
  %v5627 = vadd.f32 %v5563, %v5598
  %v5628 = vadd.f32 %v5564, %v5600
  %v5629 = vadd.f32 %v5565, %v5602
  %v5630 = vadd.f32 %v5566, %v5604
  %v5631 = vadd.f32 %v5567, %v5606
  %v5632 = vadd.f32 %v5568, %v5608
  %v5633 = vadd.f32 %v5569, %v5610
  %v5634 = vadd.f32 %v5570, %v5612
  %v5635 = vadd.f32 %v5571, %v5614
  %v5636 = vadd.f32 %v5572, %v5616
  %v5637 = vadd.f32 %v5573, %v5618
  %v5638 = vadd.f32 %v5574, %v5620
  %v5639 = vadd.f32 %v5575, %v5622
  %v5640 = vadd.f32 %v5576, %v5624
  %v5641 = vld [vmem:[#allocation3 + $0x2] sm:$0xff]
  %v5642 = vld [vmem:[#allocation3 + $0xa] sm:$0xff]
  %v5643 = vld [vmem:[#allocation3 + $0x12] sm:$0xff]
  %v5644 = vld [vmem:[#allocation3 + $0x1a] sm:$0xff]
  %v5645 = vld [vmem:[#allocation3 + $0x22] sm:$0xff]
  %v5646 = vld [vmem:[#allocation3 + $0x2a] sm:$0xff]
  %v5647 = vld [vmem:[#allocation3 + $0x32] sm:$0xff]
  %v5648 = vld [vmem:[#allocation3 + $0x3a] sm:$0xff]
  %v5649 = vld [vmem:[#allocation3 + $0x42] sm:$0xff]
  %v5650 = vld [vmem:[#allocation3 + $0x4a] sm:$0xff]
  %v5651 = vld [vmem:[#allocation3 + $0x52] sm:$0xff]
  %v5652 = vld [vmem:[#allocation3 + $0x5a] sm:$0xff]
  %v5653 = vld [vmem:[#allocation3 + $0x62] sm:$0xff]
  %v5654 = vld [vmem:[#allocation3 + $0x6a] sm:$0xff]
  %v5655 = vld [vmem:[#allocation3 + $0x72] sm:$0xff]
  %v5656 = vld [vmem:[#allocation3 + $0x7a] sm:$0xff]
  %5657 = vrot.lane.b32.xlu0 %v5641, 20
  %v5658 = vpop.permute.xlu0 %5657
  %5659 = vrot.lane.b32.xlu0 %v5642, 20
  %v5660 = vpop.permute.xlu0 %5659
  %5661 = vrot.lane.b32.xlu0 %v5643, 20
  %v5662 = vpop.permute.xlu0 %5661
  %5663 = vrot.lane.b32.xlu0 %v5644, 20
  %v5664 = vpop.permute.xlu0 %5663
  %5665 = vrot.lane.b32.xlu0 %v5645, 20
  %v5666 = vpop.permute.xlu0 %5665
  %5667 = vrot.lane.b32.xlu0 %v5646, 20
  %v5668 = vpop.permute.xlu0 %5667
  %5669 = vrot.lane.b32.xlu0 %v5647, 20
  %v5670 = vpop.permute.xlu0 %5669
  %5671 = vrot.lane.b32.xlu0 %v5648, 20
  %v5672 = vpop.permute.xlu0 %5671
  %5673 = vrot.lane.b32.xlu0 %v5649, 20
  %v5674 = vpop.permute.xlu0 %5673
  %5675 = vrot.lane.b32.xlu0 %v5650, 20
  %v5676 = vpop.permute.xlu0 %5675
  %5677 = vrot.lane.b32.xlu0 %v5651, 20
  %v5678 = vpop.permute.xlu0 %5677
  %5679 = vrot.lane.b32.xlu0 %v5652, 20
  %v5680 = vpop.permute.xlu0 %5679
  %5681 = vrot.lane.b32.xlu0 %v5653, 20
  %v5682 = vpop.permute.xlu0 %5681
  %5683 = vrot.lane.b32.xlu0 %v5654, 20
  %v5684 = vpop.permute.xlu0 %5683
  %5685 = vrot.lane.b32.xlu0 %v5655, 20
  %v5686 = vpop.permute.xlu0 %5685
  %5687 = vrot.lane.b32.xlu0 %v5656, 20
  %v5688 = vpop.permute.xlu0 %5687
  %v5689 = vadd.f32 %v5625, %v5658
  %v5690 = vadd.f32 %v5626, %v5660
  %v5691 = vadd.f32 %v5627, %v5662
  %v5692 = vadd.f32 %v5628, %v5664
  %v5693 = vadd.f32 %v5629, %v5666
  %v5694 = vadd.f32 %v5630, %v5668
  %v5695 = vadd.f32 %v5631, %v5670
  %v5696 = vadd.f32 %v5632, %v5672
  %v5697 = vadd.f32 %v5633, %v5674
  %v5698 = vadd.f32 %v5634, %v5676
  %v5699 = vadd.f32 %v5635, %v5678
  %v5700 = vadd.f32 %v5636, %v5680
  %v5701 = vadd.f32 %v5637, %v5682
  %v5702 = vadd.f32 %v5638, %v5684
  %v5703 = vadd.f32 %v5639, %v5686
  %v5704 = vadd.f32 %v5640, %v5688
  %v5705 = vld [vmem:[#allocation3 + $0x82] sm:$0xff]
  %5706 = vrot.lane.b32.xlu0 %v5642, 30
  %v5707 = vpop.permute.xlu0 %5706
  %5708 = vrot.lane.b32.xlu0 %v5643, 30
  %v5709 = vpop.permute.xlu0 %5708
  %5710 = vrot.lane.b32.xlu0 %v5644, 30
  %v5711 = vpop.permute.xlu0 %5710
  %5712 = vrot.lane.b32.xlu0 %v5645, 30
  %v5713 = vpop.permute.xlu0 %5712
  %5714 = vrot.lane.b32.xlu0 %v5646, 30
  %v5715 = vpop.permute.xlu0 %5714
  %5716 = vrot.lane.b32.xlu0 %v5647, 30
  %v5717 = vpop.permute.xlu0 %5716
  %5718 = vrot.lane.b32.xlu0 %v5648, 30
  %v5719 = vpop.permute.xlu0 %5718
  %5720 = vrot.lane.b32.xlu0 %v5649, 30
  %v5721 = vpop.permute.xlu0 %5720
  %5722 = vrot.lane.b32.xlu0 %v5650, 30
  %v5723 = vpop.permute.xlu0 %5722
  %5724 = vrot.lane.b32.xlu0 %v5651, 30
  %v5725 = vpop.permute.xlu0 %5724
  %5726 = vrot.lane.b32.xlu0 %v5652, 30
  %v5727 = vpop.permute.xlu0 %5726
  %5728 = vrot.lane.b32.xlu0 %v5653, 30
  %v5729 = vpop.permute.xlu0 %5728
  %5730 = vrot.lane.b32.xlu0 %v5654, 30
  %v5731 = vpop.permute.xlu0 %5730
  %5732 = vrot.lane.b32.xlu0 %v5655, 30
  %v5733 = vpop.permute.xlu0 %5732
  %5734 = vrot.lane.b32.xlu0 %v5656, 30
  %v5735 = vpop.permute.xlu0 %5734
  %5736 = vrot.lane.b32.xlu0 %v5705, 30
  %v5737 = vpop.permute.xlu0 %5736
  %v5738 = vadd.f32 %v5689, %v5707
  %v5739 = vadd.f32 %v5690, %v5709
  %v5740 = vadd.f32 %v5691, %v5711
  %v5741 = vadd.f32 %v5692, %v5713
  %v5742 = vadd.f32 %v5693, %v5715
  %v5743 = vadd.f32 %v5694, %v5717
  %v5744 = vadd.f32 %v5695, %v5719
  %v5745 = vadd.f32 %v5696, %v5721
  %v5746 = vadd.f32 %v5697, %v5723
  %v5747 = vadd.f32 %v5698, %v5725
  %v5748 = vadd.f32 %v5699, %v5727
  %v5749 = vadd.f32 %v5700, %v5729
  %v5750 = vadd.f32 %v5701, %v5731
  %v5751 = vadd.f32 %v5702, %v5733
  %v5752 = vadd.f32 %v5703, %v5735
  %v5753 = vadd.f32 %v5704, %v5737
  %v5754 = vld [vmem:[#allocation3 + $0xb] sm:$0xff]
  %v5755 = vld [vmem:[#allocation3 + $0x13] sm:$0xff]
  %v5756 = vld [vmem:[#allocation3 + $0x1b] sm:$0xff]
  %v5757 = vld [vmem:[#allocation3 + $0x23] sm:$0xff]
  %v5758 = vld [vmem:[#allocation3 + $0x2b] sm:$0xff]
  %v5759 = vld [vmem:[#allocation3 + $0x33] sm:$0xff]
  %v5760 = vld [vmem:[#allocation3 + $0x3b] sm:$0xff]
  %v5761 = vld [vmem:[#allocation3 + $0x43] sm:$0xff]
  %v5762 = vld [vmem:[#allocation3 + $0x4b] sm:$0xff]
  %v5763 = vld [vmem:[#allocation3 + $0x53] sm:$0xff]
  %v5764 = vld [vmem:[#allocation3 + $0x5b] sm:$0xff]
  %v5765 = vld [vmem:[#allocation3 + $0x63] sm:$0xff]
  %v5766 = vld [vmem:[#allocation3 + $0x6b] sm:$0xff]
  %v5767 = vld [vmem:[#allocation3 + $0x73] sm:$0xff]
  %v5768 = vld [vmem:[#allocation3 + $0x7b] sm:$0xff]
  %v5769 = vld [vmem:[#allocation3 + $0x83] sm:$0xff]
  %5770 = vrot.lane.b32.xlu0 %v5754, 40
  %v5771 = vpop.permute.xlu0 %5770
  %5772 = vrot.lane.b32.xlu0 %v5755, 40
  %v5773 = vpop.permute.xlu0 %5772
  %5774 = vrot.lane.b32.xlu0 %v5756, 40
  %v5775 = vpop.permute.xlu0 %5774
  %5776 = vrot.lane.b32.xlu0 %v5757, 40
  %v5777 = vpop.permute.xlu0 %5776
  %5778 = vrot.lane.b32.xlu0 %v5758, 40
  %v5779 = vpop.permute.xlu0 %5778
  %5780 = vrot.lane.b32.xlu0 %v5759, 40
  %v5781 = vpop.permute.xlu0 %5780
  %5782 = vrot.lane.b32.xlu0 %v5760, 40
  %v5783 = vpop.permute.xlu0 %5782
  %5784 = vrot.lane.b32.xlu0 %v5761, 40
  %v5785 = vpop.permute.xlu0 %5784
  %5786 = vrot.lane.b32.xlu0 %v5762, 40
  %v5787 = vpop.permute.xlu0 %5786
  %5788 = vrot.lane.b32.xlu0 %v5763, 40
  %v5789 = vpop.permute.xlu0 %5788
  %5790 = vrot.lane.b32.xlu0 %v5764, 40
  %v5791 = vpop.permute.xlu0 %5790
  %5792 = vrot.lane.b32.xlu0 %v5765, 40
  %v5793 = vpop.permute.xlu0 %5792
  %5794 = vrot.lane.b32.xlu0 %v5766, 40
  %v5795 = vpop.permute.xlu0 %5794
  %5796 = vrot.lane.b32.xlu0 %v5767, 40
  %v5797 = vpop.permute.xlu0 %5796
  %5798 = vrot.lane.b32.xlu0 %v5768, 40
  %v5799 = vpop.permute.xlu0 %5798
  %5800 = vrot.lane.b32.xlu0 %v5769, 40
  %v5801 = vpop.permute.xlu0 %5800
  %v5802 = vadd.f32 %v5738, %v5771
  %v5803 = vadd.f32 %v5739, %v5773
  %v5804 = vadd.f32 %v5740, %v5775
  %v5805 = vadd.f32 %v5741, %v5777
  %v5806 = vadd.f32 %v5742, %v5779
  %v5807 = vadd.f32 %v5743, %v5781
  %v5808 = vadd.f32 %v5744, %v5783
  %v5809 = vadd.f32 %v5745, %v5785
  %v5810 = vadd.f32 %v5746, %v5787
  %v5811 = vadd.f32 %v5747, %v5789
  %v5812 = vadd.f32 %v5748, %v5791
  %v5813 = vadd.f32 %v5749, %v5793
  %v5814 = vadd.f32 %v5750, %v5795
  %v5815 = vadd.f32 %v5751, %v5797
  %v5816 = vadd.f32 %v5752, %v5799
  %v5817 = vadd.f32 %v5753, %v5801
  %v5818 = vld [vmem:[#allocation3 + $0xc] sm:$0xff]
  %v5819 = vld [vmem:[#allocation3 + $0x14] sm:$0xff]
  %v5820 = vld [vmem:[#allocation3 + $0x1c] sm:$0xff]
  %v5821 = vld [vmem:[#allocation3 + $0x24] sm:$0xff]
  %v5822 = vld [vmem:[#allocation3 + $0x2c] sm:$0xff]
  %v5823 = vld [vmem:[#allocation3 + $0x34] sm:$0xff]
  %v5824 = vld [vmem:[#allocation3 + $0x3c] sm:$0xff]
  %v5825 = vld [vmem:[#allocation3 + $0x44] sm:$0xff]
  %v5826 = vld [vmem:[#allocation3 + $0x4c] sm:$0xff]
  %v5827 = vld [vmem:[#allocation3 + $0x54] sm:$0xff]
  %v5828 = vld [vmem:[#allocation3 + $0x5c] sm:$0xff]
  %v5829 = vld [vmem:[#allocation3 + $0x64] sm:$0xff]
  %v5830 = vld [vmem:[#allocation3 + $0x6c] sm:$0xff]
  %v5831 = vld [vmem:[#allocation3 + $0x74] sm:$0xff]
  %v5832 = vld [vmem:[#allocation3 + $0x7c] sm:$0xff]
  %v5833 = vld [vmem:[#allocation3 + $0x84] sm:$0xff]
  %5834 = vrot.lane.b32.xlu0 %v5818, 50
  %v5835 = vpop.permute.xlu0 %5834
  %5836 = vrot.lane.b32.xlu0 %v5819, 50
  %v5837 = vpop.permute.xlu0 %5836
  %5838 = vrot.lane.b32.xlu0 %v5820, 50
  %v5839 = vpop.permute.xlu0 %5838
  %5840 = vrot.lane.b32.xlu0 %v5821, 50
  %v5841 = vpop.permute.xlu0 %5840
  %5842 = vrot.lane.b32.xlu0 %v5822, 50
  %v5843 = vpop.permute.xlu0 %5842
  %5844 = vrot.lane.b32.xlu0 %v5823, 50
  %v5845 = vpop.permute.xlu0 %5844
  %5846 = vrot.lane.b32.xlu0 %v5824, 50
  %v5847 = vpop.permute.xlu0 %5846
  %5848 = vrot.lane.b32.xlu0 %v5825, 50
  %v5849 = vpop.permute.xlu0 %5848
  %5850 = vrot.lane.b32.xlu0 %v5826, 50
  %v5851 = vpop.permute.xlu0 %5850
  %5852 = vrot.lane.b32.xlu0 %v5827, 50
  %v5853 = vpop.permute.xlu0 %5852
  %5854 = vrot.lane.b32.xlu0 %v5828, 50
  %v5855 = vpop.permute.xlu0 %5854
  %5856 = vrot.lane.b32.xlu0 %v5829, 50
  %v5857 = vpop.permute.xlu0 %5856
  %5858 = vrot.lane.b32.xlu0 %v5830, 50
  %v5859 = vpop.permute.xlu0 %5858
  %5860 = vrot.lane.b32.xlu0 %v5831, 50
  %v5861 = vpop.permute.xlu0 %5860
  %5862 = vrot.lane.b32.xlu0 %v5832, 50
  %v5863 = vpop.permute.xlu0 %5862
  %5864 = vrot.lane.b32.xlu0 %v5833, 50
  %v5865 = vpop.permute.xlu0 %5864
  %v5866 = vadd.f32 %v5802, %v5835
  %v5867 = vadd.f32 %v5803, %v5837
  %v5868 = vadd.f32 %v5804, %v5839
  %v5869 = vadd.f32 %v5805, %v5841
  %v5870 = vadd.f32 %v5806, %v5843
  %v5871 = vadd.f32 %v5807, %v5845
  %v5872 = vadd.f32 %v5808, %v5847
  %v5873 = vadd.f32 %v5809, %v5849
  %v5874 = vadd.f32 %v5810, %v5851
  %v5875 = vadd.f32 %v5811, %v5853
  %v5876 = vadd.f32 %v5812, %v5855
  %v5877 = vadd.f32 %v5813, %v5857
  %v5878 = vadd.f32 %v5814, %v5859
  %v5879 = vadd.f32 %v5815, %v5861
  %v5880 = vadd.f32 %v5816, %v5863
  %v5881 = vadd.f32 %v5817, %v5865
  %v5882 = vld [vmem:[#allocation3 + $0x8c] sm:$0xff]
  %5883 = vrot.lane.b32.xlu0 %v5819, 60
  %v5884 = vpop.permute.xlu0 %5883
  %5885 = vrot.lane.b32.xlu0 %v5820, 60
  %v5886 = vpop.permute.xlu0 %5885
  %5887 = vrot.lane.b32.xlu0 %v5821, 60
  %v5888 = vpop.permute.xlu0 %5887
  %5889 = vrot.lane.b32.xlu0 %v5822, 60
  %v5890 = vpop.permute.xlu0 %5889
  %5891 = vrot.lane.b32.xlu0 %v5823, 60
  %v5892 = vpop.permute.xlu0 %5891
  %5893 = vrot.lane.b32.xlu0 %v5824, 60
  %v5894 = vpop.permute.xlu0 %5893
  %5895 = vrot.lane.b32.xlu0 %v5825, 60
  %v5896 = vpop.permute.xlu0 %5895
  %5897 = vrot.lane.b32.xlu0 %v5826, 60
  %v5898 = vpop.permute.xlu0 %5897
  %5899 = vrot.lane.b32.xlu0 %v5827, 60
  %v5900 = vpop.permute.xlu0 %5899
  %5901 = vrot.lane.b32.xlu0 %v5828, 60
  %v5902 = vpop.permute.xlu0 %5901
  %5903 = vrot.lane.b32.xlu0 %v5829, 60
  %v5904 = vpop.permute.xlu0 %5903
  %5905 = vrot.lane.b32.xlu0 %v5830, 60
  %v5906 = vpop.permute.xlu0 %5905
  %5907 = vrot.lane.b32.xlu0 %v5831, 60
  %v5908 = vpop.permute.xlu0 %5907
  %5909 = vrot.lane.b32.xlu0 %v5832, 60
  %v5910 = vpop.permute.xlu0 %5909
  %5911 = vrot.lane.b32.xlu0 %v5833, 60
  %v5912 = vpop.permute.xlu0 %5911
  %5913 = vrot.lane.b32.xlu0 %v5882, 60
  %v5914 = vpop.permute.xlu0 %5913
  %v5915 = vadd.f32 %v5866, %v5884
  %v5916 = vadd.f32 %v5867, %v5886
  %v5917 = vadd.f32 %v5868, %v5888
  %v5918 = vadd.f32 %v5869, %v5890
  %v5919 = vadd.f32 %v5870, %v5892
  %v5920 = vadd.f32 %v5871, %v5894
  %v5921 = vadd.f32 %v5872, %v5896
  %v5922 = vadd.f32 %v5873, %v5898
  %v5923 = vadd.f32 %v5874, %v5900
  %v5924 = vadd.f32 %v5875, %v5902
  %v5925 = vadd.f32 %v5876, %v5904
  %v5926 = vadd.f32 %v5877, %v5906
  %v5927 = vadd.f32 %v5878, %v5908
  %v5928 = vadd.f32 %v5879, %v5910
  %v5929 = vadd.f32 %v5880, %v5912
  %v5930 = vadd.f32 %v5881, %v5914
  %v5931 = vld [vmem:[#allocation3 + $0x15] sm:$0xff]
  %v5932 = vld [vmem:[#allocation3 + $0x1d] sm:$0xff]
  %v5933 = vld [vmem:[#allocation3 + $0x25] sm:$0xff]
  %v5934 = vld [vmem:[#allocation3 + $0x2d] sm:$0xff]
  %v5935 = vld [vmem:[#allocation3 + $0x35] sm:$0xff]
  %v5936 = vld [vmem:[#allocation3 + $0x3d] sm:$0xff]
  %v5937 = vld [vmem:[#allocation3 + $0x45] sm:$0xff]
  %v5938 = vld [vmem:[#allocation3 + $0x4d] sm:$0xff]
  %v5939 = vld [vmem:[#allocation3 + $0x55] sm:$0xff]
  %v5940 = vld [vmem:[#allocation3 + $0x5d] sm:$0xff]
  %v5941 = vld [vmem:[#allocation3 + $0x65] sm:$0xff]
  %v5942 = vld [vmem:[#allocation3 + $0x6d] sm:$0xff]
  %v5943 = vld [vmem:[#allocation3 + $0x75] sm:$0xff]
  %v5944 = vld [vmem:[#allocation3 + $0x7d] sm:$0xff]
  %v5945 = vld [vmem:[#allocation3 + $0x85] sm:$0xff]
  %v5946 = vld [vmem:[#allocation3 + $0x8d] sm:$0xff]
  %5947 = vrot.lane.b32.xlu0 %v5931, 70
  %v5948 = vpop.permute.xlu0 %5947
  %5949 = vrot.lane.b32.xlu0 %v5932, 70
  %v5950 = vpop.permute.xlu0 %5949
  %5951 = vrot.lane.b32.xlu0 %v5933, 70
  %v5952 = vpop.permute.xlu0 %5951
  %5953 = vrot.lane.b32.xlu0 %v5934, 70
  %v5954 = vpop.permute.xlu0 %5953
  %5955 = vrot.lane.b32.xlu0 %v5935, 70
  %v5956 = vpop.permute.xlu0 %5955
  %5957 = vrot.lane.b32.xlu0 %v5936, 70
  %v5958 = vpop.permute.xlu0 %5957
  %5959 = vrot.lane.b32.xlu0 %v5937, 70
  %v5960 = vpop.permute.xlu0 %5959
  %5961 = vrot.lane.b32.xlu0 %v5938, 70
  %v5962 = vpop.permute.xlu0 %5961
  %5963 = vrot.lane.b32.xlu0 %v5939, 70
  %v5964 = vpop.permute.xlu0 %5963
  %5965 = vrot.lane.b32.xlu0 %v5940, 70
  %v5966 = vpop.permute.xlu0 %5965
  %5967 = vrot.lane.b32.xlu0 %v5941, 70
  %v5968 = vpop.permute.xlu0 %5967
  %5969 = vrot.lane.b32.xlu0 %v5942, 70
  %v5970 = vpop.permute.xlu0 %5969
  %5971 = vrot.lane.b32.xlu0 %v5943, 70
  %v5972 = vpop.permute.xlu0 %5971
  %5973 = vrot.lane.b32.xlu0 %v5944, 70
  %v5974 = vpop.permute.xlu0 %5973
  %5975 = vrot.lane.b32.xlu0 %v5945, 70
  %v5976 = vpop.permute.xlu0 %5975
  %5977 = vrot.lane.b32.xlu0 %v5946, 70
  %v5978 = vpop.permute.xlu0 %5977
  %v5979 = vadd.f32 %v5915, %v5948
  %v5980 = vadd.f32 %v5916, %v5950
  %v5981 = vadd.f32 %v5917, %v5952
  %v5982 = vadd.f32 %v5918, %v5954
  %v5983 = vadd.f32 %v5919, %v5956
  %v5984 = vadd.f32 %v5920, %v5958
  %v5985 = vadd.f32 %v5921, %v5960
  %v5986 = vadd.f32 %v5922, %v5962
  %v5987 = vadd.f32 %v5923, %v5964
  %v5988 = vadd.f32 %v5924, %v5966
  %v5989 = vadd.f32 %v5925, %v5968
  %v5990 = vadd.f32 %v5926, %v5970
  %v5991 = vadd.f32 %v5927, %v5972
  %v5992 = vadd.f32 %v5928, %v5974
  %v5993 = vadd.f32 %v5929, %v5976
  %v5994 = vadd.f32 %v5930, %v5978
  %v5995 = vld [vmem:[#allocation3 + $0x16] sm:$0xff]
  %v5996 = vld [vmem:[#allocation3 + $0x1e] sm:$0xff]
  %v5997 = vld [vmem:[#allocation3 + $0x26] sm:$0xff]
  %v5998 = vld [vmem:[#allocation3 + $0x2e] sm:$0xff]
  %v5999 = vld [vmem:[#allocation3 + $0x36] sm:$0xff]
  %v6000 = vld [vmem:[#allocation3 + $0x3e] sm:$0xff]
  %v6001 = vld [vmem:[#allocation3 + $0x46] sm:$0xff]
  %v6002 = vld [vmem:[#allocation3 + $0x4e] sm:$0xff]
  %v6003 = vld [vmem:[#allocation3 + $0x56] sm:$0xff]
  %v6004 = vld [vmem:[#allocation3 + $0x5e] sm:$0xff]
  %v6005 = vld [vmem:[#allocation3 + $0x66] sm:$0xff]
  %v6006 = vld [vmem:[#allocation3 + $0x6e] sm:$0xff]
  %v6007 = vld [vmem:[#allocation3 + $0x76] sm:$0xff]
  %v6008 = vld [vmem:[#allocation3 + $0x7e] sm:$0xff]
  %v6009 = vld [vmem:[#allocation3 + $0x86] sm:$0xff]
  %v6010 = vld [vmem:[#allocation3 + $0x8e] sm:$0xff]
  %6011 = vrot.lane.b32.xlu0 %v5995, 80
  %v6012 = vpop.permute.xlu0 %6011
  %6013 = vrot.lane.b32.xlu0 %v5996, 80
  %v6014 = vpop.permute.xlu0 %6013
  %6015 = vrot.lane.b32.xlu0 %v5997, 80
  %v6016 = vpop.permute.xlu0 %6015
  %6017 = vrot.lane.b32.xlu0 %v5998, 80
  %v6018 = vpop.permute.xlu0 %6017
  %6019 = vrot.lane.b32.xlu0 %v5999, 80
  %v6020 = vpop.permute.xlu0 %6019
  %6021 = vrot.lane.b32.xlu0 %v6000, 80
  %v6022 = vpop.permute.xlu0 %6021
  %6023 = vrot.lane.b32.xlu0 %v6001, 80
  %v6024 = vpop.permute.xlu0 %6023
  %6025 = vrot.lane.b32.xlu0 %v6002, 80
  %v6026 = vpop.permute.xlu0 %6025
  %6027 = vrot.lane.b32.xlu0 %v6003, 80
  %v6028 = vpop.permute.xlu0 %6027
  %6029 = vrot.lane.b32.xlu0 %v6004, 80
  %v6030 = vpop.permute.xlu0 %6029
  %6031 = vrot.lane.b32.xlu0 %v6005, 80
  %v6032 = vpop.permute.xlu0 %6031
  %6033 = vrot.lane.b32.xlu0 %v6006, 80
  %v6034 = vpop.permute.xlu0 %6033
  %6035 = vrot.lane.b32.xlu0 %v6007, 80
  %v6036 = vpop.permute.xlu0 %6035
  %6037 = vrot.lane.b32.xlu0 %v6008, 80
  %v6038 = vpop.permute.xlu0 %6037
  %6039 = vrot.lane.b32.xlu0 %v6009, 80
  %v6040 = vpop.permute.xlu0 %6039
  %6041 = vrot.lane.b32.xlu0 %v6010, 80
  %v6042 = vpop.permute.xlu0 %6041
  %v6043 = vadd.f32 %v5979, %v6012
  %v6044 = vadd.f32 %v5980, %v6014
  %v6045 = vadd.f32 %v5981, %v6016
  %v6046 = vadd.f32 %v5982, %v6018
  %v6047 = vadd.f32 %v5983, %v6020
  %v6048 = vadd.f32 %v5984, %v6022
  %v6049 = vadd.f32 %v5985, %v6024
  %v6050 = vadd.f32 %v5986, %v6026
  %v6051 = vadd.f32 %v5987, %v6028
  %v6052 = vadd.f32 %v5988, %v6030
  %v6053 = vadd.f32 %v5989, %v6032
  %v6054 = vadd.f32 %v5990, %v6034
  %v6055 = vadd.f32 %v5991, %v6036
  %v6056 = vadd.f32 %v5992, %v6038
  %v6057 = vadd.f32 %v5993, %v6040
  %v6058 = vadd.f32 %v5994, %v6042
  %v6059 = vpack.c.bf16 %v6044, %v6043
  %v6060 = vpack.c.bf16 %v6046, %v6045
  %v6061 = vpack.c.bf16 %v6048, %v6047
  %v6062 = vpack.c.bf16 %v6050, %v6049
  %v6063 = vpack.c.bf16 %v6052, %v6051
  %v6064 = vpack.c.bf16 %v6054, %v6053
  %v6065 = vpack.c.bf16 %v6056, %v6055
  %v6066 = vpack.c.bf16 %v6058, %v6057
  %s6067 = scalar_lea.vmem %s1, 128
  %v6068 = vld [vmem:[%s6067] sm:$0xf]
  %v6069 = vld [vmem:[%s6067 + $0x4] sm:$0xf]
  %v6070 = vld [vmem:[%s6067 + $0x8] sm:$0xf]
  %v6071 = vld [vmem:[%s6067 + $0xc] sm:$0xf]
  %v6072 = vld [vmem:[%s6067 + $0x10] sm:$0xf]
  %v6073 = vld [vmem:[%s6067 + $0x14] sm:$0xf]
  %v6074 = vld [vmem:[%s6067 + $0x18] sm:$0xf]
  %v6075 = vld [vmem:[%s6067 + $0x1c] sm:$0xf]
  %v6076 = vld [vmem:[%s6067 + $0x20] sm:$0xf]
  %v6077 = vld [vmem:[%s6067 + $0x24] sm:$0xf]
  %v6078 = vld [vmem:[%s6067 + $0x28] sm:$0xf]
  %v6079 = vld [vmem:[%s6067 + $0x2c] sm:$0xf]
  %v6080 = vld [vmem:[%s6067 + $0x30] sm:$0xf]
  %v6081 = vld [vmem:[%s6067 + $0x34] sm:$0xf]
  %v6082 = vld [vmem:[%s6067 + $0x38] sm:$0xf]
  %v6083 = vld [vmem:[%s6067 + $0x3c] sm:$0xf]
  %v6100 = vunpack.c.l.b16 %v6068
  %v6101 = vunpack.c.l.b16 %v6069
  %v6102 = vunpack.c.l.b16 %v6070
  %v6103 = vunpack.c.l.b16 %v6071
  %v6104 = vunpack.c.l.b16 %v6072
  %v6105 = vunpack.c.l.b16 %v6073
  %v6106 = vunpack.c.l.b16 %v6074
  %v6107 = vunpack.c.l.b16 %v6075
  %v6108 = vunpack.c.l.b16 %v6076
  %v6109 = vunpack.c.l.b16 %v6077
  %v6110 = vunpack.c.l.b16 %v6078
  %v6111 = vunpack.c.l.b16 %v6079
  %v6112 = vunpack.c.l.b16 %v6080
  %v6113 = vunpack.c.l.b16 %v6081
  %v6114 = vunpack.c.l.b16 %v6082
  %v6115 = vunpack.c.l.b16 %v6083
  %v6116 = vpack.c.b16 %v6101, %v6100
  %v6117 = vpack.c.b16 %v6103, %v6102
  %v6118 = vpack.c.b16 %v6105, %v6104
  %v6119 = vpack.c.b16 %v6107, %v6106
  %v6120 = vpack.c.b16 %v6109, %v6108
  %v6121 = vpack.c.b16 %v6111, %v6110
  %v6122 = vpack.c.b16 %v6113, %v6112
  %v6123 = vpack.c.b16 %v6115, %v6114
  %6132 = vmatprep.subr.bf16.mxu0 0
  %6133 = vmatpush1.bf16.msra.mxu0 %v6116
  %6134 = vmatprep.subr.bf16.mxu0 0
  %6135 = vmatpush1.bf16.msra.mxu0 %v6117
  %6136 = vmatprep.subr.bf16.mxu0 0
  %6137 = vmatpush1.bf16.msra.mxu0 %v6118
  %6138 = vmatprep.subr.bf16.mxu0 0
  %6139 = vmatpush1.bf16.msra.mxu0 %v6119
  %6140 = vmatprep.subr.bf16.mxu0 0
  %6141 = vmatpush1.bf16.msra.mxu0 %v6120
  %6142 = vmatprep.subr.bf16.mxu0 0
  %6143 = vmatpush1.bf16.msra.mxu0 %v6121
  %6144 = vmatprep.subr.bf16.mxu0 0
  %6145 = vmatpush1.bf16.msra.mxu0 %v6122
  %6146 = vmatprep.subr.bf16.mxu0 0
  %6147 = vmatpush1.bf16.msra.mxu0 %v6123
  %6148 = vmatprep.subr.bf16.mxu0 0
  %6149 = vmatpush1.bf16.msra.mxu0 0
  %6150 = vmatprep.subr.bf16.mxu0 0
  %6151 = vmatpush1.bf16.msra.mxu0 0
  %6152 = vmatprep.subr.bf16.mxu0 0
  %6153 = vmatpush1.bf16.msra.mxu0 0
  %6154 = vmatprep.subr.bf16.mxu0 0
  %6155 = vmatpush1.bf16.msra.mxu0 0
  %6156 = vmatprep.subr.bf16.mxu0 0
  %6157 = vmatpush1.bf16.msra.mxu0 0
  %6158 = vmatprep.subr.bf16.mxu0 0
  %6159 = vmatpush1.bf16.msra.mxu0 0
  %6160 = vmatprep.subr.bf16.mxu0 0
  %6161 = vmatpush1.bf16.msra.mxu0 0
  %6162 = vmatprep.subr.bf16.mxu0 0
  %6163 = vmatpush1.bf16.msra.mxu0 0
  %6164 = vmatprep.mubr.bf16.mxu0 0
  %6165 = vmatmul.mubr.bf16.gmra.mrb[0].mxu0 %v6059
  %v6166 = vpop.f32.mrb[0].mxu0
  %v6167 = vadd.f32 0.0, %v6166
  %v6168 = vpop.f32.mrb[0].mxu0
  %v6169 = vpop.f32.mrb[0].mxu0
  %v6170 = vadd.f32 0.0, %v6169
  %v6171 = vpop.f32.mrb[0].mxu0
  %6172 = vmatprep.mubr.bf16.mxu0 0
  %6173 = vmatmul.mubr.bf16.gmra.mrb[0].mxu0 %v6060
  %v6174 = vpop.f32.mrb[0].mxu0
  %v6175 = vadd.f32 0.0, %v6174
  %v6176 = vpop.f32.mrb[0].mxu0
  %v6177 = vpop.f32.mrb[0].mxu0
  %v6178 = vadd.f32 0.0, %v6177
  %v6179 = vpop.f32.mrb[0].mxu0
  %6180 = vmatprep.mubr.bf16.mxu0 0
  %6181 = vmatmul.mubr.bf16.gmra.mrb[0].mxu0 %v6061
  %v6182 = vpop.f32.mrb[0].mxu0
  %v6183 = vadd.f32 0.0, %v6182
  %v6184 = vpop.f32.mrb[0].mxu0
  %v6185 = vpop.f32.mrb[0].mxu0
  %v6186 = vadd.f32 0.0, %v6185
  %v6187 = vpop.f32.mrb[0].mxu0
  %6188 = vmatprep.mubr.bf16.mxu0 0
  %6189 = vmatmul.mubr.bf16.gmra.mrb[0].mxu0 %v6062
  %v6190 = vpop.f32.mrb[0].mxu0
  %v6191 = vadd.f32 0.0, %v6190
  %v6192 = vpop.f32.mrb[0].mxu0
  %v6193 = vpop.f32.mrb[0].mxu0
  %v6194 = vadd.f32 0.0, %v6193
  %v6195 = vpop.f32.mrb[0].mxu0
  %6196 = vmatprep.mubr.bf16.mxu0 0
  %6197 = vmatmul.mubr.bf16.gmra.mrb[0].mxu0 %v6063
  %v6198 = vpop.f32.mrb[0].mxu0
  %v6199 = vadd.f32 0.0, %v6198
  %v6200 = vpop.f32.mrb[0].mxu0
  %v6201 = vpop.f32.mrb[0].mxu0
  %v6202 = vadd.f32 0.0, %v6201
  %v6203 = vpop.f32.mrb[0].mxu0
  %6204 = vmatprep.mubr.bf16.mxu0 0
  %6205 = vmatmul.mubr.bf16.gmra.mrb[0].mxu0 %v6064
  %v6206 = vpop.f32.mrb[0].mxu0
  %v6207 = vadd.f32 0.0, %v6206
  %v6208 = vpop.f32.mrb[0].mxu0
  %v6209 = vpop.f32.mrb[0].mxu0
  %v6210 = vadd.f32 0.0, %v6209
  %v6211 = vpop.f32.mrb[0].mxu0
  %6212 = vmatprep.mubr.bf16.mxu0 0
  %6213 = vmatmul.mubr.bf16.gmra.mrb[0].mxu0 %v6065
  %v6214 = vpop.f32.mrb[0].mxu0
  %v6215 = vadd.f32 0.0, %v6214
  %v6216 = vpop.f32.mrb[0].mxu0
  %v6217 = vpop.f32.mrb[0].mxu0
  %v6218 = vadd.f32 0.0, %v6217
  %v6219 = vpop.f32.mrb[0].mxu0
  %6220 = vmatprep.mubr.bf16.mxu0 0
  %6221 = vmatmul.mubr.bf16.gmra.mrb[0].mxu0 %v6066
  %v6222 = vpop.f32.mrb[0].mxu0
  %v6223 = vadd.f32 0.0, %v6222
  %v6224 = vpop.f32.mrb[0].mxu0
  %v6225 = vpop.f32.mrb[0].mxu0
  %v6226 = vadd.f32 0.0, %v6225
  %v6227 = vpop.f32.mrb[0].mxu0
  %6228 = vdwg.mxu0
  %v6229 = vld [vmem:[%s6] sm:$0xff]
  %6230 = vmatprep.subr.mxu0 0.0
  %6231 = vmatpush1.msra.mxu0 %v6167
  %6232 = vmatprep.subr.mxu0 0.0
  %6233 = vmatpush1.msra.mxu0 %v6170
  %6234 = vmatprep.subr.mxu0 0.0
  %6235 = vmatpush1.msra.mxu0 %v6175
  %6236 = vmatprep.subr.mxu0 0.0
  %6237 = vmatpush1.msra.mxu0 %v6178
  %6238 = vmatprep.subr.mxu0 0.0
  %6239 = vmatpush1.msra.mxu0 %v6183
  %6240 = vmatprep.subr.mxu0 0.0
  %6241 = vmatpush1.msra.mxu0 %v6186
  %6242 = vmatprep.subr.mxu0 0.0
  %6243 = vmatpush1.msra.mxu0 %v6191
  %6244 = vmatprep.subr.mxu0 0.0
  %6245 = vmatpush1.msra.mxu0 %v6194
  %6246 = vmatprep.subr.mxu0 0.0
  %6247 = vmatpush1.msra.mxu0 %v6199
  %6248 = vmatprep.subr.mxu0 0.0
  %6249 = vmatpush1.msra.mxu0 %v6202
  %6250 = vmatprep.subr.mxu0 0.0
  %6251 = vmatpush1.msra.mxu0 %v6207
  %6252 = vmatprep.subr.mxu0 0.0
  %6253 = vmatpush1.msra.mxu0 %v6210
  %6254 = vmatprep.subr.mxu0 0.0
  %6255 = vmatpush1.msra.mxu0 %v6215
  %6256 = vmatprep.subr.mxu0 0.0
  %6257 = vmatpush1.msra.mxu0 %v6218
  %6258 = vmatprep.subr.mxu0 0.0
  %6259 = vmatpush1.msra.mxu0 %v6223
  %6260 = vmatprep.subr.mxu0 0.0
  %6261 = vmatpush1.msra.mxu0 %v6226
  %6262 = vmatprep.subr.mxu0 0.0
  %6263 = vmatpush1.msra.mxu0 0.0
  %6264 = vmatprep.subr.mxu0 0.0
  %6265 = vmatpush1.msra.mxu0 0.0
  %6266 = vmatprep.subr.mxu0 0.0
  %6267 = vmatpush1.msra.mxu0 0.0
  %6268 = vmatprep.subr.mxu0 0.0
  %6269 = vmatpush1.msra.mxu0 0.0
  %6270 = vmatprep.subr.mxu0 0.0
  %6271 = vmatpush1.msra.mxu0 0.0
  %6272 = vmatprep.subr.mxu0 0.0
  %6273 = vmatpush1.msra.mxu0 0.0
  %6274 = vmatprep.subr.mxu0 0.0
  %6275 = vmatpush1.msra.mxu0 0.0
  %6276 = vmatprep.subr.mxu0 0.0
  %6277 = vmatpush1.msra.mxu0 0.0
  %6278 = vmatprep.subr.mxu0 0.0
  %6279 = vmatpush1.msra.mxu0 0.0
  %6280 = vmatprep.subr.mxu0 0.0
  %6281 = vmatpush1.msra.mxu0 0.0
  %6282 = vmatprep.subr.mxu0 0.0
  %6283 = vmatpush1.msra.mxu0 0.0
  %6284 = vmatprep.subr.mxu0 0.0
  %6285 = vmatpush1.msra.mxu0 0.0
  %6286 = vmatprep.subr.mxu0 0.0
  %6287 = vmatpush1.msra.mxu0 0.0
  %6288 = vmatprep.subr.mxu0 0.0
  %6289 = vmatpush1.msra.mxu0 0.0
  %6290 = vmatprep.subr.mxu0 0.0
  %6291 = vmatpush1.msra.mxu0 0.0
  %6292 = vmatprep.subr.mxu0 0.0
  %6293 = vmatpush1.msra.mxu0 0.0
  %6294 = vmatprep.mubr.f32.mxu0 0.0
  %6295 = vmatmul.mubr.f32.gmra.mrb[0].mxu0 %v6229
  %v6296 = vpop.f32.mrb[0].mxu0
  %v6297 = vadd.f32 0.0, %v6296
  %v6298 = vpop.f32.mrb[0].mxu0
  %6299 = vdwg.mxu0
  %v6300 = vmul.f32 %v6167, %v6167
  %v6301 = vmul.f32 %v6170, %v6170
  %v6302 = vmul.f32 %v6175, %v6175
  %v6303 = vmul.f32 %v6178, %v6178
  %v6304 = vmul.f32 %v6183, %v6183
  %v6305 = vmul.f32 %v6186, %v6186
  %v6306 = vmul.f32 %v6191, %v6191
  %v6307 = vmul.f32 %v6194, %v6194
  %v6308 = vmul.f32 %v6199, %v6199
  %v6309 = vmul.f32 %v6202, %v6202
  %v6310 = vmul.f32 %v6207, %v6207
  %v6311 = vmul.f32 %v6210, %v6210
  %v6312 = vmul.f32 %v6215, %v6215
  %v6313 = vmul.f32 %v6218, %v6218
  %v6314 = vmul.f32 %v6223, %v6223
  %v6315 = vmul.f32 %v6226, %v6226
  %6316 = vmatprep.subr.mxu0 0.0
  %6317 = vmatpush1.msra.mxu0 %v6300
  %6318 = vmatprep.subr.mxu0 0.0
  %6319 = vmatpush1.msra.mxu0 %v6301
  %6320 = vmatprep.subr.mxu0 0.0
  %6321 = vmatpush1.msra.mxu0 %v6302
  %6322 = vmatprep.subr.mxu0 0.0
  %6323 = vmatpush1.msra.mxu0 %v6303
  %6324 = vmatprep.subr.mxu0 0.0
  %6325 = vmatpush1.msra.mxu0 %v6304
  %6326 = vmatprep.subr.mxu0 0.0
  %6327 = vmatpush1.msra.mxu0 %v6305
  %6328 = vmatprep.subr.mxu0 0.0
  %6329 = vmatpush1.msra.mxu0 %v6306
  %6330 = vmatprep.subr.mxu0 0.0
  %6331 = vmatpush1.msra.mxu0 %v6307
  %6332 = vmatprep.subr.mxu0 0.0
  %6333 = vmatpush1.msra.mxu0 %v6308
  %6334 = vmatprep.subr.mxu0 0.0
  %6335 = vmatpush1.msra.mxu0 %v6309
  %6336 = vmatprep.subr.mxu0 0.0
  %6337 = vmatpush1.msra.mxu0 %v6310
  %6338 = vmatprep.subr.mxu0 0.0
  %6339 = vmatpush1.msra.mxu0 %v6311
  %6340 = vmatprep.subr.mxu0 0.0
  %6341 = vmatpush1.msra.mxu0 %v6312
  %6342 = vmatprep.subr.mxu0 0.0
  %6343 = vmatpush1.msra.mxu0 %v6313
  %6344 = vmatprep.subr.mxu0 0.0
  %6345 = vmatpush1.msra.mxu0 %v6314
  %6346 = vmatprep.subr.mxu0 0.0
  %6347 = vmatpush1.msra.mxu0 %v6315
  %6348 = vmatprep.subr.mxu0 0.0
  %6349 = vmatpush1.msra.mxu0 0.0
  %6350 = vmatprep.subr.mxu0 0.0
  %6351 = vmatpush1.msra.mxu0 0.0
  %6352 = vmatprep.subr.mxu0 0.0
  %6353 = vmatpush1.msra.mxu0 0.0
  %6354 = vmatprep.subr.mxu0 0.0
  %6355 = vmatpush1.msra.mxu0 0.0
  %6356 = vmatprep.subr.mxu0 0.0
  %6357 = vmatpush1.msra.mxu0 0.0
  %6358 = vmatprep.subr.mxu0 0.0
  %6359 = vmatpush1.msra.mxu0 0.0
  %6360 = vmatprep.subr.mxu0 0.0
  %6361 = vmatpush1.msra.mxu0 0.0
  %6362 = vmatprep.subr.mxu0 0.0
  %6363 = vmatpush1.msra.mxu0 0.0
  %6364 = vmatprep.subr.mxu0 0.0
  %6365 = vmatpush1.msra.mxu0 0.0
  %6366 = vmatprep.subr.mxu0 0.0
  %6367 = vmatpush1.msra.mxu0 0.0
  %6368 = vmatprep.subr.mxu0 0.0
  %6369 = vmatpush1.msra.mxu0 0.0
  %6370 = vmatprep.subr.mxu0 0.0
  %6371 = vmatpush1.msra.mxu0 0.0
  %6372 = vmatprep.subr.mxu0 0.0
  %6373 = vmatpush1.msra.mxu0 0.0
  %6374 = vmatprep.subr.mxu0 0.0
  %6375 = vmatpush1.msra.mxu0 0.0
  %6376 = vmatprep.subr.mxu0 0.0
  %6377 = vmatpush1.msra.mxu0 0.0
  %6378 = vmatprep.subr.mxu0 0.0
  %6379 = vmatpush1.msra.mxu0 0.0
  %6380 = vmatprep.mubr.f32.mxu0 0.0
  %6381 = vmatmul.mubr.f32.gmra.mrb[0].mxu0 %v6229
  %v6382 = vpop.f32.mrb[0].mxu0
  %v6383 = vadd.f32 0.0, %v6382
  %v6384 = vpop.f32.mrb[0].mxu0
  %6385 = vdwg.mxu0
  %v6386 = vmul.f32 %v6297, 0.03125
  %v6387 = vmul.f32 %v6383, 0.03125
  %v6388 = vmul.f32 %v6386, %v6386
  %v6389 = vsub.f32 %v6387, %v6388
  %v6390 = vmax.f32 %v6389, 0.0
  %v6391 = vlaneseq
  %v6392 = vshrl.u32 %v6391, 7
  %v6393 = vsub.s32 0, %v6392
  %v6394 = vrot.slane %v6386, %v6393
  %v6395 = vsub.f32 %v6167, %v6394
  %v6396 = vsub.f32 %v6170, %v6394
  %v6397 = vsub.f32 %v6175, %v6394
  %v6398 = vsub.f32 %v6178, %v6394
  %v6399 = vsub.f32 %v6183, %v6394
  %v6400 = vsub.f32 %v6186, %v6394
  %v6401 = vsub.f32 %v6191, %v6394
  %v6402 = vsub.f32 %v6194, %v6394
  %v6403 = vsub.f32 %v6199, %v6394
  %v6404 = vsub.f32 %v6202, %v6394
  %v6405 = vsub.f32 %v6207, %v6394
  %v6406 = vsub.f32 %v6210, %v6394
  %v6407 = vsub.f32 %v6215, %v6394
  %v6408 = vsub.f32 %v6218, %v6394
  %v6409 = vsub.f32 %v6223, %v6394
  %v6410 = vsub.f32 %v6226, %v6394
  %v6411 = vadd.f32 %v6390, 1e-05
  %v6412 = vrsqrt.pop %v6411
  %v6413 = vlaneseq
  %v6414 = vshrl.u32 %v6413, 7
  %v6415 = vsub.s32 0, %v6414
  %v6416 = vrot.slane %v6412, %v6415
  %v6417 = vmul.f32 %v6395, %v6416
  %v6418 = vmul.f32 %v6396, %v6416
  %v6419 = vmul.f32 %v6397, %v6416
  %v6420 = vmul.f32 %v6398, %v6416
  %v6421 = vmul.f32 %v6399, %v6416
  %v6422 = vmul.f32 %v6400, %v6416
  %v6423 = vmul.f32 %v6401, %v6416
  %v6424 = vmul.f32 %v6402, %v6416
  %v6425 = vmul.f32 %v6403, %v6416
  %v6426 = vmul.f32 %v6404, %v6416
  %v6427 = vmul.f32 %v6405, %v6416
  %v6428 = vmul.f32 %v6406, %v6416
  %v6429 = vmul.f32 %v6407, %v6416
  %v6430 = vmul.f32 %v6408, %v6416
  %v6431 = vmul.f32 %v6409, %v6416
  %v6432 = vmul.f32 %v6410, %v6416
  %v6433 = vld [vmem:[%s3 + $0x3] sm:$0x1]
  %v6434 = vlaneseq
  %v6435 = vshrl.u32 %v6434, 7
  %v6436 = vsub.s32 0, %v6435
  %v6437 = vrot.slane %v6433, %v6436
  %v6438 = vmul.f32 %v6417, %v6437
  %v6439 = vmul.f32 %v6418, %v6437
  %v6440 = vmul.f32 %v6419, %v6437
  %v6441 = vmul.f32 %v6420, %v6437
  %v6442 = vmul.f32 %v6421, %v6437
  %v6443 = vmul.f32 %v6422, %v6437
  %v6444 = vmul.f32 %v6423, %v6437
  %v6445 = vmul.f32 %v6424, %v6437
  %v6446 = vmul.f32 %v6425, %v6437
  %v6447 = vmul.f32 %v6426, %v6437
  %v6448 = vmul.f32 %v6427, %v6437
  %v6449 = vmul.f32 %v6428, %v6437
  %v6450 = vmul.f32 %v6429, %v6437
  %v6451 = vmul.f32 %v6430, %v6437
  %v6452 = vmul.f32 %v6431, %v6437
  %v6453 = vmul.f32 %v6432, %v6437
  %v6454 = vld [vmem:[%s3 + $0x4] sm:$0x1]
  %v6455 = vlaneseq
  %v6456 = vshrl.u32 %v6455, 7
  %v6457 = vsub.s32 0, %v6456
  %v6458 = vrot.slane %v6454, %v6457
  %v6459 = vadd.f32 %v6438, %v6458
  %v6460 = vadd.f32 %v6439, %v6458
  %v6461 = vadd.f32 %v6440, %v6458
  %v6462 = vadd.f32 %v6441, %v6458
  %v6463 = vadd.f32 %v6442, %v6458
  %v6464 = vadd.f32 %v6443, %v6458
  %v6465 = vadd.f32 %v6444, %v6458
  %v6466 = vadd.f32 %v6445, %v6458
  %v6467 = vadd.f32 %v6446, %v6458
  %v6468 = vadd.f32 %v6447, %v6458
  %v6469 = vadd.f32 %v6448, %v6458
  %v6470 = vadd.f32 %v6449, %v6458
  %v6471 = vadd.f32 %v6450, %v6458
  %v6472 = vadd.f32 %v6451, %v6458
  %v6473 = vadd.f32 %v6452, %v6458
  %v6474 = vadd.f32 %v6453, %v6458
  %v6475 = vmax.f32 %v6459, 0.0
  %v6476 = vmax.f32 %v6460, 0.0
  %v6477 = vmax.f32 %v6461, 0.0
  %v6478 = vmax.f32 %v6462, 0.0
  %v6479 = vmax.f32 %v6463, 0.0
  %v6480 = vmax.f32 %v6464, 0.0
  %v6481 = vmax.f32 %v6465, 0.0
  %v6482 = vmax.f32 %v6466, 0.0
  %v6483 = vmax.f32 %v6467, 0.0
  %v6484 = vmax.f32 %v6468, 0.0
  %v6485 = vmax.f32 %v6469, 0.0
  %v6486 = vmax.f32 %v6470, 0.0
  %v6487 = vmax.f32 %v6471, 0.0
  %v6488 = vmax.f32 %v6472, 0.0
  %v6489 = vmax.f32 %v6473, 0.0
  %v6490 = vmax.f32 %v6474, 0.0
  %6491 = vst [vmem:[#allocation3] sm:$0xff] %v6475
  %6492 = vst [vmem:[#allocation3 + $0x8] sm:$0xff] %v6476
  %6493 = vst [vmem:[#allocation3 + $0x10] sm:$0xff] %v6477
  %6494 = vst [vmem:[#allocation3 + $0x18] sm:$0xff] %v6478
  %6495 = vst [vmem:[#allocation3 + $0x20] sm:$0xff] %v6479
  %6496 = vst [vmem:[#allocation3 + $0x28] sm:$0xff] %v6480
  %6497 = vst [vmem:[#allocation3 + $0x30] sm:$0xff] %v6481
  %6498 = vst [vmem:[#allocation3 + $0x38] sm:$0xff] %v6482
  %6499 = vst [vmem:[#allocation3 + $0x40] sm:$0xff] %v6483
  %6500 = vst [vmem:[#allocation3 + $0x48] sm:$0xff] %v6484
  %6501 = vst [vmem:[#allocation3 + $0x50] sm:$0xff] %v6485
  %6502 = vst [vmem:[#allocation3 + $0x58] sm:$0xff] %v6486
  %6503 = vst [vmem:[#allocation3 + $0x60] sm:$0xff] %v6487
  %6504 = vst [vmem:[#allocation3 + $0x68] sm:$0xff] %v6488
  %6505 = vst [vmem:[#allocation3 + $0x70] sm:$0xff] %v6489
  %6506 = vst [vmem:[#allocation3 + $0x78] sm:$0xff] %v6490
  %v6507 = vld [vmem:[#allocation3] ss:$64 sm:$0x1]
  %v6508 = vld [vmem:[#allocation3] ss:$64 sm:$0x2]
  %v6509 = vor.u32 %v6507, %v6508
  %s6510 = scalar_lea.vmem [#allocation3], 1
  %v6511 = vld [vmem:[%s6510] ss:$64 sm:$0x1]
  %v6512 = vld [vmem:[%s6510] ss:$64 sm:$0x2]
  %v6513 = vor.u32 %v6511, %v6512
  %v6514 = vmax.f32 %v6509, %v6513
  %s6515 = scalar_lea.vmem [#allocation3], 2
  %v6516 = vld [vmem:[%s6515] ss:$64 sm:$0x1]
  %v6517 = vld [vmem:[%s6515] ss:$64 sm:$0x2]
  %v6518 = vor.u32 %v6516, %v6517
  %s6519 = scalar_lea.vmem [#allocation3], 3
  %v6520 = vld [vmem:[%s6519] ss:$64 sm:$0x1]
  %v6521 = vld [vmem:[%s6519] ss:$64 sm:$0x2]
  %v6522 = vor.u32 %v6520, %v6521
  %v6523 = vmax.f32 %v6518, %v6522
  %6524 = vrot.lane.b32.xlu0 %v6523, 20
  %v6525 = vpop.permute.xlu0 %6524
  %v6526 = vadd.f32 %v6514, %v6525
  %s6527 = scalar_lea.vmem [#allocation3], 4
  %v6528 = vld [vmem:[%s6527] ss:$64 sm:$0x1]
  %v6529 = vld [vmem:[%s6527] ss:$64 sm:$0x2]
  %v6530 = vor.u32 %v6528, %v6529
  %s6531 = scalar_lea.vmem [#allocation3], 5
  %v6532 = vld [vmem:[%s6531] ss:$64 sm:$0x1]
  %v6533 = vld [vmem:[%s6531] ss:$64 sm:$0x2]
  %v6534 = vor.u32 %v6532, %v6533
  %v6535 = vmax.f32 %v6530, %v6534
  %6536 = vrot.lane.b32.xlu0 %v6535, 40
  %v6537 = vpop.permute.xlu0 %6536
  %v6538 = vadd.f32 %v6526, %v6537
  %s6539 = scalar_lea.vmem [#allocation3], 6
  %v6540 = vld [vmem:[%s6539] ss:$64 sm:$0x1]
  %v6541 = vld [vmem:[%s6539] ss:$64 sm:$0x2]
  %v6542 = vor.u32 %v6540, %v6541
  %s6543 = scalar_lea.vmem [#allocation3], 7
  %v6544 = vld [vmem:[%s6543] ss:$64 sm:$0x1]
  %v6545 = vld [vmem:[%s6543] ss:$64 sm:$0x2]
  %v6546 = vor.u32 %v6544, %v6545
  %v6547 = vmax.f32 %v6542, %v6546
  %6548 = vrot.lane.b32.xlu0 %v6547, 60
  %v6549 = vpop.permute.xlu0 %6548
  %v6550 = vadd.f32 %v6538, %v6549
  %v6551 = vpack.c.bf16 %v6550, %v6550
  %v6552 = vld [vmem:[%s2] sm:$0xf]
  %v6553 = vld [vmem:[%s2 + $0x4] sm:$0xf]
  %v6554 = vld [vmem:[%s2 + $0x8] sm:$0xf]
  %v6555 = vld [vmem:[%s2 + $0xc] sm:$0xf]
  %v6556 = vld [vmem:[%s2 + $0x10] sm:$0xf]
  %v6557 = vld [vmem:[%s2 + $0x14] sm:$0xf]
  %v6558 = vld [vmem:[%s2 + $0x18] sm:$0xf]
  %v6559 = vld [vmem:[%s2 + $0x1c] sm:$0xf]
  %v6560 = vld [vmem:[%s2 + $0x20] sm:$0xf]
  %v6561 = vld [vmem:[%s2 + $0x24] sm:$0xf]
  %v6562 = vld [vmem:[%s2 + $0x28] sm:$0xf]
  %v6563 = vld [vmem:[%s2 + $0x2c] sm:$0xf]
  %v6564 = vld [vmem:[%s2 + $0x30] sm:$0xf]
  %v6565 = vld [vmem:[%s2 + $0x34] sm:$0xf]
  %v6566 = vld [vmem:[%s2 + $0x38] sm:$0xf]
  %v6567 = vld [vmem:[%s2 + $0x3c] sm:$0xf]
  %s6568 = scalar_lea.vmem [#allocation3], 10
  %v6569 = vld [vmem:[%s6568] ss:$64 sm:$0x1]
  %v6570 = vld [vmem:[%s6568] ss:$64 sm:$0x2]
  %v6571 = vor.u32 %v6569, %v6570
  %s6572 = scalar_lea.vmem [#allocation3], 11
  %v6573 = vld [vmem:[%s6572] ss:$64 sm:$0x1]
  %v6574 = vld [vmem:[%s6572] ss:$64 sm:$0x2]
  %v6575 = vor.u32 %v6573, %v6574
  %v6576 = vmax.f32 %v6571, %v6575
  %s6577 = scalar_lea.vmem [#allocation3], 12
  %v6578 = vld [vmem:[%s6577] ss:$64 sm:$0x1]
  %v6579 = vld [vmem:[%s6577] ss:$64 sm:$0x2]
  %v6580 = vor.u32 %v6578, %v6579
  %s6581 = scalar_lea.vmem [#allocation3], 13
  %v6582 = vld [vmem:[%s6581] ss:$64 sm:$0x1]
  %v6583 = vld [vmem:[%s6581] ss:$64 sm:$0x2]
  %v6584 = vor.u32 %v6582, %v6583
  %v6585 = vmax.f32 %v6580, %v6584
  %6586 = vrot.lane.b32.xlu0 %v6585, 20
  %v6587 = vpop.permute.xlu0 %6586
  %v6588 = vadd.f32 %v6576, %v6587
  %s6589 = scalar_lea.vmem [#allocation3], 14
  %v6590 = vld [vmem:[%s6589] ss:$64 sm:$0x1]
  %v6591 = vld [vmem:[%s6589] ss:$64 sm:$0x2]
  %v6592 = vor.u32 %v6590, %v6591
  %s6593 = scalar_lea.vmem [#allocation3], 15
  %v6594 = vld [vmem:[%s6593] ss:$64 sm:$0x1]
  %v6595 = vld [vmem:[%s6593] ss:$64 sm:$0x2]
  %v6596 = vor.u32 %v6594, %v6595
  %v6597 = vmax.f32 %v6592, %v6596
  %6598 = vrot.lane.b32.xlu0 %v6597, 40
  %v6599 = vpop.permute.xlu0 %6598
  %v6600 = vadd.f32 %v6588, %v6599
  %s6601 = scalar_lea.vmem [#allocation3], 16
  %v6602 = vld [vmem:[%s6601] ss:$64 sm:$0x1]
  %v6603 = vld [vmem:[%s6601] ss:$64 sm:$0x2]
  %v6604 = vor.u32 %v6602, %v6603
  %s6605 = scalar_lea.vmem [#allocation3], 17
  %v6606 = vld [vmem:[%s6605] ss:$64 sm:$0x1]
  %v6607 = vld [vmem:[%s6605] ss:$64 sm:$0x2]
  %v6608 = vor.u32 %v6606, %v6607
  %v6609 = vmax.f32 %v6604, %v6608
  %6610 = vrot.lane.b32.xlu0 %v6609, 60
  %v6611 = vpop.permute.xlu0 %6610
  %v6612 = vadd.f32 %v6600, %v6611
  %v6613 = vpack.c.bf16 %v6612, %v6612
  %s6614 = scalar_lea.vmem %s2, 64
  %v6615 = vld [vmem:[%s6614] sm:$0xf]
  %v6616 = vld [vmem:[%s6614 + $0x4] sm:$0xf]
  %v6617 = vld [vmem:[%s6614 + $0x8] sm:$0xf]
  %v6618 = vld [vmem:[%s6614 + $0xc] sm:$0xf]
  %v6619 = vld [vmem:[%s6614 + $0x10] sm:$0xf]
  %v6620 = vld [vmem:[%s6614 + $0x14] sm:$0xf]
  %v6621 = vld [vmem:[%s6614 + $0x18] sm:$0xf]
  %v6622 = vld [vmem:[%s6614 + $0x1c] sm:$0xf]
  %v6623 = vld [vmem:[%s6614 + $0x20] sm:$0xf]
  %v6624 = vld [vmem:[%s6614 + $0x24] sm:$0xf]
  %v6625 = vld [vmem:[%s6614 + $0x28] sm:$0xf]
  %v6626 = vld [vmem:[%s6614 + $0x2c] sm:$0xf]
  %v6627 = vld [vmem:[%s6614 + $0x30] sm:$0xf]
  %v6628 = vld [vmem:[%s6614 + $0x34] sm:$0xf]
  %v6629 = vld [vmem:[%s6614 + $0x38] sm:$0xf]
  %v6630 = vld [vmem:[%s6614 + $0x3c] sm:$0xf]
  %v6647 = vunpack.c.l.b16 %v6615
  %v6648 = vunpack.c.l.b16 %v6616
  %v6649 = vunpack.c.l.b16 %v6617
  %v6650 = vunpack.c.l.b16 %v6618
  %v6651 = vunpack.c.l.b16 %v6619
  %v6652 = vunpack.c.l.b16 %v6620
  %v6653 = vunpack.c.l.b16 %v6621
  %v6654 = vunpack.c.l.b16 %v6622
  %v6655 = vunpack.c.l.b16 %v6623
  %v6656 = vunpack.c.l.b16 %v6624
  %v6657 = vunpack.c.l.b16 %v6625
  %v6658 = vunpack.c.l.b16 %v6626
  %v6659 = vunpack.c.l.b16 %v6627
  %v6660 = vunpack.c.l.b16 %v6628
  %v6661 = vunpack.c.l.b16 %v6629
  %v6662 = vunpack.c.l.b16 %v6630
  %v6663 = vpack.c.b16 %v6648, %v6647
  %v6664 = vpack.c.b16 %v6650, %v6649
  %v6665 = vpack.c.b16 %v6652, %v6651
  %v6666 = vpack.c.b16 %v6654, %v6653
  %v6667 = vpack.c.b16 %v6656, %v6655
  %v6668 = vpack.c.b16 %v6658, %v6657
  %v6669 = vpack.c.b16 %v6660, %v6659
  %v6670 = vpack.c.b16 %v6662, %v6661
  %6679 = vmatprep.subr.bf16.mxu0 0
  %6680 = vmatpush1.bf16.msra.mxu0 %v6663
  %6681 = vmatprep.subr.bf16.mxu0 0
  %6682 = vmatpush1.bf16.msra.mxu0 %v6664
  %6683 = vmatprep.subr.bf16.mxu0 0
  %6684 = vmatpush1.bf16.msra.mxu0 %v6665
  %6685 = vmatprep.subr.bf16.mxu0 0
  %6686 = vmatpush1.bf16.msra.mxu0 %v6666
  %6687 = vmatprep.subr.bf16.mxu0 0
  %6688 = vmatpush1.bf16.msra.mxu0 %v6667
  %6689 = vmatprep.subr.bf16.mxu0 0
  %6690 = vmatpush1.bf16.msra.mxu0 %v6668
  %6691 = vmatprep.subr.bf16.mxu0 0
  %6692 = vmatpush1.bf16.msra.mxu0 %v6669
  %6693 = vmatprep.subr.bf16.mxu0 0
  %6694 = vmatpush1.bf16.msra.mxu0 %v6670
  %6695 = vmatprep.subr.bf16.mxu0 0
  %6696 = vmatpush1.bf16.msra.mxu0 0
  %6697 = vmatprep.subr.bf16.mxu0 0
  %6698 = vmatpush1.bf16.msra.mxu0 0
  %6699 = vmatprep.subr.bf16.mxu0 0
  %6700 = vmatpush1.bf16.msra.mxu0 0
  %6701 = vmatprep.subr.bf16.mxu0 0
  %6702 = vmatpush1.bf16.msra.mxu0 0
  %6703 = vmatprep.subr.bf16.mxu0 0
  %6704 = vmatpush1.bf16.msra.mxu0 0
  %6705 = vmatprep.subr.bf16.mxu0 0
  %6706 = vmatpush1.bf16.msra.mxu0 0
  %6707 = vmatprep.subr.bf16.mxu0 0
  %6708 = vmatpush1.bf16.msra.mxu0 0
  %6709 = vmatprep.subr.bf16.mxu0 0
  %6710 = vmatpush1.bf16.msra.mxu0 0
  %6711 = vmatprep.mubr.bf16.mxu0 0
  %6712 = vmatmul.mubr.bf16.gmra.mrb[0].mxu0 %v6613
  %v6713 = vpop.f32.mrb[0].mxu0
  %v6714 = vadd.f32 0.0, %v6713
  %v6715 = vpop.f32.mrb[0].mxu0
  %v6716 = vpop.f32.mrb[0].mxu0
  %v6717 = vpop.f32.mrb[0].mxu0
  %6718 = vdwg.mxu0
  %v6735 = vunpack.c.l.b16 %v6552
  %v6736 = vunpack.c.l.b16 %v6553
  %v6737 = vunpack.c.l.b16 %v6554
  %v6738 = vunpack.c.l.b16 %v6555
  %v6739 = vunpack.c.l.b16 %v6556
  %v6740 = vunpack.c.l.b16 %v6557
  %v6741 = vunpack.c.l.b16 %v6558
  %v6742 = vunpack.c.l.b16 %v6559
  %v6743 = vunpack.c.l.b16 %v6560
  %v6744 = vunpack.c.l.b16 %v6561
  %v6745 = vunpack.c.l.b16 %v6562
  %v6746 = vunpack.c.l.b16 %v6563
  %v6747 = vunpack.c.l.b16 %v6564
  %v6748 = vunpack.c.l.b16 %v6565
  %v6749 = vunpack.c.l.b16 %v6566
  %v6750 = vunpack.c.l.b16 %v6567
  %v6751 = vpack.c.b16 %v6736, %v6735
  %v6752 = vpack.c.b16 %v6738, %v6737
  %v6753 = vpack.c.b16 %v6740, %v6739
  %v6754 = vpack.c.b16 %v6742, %v6741
  %v6755 = vpack.c.b16 %v6744, %v6743
  %v6756 = vpack.c.b16 %v6746, %v6745
  %v6757 = vpack.c.b16 %v6748, %v6747
  %v6758 = vpack.c.b16 %v6750, %v6749
  %6767 = vmatprep.subr.bf16.mxu0 0
  %6768 = vmatpush1.bf16.msra.mxu0 %v6751
  %6769 = vmatprep.subr.bf16.mxu0 0
  %6770 = vmatpush1.bf16.msra.mxu0 %v6752
  %6771 = vmatprep.subr.bf16.mxu0 0
  %6772 = vmatpush1.bf16.msra.mxu0 %v6753
  %6773 = vmatprep.subr.bf16.mxu0 0
  %6774 = vmatpush1.bf16.msra.mxu0 %v6754
  %6775 = vmatprep.subr.bf16.mxu0 0
  %6776 = vmatpush1.bf16.msra.mxu0 %v6755
  %6777 = vmatprep.subr.bf16.mxu0 0
  %6778 = vmatpush1.bf16.msra.mxu0 %v6756
  %6779 = vmatprep.subr.bf16.mxu0 0
  %6780 = vmatpush1.bf16.msra.mxu0 %v6757
  %6781 = vmatprep.subr.bf16.mxu0 0
  %6782 = vmatpush1.bf16.msra.mxu0 %v6758
  %6783 = vmatprep.subr.bf16.mxu0 0
  %6784 = vmatpush1.bf16.msra.mxu0 0
  %6785 = vmatprep.subr.bf16.mxu0 0
  %6786 = vmatpush1.bf16.msra.mxu0 0
  %6787 = vmatprep.subr.bf16.mxu0 0
  %6788 = vmatpush1.bf16.msra.mxu0 0
  %6789 = vmatprep.subr.bf16.mxu0 0
  %6790 = vmatpush1.bf16.msra.mxu0 0
  %6791 = vmatprep.subr.bf16.mxu0 0
  %6792 = vmatpush1.bf16.msra.mxu0 0
  %6793 = vmatprep.subr.bf16.mxu0 0
  %6794 = vmatpush1.bf16.msra.mxu0 0
  %6795 = vmatprep.subr.bf16.mxu0 0
  %6796 = vmatpush1.bf16.msra.mxu0 0
  %6797 = vmatprep.subr.bf16.mxu0 0
  %6798 = vmatpush1.bf16.msra.mxu0 0
  %6799 = vmatprep.mubr.bf16.mxu0 0
  %6800 = vmatmul.mubr.bf16.gmra.mrb[0].mxu0 %v6551
  %v6801 = vpop.f32.mrb[0].mxu0
  %v6802 = vadd.f32 %v6714, %v6801
  %v6803 = vpop.f32.mrb[0].mxu0
  %v6804 = vpop.f32.mrb[0].mxu0
  %v6805 = vpop.f32.mrb[0].mxu0
  %6806 = vdwg.mxu0
  %vm6807 = vcmask 1041408
  %v6808 = vsel %vm6807, %v6802, 0.0
  %v6809 = vrot.slane %v6808, 4
  %v6810 = vadd.f32 %v6808, %v6809
  %v6811 = vrot.slane %v6810, 2
  %v6812 = vadd.f32 %v6810, %v6811
  %v6813 = vrot.slane %v6812, 1
  %v6814 = vadd.f32 %v6812, %v6813
  %v6815 = vrcp.pop 2.0
  %v6816 = vmul.f32 %v6814, %v6815
  %v6817 = vmul.f32 %v6802, %v6802
  %v6818 = vsel %vm6807, %v6817, 0.0
  %v6819 = vrot.slane %v6818, 4
  %v6820 = vadd.f32 %v6818, %v6819
  %v6821 = vrot.slane %v6820, 2
  %v6822 = vadd.f32 %v6820, %v6821
  %v6823 = vrot.slane %v6822, 1
  %v6824 = vadd.f32 %v6822, %v6823
  %v6825 = vmul.f32 %v6824, %v6815
  %v6826 = vmul.f32 %v6816, %v6816
  %v6827 = vsub.f32 %v6825, %v6826
  %v6828 = vmax.f32 %v6827, 0.0
  %v6829 = vsub.f32 %v6802, %v6816
  %v6830 = vadd.f32 %v6828, 1e-05
  %v6831 = vrsqrt.pop %v6830
  %v6832 = vmul.f32 %v6829, %v6831
  %v6833 = vld [vmem:[%s3 + $0x5] sm:$0x1]
  %v6834 = vlaneseq
  %v6835 = vshrl.u32 %v6834, 7
  %v6836 = vsub.s32 0, %v6835
  %v6837 = vrot.slane %v6833, %v6836
  %v6838 = vmul.f32 %v6832, %v6837
  %v6839 = vld [vmem:[%s3 + $0x6] sm:$0x1]
  %v6840 = vlaneseq
  %v6841 = vshrl.u32 %v6840, 7
  %v6842 = vsub.s32 0, %v6841
  %v6843 = vrot.slane %v6839, %v6842
  %v6844 = vadd.f32 %v6838, %v6843
  %v6845 = vmax.f32 %v6844, 0.0
  %v6846 = vpack.c.bf16 %v6845, %v6845
  %s6847 = scalar_lea.vmem %s2, 128
  %v6848 = vld [vmem:[%s6847] sm:$0xf]
  %v6849 = vld [vmem:[%s6847 + $0x4] sm:$0xf]
  %v6850 = vld [vmem:[%s6847 + $0x8] sm:$0xf]
  %v6851 = vld [vmem:[%s6847 + $0xc] sm:$0xf]
  %v6852 = vld [vmem:[%s6847 + $0x10] sm:$0xf]
  %v6853 = vld [vmem:[%s6847 + $0x14] sm:$0xf]
  %v6854 = vld [vmem:[%s6847 + $0x18] sm:$0xf]
  %v6855 = vld [vmem:[%s6847 + $0x1c] sm:$0xf]
  %v6856 = vld [vmem:[%s6847 + $0x20] sm:$0xf]
  %v6857 = vld [vmem:[%s6847 + $0x24] sm:$0xf]
  %v6858 = vld [vmem:[%s6847 + $0x28] sm:$0xf]
  %v6859 = vld [vmem:[%s6847 + $0x2c] sm:$0xf]
  %v6860 = vld [vmem:[%s6847 + $0x30] sm:$0xf]
  %v6861 = vld [vmem:[%s6847 + $0x34] sm:$0xf]
  %v6862 = vld [vmem:[%s6847 + $0x38] sm:$0xf]
  %v6863 = vld [vmem:[%s6847 + $0x3c] sm:$0xf]
  %v6880 = vunpack.c.l.b16 %v6848
  %v6881 = vunpack.c.l.b16 %v6849
  %v6882 = vunpack.c.l.b16 %v6850
  %v6883 = vunpack.c.l.b16 %v6851
  %v6884 = vunpack.c.l.b16 %v6852
  %v6885 = vunpack.c.l.b16 %v6853
  %v6886 = vunpack.c.l.b16 %v6854
  %v6887 = vunpack.c.l.b16 %v6855
  %v6888 = vunpack.c.l.b16 %v6856
  %v6889 = vunpack.c.l.b16 %v6857
  %v6890 = vunpack.c.l.b16 %v6858
  %v6891 = vunpack.c.l.b16 %v6859
  %v6892 = vunpack.c.l.b16 %v6860
  %v6893 = vunpack.c.l.b16 %v6861
  %v6894 = vunpack.c.l.b16 %v6862
  %v6895 = vunpack.c.l.b16 %v6863
  %v6896 = vpack.c.b16 %v6881, %v6880
  %v6897 = vpack.c.b16 %v6883, %v6882
  %v6898 = vpack.c.b16 %v6885, %v6884
  %v6899 = vpack.c.b16 %v6887, %v6886
  %v6900 = vpack.c.b16 %v6889, %v6888
  %v6901 = vpack.c.b16 %v6891, %v6890
  %v6902 = vpack.c.b16 %v6893, %v6892
  %v6903 = vpack.c.b16 %v6895, %v6894
  %6912 = vmatprep.subr.bf16.mxu0 0
  %6913 = vmatpush1.bf16.msra.mxu0 %v6896
  %6914 = vmatprep.subr.bf16.mxu0 0
  %6915 = vmatpush1.bf16.msra.mxu0 %v6897
  %6916 = vmatprep.subr.bf16.mxu0 0
  %6917 = vmatpush1.bf16.msra.mxu0 %v6898
  %6918 = vmatprep.subr.bf16.mxu0 0
  %6919 = vmatpush1.bf16.msra.mxu0 %v6899
  %6920 = vmatprep.subr.bf16.mxu0 0
  %6921 = vmatpush1.bf16.msra.mxu0 %v6900
  %6922 = vmatprep.subr.bf16.mxu0 0
  %6923 = vmatpush1.bf16.msra.mxu0 %v6901
  %6924 = vmatprep.subr.bf16.mxu0 0
  %6925 = vmatpush1.bf16.msra.mxu0 %v6902
  %6926 = vmatprep.subr.bf16.mxu0 0
  %6927 = vmatpush1.bf16.msra.mxu0 %v6903
  %6928 = vmatprep.subr.bf16.mxu0 0
  %6929 = vmatpush1.bf16.msra.mxu0 0
  %6930 = vmatprep.subr.bf16.mxu0 0
  %6931 = vmatpush1.bf16.msra.mxu0 0
  %6932 = vmatprep.subr.bf16.mxu0 0
  %6933 = vmatpush1.bf16.msra.mxu0 0
  %6934 = vmatprep.subr.bf16.mxu0 0
  %6935 = vmatpush1.bf16.msra.mxu0 0
  %6936 = vmatprep.subr.bf16.mxu0 0
  %6937 = vmatpush1.bf16.msra.mxu0 0
  %6938 = vmatprep.subr.bf16.mxu0 0
  %6939 = vmatpush1.bf16.msra.mxu0 0
  %6940 = vmatprep.subr.bf16.mxu0 0
  %6941 = vmatpush1.bf16.msra.mxu0 0
  %6942 = vmatprep.subr.bf16.mxu0 0
  %6943 = vmatpush1.bf16.msra.mxu0 0
  %6944 = vmatprep.mubr.bf16.mxu0 0
  %6945 = vmatmul.mubr.bf16.gmra.mrb[0].mxu0 %v6846
  %v6946 = vpop.f32.mrb[0].mxu0
  %v6947 = vadd.f32 0.0, %v6946
  %v6948 = vpop.f32.mrb[0].mxu0
  %v6949 = vpop.f32.mrb[0].mxu0
  %v6950 = vpop.f32.mrb[0].mxu0
  %6951 = vdwg.mxu0
  %v6952 = vsel %vm6807, %v6947, 0.0
  %v6953 = vrot.slane %v6952, 4
  %v6954 = vadd.f32 %v6952, %v6953
  %v6955 = vrot.slane %v6954, 2
  %v6956 = vadd.f32 %v6954, %v6955
  %v6957 = vrot.slane %v6956, 1
  %v6958 = vadd.f32 %v6956, %v6957
  %v6959 = vmul.f32 %v6958, %v6815
  %v6960 = vmul.f32 %v6947, %v6947
  %v6961 = vsel %vm6807, %v6960, 0.0
  %v6962 = vrot.slane %v6961, 4
  %v6963 = vadd.f32 %v6961, %v6962
  %v6964 = vrot.slane %v6963, 2
  %v6965 = vadd.f32 %v6963, %v6964
  %v6966 = vrot.slane %v6965, 1
  %v6967 = vadd.f32 %v6965, %v6966
  %v6968 = vmul.f32 %v6967, %v6815
  %v6969 = vmul.f32 %v6959, %v6959
  %v6970 = vsub.f32 %v6968, %v6969
  %v6971 = vmax.f32 %v6970, 0.0
  %v6972 = vsub.f32 %v6947, %v6959
  %v6973 = vadd.f32 %v6971, 1e-05
  %v6974 = vrsqrt.pop %v6973
  %v6975 = vmul.f32 %v6972, %v6974
  %v6976 = vld [vmem:[%s3 + $0x7] sm:$0x1]
  %v6977 = vlaneseq
  %v6978 = vshrl.u32 %v6977, 7
  %v6979 = vsub.s32 0, %v6978
  %v6980 = vrot.slane %v6976, %v6979
  %v6981 = vmul.f32 %v6975, %v6980
  %v6982 = vld [vmem:[%s3 + $0x8] sm:$0x1]
  %v6983 = vlaneseq
  %v6984 = vshrl.u32 %v6983, 7
  %v6985 = vsub.s32 0, %v6984
  %v6986 = vrot.slane %v6982, %v6985
  %v6987 = vadd.f32 %v6981, %v6986
  %v6988 = vmax.f32 %v6987, 0.0
  %v6989 = vpack.c.bf16 %v6988, %v6988
  %s6990 = scalar_lea.vmem %s2, 192
  %v6991 = vld [vmem:[%s6990] sm:$0xf]
  %v6992 = vld [vmem:[%s6990 + $0x4] sm:$0xf]
  %v6993 = vld [vmem:[%s6990 + $0x8] sm:$0xf]
  %v6994 = vld [vmem:[%s6990 + $0xc] sm:$0xf]
  %v6995 = vld [vmem:[%s6990 + $0x10] sm:$0xf]
  %v6996 = vld [vmem:[%s6990 + $0x14] sm:$0xf]
  %v6997 = vld [vmem:[%s6990 + $0x18] sm:$0xf]
  %v6998 = vld [vmem:[%s6990 + $0x1c] sm:$0xf]
  %v6999 = vld [vmem:[%s6990 + $0x20] sm:$0xf]
  %v7000 = vld [vmem:[%s6990 + $0x24] sm:$0xf]
  %v7001 = vld [vmem:[%s6990 + $0x28] sm:$0xf]
  %v7002 = vld [vmem:[%s6990 + $0x2c] sm:$0xf]
  %v7003 = vld [vmem:[%s6990 + $0x30] sm:$0xf]
  %v7004 = vld [vmem:[%s6990 + $0x34] sm:$0xf]
  %v7005 = vld [vmem:[%s6990 + $0x38] sm:$0xf]
  %v7006 = vld [vmem:[%s6990 + $0x3c] sm:$0xf]
  %v7007 = vld [vmem:[%s3 + $0x9] sm:$0x1]
  %v7008 = vlaneseq
  %v7009 = vshrl.u32 %v7008, 7
  %v7010 = vsub.s32 0, %v7009
  %v7011 = vrot.slane %v7007, %v7010
  %v7028 = vunpack.c.l.b16 %v6991
  %v7029 = vunpack.c.l.b16 %v6992
  %v7030 = vunpack.c.l.b16 %v6993
  %v7031 = vunpack.c.l.b16 %v6994
  %v7032 = vunpack.c.l.b16 %v6995
  %v7033 = vunpack.c.l.b16 %v6996
  %v7034 = vunpack.c.l.b16 %v6997
  %v7035 = vunpack.c.l.b16 %v6998
  %v7036 = vunpack.c.l.b16 %v6999
  %v7037 = vunpack.c.l.b16 %v7000
  %v7038 = vunpack.c.l.b16 %v7001
  %v7039 = vunpack.c.l.b16 %v7002
  %v7040 = vunpack.c.l.b16 %v7003
  %v7041 = vunpack.c.l.b16 %v7004
  %v7042 = vunpack.c.l.b16 %v7005
  %v7043 = vunpack.c.l.b16 %v7006
  %v7044 = vpack.c.b16 %v7029, %v7028
  %v7045 = vpack.c.b16 %v7031, %v7030
  %v7046 = vpack.c.b16 %v7033, %v7032
  %v7047 = vpack.c.b16 %v7035, %v7034
  %v7048 = vpack.c.b16 %v7037, %v7036
  %v7049 = vpack.c.b16 %v7039, %v7038
  %v7050 = vpack.c.b16 %v7041, %v7040
  %v7051 = vpack.c.b16 %v7043, %v7042
  %7060 = vmatprep.subr.bf16.mxu0 0
  %7061 = vmatpush1.bf16.msra.mxu0 %v7044
  %7062 = vmatprep.subr.bf16.mxu0 0
  %7063 = vmatpush1.bf16.msra.mxu0 %v7045
  %7064 = vmatprep.subr.bf16.mxu0 0
  %7065 = vmatpush1.bf16.msra.mxu0 %v7046
  %7066 = vmatprep.subr.bf16.mxu0 0
  %7067 = vmatpush1.bf16.msra.mxu0 %v7047
  %7068 = vmatprep.subr.bf16.mxu0 0
  %7069 = vmatpush1.bf16.msra.mxu0 %v7048
  %7070 = vmatprep.subr.bf16.mxu0 0
  %7071 = vmatpush1.bf16.msra.mxu0 %v7049
  %7072 = vmatprep.subr.bf16.mxu0 0
  %7073 = vmatpush1.bf16.msra.mxu0 %v7050
  %7074 = vmatprep.subr.bf16.mxu0 0
  %7075 = vmatpush1.bf16.msra.mxu0 %v7051
  %7076 = vmatprep.subr.bf16.mxu0 0
  %7077 = vmatpush1.bf16.msra.mxu0 0
  %7078 = vmatprep.subr.bf16.mxu0 0
  %7079 = vmatpush1.bf16.msra.mxu0 0
  %7080 = vmatprep.subr.bf16.mxu0 0
  %7081 = vmatpush1.bf16.msra.mxu0 0
  %7082 = vmatprep.subr.bf16.mxu0 0
  %7083 = vmatpush1.bf16.msra.mxu0 0
  %7084 = vmatprep.subr.bf16.mxu0 0
  %7085 = vmatpush1.bf16.msra.mxu0 0
  %7086 = vmatprep.subr.bf16.mxu0 0
  %7087 = vmatpush1.bf16.msra.mxu0 0
  %7088 = vmatprep.subr.bf16.mxu0 0
  %7089 = vmatpush1.bf16.msra.mxu0 0
  %7090 = vmatprep.subr.bf16.mxu0 0
  %7091 = vmatpush1.bf16.msra.mxu0 0
  %7092 = vmatprep.mubr.bf16.mxu0 0
  %7093 = vmatmul.mubr.bf16.gmra.mrb[0].mxu0 %v6989
  %v7094 = vpop.f32.mrb[0].mxu0
  %v7095 = vadd.f32 %v7011, %v7094
  %v7096 = vpop.f32.mrb[0].mxu0
  %v7097 = vpop.f32.mrb[0].mxu0
  %v7098 = vpop.f32.mrb[0].mxu0
  %7099 = vdwg.mxu0
  %v7100 = vxor.u32 %v7095, 2147483648
  %v7101 = vmul.f32 %v7100, 1.442695
  %v7102 = vpow.pop %v7101
  %v7103 = vadd.f32 %v7102, 1.0
  %v7104 = vrcp.pop %v7103
  %v7105 = vmul.f32 1.0, %v7104
  %7106 = vst [vmem:[%s7] sm:$0x3] %v7105
  // Predicated region
  $region30: #{forward.1} parent=0 // pred_check
    _
  $region31: #{forward.1} parent=0 // pred_check_branch
    %7108 = sbr.rel (0) target = $region33
  $region32: #{forward.1} parent=0 // pred_region
    _
  $region33: #{forward.1} parent=0 // pred_fallthru
    _
  // Predicated region
  $region34: #{forward.1} parent=0 // pred_check
    _
  $region35: #{forward.1} parent=0 // pred_check_branch
    %7110 = sbr.rel (0) target = $region37
  $region36: #{forward.1} parent=0 // pred_region
    _
  $region37: #{forward.1} parent=0 // pred_fallthru
    _

</llo_original>
